<compile_context>
chip_gen: v6e
topology: v6e:2x2x1
jax: 0.10.0
libtpu: 0.0.40
codegen_flags: <defaults>
</compile_context>

<pallas_src>
import functools
import math

import jax
import jax.numpy as jnp
from jax.experimental import pallas as pl
from jax.experimental.pallas import tpu as pltpu


# ----------------------- static polyphase / tap tables ----------------------
# conv k=4, stride=2, pad=1 (encoder conv2): kernel row i -> (base-grid shift, input parity)
_C2_ROW = ((-1, 1), (0, 0), (0, 1), (1, 0))
# ConvTranspose2d k=4, s=2, p=1 (deconv1): output parity -> ((base shift, kernel i), ...)
_T1_ROW = (((0, 1), (-1, 3)), ((1, 0), (0, 2)))
# deconv2 (input stored as 2x2 parity comps): output phase -> ((in parity, shift, kernel i), ...)
_T2_ROW = (((0, 0, 1), (1, -1, 3)),
           ((0, 0, 2), (1, 0, 0)),
           ((0, 0, 3), (1, 0, 1)),
           ((1, 0, 2), (0, 1, 0)))


def _sidx(du, dv):
  # shift index t for shift (du, dv), du/dv in {-1, 0, 1}; t == 4 is the identity.
  return (du + 1) * 3 + (dv + 1)


# ----------------------------- the fused kernel ------------------------------

def _fused_vqvae_kernel(
    p1_ref, sft_ref,
    w1_ref, b1_ref, w2_ref, b2_ref, w3_ref, b3_ref,
    wr3e_ref, wr1e_ref, wpv_ref, bpv_ref,
    emb_ref, embt_ref, e2_ref,
    wd1_ref, bd1_ref, wr3d_ref, wr1d_ref,
    wt1_ref, bt1_ref, wt2_ref, bt2_ref,
    out_ref, stats_ref,
    *, n_res):
  f32, bf16 = jnp.float32, jnp.bfloat16
  sft = sft_ref[...]                      # (9, mg, mg) bf16 per-image shift matrices

  def expand9(x):
    # x: (mg, C) f32 -> (mg, 9*C) f32.  Column block t = x spatially shifted by
    # (t//3 - 1, t%3 - 1), zero padded, via 0/1 gather matmuls on the MXU.
    xb = x.astype(bf16)
    parts = []
    for t in range(9):
      if t == 4:
        parts.append(x)
      else:
        parts.append(jnp.dot(sft[t], xb, preferred_element_type=f32))
    return jnp.concatenate(parts, axis=-1)

  def gconv(x, w, bias, relu):
    # One fused MXU matmul per conv: (mg, 9*Cin) @ (9*Cin, Nout), f32 accumulation.
    y = jnp.dot(expand9(x).astype(bf16), w, preferred_element_type=f32)
    if bias is not None:
      y = y + bias
    return jnp.maximum(y, 0.0) if relu else y

  def res_stack(x, wr3_ref, wr1_ref):
    # x + conv1x1(relu(conv3x3(relu(x)))) per layer (bias-free), final ReLU.
    for l in range(n_res):
      h = gconv(jnp.maximum(x, 0.0), wr3_ref[l], None, True)
      x = x + jnp.dot(h.astype(bf16), wr1_ref[l], preferred_element_type=f32)
    return jnp.maximum(x, 0.0)

  # ------------------------------- Encoder --------------------------------
  # conv1 (4x4 s2) on host-im2col'd patches, block-diagonal over the 4 parity comps.
  h1 = jnp.dot(p1_ref[...], w1_ref[...], preferred_element_type=f32) + b1_ref[...]
  h1 = jnp.maximum(h1, 0.0)                        # (mg, 4 * nh/2)
  h2 = gconv(h1, w2_ref[...], b2_ref[...], True)   # conv2 (4x4 s2), single fused matmul
  h3 = gconv(h2, w3_ref[...], b3_ref[...], False)  # conv3 (3x3)
  he = res_stack(h3, wr3e_ref, wr1e_ref)

  # ------------------------------ pre-VQ 1x1 -------------------------------
  z = jnp.dot(he.astype(bf16), wpv_ref[...], preferred_element_type=f32) + bpv_ref[...]

  # -------------------------- VectorQuantizer (f32) ------------------------
  z2 = jnp.sum(z * z, axis=1, keepdims=True)
  dist = z2 + e2_ref[...] - 2.0 * jnp.dot(z, embt_ref[...], preferred_element_type=f32)
  kp = dist.shape[1]                               # codebook padded to 128 lanes
  col = jax.lax.broadcasted_iota(jnp.int32, dist.shape, 1)
  min_d = jnp.min(dist, axis=1, keepdims=True)
  idx = jnp.min(jnp.where(dist == min_d, col, kp), axis=1, keepdims=True)
  onehot = (col == idx).astype(f32)                # torch-compatible first argmin
  q = jnp.dot(onehot, emb_ref[...], preferred_element_type=f32)

  # TODO(synk): forward values only; the straight-through estimator and the separate
  # codebook / commitment loss gradient split are not reproduced.
  sse = jnp.sum((q - z) * (q - z), keepdims=True)          # (1, 1) per-image SSE
  counts = jnp.sum(onehot, axis=0, keepdims=True)          # (1, kp) codebook counts
  row = jax.lax.broadcasted_iota(jnp.int32, (2, kp), 0)
  stats_ref[...] = jnp.where(row == 0, counts, sse)        # row0: counts, row1: sse

  # ------------------------------- Decoder --------------------------------
  hd = gconv(q, wd1_ref[...], bd1_ref[...], False)
  hd = res_stack(hd, wr3d_ref, wr1d_ref)
  y1 = gconv(hd, wt1_ref[...], bt1_ref[...], True)             # deconv1: 4 comps fused on N
  out_ref[...] = gconv(y1, wt2_ref[...], bt2_ref[...], False)  # deconv2: 16 phases, lane-dense


# ------------------------- host-side glue / packing --------------------------

def _w_taps_flat(w):
  # Conv2d weight (Cout, Cin, kh, kw) -> (kh*kw*Cin, Cout), rows grouped by tap/shift.
  cout, cin, kh, kw = w.shape
  return jnp.transpose(w, (2, 3, 1, 0)).reshape(kh * kw * cin, cout)


def _pack_conv1(w):
  # First stride-2 conv as one block-diagonal matmul over the 4 output-parity components.
  ch1, cin, kh, kw = w.shape
  k1 = kh * kw * cin
  flat = _w_taps_flat(w)                                   # (k1, ch1)
  out = jnp.zeros((4 * k1, 4 * ch1), jnp.float32)
  for c in range(4):
    out = out.at[c * k1:(c + 1) * k1, c * ch1:(c + 1) * ch1].set(flat)
  return out


def _pack_conv2(w):
  # Second stride-2 conv: rows indexed (shift t, input-parity component, cin).
  nh, ch1, _, _ = w.shape
  out = jnp.zeros((9 * 4 * ch1, nh), jnp.float32)
  for i in range(4):
    dq, p = _C2_ROW[i]
    for j in range(4):
      dr, s = _C2_ROW[j]
      r0 = _sidx(dq, dr) * (4 * ch1) + (2 * p + s) * ch1
      out = out.at[r0:r0 + ch1, :].add(jnp.transpose(w[:, :, i, j]))
  return out


def _pack_t1(w):
  # ConvTranspose2d weight (Cin, Cout, 4, 4): 4 output parity comps fused along N.
  cin, cout, _, _ = w.shape
  out = jnp.zeros((9 * cin, 4 * cout), jnp.float32)
  for p in range(2):
    for s in range(2):
      c0 = (2 * p + s) * cout
      for (dr, i) in _T1_ROW[p]:
        for (dc, j) in _T1_ROW[s]:
          r0 = _sidx(dr, dc) * cin
          out = out.at[r0:r0 + cin, c0:c0 + cout].add(w[:, :, i, j])
  return out


def _pack_t2(w, outw):
  # ConvTranspose2d weight (Cin, Cout, 4, 4), input stored as 4 parity comps:
  # 16 output phases fused along N, padded to `outw` lanes.
  cin, cout, _, _ = w.shape
  out = jnp.zeros((9 * 4 * cin, outw), jnp.float32)
  for phi in range(4):
    for psi in range(4):
      c0 = (4 * phi + psi) * cout
      for (pr, dr, i) in _T2_ROW[phi]:
        for (pc, dc, j) in _T2_ROW[psi]:
          r0 = _sidx(dr, dc) * (4 * cin) + (2 * pr + pc) * cin
          out = out.at[r0:r0 + cin, c0:c0 + cout].add(w[:, :, i, j])
  return out


def _shift_mats(gh, gw, dtype):
  # 9 per-image 0/1 gather matrices (mg, mg): shift (du, dv), zero padded at borders.
  mg = gh * gw
  r = jnp.arange(mg)
  uu, vv = r // gw, r % gw
  mats = []
  for du in (-1, 0, 1):
    for dv in (-1, 0, 1):
      u2, v2 = uu + du, vv + dv
      valid = (u2 >= 0) & (u2 < gh) & (v2 >= 0) & (v2 < gw)
      src = jnp.clip(u2, 0, gh - 1) * gw + jnp.clip(v2, 0, gw - 1)
      mats.append(((jnp.arange(mg)[None, :] == src[:, None])
                   & valid[:, None]).astype(dtype))
  return jnp.stack(mats, 0)


def _conv1_patches(x_nhwc, kh, kw, stride, pad):
  # im2col of the raw model input only (plain-JAX glue, one-shot, tiny).
  xp = jnp.pad(x_nhwc, ((0, 0), (pad, pad), (pad, pad), (0, 0)))
  b, hp, wp, _ = xp.shape
  oh, ow = (hp - kh) // stride + 1, (wp - kw) // stride + 1
  cols = [xp[:, i:i + stride * oh:stride, j:j + stride * ow:stride, :]
          for i in range(kh) for j in range(kw)]
  return jnp.concatenate(cols, axis=-1)            # (B, oh, ow, kh*kw*Cin)


def _tile_bias(b, reps, pad_to=None):
  v = jnp.tile(b.reshape(1, -1).astype(jnp.float32), (1, reps))
  if pad_to is not None and v.shape[1] < pad_to:
    v = jnp.concatenate([v, jnp.zeros((1, pad_to - v.shape[1]), jnp.float32)], axis=1)
  return v


# ----------------------------- parameters ------------------------------------

def _conv_init(key, cout, cin, kh, kw):
  fan_in = cin * kh * kw
  bound = 1.0 / math.sqrt(fan_in)
  kw_, kb_ = jax.random.split(key)
  w = jax.random.uniform(kw_, (cout, cin, kh, kw), jnp.float32, -bound, bound)
  b = jax.random.uniform(kb_, (cout,), jnp.float32, -bound, bound)
  return w, b


def build_params(key, in_channels, num_hiddens, num_residual_layers,
                 num_residual_hiddens, num_embeddings, embedding_dim):
  keys = iter(jax.random.split(key, 64))
  p = {}
  # ----- Encoder_feature -----
  p["e_conv1_w"], p["e_conv1_b"] = _conv_init(next(keys), num_hiddens // 2, in_channels, 4, 4)
  p["e_conv2_w"], p["e_conv2_b"] = _conv_init(next(keys), num_hiddens, num_hiddens // 2, 4, 4)
  p["e_conv3_w"], p["e_conv3_b"] = _conv_init(next(keys), num_hiddens, num_hiddens, 3, 3)
  p["e_res"] = []
  for _ in range(num_residual_layers):
    w3, _ = _conv_init(next(keys), num_residual_hiddens, num_hiddens, 3, 3)
    w1, _ = _conv_init(next(keys), num_hiddens, num_residual_hiddens, 1, 1)
    p["e_res"].append((w3, w1))
  # ----- pre-VQ 1x1 conv -----
  p["pre_vq_w"], p["pre_vq_b"] = _conv_init(next(keys), embedding_dim, num_hiddens, 1, 1)
  # ----- VectorQuantizer codebook (uniform(-1/K, 1/K) as in reference) -----
  p["vq_embedding"] = jax.random.uniform(
      next(keys), (num_embeddings, embedding_dim), jnp.float32,
      -1.0 / num_embeddings, 1.0 / num_embeddings)
  # ----- Decoder_feature -----
  p["d_conv1_w"], p["d_conv1_b"] = _conv_init(next(keys), num_hiddens, embedding_dim, 3, 3)
  p["d_res"] = []
  for _ in range(num_residual_layers):
    w3, _ = _conv_init(next(keys), num_residual_hiddens, num_hiddens, 3, 3)
    w1, _ = _conv_init(next(keys), num_hiddens, num_residual_hiddens, 1, 1)
    p["d_res"].append((w3, w1))
  # ConvTranspose2d weights stored PyTorch-style as (Cin, Cout, kh, kw)
  wt1, bt1 = _conv_init(next(keys), num_hiddens // 2, num_hiddens, 4, 4)
  p["d_convt1_w"], p["d_convt1_b"] = jnp.transpose(wt1, (1, 0, 2, 3)), bt1
  # TODO(synk): Decoder_feature source not provided; final transposed conv assumed to
  # reconstruct `in_channels` feature channels.
  wt2, bt2 = _conv_init(next(keys), in_channels, num_hiddens // 2, 4, 4)
  p["d_convt2_w"], p["d_convt2_b"] = jnp.transpose(wt2, (1, 0, 2, 3)), bt2
  return p


# ----------------------------- forward ---------------------------------------

def model_feature_forward(params, x_nchw, commitment_cost, output_padding):
  if output_padding != 0:
    # TODO(synk): polyphase tables assume output_padding == 0 (the only consistent setting
    # for a 16 -> 8 -> 4 -> 8 -> 16 spatial round trip).
    raise NotImplementedError("output_padding != 0 is not supported")

  f32, bf16 = jnp.float32, jnp.bfloat16
  bsz, _cin, hh, ww = x_nchw.shape
  assert hh % 4 == 0 and ww % 4 == 0, "spatial dims must be divisible by 4"
  gh, gw = hh // 4, ww // 4
  mg = gh * gw

  emb = params["vq_embedding"]
  num_k, emb_d = emb.shape
  kp = ((num_k + 127) // 128) * 128
  cout = params["d_convt2_w"].shape[1]
  outw = ((16 * cout + 127) // 128) * 128
  n_res = len(params["e_res"])

  # ---------------- host-side glue: im2col of the raw input ----------------
  x = jnp.transpose(x_nchw, (0, 2, 3, 1)).astype(f32)          # NCHW -> NHWC
  patches = _conv1_patches(x, 4, 4, 2, 1)                      # (B, 2gh, 2gw, k1)
  k1 = patches.shape[-1]
  p1 = patches.reshape(bsz, gh, 2, gw, 2, k1).transpose(0, 1, 3, 2, 4, 5)
  p1 = p1.reshape(bsz, mg, 4 * k1).astype(bf16)                # parity comps along columns

  sft = _shift_mats(gh, gw, bf16)                              # (9, mg, mg) per-image

  # ---------------- weight packing (structured, MXU-friendly) --------------
  w1 = _pack_conv1(params["e_conv1_w"]).astype(bf16)
  b1 = _tile_bias(params["e_conv1_b"], 4)
  w2 = _pack_conv2(params["e_conv2_w"]).astype(bf16)
  b2 = _tile_bias(params["e_conv2_b"], 1)
  w3 = _w_taps_flat(params["e_conv3_w"]).astype(bf16)
  b3 = _tile_bias(params["e_conv3_b"], 1)
  wr3e = jnp.stack([_w_taps_flat(a) for (a, _) in params["e_res"]], 0).astype(bf16)
  wr1e = jnp.stack([_w_taps_flat(b) for (_, b) in params["e_res"]], 0).astype(bf16)
  wpv = _w_taps_flat(params["pre_vq_w"]).astype(bf16)
  bpv = _tile_bias(params["pre_vq_b"], 1)
  e_f32 = emb.astype(f32)
  e_pad = jnp.zeros((kp, emb_d), f32).at[:num_k].set(e_f32)
  e_pad_t = jnp.transpose(e_pad)
  e2_pad = jnp.full((1, kp), 1e30, f32).at[0, :num_k].set(jnp.sum(e_f32 * e_f32, axis=1))
  wd1 = _w_taps_flat(params["d_conv1_w"]).astype(bf16)
  bd1 = _tile_bias(params["d_conv1_b"], 1)
  wr3d = jnp.stack([_w_taps_flat(a) for (a, _) in params["d_res"]], 0).astype(bf16)
  wr1d = jnp.stack([_w_taps_flat(b) for (_, b) in params["d_res"]], 0).astype(bf16)
  wt1 = _pack_t1(params["d_convt1_w"]).astype(bf16)
  bt1 = _tile_bias(params["d_convt1_b"], 4)
  wt2 = _pack_t2(params["d_convt2_w"], outw).astype(bf16)
  bt2 = _tile_bias(params["d_convt2_b"], 16, pad_to=outw)

  operands = (p1, sft,
              w1, b1, w2, b2, w3, b3,
              wr3e, wr1e, wpv, bpv,
              e_pad, e_pad_t, e2_pad,
              wd1, bd1, wr3d, wr1d,
              wt1, bt1, wt2, bt2)

  def _bcast_spec(shape):
    nd = len(shape)
    return pl.BlockSpec(shape, lambda b: (0,) * nd)

  in_specs = ([pl.BlockSpec((None, mg, 4 * k1), lambda b: (b, 0, 0))]
              + [_bcast_spec(a.shape) for a in operands[1:]])

  kernel = functools.partial(_fused_vqvae_kernel, n_res=n_res)

  out, stats = pl.pallas_call(
      kernel,
      grid=(bsz,),
      in_specs=in_specs,
      out_specs=(pl.BlockSpec((None, mg, outw), lambda b: (b, 0, 0)),
                 pl.BlockSpec((None, 2, kp), lambda b: (b, 0, 0))),
      out_shape=(jax.ShapeDtypeStruct((bsz, mg, outw), f32),
                 jax.ShapeDtypeStruct((bsz, 2, kp), f32)),
      compiler_params=pltpu.CompilerParams(
          dimension_semantics=("parallel",)),
  )(*operands)

  # depth-to-space on the lane-dense kernel output (layout plumbing only).
  y = out[:, :, :16 * cout].reshape(bsz, gh, gw, 4, 4, cout)
  y = y.transpose(0, 1, 3, 2, 4, 5).reshape(bsz, 4 * gh, 4 * gw, cout)
  feature_recon = jnp.transpose(y, (0, 3, 1, 2))

  # tiny cross-batch reductions for loss / perplexity (scalars).
  total_rows = bsz * mg
  counts = jnp.sum(stats[:, 0, :], axis=0)[:num_k]
  avg = counts / total_rows
  perplexity = jnp.exp(-jnp.sum(avg * jnp.log(avg + 1e-10)))
  sse = jnp.sum(stats[:, 1, 0])
  mse = sse / (total_rows * emb_d)
  loss = (1.0 + commitment_cost) * mse
  return loss, feature_recon, perplexity


# ----------------------------- main ------------------------------------------

if __name__ == "__main__":
  in_channels = 4
  num_hiddens = 32
  num_residual_layers = 2
  num_residual_hiddens = 8
  num_embeddings = 16
  embedding_dim = 8
  output_padding = 0
  commitment_cost = 0.25

  key = jax.random.PRNGKey(0)
  k_x, k_p = jax.random.split(key)
  x = jax.random.normal(k_x, (2, in_channels, 16, 16), jnp.float32)   # NCHW input
  params = build_params(k_p, in_channels, num_hiddens, num_residual_layers,
                        num_residual_hiddens, num_embeddings, embedding_dim)

  fwd = jax.jit(functools.partial(model_feature_forward,
                                  commitment_cost=commitment_cost,
                                  output_padding=output_padding))
  loss, recon, perplexity = fwd(params, x)
  jax.block_until_ready((loss, recon, perplexity))

  assert recon.shape == (2, in_channels, 16, 16), recon.shape
  assert loss.shape == () and perplexity.shape == ()
  assert jnp.isfinite(loss) and jnp.isfinite(perplexity) and jnp.all(jnp.isfinite(recon))
  print("KERNEL_OK")
</pallas_src>

<mosaic_0001>
module attributes {stable_mosaic.version = 11 : i64} {
  func.func @_fused_vqvae_kernel(%arg0: i32, %arg1: memref<1x16x256xbf16, #tpu.memory_space<vmem>>, %arg2: memref<9x16x16xbf16, #tpu.memory_space<vmem>>, %arg3: memref<256x64xbf16, #tpu.memory_space<vmem>>, %arg4: memref<1x64xf32, #tpu.memory_space<vmem>>, %arg5: memref<576x32xbf16, #tpu.memory_space<vmem>>, %arg6: memref<1x32xf32, #tpu.memory_space<vmem>>, %arg7: memref<288x32xbf16, #tpu.memory_space<vmem>>, %arg8: memref<1x32xf32, #tpu.memory_space<vmem>>, %arg9: memref<2x288x8xbf16, #tpu.memory_space<vmem>>, %arg10: memref<2x8x32xbf16, #tpu.memory_space<vmem>>, %arg11: memref<32x8xbf16, #tpu.memory_space<vmem>>, %arg12: memref<1x8xf32, #tpu.memory_space<vmem>>, %arg13: memref<128x8xf32, #tpu.memory_space<vmem>>, %arg14: memref<8x128xf32, #tpu.memory_space<vmem>>, %arg15: memref<1x128xf32, #tpu.memory_space<vmem>>, %arg16: memref<72x32xbf16, #tpu.memory_space<vmem>>, %arg17: memref<1x32xf32, #tpu.memory_space<vmem>>, %arg18: memref<2x288x8xbf16, #tpu.memory_space<vmem>>, %arg19: memref<2x8x32xbf16, #tpu.memory_space<vmem>>, %arg20: memref<288x64xbf16, #tpu.memory_space<vmem>>, %arg21: memref<1x64xf32, #tpu.memory_space<vmem>>, %arg22: memref<576x128xbf16, #tpu.memory_space<vmem>>, %arg23: memref<1x128xf32, #tpu.memory_space<vmem>>, %arg24: memref<1x16x128xf32, #tpu.memory_space<vmem>>, %arg25: memref<1x2x128xf32, #tpu.memory_space<vmem>>) attributes {dimension_semantics = [#tpu.dimension_semantics<parallel>], iteration_bounds = array<i64: 2>, scalar_prefetch = 0 : i64, scratch_operands = 0 : i64, tpu.core_type = #tpu.core_type<tc>, window_params = [{transform_indices = @transform_0, window_bounds = array<i64: 1, 16, 256>}, {pipeline_mode = #tpu.pipeline_mode<synchronous>, transform_indices = @transform_1, window_bounds = array<i64: 9, 16, 16>}, {pipeline_mode = #tpu.pipeline_mode<synchronous>, transform_indices = @transform_2, window_bounds = array<i64: 256, 64>}, {pipeline_mode = #tpu.pipeline_mode<synchronous>, transform_indices = @transform_3, window_bounds = array<i64: 1, 64>}, {pipeline_mode = #tpu.pipeline_mode<synchronous>, transform_indices = @transform_4, window_bounds = array<i64: 576, 32>}, {pipeline_mode = #tpu.pipeline_mode<synchronous>, transform_indices = @transform_5, window_bounds = array<i64: 1, 32>}, {pipeline_mode = #tpu.pipeline_mode<synchronous>, transform_indices = @transform_6, window_bounds = array<i64: 288, 32>}, {pipeline_mode = #tpu.pipeline_mode<synchronous>, transform_indices = @transform_7, window_bounds = array<i64: 1, 32>}, {pipeline_mode = #tpu.pipeline_mode<synchronous>, transform_indices = @transform_8, window_bounds = array<i64: 2, 288, 8>}, {pipeline_mode = #tpu.pipeline_mode<synchronous>, transform_indices = @transform_9, window_bounds = array<i64: 2, 8, 32>}, {pipeline_mode = #tpu.pipeline_mode<synchronous>, transform_indices = @transform_10, window_bounds = array<i64: 32, 8>}, {pipeline_mode = #tpu.pipeline_mode<synchronous>, transform_indices = @transform_11, window_bounds = array<i64: 1, 8>}, {pipeline_mode = #tpu.pipeline_mode<synchronous>, transform_indices = @transform_12, window_bounds = array<i64: 128, 8>}, {pipeline_mode = #tpu.pipeline_mode<synchronous>, transform_indices = @transform_13, window_bounds = array<i64: 8, 128>}, {pipeline_mode = #tpu.pipeline_mode<synchronous>, transform_indices = @transform_14, window_bounds = array<i64: 1, 128>}, {pipeline_mode = #tpu.pipeline_mode<synchronous>, transform_indices = @transform_15, window_bounds = array<i64: 72, 32>}, {pipeline_mode = #tpu.pipeline_mode<synchronous>, transform_indices = @transform_16, window_bounds = array<i64: 1, 32>}, {pipeline_mode = #tpu.pipeline_mode<synchronous>, transform_indices = @transform_17, window_bounds = array<i64: 2, 288, 8>}, {pipeline_mode = #tpu.pipeline_mode<synchronous>, transform_indices = @transform_18, window_bounds = array<i64: 2, 8, 32>}, {pipeline_mode = #tpu.pipeline_mode<synchronous>, transform_indices = @transform_19, window_bounds = array<i64: 288, 64>}, {pipeline_mode = #tpu.pipeline_mode<synchronous>, transform_indices = @transform_20, window_bounds = array<i64: 1, 64>}, {pipeline_mode = #tpu.pipeline_mode<synchronous>, transform_indices = @transform_21, window_bounds = array<i64: 576, 128>}, {pipeline_mode = #tpu.pipeline_mode<synchronous>, transform_indices = @transform_22, window_bounds = array<i64: 1, 128>}, {transform_indices = @transform_23, window_bounds = array<i64: 1, 16, 128>}, {transform_indices = @transform_24, window_bounds = array<i64: 1, 2, 128>}]} {
    %c0 = arith.constant 0 : index
    %c0_0 = arith.constant 0 : index
    %c0_1 = arith.constant 0 : index
    %0 = vector.load %arg2[%c0, %c0_0, %c0_1] : memref<9x16x16xbf16, #tpu.memory_space<vmem>>, vector<9x16x16xbf16>
    %c0_2 = arith.constant 0 : index
    %c0_3 = arith.constant 0 : index
    %c0_4 = arith.constant 0 : index
    %1 = vector.load %arg1[%c0_2, %c0_3, %c0_4] : memref<1x16x256xbf16, #tpu.memory_space<vmem>>, vector<1x16x256xbf16>
    %2 = vector.shape_cast %1 : vector<1x16x256xbf16> to vector<16x256xbf16>
    %c0_5 = arith.constant 0 : index
    %c0_6 = arith.constant 0 : index
    %3 = vector.load %arg3[%c0_5, %c0_6] : memref<256x64xbf16, #tpu.memory_space<vmem>>, vector<256x64xbf16>
    %cst = arith.constant dense<0.000000e+00> : vector<16x64xf32>
    %4 = tpu.matmul %2, %3, %cst {dimension_numbers = #tpu.dot_dimension_numbers<[1], [0], [0], [1], [0, 0, 1, 1], [], []>} : vector<16x256xbf16>, vector<256x64xbf16>, vector<16x64xf32> -> vector<16x64xf32>
    %c0_7 = arith.constant 0 : index
    %c0_8 = arith.constant 0 : index
    %5 = vector.load %arg4[%c0_7, %c0_8] : memref<1x64xf32, #tpu.memory_space<vmem>>, vector<1x64xf32>
    %6 = vector.broadcast %5 : vector<1x64xf32> to vector<16x64xf32>
    %7 = arith.addf %4, %6 : vector<16x64xf32>
    %cst_9 = arith.constant 0.000000e+00 : f32
    %8 = vector.broadcast %cst_9 : f32 to vector<16x64xf32>
    %9 = arith.maximumf %7, %8 : vector<16x64xf32>
    %c0_10 = arith.constant 0 : index
    %c0_11 = arith.constant 0 : index
    %10 = vector.load %arg5[%c0_10, %c0_11] : memref<576x32xbf16, #tpu.memory_space<vmem>>, vector<576x32xbf16>
    %c0_12 = arith.constant 0 : index
    %c0_13 = arith.constant 0 : index
    %11 = vector.load %arg6[%c0_12, %c0_13] : memref<1x32xf32, #tpu.memory_space<vmem>>, vector<1x32xf32>
    %12 = arith.truncf %9 : vector<16x64xf32> to vector<16x64xbf16>
    %13 = vector.extract_strided_slice %0 {offsets = [0, 0, 0], sizes = [1, 16, 16], strides = [1, 1, 1]} : vector<9x16x16xbf16> to vector<1x16x16xbf16>
    %14 = vector.shape_cast %13 : vector<1x16x16xbf16> to vector<16x16xbf16>
    %cst_14 = arith.constant dense<0.000000e+00> : vector<16x64xf32>
    %15 = tpu.matmul %14, %12, %cst_14 {dimension_numbers = #tpu.dot_dimension_numbers<[1], [0], [0], [1], [0, 0, 1, 1], [], []>} : vector<16x16xbf16>, vector<16x64xbf16>, vector<16x64xf32> -> vector<16x64xf32>
    %16 = vector.extract_strided_slice %0 {offsets = [1, 0, 0], sizes = [1, 16, 16], strides = [1, 1, 1]} : vector<9x16x16xbf16> to vector<1x16x16xbf16>
    %17 = vector.shape_cast %16 : vector<1x16x16xbf16> to vector<16x16xbf16>
    %cst_15 = arith.constant dense<0.000000e+00> : vector<16x64xf32>
    %18 = tpu.matmul %17, %12, %cst_15 {dimension_numbers = #tpu.dot_dimension_numbers<[1], [0], [0], [1], [0, 0, 1, 1], [], []>} : vector<16x16xbf16>, vector<16x64xbf16>, vector<16x64xf32> -> vector<16x64xf32>
    %19 = vector.extract_strided_slice %0 {offsets = [2, 0, 0], sizes = [1, 16, 16], strides = [1, 1, 1]} : vector<9x16x16xbf16> to vector<1x16x16xbf16>
    %20 = vector.shape_cast %19 : vector<1x16x16xbf16> to vector<16x16xbf16>
    %cst_16 = arith.constant dense<0.000000e+00> : vector<16x64xf32>
    %21 = tpu.matmul %20, %12, %cst_16 {dimension_numbers = #tpu.dot_dimension_numbers<[1], [0], [0], [1], [0, 0, 1, 1], [], []>} : vector<16x16xbf16>, vector<16x64xbf16>, vector<16x64xf32> -> vector<16x64xf32>
    %22 = vector.extract_strided_slice %0 {offsets = [3, 0, 0], sizes = [1, 16, 16], strides = [1, 1, 1]} : vector<9x16x16xbf16> to vector<1x16x16xbf16>
    %23 = vector.shape_cast %22 : vector<1x16x16xbf16> to vector<16x16xbf16>
    %cst_17 = arith.constant dense<0.000000e+00> : vector<16x64xf32>
    %24 = tpu.matmul %23, %12, %cst_17 {dimension_numbers = #tpu.dot_dimension_numbers<[1], [0], [0], [1], [0, 0, 1, 1], [], []>} : vector<16x16xbf16>, vector<16x64xbf16>, vector<16x64xf32> -> vector<16x64xf32>
    %25 = vector.extract_strided_slice %0 {offsets = [5, 0, 0], sizes = [1, 16, 16], strides = [1, 1, 1]} : vector<9x16x16xbf16> to vector<1x16x16xbf16>
    %26 = vector.shape_cast %25 : vector<1x16x16xbf16> to vector<16x16xbf16>
    %cst_18 = arith.constant dense<0.000000e+00> : vector<16x64xf32>
    %27 = tpu.matmul %26, %12, %cst_18 {dimension_numbers = #tpu.dot_dimension_numbers<[1], [0], [0], [1], [0, 0, 1, 1], [], []>} : vector<16x16xbf16>, vector<16x64xbf16>, vector<16x64xf32> -> vector<16x64xf32>
    %28 = vector.extract_strided_slice %0 {offsets = [6, 0, 0], sizes = [1, 16, 16], strides = [1, 1, 1]} : vector<9x16x16xbf16> to vector<1x16x16xbf16>
    %29 = vector.shape_cast %28 : vector<1x16x16xbf16> to vector<16x16xbf16>
    %cst_19 = arith.constant dense<0.000000e+00> : vector<16x64xf32>
    %30 = tpu.matmul %29, %12, %cst_19 {dimension_numbers = #tpu.dot_dimension_numbers<[1], [0], [0], [1], [0, 0, 1, 1], [], []>} : vector<16x16xbf16>, vector<16x64xbf16>, vector<16x64xf32> -> vector<16x64xf32>
    %31 = vector.extract_strided_slice %0 {offsets = [7, 0, 0], sizes = [1, 16, 16], strides = [1, 1, 1]} : vector<9x16x16xbf16> to vector<1x16x16xbf16>
    %32 = vector.shape_cast %31 : vector<1x16x16xbf16> to vector<16x16xbf16>
    %cst_20 = arith.constant dense<0.000000e+00> : vector<16x64xf32>
    %33 = tpu.matmul %32, %12, %cst_20 {dimension_numbers = #tpu.dot_dimension_numbers<[1], [0], [0], [1], [0, 0, 1, 1], [], []>} : vector<16x16xbf16>, vector<16x64xbf16>, vector<16x64xf32> -> vector<16x64xf32>
    %34 = vector.extract_strided_slice %0 {offsets = [8, 0, 0], sizes = [1, 16, 16], strides = [1, 1, 1]} : vector<9x16x16xbf16> to vector<1x16x16xbf16>
    %35 = vector.shape_cast %34 : vector<1x16x16xbf16> to vector<16x16xbf16>
    %cst_21 = arith.constant dense<0.000000e+00> : vector<16x64xf32>
    %36 = tpu.matmul %35, %12, %cst_21 {dimension_numbers = #tpu.dot_dimension_numbers<[1], [0], [0], [1], [0, 0, 1, 1], [], []>} : vector<16x16xbf16>, vector<16x64xbf16>, vector<16x64xf32> -> vector<16x64xf32>
    %37 = tpu.concatenate %15, %18, %21, %24, %9, %27, %30, %33, %36 in 1 : vector<16x64xf32>, vector<16x64xf32>, vector<16x64xf32>, vector<16x64xf32>, vector<16x64xf32>, vector<16x64xf32>, vector<16x64xf32>, vector<16x64xf32>, vector<16x64xf32> -> vector<16x576xf32>
    %38 = arith.truncf %37 : vector<16x576xf32> to vector<16x576xbf16>
    %cst_22 = arith.constant dense<0.000000e+00> : vector<16x32xf32>
    %39 = tpu.matmul %38, %10, %cst_22 {dimension_numbers = #tpu.dot_dimension_numbers<[1], [0], [0], [1], [0, 0, 1, 1], [], []>} : vector<16x576xbf16>, vector<576x32xbf16>, vector<16x32xf32> -> vector<16x32xf32>
    %40 = vector.broadcast %11 : vector<1x32xf32> to vector<16x32xf32>
    %41 = arith.addf %39, %40 : vector<16x32xf32>
    %cst_23 = arith.constant 0.000000e+00 : f32
    %42 = vector.broadcast %cst_23 : f32 to vector<16x32xf32>
    %43 = arith.maximumf %41, %42 : vector<16x32xf32>
    %c0_24 = arith.constant 0 : index
    %c0_25 = arith.constant 0 : index
    %44 = vector.load %arg7[%c0_24, %c0_25] : memref<288x32xbf16, #tpu.memory_space<vmem>>, vector<288x32xbf16>
    %c0_26 = arith.constant 0 : index
    %c0_27 = arith.constant 0 : index
    %45 = vector.load %arg8[%c0_26, %c0_27] : memref<1x32xf32, #tpu.memory_space<vmem>>, vector<1x32xf32>
    %46 = arith.truncf %43 : vector<16x32xf32> to vector<16x32xbf16>
    %47 = vector.extract_strided_slice %0 {offsets = [0, 0, 0], sizes = [1, 16, 16], strides = [1, 1, 1]} : vector<9x16x16xbf16> to vector<1x16x16xbf16>
    %48 = vector.shape_cast %47 : vector<1x16x16xbf16> to vector<16x16xbf16>
    %cst_28 = arith.constant dense<0.000000e+00> : vector<16x32xf32>
    %49 = tpu.matmul %48, %46, %cst_28 {dimension_numbers = #tpu.dot_dimension_numbers<[1], [0], [0], [1], [0, 0, 1, 1], [], []>} : vector<16x16xbf16>, vector<16x32xbf16>, vector<16x32xf32> -> vector<16x32xf32>
    %50 = vector.extract_strided_slice %0 {offsets = [1, 0, 0], sizes = [1, 16, 16], strides = [1, 1, 1]} : vector<9x16x16xbf16> to vector<1x16x16xbf16>
    %51 = vector.shape_cast %50 : vector<1x16x16xbf16> to vector<16x16xbf16>
    %cst_29 = arith.constant dense<0.000000e+00> : vector<16x32xf32>
    %52 = tpu.matmul %51, %46, %cst_29 {dimension_numbers = #tpu.dot_dimension_numbers<[1], [0], [0], [1], [0, 0, 1, 1], [], []>} : vector<16x16xbf16>, vector<16x32xbf16>, vector<16x32xf32> -> vector<16x32xf32>
    %53 = vector.extract_strided_slice %0 {offsets = [2, 0, 0], sizes = [1, 16, 16], strides = [1, 1, 1]} : vector<9x16x16xbf16> to vector<1x16x16xbf16>
    %54 = vector.shape_cast %53 : vector<1x16x16xbf16> to vector<16x16xbf16>
    %cst_30 = arith.constant dense<0.000000e+00> : vector<16x32xf32>
    %55 = tpu.matmul %54, %46, %cst_30 {dimension_numbers = #tpu.dot_dimension_numbers<[1], [0], [0], [1], [0, 0, 1, 1], [], []>} : vector<16x16xbf16>, vector<16x32xbf16>, vector<16x32xf32> -> vector<16x32xf32>
    %56 = vector.extract_strided_slice %0 {offsets = [3, 0, 0], sizes = [1, 16, 16], strides = [1, 1, 1]} : vector<9x16x16xbf16> to vector<1x16x16xbf16>
    %57 = vector.shape_cast %56 : vector<1x16x16xbf16> to vector<16x16xbf16>
    %cst_31 = arith.constant dense<0.000000e+00> : vector<16x32xf32>
    %58 = tpu.matmul %57, %46, %cst_31 {dimension_numbers = #tpu.dot_dimension_numbers<[1], [0], [0], [1], [0, 0, 1, 1], [], []>} : vector<16x16xbf16>, vector<16x32xbf16>, vector<16x32xf32> -> vector<16x32xf32>
    %59 = vector.extract_strided_slice %0 {offsets = [5, 0, 0], sizes = [1, 16, 16], strides = [1, 1, 1]} : vector<9x16x16xbf16> to vector<1x16x16xbf16>
    %60 = vector.shape_cast %59 : vector<1x16x16xbf16> to vector<16x16xbf16>
    %cst_32 = arith.constant dense<0.000000e+00> : vector<16x32xf32>
    %61 = tpu.matmul %60, %46, %cst_32 {dimension_numbers = #tpu.dot_dimension_numbers<[1], [0], [0], [1], [0, 0, 1, 1], [], []>} : vector<16x16xbf16>, vector<16x32xbf16>, vector<16x32xf32> -> vector<16x32xf32>
    %62 = vector.extract_strided_slice %0 {offsets = [6, 0, 0], sizes = [1, 16, 16], strides = [1, 1, 1]} : vector<9x16x16xbf16> to vector<1x16x16xbf16>
    %63 = vector.shape_cast %62 : vector<1x16x16xbf16> to vector<16x16xbf16>
    %cst_33 = arith.constant dense<0.000000e+00> : vector<16x32xf32>
    %64 = tpu.matmul %63, %46, %cst_33 {dimension_numbers = #tpu.dot_dimension_numbers<[1], [0], [0], [1], [0, 0, 1, 1], [], []>} : vector<16x16xbf16>, vector<16x32xbf16>, vector<16x32xf32> -> vector<16x32xf32>
    %65 = vector.extract_strided_slice %0 {offsets = [7, 0, 0], sizes = [1, 16, 16], strides = [1, 1, 1]} : vector<9x16x16xbf16> to vector<1x16x16xbf16>
    %66 = vector.shape_cast %65 : vector<1x16x16xbf16> to vector<16x16xbf16>
    %cst_34 = arith.constant dense<0.000000e+00> : vector<16x32xf32>
    %67 = tpu.matmul %66, %46, %cst_34 {dimension_numbers = #tpu.dot_dimension_numbers<[1], [0], [0], [1], [0, 0, 1, 1], [], []>} : vector<16x16xbf16>, vector<16x32xbf16>, vector<16x32xf32> -> vector<16x32xf32>
    %68 = vector.extract_strided_slice %0 {offsets = [8, 0, 0], sizes = [1, 16, 16], strides = [1, 1, 1]} : vector<9x16x16xbf16> to vector<1x16x16xbf16>
    %69 = vector.shape_cast %68 : vector<1x16x16xbf16> to vector<16x16xbf16>
    %cst_35 = arith.constant dense<0.000000e+00> : vector<16x32xf32>
    %70 = tpu.matmul %69, %46, %cst_35 {dimension_numbers = #tpu.dot_dimension_numbers<[1], [0], [0], [1], [0, 0, 1, 1], [], []>} : vector<16x16xbf16>, vector<16x32xbf16>, vector<16x32xf32> -> vector<16x32xf32>
    %71 = tpu.concatenate %49, %52, %55, %58, %43, %61, %64, %67, %70 in 1 : vector<16x32xf32>, vector<16x32xf32>, vector<16x32xf32>, vector<16x32xf32>, vector<16x32xf32>, vector<16x32xf32>, vector<16x32xf32>, vector<16x32xf32>, vector<16x32xf32> -> vector<16x288xf32>
    %72 = arith.truncf %71 : vector<16x288xf32> to vector<16x288xbf16>
    %cst_36 = arith.constant dense<0.000000e+00> : vector<16x32xf32>
    %73 = tpu.matmul %72, %44, %cst_36 {dimension_numbers = #tpu.dot_dimension_numbers<[1], [0], [0], [1], [0, 0, 1, 1], [], []>} : vector<16x288xbf16>, vector<288x32xbf16>, vector<16x32xf32> -> vector<16x32xf32>
    %74 = vector.broadcast %45 : vector<1x32xf32> to vector<16x32xf32>
    %75 = arith.addf %73, %74 : vector<16x32xf32>
    %cst_37 = arith.constant 0.000000e+00 : f32
    %76 = vector.broadcast %cst_37 : f32 to vector<16x32xf32>
    %77 = arith.maximumf %75, %76 : vector<16x32xf32>
    %c0_38 = arith.constant 0 : index
    %c0_39 = arith.constant 0 : index
    %c0_40 = arith.constant 0 : index
    %78 = vector.load %arg9[%c0_38, %c0_39, %c0_40] : memref<2x288x8xbf16, #tpu.memory_space<vmem>>, vector<1x288x8xbf16>
    %79 = vector.shape_cast %78 : vector<1x288x8xbf16> to vector<288x8xbf16>
    %80 = arith.truncf %77 : vector<16x32xf32> to vector<16x32xbf16>
    %81 = vector.extract_strided_slice %0 {offsets = [0, 0, 0], sizes = [1, 16, 16], strides = [1, 1, 1]} : vector<9x16x16xbf16> to vector<1x16x16xbf16>
    %82 = vector.shape_cast %81 : vector<1x16x16xbf16> to vector<16x16xbf16>
    %cst_41 = arith.constant dense<0.000000e+00> : vector<16x32xf32>
    %83 = tpu.matmul %82, %80, %cst_41 {dimension_numbers = #tpu.dot_dimension_numbers<[1], [0], [0], [1], [0, 0, 1, 1], [], []>} : vector<16x16xbf16>, vector<16x32xbf16>, vector<16x32xf32> -> vector<16x32xf32>
    %84 = vector.extract_strided_slice %0 {offsets = [1, 0, 0], sizes = [1, 16, 16], strides = [1, 1, 1]} : vector<9x16x16xbf16> to vector<1x16x16xbf16>
    %85 = vector.shape_cast %84 : vector<1x16x16xbf16> to vector<16x16xbf16>
    %cst_42 = arith.constant dense<0.000000e+00> : vector<16x32xf32>
    %86 = tpu.matmul %85, %80, %cst_42 {dimension_numbers = #tpu.dot_dimension_numbers<[1], [0], [0], [1], [0, 0, 1, 1], [], []>} : vector<16x16xbf16>, vector<16x32xbf16>, vector<16x32xf32> -> vector<16x32xf32>
    %87 = vector.extract_strided_slice %0 {offsets = [2, 0, 0], sizes = [1, 16, 16], strides = [1, 1, 1]} : vector<9x16x16xbf16> to vector<1x16x16xbf16>
    %88 = vector.shape_cast %87 : vector<1x16x16xbf16> to vector<16x16xbf16>
    %cst_43 = arith.constant dense<0.000000e+00> : vector<16x32xf32>
    %89 = tpu.matmul %88, %80, %cst_43 {dimension_numbers = #tpu.dot_dimension_numbers<[1], [0], [0], [1], [0, 0, 1, 1], [], []>} : vector<16x16xbf16>, vector<16x32xbf16>, vector<16x32xf32> -> vector<16x32xf32>
    %90 = vector.extract_strided_slice %0 {offsets = [3, 0, 0], sizes = [1, 16, 16], strides = [1, 1, 1]} : vector<9x16x16xbf16> to vector<1x16x16xbf16>
    %91 = vector.shape_cast %90 : vector<1x16x16xbf16> to vector<16x16xbf16>
    %cst_44 = arith.constant dense<0.000000e+00> : vector<16x32xf32>
    %92 = tpu.matmul %91, %80, %cst_44 {dimension_numbers = #tpu.dot_dimension_numbers<[1], [0], [0], [1], [0, 0, 1, 1], [], []>} : vector<16x16xbf16>, vector<16x32xbf16>, vector<16x32xf32> -> vector<16x32xf32>
    %93 = vector.extract_strided_slice %0 {offsets = [5, 0, 0], sizes = [1, 16, 16], strides = [1, 1, 1]} : vector<9x16x16xbf16> to vector<1x16x16xbf16>
    %94 = vector.shape_cast %93 : vector<1x16x16xbf16> to vector<16x16xbf16>
    %cst_45 = arith.constant dense<0.000000e+00> : vector<16x32xf32>
    %95 = tpu.matmul %94, %80, %cst_45 {dimension_numbers = #tpu.dot_dimension_numbers<[1], [0], [0], [1], [0, 0, 1, 1], [], []>} : vector<16x16xbf16>, vector<16x32xbf16>, vector<16x32xf32> -> vector<16x32xf32>
    %96 = vector.extract_strided_slice %0 {offsets = [6, 0, 0], sizes = [1, 16, 16], strides = [1, 1, 1]} : vector<9x16x16xbf16> to vector<1x16x16xbf16>
    %97 = vector.shape_cast %96 : vector<1x16x16xbf16> to vector<16x16xbf16>
    %cst_46 = arith.constant dense<0.000000e+00> : vector<16x32xf32>
    %98 = tpu.matmul %97, %80, %cst_46 {dimension_numbers = #tpu.dot_dimension_numbers<[1], [0], [0], [1], [0, 0, 1, 1], [], []>} : vector<16x16xbf16>, vector<16x32xbf16>, vector<16x32xf32> -> vector<16x32xf32>
    %99 = vector.extract_strided_slice %0 {offsets = [7, 0, 0], sizes = [1, 16, 16], strides = [1, 1, 1]} : vector<9x16x16xbf16> to vector<1x16x16xbf16>
    %100 = vector.shape_cast %99 : vector<1x16x16xbf16> to vector<16x16xbf16>
    %cst_47 = arith.constant dense<0.000000e+00> : vector<16x32xf32>
    %101 = tpu.matmul %100, %80, %cst_47 {dimension_numbers = #tpu.dot_dimension_numbers<[1], [0], [0], [1], [0, 0, 1, 1], [], []>} : vector<16x16xbf16>, vector<16x32xbf16>, vector<16x32xf32> -> vector<16x32xf32>
    %102 = vector.extract_strided_slice %0 {offsets = [8, 0, 0], sizes = [1, 16, 16], strides = [1, 1, 1]} : vector<9x16x16xbf16> to vector<1x16x16xbf16>
    %103 = vector.shape_cast %102 : vector<1x16x16xbf16> to vector<16x16xbf16>
    %cst_48 = arith.constant dense<0.000000e+00> : vector<16x32xf32>
    %104 = tpu.matmul %103, %80, %cst_48 {dimension_numbers = #tpu.dot_dimension_numbers<[1], [0], [0], [1], [0, 0, 1, 1], [], []>} : vector<16x16xbf16>, vector<16x32xbf16>, vector<16x32xf32> -> vector<16x32xf32>
    %105 = tpu.concatenate %83, %86, %89, %92, %77, %95, %98, %101, %104 in 1 : vector<16x32xf32>, vector<16x32xf32>, vector<16x32xf32>, vector<16x32xf32>, vector<16x32xf32>, vector<16x32xf32>, vector<16x32xf32>, vector<16x32xf32>, vector<16x32xf32> -> vector<16x288xf32>
    %106 = arith.truncf %105 : vector<16x288xf32> to vector<16x288xbf16>
    %cst_49 = arith.constant dense<0.000000e+00> : vector<16x8xf32>
    %107 = tpu.matmul %106, %79, %cst_49 {dimension_numbers = #tpu.dot_dimension_numbers<[1], [0], [0], [1], [0, 0, 1, 1], [], []>} : vector<16x288xbf16>, vector<288x8xbf16>, vector<16x8xf32> -> vector<16x8xf32>
    %cst_50 = arith.constant 0.000000e+00 : f32
    %108 = vector.broadcast %cst_50 : f32 to vector<16x8xf32>
    %109 = arith.maximumf %107, %108 : vector<16x8xf32>
    %110 = arith.truncf %109 : vector<16x8xf32> to vector<16x8xbf16>
    %c0_51 = arith.constant 0 : index
    %c0_52 = arith.constant 0 : index
    %c0_53 = arith.constant 0 : index
    %111 = vector.load %arg10[%c0_51, %c0_52, %c0_53] : memref<2x8x32xbf16, #tpu.memory_space<vmem>>, vector<1x8x32xbf16>
    %112 = vector.shape_cast %111 : vector<1x8x32xbf16> to vector<8x32xbf16>
    %cst_54 = arith.constant dense<0.000000e+00> : vector<16x32xf32>
    %113 = tpu.matmul %110, %112, %cst_54 {dimension_numbers = #tpu.dot_dimension_numbers<[1], [0], [0], [1], [0, 0, 1, 1], [], []>} : vector<16x8xbf16>, vector<8x32xbf16>, vector<16x32xf32> -> vector<16x32xf32>
    %114 = arith.addf %75, %113 : vector<16x32xf32>
    %cst_55 = arith.constant 0.000000e+00 : f32
    %115 = vector.broadcast %cst_55 : f32 to vector<16x32xf32>
    %116 = arith.maximumf %114, %115 : vector<16x32xf32>
    %c1 = arith.constant 1 : index
    %c0_56 = arith.constant 0 : index
    %c0_57 = arith.constant 0 : index
    %117 = vector.load %arg9[%c1, %c0_56, %c0_57] : memref<2x288x8xbf16, #tpu.memory_space<vmem>>, vector<1x288x8xbf16>
    %118 = vector.shape_cast %117 : vector<1x288x8xbf16> to vector<288x8xbf16>
    %119 = arith.truncf %116 : vector<16x32xf32> to vector<16x32xbf16>
    %120 = vector.extract_strided_slice %0 {offsets = [0, 0, 0], sizes = [1, 16, 16], strides = [1, 1, 1]} : vector<9x16x16xbf16> to vector<1x16x16xbf16>
    %121 = vector.shape_cast %120 : vector<1x16x16xbf16> to vector<16x16xbf16>
    %cst_58 = arith.constant dense<0.000000e+00> : vector<16x32xf32>
    %122 = tpu.matmul %121, %119, %cst_58 {dimension_numbers = #tpu.dot_dimension_numbers<[1], [0], [0], [1], [0, 0, 1, 1], [], []>} : vector<16x16xbf16>, vector<16x32xbf16>, vector<16x32xf32> -> vector<16x32xf32>
    %123 = vector.extract_strided_slice %0 {offsets = [1, 0, 0], sizes = [1, 16, 16], strides = [1, 1, 1]} : vector<9x16x16xbf16> to vector<1x16x16xbf16>
    %124 = vector.shape_cast %123 : vector<1x16x16xbf16> to vector<16x16xbf16>
    %cst_59 = arith.constant dense<0.000000e+00> : vector<16x32xf32>
    %125 = tpu.matmul %124, %119, %cst_59 {dimension_numbers = #tpu.dot_dimension_numbers<[1], [0], [0], [1], [0, 0, 1, 1], [], []>} : vector<16x16xbf16>, vector<16x32xbf16>, vector<16x32xf32> -> vector<16x32xf32>
    %126 = vector.extract_strided_slice %0 {offsets = [2, 0, 0], sizes = [1, 16, 16], strides = [1, 1, 1]} : vector<9x16x16xbf16> to vector<1x16x16xbf16>
    %127 = vector.shape_cast %126 : vector<1x16x16xbf16> to vector<16x16xbf16>
    %cst_60 = arith.constant dense<0.000000e+00> : vector<16x32xf32>
    %128 = tpu.matmul %127, %119, %cst_60 {dimension_numbers = #tpu.dot_dimension_numbers<[1], [0], [0], [1], [0, 0, 1, 1], [], []>} : vector<16x16xbf16>, vector<16x32xbf16>, vector<16x32xf32> -> vector<16x32xf32>
    %129 = vector.extract_strided_slice %0 {offsets = [3, 0, 0], sizes = [1, 16, 16], strides = [1, 1, 1]} : vector<9x16x16xbf16> to vector<1x16x16xbf16>
    %130 = vector.shape_cast %129 : vector<1x16x16xbf16> to vector<16x16xbf16>
    %cst_61 = arith.constant dense<0.000000e+00> : vector<16x32xf32>
    %131 = tpu.matmul %130, %119, %cst_61 {dimension_numbers = #tpu.dot_dimension_numbers<[1], [0], [0], [1], [0, 0, 1, 1], [], []>} : vector<16x16xbf16>, vector<16x32xbf16>, vector<16x32xf32> -> vector<16x32xf32>
    %132 = vector.extract_strided_slice %0 {offsets = [5, 0, 0], sizes = [1, 16, 16], strides = [1, 1, 1]} : vector<9x16x16xbf16> to vector<1x16x16xbf16>
    %133 = vector.shape_cast %132 : vector<1x16x16xbf16> to vector<16x16xbf16>
    %cst_62 = arith.constant dense<0.000000e+00> : vector<16x32xf32>
    %134 = tpu.matmul %133, %119, %cst_62 {dimension_numbers = #tpu.dot_dimension_numbers<[1], [0], [0], [1], [0, 0, 1, 1], [], []>} : vector<16x16xbf16>, vector<16x32xbf16>, vector<16x32xf32> -> vector<16x32xf32>
    %135 = vector.extract_strided_slice %0 {offsets = [6, 0, 0], sizes = [1, 16, 16], strides = [1, 1, 1]} : vector<9x16x16xbf16> to vector<1x16x16xbf16>
    %136 = vector.shape_cast %135 : vector<1x16x16xbf16> to vector<16x16xbf16>
    %cst_63 = arith.constant dense<0.000000e+00> : vector<16x32xf32>
    %137 = tpu.matmul %136, %119, %cst_63 {dimension_numbers = #tpu.dot_dimension_numbers<[1], [0], [0], [1], [0, 0, 1, 1], [], []>} : vector<16x16xbf16>, vector<16x32xbf16>, vector<16x32xf32> -> vector<16x32xf32>
    %138 = vector.extract_strided_slice %0 {offsets = [7, 0, 0], sizes = [1, 16, 16], strides = [1, 1, 1]} : vector<9x16x16xbf16> to vector<1x16x16xbf16>
    %139 = vector.shape_cast %138 : vector<1x16x16xbf16> to vector<16x16xbf16>
    %cst_64 = arith.constant dense<0.000000e+00> : vector<16x32xf32>
    %140 = tpu.matmul %139, %119, %cst_64 {dimension_numbers = #tpu.dot_dimension_numbers<[1], [0], [0], [1], [0, 0, 1, 1], [], []>} : vector<16x16xbf16>, vector<16x32xbf16>, vector<16x32xf32> -> vector<16x32xf32>
    %141 = vector.extract_strided_slice %0 {offsets = [8, 0, 0], sizes = [1, 16, 16], strides = [1, 1, 1]} : vector<9x16x16xbf16> to vector<1x16x16xbf16>
    %142 = vector.shape_cast %141 : vector<1x16x16xbf16> to vector<16x16xbf16>
    %cst_65 = arith.constant dense<0.000000e+00> : vector<16x32xf32>
    %143 = tpu.matmul %142, %119, %cst_65 {dimension_numbers = #tpu.dot_dimension_numbers<[1], [0], [0], [1], [0, 0, 1, 1], [], []>} : vector<16x16xbf16>, vector<16x32xbf16>, vector<16x32xf32> -> vector<16x32xf32>
    %144 = tpu.concatenate %122, %125, %128, %131, %116, %134, %137, %140, %143 in 1 : vector<16x32xf32>, vector<16x32xf32>, vector<16x32xf32>, vector<16x32xf32>, vector<16x32xf32>, vector<16x32xf32>, vector<16x32xf32>, vector<16x32xf32>, vector<16x32xf32> -> vector<16x288xf32>
    %145 = arith.truncf %144 : vector<16x288xf32> to vector<16x288xbf16>
    %cst_66 = arith.constant dense<0.000000e+00> : vector<16x8xf32>
    %146 = tpu.matmul %145, %118, %cst_66 {dimension_numbers = #tpu.dot_dimension_numbers<[1], [0], [0], [1], [0, 0, 1, 1], [], []>} : vector<16x288xbf16>, vector<288x8xbf16>, vector<16x8xf32> -> vector<16x8xf32>
    %cst_67 = arith.constant 0.000000e+00 : f32
    %147 = vector.broadcast %cst_67 : f32 to vector<16x8xf32>
    %148 = arith.maximumf %146, %147 : vector<16x8xf32>
    %149 = arith.truncf %148 : vector<16x8xf32> to vector<16x8xbf16>
    %c1_68 = arith.constant 1 : index
    %c0_69 = arith.constant 0 : index
    %c0_70 = arith.constant 0 : index
    %150 = vector.load %arg10[%c1_68, %c0_69, %c0_70] : memref<2x8x32xbf16, #tpu.memory_space<vmem>>, vector<1x8x32xbf16>
    %151 = vector.shape_cast %150 : vector<1x8x32xbf16> to vector<8x32xbf16>
    %cst_71 = arith.constant dense<0.000000e+00> : vector<16x32xf32>
    %152 = tpu.matmul %149, %151, %cst_71 {dimension_numbers = #tpu.dot_dimension_numbers<[1], [0], [0], [1], [0, 0, 1, 1], [], []>} : vector<16x8xbf16>, vector<8x32xbf16>, vector<16x32xf32> -> vector<16x32xf32>
    %153 = arith.addf %114, %152 : vector<16x32xf32>
    %cst_72 = arith.constant 0.000000e+00 : f32
    %154 = vector.broadcast %cst_72 : f32 to vector<16x32xf32>
    %155 = arith.maximumf %153, %154 : vector<16x32xf32>
    %156 = arith.truncf %155 : vector<16x32xf32> to vector<16x32xbf16>
    %c0_73 = arith.constant 0 : index
    %c0_74 = arith.constant 0 : index
    %157 = vector.load %arg11[%c0_73, %c0_74] : memref<32x8xbf16, #tpu.memory_space<vmem>>, vector<32x8xbf16>
    %cst_75 = arith.constant dense<0.000000e+00> : vector<16x8xf32>
    %158 = tpu.matmul %156, %157, %cst_75 {dimension_numbers = #tpu.dot_dimension_numbers<[1], [0], [0], [1], [0, 0, 1, 1], [], []>} : vector<16x32xbf16>, vector<32x8xbf16>, vector<16x8xf32> -> vector<16x8xf32>
    %c0_76 = arith.constant 0 : index
    %c0_77 = arith.constant 0 : index
    %159 = vector.load %arg12[%c0_76, %c0_77] : memref<1x8xf32, #tpu.memory_space<vmem>>, vector<1x8xf32>
    %160 = vector.broadcast %159 : vector<1x8xf32> to vector<16x8xf32>
    %161 = arith.addf %158, %160 : vector<16x8xf32>
    %162 = arith.mulf %161, %161 : vector<16x8xf32>
    %cst_78 = arith.constant dense<0.000000e+00> : vector<16xf32>
    %163 = vector.multi_reduction <add>, %162, %cst_78 [1] : vector<16x8xf32> to vector<16xf32>
    %164 = vector.shape_cast %163 : vector<16xf32> to vector<16x1xf32>
    %c0_79 = arith.constant 0 : index
    %c0_80 = arith.constant 0 : index
    %165 = vector.load %arg15[%c0_79, %c0_80] : memref<1x128xf32, #tpu.memory_space<vmem>>, vector<1x128xf32>
    %166 = vector.broadcast %164 : vector<16x1xf32> to vector<16x128xf32>
    %167 = vector.broadcast %165 : vector<1x128xf32> to vector<16x128xf32>
    %168 = arith.addf %166, %167 : vector<16x128xf32>
    %c0_81 = arith.constant 0 : index
    %c0_82 = arith.constant 0 : index
    %169 = vector.load %arg14[%c0_81, %c0_82] : memref<8x128xf32, #tpu.memory_space<vmem>>, vector<8x128xf32>
    %cst_83 = arith.constant dense<0.000000e+00> : vector<16x128xf32>
    %170 = tpu.matmul %161, %169, %cst_83 {dimension_numbers = #tpu.dot_dimension_numbers<[1], [0], [0], [1], [0, 0, 1, 1], [], []>} : vector<16x8xf32>, vector<8x128xf32>, vector<16x128xf32> -> vector<16x128xf32>
    %cst_84 = arith.constant 2.000000e+00 : f32
    %171 = vector.broadcast %cst_84 : f32 to vector<16x128xf32>
    %172 = arith.mulf %171, %170 : vector<16x128xf32>
    %173 = arith.subf %168, %172 : vector<16x128xf32>
    %174 = tpu.iota {dimensions = array<i32: 1>} : vector<16x128xi32>
    %cst_85 = arith.constant dense<0x7F800000> : vector<16xf32>
    %175 = vector.multi_reduction <minimumf>, %173, %cst_85 [1] : vector<16x128xf32> to vector<16xf32>
    %176 = vector.shape_cast %175 : vector<16xf32> to vector<16x1xf32>
    %177 = vector.broadcast %176 : vector<16x1xf32> to vector<16x128xf32>
    %178 = arith.cmpf oeq, %173, %177 : vector<16x128xf32>
    %c128_i32 = arith.constant 128 : i32
    %179 = vector.broadcast %c128_i32 : i32 to vector<16x128xi32>
    %180 = arith.select %178, %174, %179 : vector<16x128xi1>, vector<16x128xi32>
    %cst_86 = arith.constant dense<2147483647> : vector<16xi32>
    %181 = vector.multi_reduction <minsi>, %180, %cst_86 [1] : vector<16x128xi32> to vector<16xi32>
    %182 = vector.shape_cast %181 : vector<16xi32> to vector<16x1xi32>
    %183 = vector.broadcast %182 : vector<16x1xi32> to vector<16x128xi32>
    %184 = arith.cmpi eq, %174, %183 : vector<16x128xi32>
    %185 = arith.extui %184 : vector<16x128xi1> to vector<16x128xi32>
    %186 = arith.sitofp %185 : vector<16x128xi32> to vector<16x128xf32>
    %c0_87 = arith.constant 0 : index
    %c0_88 = arith.constant 0 : index
    %187 = vector.load %arg13[%c0_87, %c0_88] : memref<128x8xf32, #tpu.memory_space<vmem>>, vector<128x8xf32>
    %cst_89 = arith.constant dense<0.000000e+00> : vector<16x8xf32>
    %188 = tpu.matmul %186, %187, %cst_89 {dimension_numbers = #tpu.dot_dimension_numbers<[1], [0], [0], [1], [0, 0, 1, 1], [], []>} : vector<16x128xf32>, vector<128x8xf32>, vector<16x8xf32> -> vector<16x8xf32>
    %189 = arith.subf %188, %161 : vector<16x8xf32>
    %190 = arith.subf %188, %161 : vector<16x8xf32>
    %191 = arith.mulf %189, %190 : vector<16x8xf32>
    %192 = vector.shape_cast %191 : vector<16x8xf32> to vector<1x16x8xf32>
    %cst_90 = arith.constant dense<0.000000e+00> : vector<1xf32>
    %193 = vector.multi_reduction <add>, %192, %cst_90 [1, 2] : vector<1x16x8xf32> to vector<1xf32>
    %194 = vector.shape_cast %193 : vector<1xf32> to vector<1x1x1xf32>
    %195 = vector.extract %194[0, 0, 0] : f32 from vector<1x1x1xf32>
    %196 = vector.broadcast %195 : f32 to vector<1x1xf32>
    %cst_91 = arith.constant dense<0.000000e+00> : vector<128xf32>
    %197 = vector.multi_reduction <add>, %186, %cst_91 [0] : vector<16x128xf32> to vector<128xf32>
    %198 = vector.shape_cast %197 : vector<128xf32> to vector<1x128xf32>
    %199 = tpu.iota {dimensions = array<i32: 0>} : vector<2x128xi32>
    %c0_i32 = arith.constant 0 : i32
    %200 = vector.broadcast %c0_i32 : i32 to vector<2x128xi32>
    %201 = arith.cmpi eq, %199, %200 : vector<2x128xi32>
    %202 = vector.shape_cast %198 : vector<1x128xf32> to vector<1x128xf32>
    %203 = vector.broadcast %202 : vector<1x128xf32> to vector<2x128xf32>
    %204 = vector.shape_cast %196 : vector<1x1xf32> to vector<1x1xf32>
    %205 = vector.broadcast %204 : vector<1x1xf32> to vector<2x128xf32>
    %206 = arith.select %201, %203, %205 : vector<2x128xi1>, vector<2x128xf32>
    %c0_92 = arith.constant 0 : index
    %c0_93 = arith.constant 0 : index
    %c0_94 = arith.constant 0 : index
    %207 = vector.load %arg25[%c0_92, %c0_93, %c0_94] : memref<1x2x128xf32, #tpu.memory_space<vmem>>, vector<1x2x128xf32>
    %208 = vector.shape_cast %207 : vector<1x2x128xf32> to vector<2x128xf32>
    %209 = vector.shape_cast %206 : vector<2x128xf32> to vector<1x2x128xf32>
    tpu.vector_store %arg25[%c0_92, %c0_93, %c0_94], %209 {strides = array<i32>} : memref<1x2x128xf32, #tpu.memory_space<vmem>>, vector<1x2x128xf32>,
    %c0_95 = arith.constant 0 : index
    %c0_96 = arith.constant 0 : index
    %210 = vector.load %arg16[%c0_95, %c0_96] : memref<72x32xbf16, #tpu.memory_space<vmem>>, vector<72x32xbf16>
    %c0_97 = arith.constant 0 : index
    %c0_98 = arith.constant 0 : index
    %211 = vector.load %arg17[%c0_97, %c0_98] : memref<1x32xf32, #tpu.memory_space<vmem>>, vector<1x32xf32>
    %212 = arith.truncf %188 : vector<16x8xf32> to vector<16x8xbf16>
    %213 = vector.extract_strided_slice %0 {offsets = [0, 0, 0], sizes = [1, 16, 16], strides = [1, 1, 1]} : vector<9x16x16xbf16> to vector<1x16x16xbf16>
    %214 = vector.shape_cast %213 : vector<1x16x16xbf16> to vector<16x16xbf16>
    %cst_99 = arith.constant dense<0.000000e+00> : vector<16x8xf32>
    %215 = tpu.matmul %214, %212, %cst_99 {dimension_numbers = #tpu.dot_dimension_numbers<[1], [0], [0], [1], [0, 0, 1, 1], [], []>} : vector<16x16xbf16>, vector<16x8xbf16>, vector<16x8xf32> -> vector<16x8xf32>
    %216 = vector.extract_strided_slice %0 {offsets = [1, 0, 0], sizes = [1, 16, 16], strides = [1, 1, 1]} : vector<9x16x16xbf16> to vector<1x16x16xbf16>
    %217 = vector.shape_cast %216 : vector<1x16x16xbf16> to vector<16x16xbf16>
    %cst_100 = arith.constant dense<0.000000e+00> : vector<16x8xf32>
    %218 = tpu.matmul %217, %212, %cst_100 {dimension_numbers = #tpu.dot_dimension_numbers<[1], [0], [0], [1], [0, 0, 1, 1], [], []>} : vector<16x16xbf16>, vector<16x8xbf16>, vector<16x8xf32> -> vector<16x8xf32>
    %219 = vector.extract_strided_slice %0 {offsets = [2, 0, 0], sizes = [1, 16, 16], strides = [1, 1, 1]} : vector<9x16x16xbf16> to vector<1x16x16xbf16>
    %220 = vector.shape_cast %219 : vector<1x16x16xbf16> to vector<16x16xbf16>
    %cst_101 = arith.constant dense<0.000000e+00> : vector<16x8xf32>
    %221 = tpu.matmul %220, %212, %cst_101 {dimension_numbers = #tpu.dot_dimension_numbers<[1], [0], [0], [1], [0, 0, 1, 1], [], []>} : vector<16x16xbf16>, vector<16x8xbf16>, vector<16x8xf32> -> vector<16x8xf32>
    %222 = vector.extract_strided_slice %0 {offsets = [3, 0, 0], sizes = [1, 16, 16], strides = [1, 1, 1]} : vector<9x16x16xbf16> to vector<1x16x16xbf16>
    %223 = vector.shape_cast %222 : vector<1x16x16xbf16> to vector<16x16xbf16>
    %cst_102 = arith.constant dense<0.000000e+00> : vector<16x8xf32>
    %224 = tpu.matmul %223, %212, %cst_102 {dimension_numbers = #tpu.dot_dimension_numbers<[1], [0], [0], [1], [0, 0, 1, 1], [], []>} : vector<16x16xbf16>, vector<16x8xbf16>, vector<16x8xf32> -> vector<16x8xf32>
    %225 = vector.extract_strided_slice %0 {offsets = [5, 0, 0], sizes = [1, 16, 16], strides = [1, 1, 1]} : vector<9x16x16xbf16> to vector<1x16x16xbf16>
    %226 = vector.shape_cast %225 : vector<1x16x16xbf16> to vector<16x16xbf16>
    %cst_103 = arith.constant dense<0.000000e+00> : vector<16x8xf32>
    %227 = tpu.matmul %226, %212, %cst_103 {dimension_numbers = #tpu.dot_dimension_numbers<[1], [0], [0], [1], [0, 0, 1, 1], [], []>} : vector<16x16xbf16>, vector<16x8xbf16>, vector<16x8xf32> -> vector<16x8xf32>
    %228 = vector.extract_strided_slice %0 {offsets = [6, 0, 0], sizes = [1, 16, 16], strides = [1, 1, 1]} : vector<9x16x16xbf16> to vector<1x16x16xbf16>
    %229 = vector.shape_cast %228 : vector<1x16x16xbf16> to vector<16x16xbf16>
    %cst_104 = arith.constant dense<0.000000e+00> : vector<16x8xf32>
    %230 = tpu.matmul %229, %212, %cst_104 {dimension_numbers = #tpu.dot_dimension_numbers<[1], [0], [0], [1], [0, 0, 1, 1], [], []>} : vector<16x16xbf16>, vector<16x8xbf16>, vector<16x8xf32> -> vector<16x8xf32>
    %231 = vector.extract_strided_slice %0 {offsets = [7, 0, 0], sizes = [1, 16, 16], strides = [1, 1, 1]} : vector<9x16x16xbf16> to vector<1x16x16xbf16>
    %232 = vector.shape_cast %231 : vector<1x16x16xbf16> to vector<16x16xbf16>
    %cst_105 = arith.constant dense<0.000000e+00> : vector<16x8xf32>
    %233 = tpu.matmul %232, %212, %cst_105 {dimension_numbers = #tpu.dot_dimension_numbers<[1], [0], [0], [1], [0, 0, 1, 1], [], []>} : vector<16x16xbf16>, vector<16x8xbf16>, vector<16x8xf32> -> vector<16x8xf32>
    %234 = vector.extract_strided_slice %0 {offsets = [8, 0, 0], sizes = [1, 16, 16], strides = [1, 1, 1]} : vector<9x16x16xbf16> to vector<1x16x16xbf16>
    %235 = vector.shape_cast %234 : vector<1x16x16xbf16> to vector<16x16xbf16>
    %cst_106 = arith.constant dense<0.000000e+00> : vector<16x8xf32>
    %236 = tpu.matmul %235, %212, %cst_106 {dimension_numbers = #tpu.dot_dimension_numbers<[1], [0], [0], [1], [0, 0, 1, 1], [], []>} : vector<16x16xbf16>, vector<16x8xbf16>, vector<16x8xf32> -> vector<16x8xf32>
    %237 = tpu.concatenate %215, %218, %221, %224, %188, %227, %230, %233, %236 in 1 : vector<16x8xf32>, vector<16x8xf32>, vector<16x8xf32>, vector<16x8xf32>, vector<16x8xf32>, vector<16x8xf32>, vector<16x8xf32>, vector<16x8xf32>, vector<16x8xf32> -> vector<16x72xf32>
    %238 = arith.truncf %237 : vector<16x72xf32> to vector<16x72xbf16>
    %cst_107 = arith.constant dense<0.000000e+00> : vector<16x32xf32>
    %239 = tpu.matmul %238, %210, %cst_107 {dimension_numbers = #tpu.dot_dimension_numbers<[1], [0], [0], [1], [0, 0, 1, 1], [], []>} : vector<16x72xbf16>, vector<72x32xbf16>, vector<16x32xf32> -> vector<16x32xf32>
    %240 = vector.broadcast %211 : vector<1x32xf32> to vector<16x32xf32>
    %241 = arith.addf %239, %240 : vector<16x32xf32>
    %cst_108 = arith.constant 0.000000e+00 : f32
    %242 = vector.broadcast %cst_108 : f32 to vector<16x32xf32>
    %243 = arith.maximumf %241, %242 : vector<16x32xf32>
    %c0_109 = arith.constant 0 : index
    %c0_110 = arith.constant 0 : index
    %c0_111 = arith.constant 0 : index
    %244 = vector.load %arg18[%c0_109, %c0_110, %c0_111] : memref<2x288x8xbf16, #tpu.memory_space<vmem>>, vector<1x288x8xbf16>
    %245 = vector.shape_cast %244 : vector<1x288x8xbf16> to vector<288x8xbf16>
    %246 = arith.truncf %243 : vector<16x32xf32> to vector<16x32xbf16>
    %247 = vector.extract_strided_slice %0 {offsets = [0, 0, 0], sizes = [1, 16, 16], strides = [1, 1, 1]} : vector<9x16x16xbf16> to vector<1x16x16xbf16>
    %248 = vector.shape_cast %247 : vector<1x16x16xbf16> to vector<16x16xbf16>
    %cst_112 = arith.constant dense<0.000000e+00> : vector<16x32xf32>
    %249 = tpu.matmul %248, %246, %cst_112 {dimension_numbers = #tpu.dot_dimension_numbers<[1], [0], [0], [1], [0, 0, 1, 1], [], []>} : vector<16x16xbf16>, vector<16x32xbf16>, vector<16x32xf32> -> vector<16x32xf32>
    %250 = vector.extract_strided_slice %0 {offsets = [1, 0, 0], sizes = [1, 16, 16], strides = [1, 1, 1]} : vector<9x16x16xbf16> to vector<1x16x16xbf16>
    %251 = vector.shape_cast %250 : vector<1x16x16xbf16> to vector<16x16xbf16>
    %cst_113 = arith.constant dense<0.000000e+00> : vector<16x32xf32>
    %252 = tpu.matmul %251, %246, %cst_113 {dimension_numbers = #tpu.dot_dimension_numbers<[1], [0], [0], [1], [0, 0, 1, 1], [], []>} : vector<16x16xbf16>, vector<16x32xbf16>, vector<16x32xf32> -> vector<16x32xf32>
    %253 = vector.extract_strided_slice %0 {offsets = [2, 0, 0], sizes = [1, 16, 16], strides = [1, 1, 1]} : vector<9x16x16xbf16> to vector<1x16x16xbf16>
    %254 = vector.shape_cast %253 : vector<1x16x16xbf16> to vector<16x16xbf16>
    %cst_114 = arith.constant dense<0.000000e+00> : vector<16x32xf32>
    %255 = tpu.matmul %254, %246, %cst_114 {dimension_numbers = #tpu.dot_dimension_numbers<[1], [0], [0], [1], [0, 0, 1, 1], [], []>} : vector<16x16xbf16>, vector<16x32xbf16>, vector<16x32xf32> -> vector<16x32xf32>
    %256 = vector.extract_strided_slice %0 {offsets = [3, 0, 0], sizes = [1, 16, 16], strides = [1, 1, 1]} : vector<9x16x16xbf16> to vector<1x16x16xbf16>
    %257 = vector.shape_cast %256 : vector<1x16x16xbf16> to vector<16x16xbf16>
    %cst_115 = arith.constant dense<0.000000e+00> : vector<16x32xf32>
    %258 = tpu.matmul %257, %246, %cst_115 {dimension_numbers = #tpu.dot_dimension_numbers<[1], [0], [0], [1], [0, 0, 1, 1], [], []>} : vector<16x16xbf16>, vector<16x32xbf16>, vector<16x32xf32> -> vector<16x32xf32>
    %259 = vector.extract_strided_slice %0 {offsets = [5, 0, 0], sizes = [1, 16, 16], strides = [1, 1, 1]} : vector<9x16x16xbf16> to vector<1x16x16xbf16>
    %260 = vector.shape_cast %259 : vector<1x16x16xbf16> to vector<16x16xbf16>
    %cst_116 = arith.constant dense<0.000000e+00> : vector<16x32xf32>
    %261 = tpu.matmul %260, %246, %cst_116 {dimension_numbers = #tpu.dot_dimension_numbers<[1], [0], [0], [1], [0, 0, 1, 1], [], []>} : vector<16x16xbf16>, vector<16x32xbf16>, vector<16x32xf32> -> vector<16x32xf32>
    %262 = vector.extract_strided_slice %0 {offsets = [6, 0, 0], sizes = [1, 16, 16], strides = [1, 1, 1]} : vector<9x16x16xbf16> to vector<1x16x16xbf16>
    %263 = vector.shape_cast %262 : vector<1x16x16xbf16> to vector<16x16xbf16>
    %cst_117 = arith.constant dense<0.000000e+00> : vector<16x32xf32>
    %264 = tpu.matmul %263, %246, %cst_117 {dimension_numbers = #tpu.dot_dimension_numbers<[1], [0], [0], [1], [0, 0, 1, 1], [], []>} : vector<16x16xbf16>, vector<16x32xbf16>, vector<16x32xf32> -> vector<16x32xf32>
    %265 = vector.extract_strided_slice %0 {offsets = [7, 0, 0], sizes = [1, 16, 16], strides = [1, 1, 1]} : vector<9x16x16xbf16> to vector<1x16x16xbf16>
    %266 = vector.shape_cast %265 : vector<1x16x16xbf16> to vector<16x16xbf16>
    %cst_118 = arith.constant dense<0.000000e+00> : vector<16x32xf32>
    %267 = tpu.matmul %266, %246, %cst_118 {dimension_numbers = #tpu.dot_dimension_numbers<[1], [0], [0], [1], [0, 0, 1, 1], [], []>} : vector<16x16xbf16>, vector<16x32xbf16>, vector<16x32xf32> -> vector<16x32xf32>
    %268 = vector.extract_strided_slice %0 {offsets = [8, 0, 0], sizes = [1, 16, 16], strides = [1, 1, 1]} : vector<9x16x16xbf16> to vector<1x16x16xbf16>
    %269 = vector.shape_cast %268 : vector<1x16x16xbf16> to vector<16x16xbf16>
    %cst_119 = arith.constant dense<0.000000e+00> : vector<16x32xf32>
    %270 = tpu.matmul %269, %246, %cst_119 {dimension_numbers = #tpu.dot_dimension_numbers<[1], [0], [0], [1], [0, 0, 1, 1], [], []>} : vector<16x16xbf16>, vector<16x32xbf16>, vector<16x32xf32> -> vector<16x32xf32>
    %271 = tpu.concatenate %249, %252, %255, %258, %243, %261, %264, %267, %270 in 1 : vector<16x32xf32>, vector<16x32xf32>, vector<16x32xf32>, vector<16x32xf32>, vector<16x32xf32>, vector<16x32xf32>, vector<16x32xf32>, vector<16x32xf32>, vector<16x32xf32> -> vector<16x288xf32>
    %272 = arith.truncf %271 : vector<16x288xf32> to vector<16x288xbf16>
    %cst_120 = arith.constant dense<0.000000e+00> : vector<16x8xf32>
    %273 = tpu.matmul %272, %245, %cst_120 {dimension_numbers = #tpu.dot_dimension_numbers<[1], [0], [0], [1], [0, 0, 1, 1], [], []>} : vector<16x288xbf16>, vector<288x8xbf16>, vector<16x8xf32> -> vector<16x8xf32>
    %cst_121 = arith.constant 0.000000e+00 : f32
    %274 = vector.broadcast %cst_121 : f32 to vector<16x8xf32>
    %275 = arith.maximumf %273, %274 : vector<16x8xf32>
    %276 = arith.truncf %275 : vector<16x8xf32> to vector<16x8xbf16>
    %c0_122 = arith.constant 0 : index
    %c0_123 = arith.constant 0 : index
    %c0_124 = arith.constant 0 : index
    %277 = vector.load %arg19[%c0_122, %c0_123, %c0_124] : memref<2x8x32xbf16, #tpu.memory_space<vmem>>, vector<1x8x32xbf16>
    %278 = vector.shape_cast %277 : vector<1x8x32xbf16> to vector<8x32xbf16>
    %cst_125 = arith.constant dense<0.000000e+00> : vector<16x32xf32>
    %279 = tpu.matmul %276, %278, %cst_125 {dimension_numbers = #tpu.dot_dimension_numbers<[1], [0], [0], [1], [0, 0, 1, 1], [], []>} : vector<16x8xbf16>, vector<8x32xbf16>, vector<16x32xf32> -> vector<16x32xf32>
    %280 = arith.addf %241, %279 : vector<16x32xf32>
    %cst_126 = arith.constant 0.000000e+00 : f32
    %281 = vector.broadcast %cst_126 : f32 to vector<16x32xf32>
    %282 = arith.maximumf %280, %281 : vector<16x32xf32>
    %c1_127 = arith.constant 1 : index
    %c0_128 = arith.constant 0 : index
    %c0_129 = arith.constant 0 : index
    %283 = vector.load %arg18[%c1_127, %c0_128, %c0_129] : memref<2x288x8xbf16, #tpu.memory_space<vmem>>, vector<1x288x8xbf16>
    %284 = vector.shape_cast %283 : vector<1x288x8xbf16> to vector<288x8xbf16>
    %285 = arith.truncf %282 : vector<16x32xf32> to vector<16x32xbf16>
    %286 = vector.extract_strided_slice %0 {offsets = [0, 0, 0], sizes = [1, 16, 16], strides = [1, 1, 1]} : vector<9x16x16xbf16> to vector<1x16x16xbf16>
    %287 = vector.shape_cast %286 : vector<1x16x16xbf16> to vector<16x16xbf16>
    %cst_130 = arith.constant dense<0.000000e+00> : vector<16x32xf32>
    %288 = tpu.matmul %287, %285, %cst_130 {dimension_numbers = #tpu.dot_dimension_numbers<[1], [0], [0], [1], [0, 0, 1, 1], [], []>} : vector<16x16xbf16>, vector<16x32xbf16>, vector<16x32xf32> -> vector<16x32xf32>
    %289 = vector.extract_strided_slice %0 {offsets = [1, 0, 0], sizes = [1, 16, 16], strides = [1, 1, 1]} : vector<9x16x16xbf16> to vector<1x16x16xbf16>
    %290 = vector.shape_cast %289 : vector<1x16x16xbf16> to vector<16x16xbf16>
    %cst_131 = arith.constant dense<0.000000e+00> : vector<16x32xf32>
    %291 = tpu.matmul %290, %285, %cst_131 {dimension_numbers = #tpu.dot_dimension_numbers<[1], [0], [0], [1], [0, 0, 1, 1], [], []>} : vector<16x16xbf16>, vector<16x32xbf16>, vector<16x32xf32> -> vector<16x32xf32>
    %292 = vector.extract_strided_slice %0 {offsets = [2, 0, 0], sizes = [1, 16, 16], strides = [1, 1, 1]} : vector<9x16x16xbf16> to vector<1x16x16xbf16>
    %293 = vector.shape_cast %292 : vector<1x16x16xbf16> to vector<16x16xbf16>
    %cst_132 = arith.constant dense<0.000000e+00> : vector<16x32xf32>
    %294 = tpu.matmul %293, %285, %cst_132 {dimension_numbers = #tpu.dot_dimension_numbers<[1], [0], [0], [1], [0, 0, 1, 1], [], []>} : vector<16x16xbf16>, vector<16x32xbf16>, vector<16x32xf32> -> vector<16x32xf32>
    %295 = vector.extract_strided_slice %0 {offsets = [3, 0, 0], sizes = [1, 16, 16], strides = [1, 1, 1]} : vector<9x16x16xbf16> to vector<1x16x16xbf16>
    %296 = vector.shape_cast %295 : vector<1x16x16xbf16> to vector<16x16xbf16>
    %cst_133 = arith.constant dense<0.000000e+00> : vector<16x32xf32>
    %297 = tpu.matmul %296, %285, %cst_133 {dimension_numbers = #tpu.dot_dimension_numbers<[1], [0], [0], [1], [0, 0, 1, 1], [], []>} : vector<16x16xbf16>, vector<16x32xbf16>, vector<16x32xf32> -> vector<16x32xf32>
    %298 = vector.extract_strided_slice %0 {offsets = [5, 0, 0], sizes = [1, 16, 16], strides = [1, 1, 1]} : vector<9x16x16xbf16> to vector<1x16x16xbf16>
    %299 = vector.shape_cast %298 : vector<1x16x16xbf16> to vector<16x16xbf16>
    %cst_134 = arith.constant dense<0.000000e+00> : vector<16x32xf32>
    %300 = tpu.matmul %299, %285, %cst_134 {dimension_numbers = #tpu.dot_dimension_numbers<[1], [0], [0], [1], [0, 0, 1, 1], [], []>} : vector<16x16xbf16>, vector<16x32xbf16>, vector<16x32xf32> -> vector<16x32xf32>
    %301 = vector.extract_strided_slice %0 {offsets = [6, 0, 0], sizes = [1, 16, 16], strides = [1, 1, 1]} : vector<9x16x16xbf16> to vector<1x16x16xbf16>
    %302 = vector.shape_cast %301 : vector<1x16x16xbf16> to vector<16x16xbf16>
    %cst_135 = arith.constant dense<0.000000e+00> : vector<16x32xf32>
    %303 = tpu.matmul %302, %285, %cst_135 {dimension_numbers = #tpu.dot_dimension_numbers<[1], [0], [0], [1], [0, 0, 1, 1], [], []>} : vector<16x16xbf16>, vector<16x32xbf16>, vector<16x32xf32> -> vector<16x32xf32>
    %304 = vector.extract_strided_slice %0 {offsets = [7, 0, 0], sizes = [1, 16, 16], strides = [1, 1, 1]} : vector<9x16x16xbf16> to vector<1x16x16xbf16>
    %305 = vector.shape_cast %304 : vector<1x16x16xbf16> to vector<16x16xbf16>
    %cst_136 = arith.constant dense<0.000000e+00> : vector<16x32xf32>
    %306 = tpu.matmul %305, %285, %cst_136 {dimension_numbers = #tpu.dot_dimension_numbers<[1], [0], [0], [1], [0, 0, 1, 1], [], []>} : vector<16x16xbf16>, vector<16x32xbf16>, vector<16x32xf32> -> vector<16x32xf32>
    %307 = vector.extract_strided_slice %0 {offsets = [8, 0, 0], sizes = [1, 16, 16], strides = [1, 1, 1]} : vector<9x16x16xbf16> to vector<1x16x16xbf16>
    %308 = vector.shape_cast %307 : vector<1x16x16xbf16> to vector<16x16xbf16>
    %cst_137 = arith.constant dense<0.000000e+00> : vector<16x32xf32>
    %309 = tpu.matmul %308, %285, %cst_137 {dimension_numbers = #tpu.dot_dimension_numbers<[1], [0], [0], [1], [0, 0, 1, 1], [], []>} : vector<16x16xbf16>, vector<16x32xbf16>, vector<16x32xf32> -> vector<16x32xf32>
    %310 = tpu.concatenate %288, %291, %294, %297, %282, %300, %303, %306, %309 in 1 : vector<16x32xf32>, vector<16x32xf32>, vector<16x32xf32>, vector<16x32xf32>, vector<16x32xf32>, vector<16x32xf32>, vector<16x32xf32>, vector<16x32xf32>, vector<16x32xf32> -> vector<16x288xf32>
    %311 = arith.truncf %310 : vector<16x288xf32> to vector<16x288xbf16>
    %cst_138 = arith.constant dense<0.000000e+00> : vector<16x8xf32>
    %312 = tpu.matmul %311, %284, %cst_138 {dimension_numbers = #tpu.dot_dimension_numbers<[1], [0], [0], [1], [0, 0, 1, 1], [], []>} : vector<16x288xbf16>, vector<288x8xbf16>, vector<16x8xf32> -> vector<16x8xf32>
    %cst_139 = arith.constant 0.000000e+00 : f32
    %313 = vector.broadcast %cst_139 : f32 to vector<16x8xf32>
    %314 = arith.maximumf %312, %313 : vector<16x8xf32>
    %315 = arith.truncf %314 : vector<16x8xf32> to vector<16x8xbf16>
    %c1_140 = arith.constant 1 : index
    %c0_141 = arith.constant 0 : index
    %c0_142 = arith.constant 0 : index
    %316 = vector.load %arg19[%c1_140, %c0_141, %c0_142] : memref<2x8x32xbf16, #tpu.memory_space<vmem>>, vector<1x8x32xbf16>
    %317 = vector.shape_cast %316 : vector<1x8x32xbf16> to vector<8x32xbf16>
    %cst_143 = arith.constant dense<0.000000e+00> : vector<16x32xf32>
    %318 = tpu.matmul %315, %317, %cst_143 {dimension_numbers = #tpu.dot_dimension_numbers<[1], [0], [0], [1], [0, 0, 1, 1], [], []>} : vector<16x8xbf16>, vector<8x32xbf16>, vector<16x32xf32> -> vector<16x32xf32>
    %319 = arith.addf %280, %318 : vector<16x32xf32>
    %cst_144 = arith.constant 0.000000e+00 : f32
    %320 = vector.broadcast %cst_144 : f32 to vector<16x32xf32>
    %321 = arith.maximumf %319, %320 : vector<16x32xf32>
    %c0_145 = arith.constant 0 : index
    %c0_146 = arith.constant 0 : index
    %322 = vector.load %arg20[%c0_145, %c0_146] : memref<288x64xbf16, #tpu.memory_space<vmem>>, vector<288x64xbf16>
    %c0_147 = arith.constant 0 : index
    %c0_148 = arith.constant 0 : index
    %323 = vector.load %arg21[%c0_147, %c0_148] : memref<1x64xf32, #tpu.memory_space<vmem>>, vector<1x64xf32>
    %324 = arith.truncf %321 : vector<16x32xf32> to vector<16x32xbf16>
    %325 = vector.extract_strided_slice %0 {offsets = [0, 0, 0], sizes = [1, 16, 16], strides = [1, 1, 1]} : vector<9x16x16xbf16> to vector<1x16x16xbf16>
    %326 = vector.shape_cast %325 : vector<1x16x16xbf16> to vector<16x16xbf16>
    %cst_149 = arith.constant dense<0.000000e+00> : vector<16x32xf32>
    %327 = tpu.matmul %326, %324, %cst_149 {dimension_numbers = #tpu.dot_dimension_numbers<[1], [0], [0], [1], [0, 0, 1, 1], [], []>} : vector<16x16xbf16>, vector<16x32xbf16>, vector<16x32xf32> -> vector<16x32xf32>
    %328 = vector.extract_strided_slice %0 {offsets = [1, 0, 0], sizes = [1, 16, 16], strides = [1, 1, 1]} : vector<9x16x16xbf16> to vector<1x16x16xbf16>
    %329 = vector.shape_cast %328 : vector<1x16x16xbf16> to vector<16x16xbf16>
    %cst_150 = arith.constant dense<0.000000e+00> : vector<16x32xf32>
    %330 = tpu.matmul %329, %324, %cst_150 {dimension_numbers = #tpu.dot_dimension_numbers<[1], [0], [0], [1], [0, 0, 1, 1], [], []>} : vector<16x16xbf16>, vector<16x32xbf16>, vector<16x32xf32> -> vector<16x32xf32>
    %331 = vector.extract_strided_slice %0 {offsets = [2, 0, 0], sizes = [1, 16, 16], strides = [1, 1, 1]} : vector<9x16x16xbf16> to vector<1x16x16xbf16>
    %332 = vector.shape_cast %331 : vector<1x16x16xbf16> to vector<16x16xbf16>
    %cst_151 = arith.constant dense<0.000000e+00> : vector<16x32xf32>
    %333 = tpu.matmul %332, %324, %cst_151 {dimension_numbers = #tpu.dot_dimension_numbers<[1], [0], [0], [1], [0, 0, 1, 1], [], []>} : vector<16x16xbf16>, vector<16x32xbf16>, vector<16x32xf32> -> vector<16x32xf32>
    %334 = vector.extract_strided_slice %0 {offsets = [3, 0, 0], sizes = [1, 16, 16], strides = [1, 1, 1]} : vector<9x16x16xbf16> to vector<1x16x16xbf16>
    %335 = vector.shape_cast %334 : vector<1x16x16xbf16> to vector<16x16xbf16>
    %cst_152 = arith.constant dense<0.000000e+00> : vector<16x32xf32>
    %336 = tpu.matmul %335, %324, %cst_152 {dimension_numbers = #tpu.dot_dimension_numbers<[1], [0], [0], [1], [0, 0, 1, 1], [], []>} : vector<16x16xbf16>, vector<16x32xbf16>, vector<16x32xf32> -> vector<16x32xf32>
    %337 = vector.extract_strided_slice %0 {offsets = [5, 0, 0], sizes = [1, 16, 16], strides = [1, 1, 1]} : vector<9x16x16xbf16> to vector<1x16x16xbf16>
    %338 = vector.shape_cast %337 : vector<1x16x16xbf16> to vector<16x16xbf16>
    %cst_153 = arith.constant dense<0.000000e+00> : vector<16x32xf32>
    %339 = tpu.matmul %338, %324, %cst_153 {dimension_numbers = #tpu.dot_dimension_numbers<[1], [0], [0], [1], [0, 0, 1, 1], [], []>} : vector<16x16xbf16>, vector<16x32xbf16>, vector<16x32xf32> -> vector<16x32xf32>
    %340 = vector.extract_strided_slice %0 {offsets = [6, 0, 0], sizes = [1, 16, 16], strides = [1, 1, 1]} : vector<9x16x16xbf16> to vector<1x16x16xbf16>
    %341 = vector.shape_cast %340 : vector<1x16x16xbf16> to vector<16x16xbf16>
    %cst_154 = arith.constant dense<0.000000e+00> : vector<16x32xf32>
    %342 = tpu.matmul %341, %324, %cst_154 {dimension_numbers = #tpu.dot_dimension_numbers<[1], [0], [0], [1], [0, 0, 1, 1], [], []>} : vector<16x16xbf16>, vector<16x32xbf16>, vector<16x32xf32> -> vector<16x32xf32>
    %343 = vector.extract_strided_slice %0 {offsets = [7, 0, 0], sizes = [1, 16, 16], strides = [1, 1, 1]} : vector<9x16x16xbf16> to vector<1x16x16xbf16>
    %344 = vector.shape_cast %343 : vector<1x16x16xbf16> to vector<16x16xbf16>
    %cst_155 = arith.constant dense<0.000000e+00> : vector<16x32xf32>
    %345 = tpu.matmul %344, %324, %cst_155 {dimension_numbers = #tpu.dot_dimension_numbers<[1], [0], [0], [1], [0, 0, 1, 1], [], []>} : vector<16x16xbf16>, vector<16x32xbf16>, vector<16x32xf32> -> vector<16x32xf32>
    %346 = vector.extract_strided_slice %0 {offsets = [8, 0, 0], sizes = [1, 16, 16], strides = [1, 1, 1]} : vector<9x16x16xbf16> to vector<1x16x16xbf16>
    %347 = vector.shape_cast %346 : vector<1x16x16xbf16> to vector<16x16xbf16>
    %cst_156 = arith.constant dense<0.000000e+00> : vector<16x32xf32>
    %348 = tpu.matmul %347, %324, %cst_156 {dimension_numbers = #tpu.dot_dimension_numbers<[1], [0], [0], [1], [0, 0, 1, 1], [], []>} : vector<16x16xbf16>, vector<16x32xbf16>, vector<16x32xf32> -> vector<16x32xf32>
    %349 = tpu.concatenate %327, %330, %333, %336, %321, %339, %342, %345, %348 in 1 : vector<16x32xf32>, vector<16x32xf32>, vector<16x32xf32>, vector<16x32xf32>, vector<16x32xf32>, vector<16x32xf32>, vector<16x32xf32>, vector<16x32xf32>, vector<16x32xf32> -> vector<16x288xf32>
    %350 = arith.truncf %349 : vector<16x288xf32> to vector<16x288xbf16>
    %cst_157 = arith.constant dense<0.000000e+00> : vector<16x64xf32>
    %351 = tpu.matmul %350, %322, %cst_157 {dimension_numbers = #tpu.dot_dimension_numbers<[1], [0], [0], [1], [0, 0, 1, 1], [], []>} : vector<16x288xbf16>, vector<288x64xbf16>, vector<16x64xf32> -> vector<16x64xf32>
    %352 = vector.broadcast %323 : vector<1x64xf32> to vector<16x64xf32>
    %353 = arith.addf %351, %352 : vector<16x64xf32>
    %cst_158 = arith.constant 0.000000e+00 : f32
    %354 = vector.broadcast %cst_158 : f32 to vector<16x64xf32>
    %355 = arith.maximumf %353, %354 : vector<16x64xf32>
    %c0_159 = arith.constant 0 : index
    %c0_160 = arith.constant 0 : index
    %356 = vector.load %arg22[%c0_159, %c0_160] : memref<576x128xbf16, #tpu.memory_space<vmem>>, vector<576x128xbf16>
    %c0_161 = arith.constant 0 : index
    %c0_162 = arith.constant 0 : index
    %357 = vector.load %arg23[%c0_161, %c0_162] : memref<1x128xf32, #tpu.memory_space<vmem>>, vector<1x128xf32>
    %358 = arith.truncf %355 : vector<16x64xf32> to vector<16x64xbf16>
    %359 = vector.extract_strided_slice %0 {offsets = [0, 0, 0], sizes = [1, 16, 16], strides = [1, 1, 1]} : vector<9x16x16xbf16> to vector<1x16x16xbf16>
    %360 = vector.shape_cast %359 : vector<1x16x16xbf16> to vector<16x16xbf16>
    %cst_163 = arith.constant dense<0.000000e+00> : vector<16x64xf32>
    %361 = tpu.matmul %360, %358, %cst_163 {dimension_numbers = #tpu.dot_dimension_numbers<[1], [0], [0], [1], [0, 0, 1, 1], [], []>} : vector<16x16xbf16>, vector<16x64xbf16>, vector<16x64xf32> -> vector<16x64xf32>
    %362 = vector.extract_strided_slice %0 {offsets = [1, 0, 0], sizes = [1, 16, 16], strides = [1, 1, 1]} : vector<9x16x16xbf16> to vector<1x16x16xbf16>
    %363 = vector.shape_cast %362 : vector<1x16x16xbf16> to vector<16x16xbf16>
    %cst_164 = arith.constant dense<0.000000e+00> : vector<16x64xf32>
    %364 = tpu.matmul %363, %358, %cst_164 {dimension_numbers = #tpu.dot_dimension_numbers<[1], [0], [0], [1], [0, 0, 1, 1], [], []>} : vector<16x16xbf16>, vector<16x64xbf16>, vector<16x64xf32> -> vector<16x64xf32>
    %365 = vector.extract_strided_slice %0 {offsets = [2, 0, 0], sizes = [1, 16, 16], strides = [1, 1, 1]} : vector<9x16x16xbf16> to vector<1x16x16xbf16>
    %366 = vector.shape_cast %365 : vector<1x16x16xbf16> to vector<16x16xbf16>
    %cst_165 = arith.constant dense<0.000000e+00> : vector<16x64xf32>
    %367 = tpu.matmul %366, %358, %cst_165 {dimension_numbers = #tpu.dot_dimension_numbers<[1], [0], [0], [1], [0, 0, 1, 1], [], []>} : vector<16x16xbf16>, vector<16x64xbf16>, vector<16x64xf32> -> vector<16x64xf32>
    %368 = vector.extract_strided_slice %0 {offsets = [3, 0, 0], sizes = [1, 16, 16], strides = [1, 1, 1]} : vector<9x16x16xbf16> to vector<1x16x16xbf16>
    %369 = vector.shape_cast %368 : vector<1x16x16xbf16> to vector<16x16xbf16>
    %cst_166 = arith.constant dense<0.000000e+00> : vector<16x64xf32>
    %370 = tpu.matmul %369, %358, %cst_166 {dimension_numbers = #tpu.dot_dimension_numbers<[1], [0], [0], [1], [0, 0, 1, 1], [], []>} : vector<16x16xbf16>, vector<16x64xbf16>, vector<16x64xf32> -> vector<16x64xf32>
    %371 = vector.extract_strided_slice %0 {offsets = [5, 0, 0], sizes = [1, 16, 16], strides = [1, 1, 1]} : vector<9x16x16xbf16> to vector<1x16x16xbf16>
    %372 = vector.shape_cast %371 : vector<1x16x16xbf16> to vector<16x16xbf16>
    %cst_167 = arith.constant dense<0.000000e+00> : vector<16x64xf32>
    %373 = tpu.matmul %372, %358, %cst_167 {dimension_numbers = #tpu.dot_dimension_numbers<[1], [0], [0], [1], [0, 0, 1, 1], [], []>} : vector<16x16xbf16>, vector<16x64xbf16>, vector<16x64xf32> -> vector<16x64xf32>
    %374 = vector.extract_strided_slice %0 {offsets = [6, 0, 0], sizes = [1, 16, 16], strides = [1, 1, 1]} : vector<9x16x16xbf16> to vector<1x16x16xbf16>
    %375 = vector.shape_cast %374 : vector<1x16x16xbf16> to vector<16x16xbf16>
    %cst_168 = arith.constant dense<0.000000e+00> : vector<16x64xf32>
    %376 = tpu.matmul %375, %358, %cst_168 {dimension_numbers = #tpu.dot_dimension_numbers<[1], [0], [0], [1], [0, 0, 1, 1], [], []>} : vector<16x16xbf16>, vector<16x64xbf16>, vector<16x64xf32> -> vector<16x64xf32>
    %377 = vector.extract_strided_slice %0 {offsets = [7, 0, 0], sizes = [1, 16, 16], strides = [1, 1, 1]} : vector<9x16x16xbf16> to vector<1x16x16xbf16>
    %378 = vector.shape_cast %377 : vector<1x16x16xbf16> to vector<16x16xbf16>
    %cst_169 = arith.constant dense<0.000000e+00> : vector<16x64xf32>
    %379 = tpu.matmul %378, %358, %cst_169 {dimension_numbers = #tpu.dot_dimension_numbers<[1], [0], [0], [1], [0, 0, 1, 1], [], []>} : vector<16x16xbf16>, vector<16x64xbf16>, vector<16x64xf32> -> vector<16x64xf32>
    %380 = vector.extract_strided_slice %0 {offsets = [8, 0, 0], sizes = [1, 16, 16], strides = [1, 1, 1]} : vector<9x16x16xbf16> to vector<1x16x16xbf16>
    %381 = vector.shape_cast %380 : vector<1x16x16xbf16> to vector<16x16xbf16>
    %cst_170 = arith.constant dense<0.000000e+00> : vector<16x64xf32>
    %382 = tpu.matmul %381, %358, %cst_170 {dimension_numbers = #tpu.dot_dimension_numbers<[1], [0], [0], [1], [0, 0, 1, 1], [], []>} : vector<16x16xbf16>, vector<16x64xbf16>, vector<16x64xf32> -> vector<16x64xf32>
    %383 = tpu.concatenate %361, %364, %367, %370, %355, %373, %376, %379, %382 in 1 : vector<16x64xf32>, vector<16x64xf32>, vector<16x64xf32>, vector<16x64xf32>, vector<16x64xf32>, vector<16x64xf32>, vector<16x64xf32>, vector<16x64xf32>, vector<16x64xf32> -> vector<16x576xf32>
    %384 = arith.truncf %383 : vector<16x576xf32> to vector<16x576xbf16>
    %cst_171 = arith.constant dense<0.000000e+00> : vector<16x128xf32>
    %385 = tpu.matmul %384, %356, %cst_171 {dimension_numbers = #tpu.dot_dimension_numbers<[1], [0], [0], [1], [0, 0, 1, 1], [], []>} : vector<16x576xbf16>, vector<576x128xbf16>, vector<16x128xf32> -> vector<16x128xf32>
    %386 = vector.broadcast %357 : vector<1x128xf32> to vector<16x128xf32>
    %387 = arith.addf %385, %386 : vector<16x128xf32>
    %c0_172 = arith.constant 0 : index
    %c0_173 = arith.constant 0 : index
    %c0_174 = arith.constant 0 : index
    %388 = vector.load %arg24[%c0_172, %c0_173, %c0_174] : memref<1x16x128xf32, #tpu.memory_space<vmem>>, vector<1x16x128xf32>
    %389 = vector.shape_cast %388 : vector<1x16x128xf32> to vector<16x128xf32>
    %390 = vector.shape_cast %387 : vector<16x128xf32> to vector<1x16x128xf32>
    tpu.vector_store %arg24[%c0_172, %c0_173, %c0_174], %390 {strides = array<i32>} : memref<1x16x128xf32, #tpu.memory_space<vmem>>, vector<1x16x128xf32>,
    return
  }
  func.func @transform_0(%arg0: i32) -> (i32, i32, i32) {
    %c0_i32 = arith.constant 0 : i32
    %c0_i32_0 = arith.constant 0 : i32
    %c0_i32_1 = arith.constant 0 : i32
    return %arg0, %c0_i32, %c0_i32_0 : i32, i32, i32
  }
  func.func @transform_1(%arg0: i32) -> (i32, i32, i32) {
    %c0_i32 = arith.constant 0 : i32
    %c0_i32_0 = arith.constant 0 : i32
    %c0_i32_1 = arith.constant 0 : i32
    %c0_i32_2 = arith.constant 0 : i32
    return %c0_i32, %c0_i32_0, %c0_i32_1 : i32, i32, i32
  }
  func.func @transform_2(%arg0: i32) -> (i32, i32) {
    %c0_i32 = arith.constant 0 : i32
    %c0_i32_0 = arith.constant 0 : i32
    %c0_i32_1 = arith.constant 0 : i32
    return %c0_i32, %c0_i32_0 : i32, i32
  }
  func.func @transform_3(%arg0: i32) -> (i32, i32) {
    %c0_i32 = arith.constant 0 : i32
    %c0_i32_0 = arith.constant 0 : i32
    %c0_i32_1 = arith.constant 0 : i32
    return %c0_i32, %c0_i32_0 : i32, i32
  }
  func.func @transform_4(%arg0: i32) -> (i32, i32) {
    %c0_i32 = arith.constant 0 : i32
    %c0_i32_0 = arith.constant 0 : i32
    %c0_i32_1 = arith.constant 0 : i32
    return %c0_i32, %c0_i32_0 : i32, i32
  }
  func.func @transform_5(%arg0: i32) -> (i32, i32) {
    %c0_i32 = arith.constant 0 : i32
    %c0_i32_0 = arith.constant 0 : i32
    %c0_i32_1 = arith.constant 0 : i32
    return %c0_i32, %c0_i32_0 : i32, i32
  }
  func.func @transform_6(%arg0: i32) -> (i32, i32) {
    %c0_i32 = arith.constant 0 : i32
    %c0_i32_0 = arith.constant 0 : i32
    %c0_i32_1 = arith.constant 0 : i32
    return %c0_i32, %c0_i32_0 : i32, i32
  }
  func.func @transform_7(%arg0: i32) -> (i32, i32) {
    %c0_i32 = arith.constant 0 : i32
    %c0_i32_0 = arith.constant 0 : i32
    %c0_i32_1 = arith.constant 0 : i32
    return %c0_i32, %c0_i32_0 : i32, i32
  }
  func.func @transform_8(%arg0: i32) -> (i32, i32, i32) {
    %c0_i32 = arith.constant 0 : i32
    %c0_i32_0 = arith.constant 0 : i32
    %c0_i32_1 = arith.constant 0 : i32
    %c0_i32_2 = arith.constant 0 : i32
    return %c0_i32, %c0_i32_0, %c0_i32_1 : i32, i32, i32
  }
  func.func @transform_9(%arg0: i32) -> (i32, i32, i32) {
    %c0_i32 = arith.constant 0 : i32
    %c0_i32_0 = arith.constant 0 : i32
    %c0_i32_1 = arith.constant 0 : i32
    %c0_i32_2 = arith.constant 0 : i32
    return %c0_i32, %c0_i32_0, %c0_i32_1 : i32, i32, i32
  }
  func.func @transform_10(%arg0: i32) -> (i32, i32) {
    %c0_i32 = arith.constant 0 : i32
    %c0_i32_0 = arith.constant 0 : i32
    %c0_i32_1 = arith.constant 0 : i32
    return %c0_i32, %c0_i32_0 : i32, i32
  }
  func.func @transform_11(%arg0: i32) -> (i32, i32) {
    %c0_i32 = arith.constant 0 : i32
    %c0_i32_0 = arith.constant 0 : i32
    %c0_i32_1 = arith.constant 0 : i32
    return %c0_i32, %c0_i32_0 : i32, i32
  }
  func.func @transform_12(%arg0: i32) -> (i32, i32) {
    %c0_i32 = arith.constant 0 : i32
    %c0_i32_0 = arith.constant 0 : i32
    %c0_i32_1 = arith.constant 0 : i32
    return %c0_i32, %c0_i32_0 : i32, i32
  }
  func.func @transform_13(%arg0: i32) -> (i32, i32) {
    %c0_i32 = arith.constant 0 : i32
    %c0_i32_0 = arith.constant 0 : i32
    %c0_i32_1 = arith.constant 0 : i32
    return %c0_i32, %c0_i32_0 : i32, i32
  }
  func.func @transform_14(%arg0: i32) -> (i32, i32) {
    %c0_i32 = arith.constant 0 : i32
    %c0_i32_0 = arith.constant 0 : i32
    %c0_i32_1 = arith.constant 0 : i32
    return %c0_i32, %c0_i32_0 : i32, i32
  }
  func.func @transform_15(%arg0: i32) -> (i32, i32) {
    %c0_i32 = arith.constant 0 : i32
    %c0_i32_0 = arith.constant 0 : i32
    %c0_i32_1 = arith.constant 0 : i32
    return %c0_i32, %c0_i32_0 : i32, i32
  }
  func.func @transform_16(%arg0: i32) -> (i32, i32) {
    %c0_i32 = arith.constant 0 : i32
    %c0_i32_0 = arith.constant 0 : i32
    %c0_i32_1 = arith.constant 0 : i32
    return %c0_i32, %c0_i32_0 : i32, i32
  }
  func.func @transform_17(%arg0: i32) -> (i32, i32, i32) {
    %c0_i32 = arith.constant 0 : i32
    %c0_i32_0 = arith.constant 0 : i32
    %c0_i32_1 = arith.constant 0 : i32
    %c0_i32_2 = arith.constant 0 : i32
    return %c0_i32, %c0_i32_0, %c0_i32_1 : i32, i32, i32
  }
  func.func @transform_18(%arg0: i32) -> (i32, i32, i32) {
    %c0_i32 = arith.constant 0 : i32
    %c0_i32_0 = arith.constant 0 : i32
    %c0_i32_1 = arith.constant 0 : i32
    %c0_i32_2 = arith.constant 0 : i32
    return %c0_i32, %c0_i32_0, %c0_i32_1 : i32, i32, i32
  }
  func.func @transform_19(%arg0: i32) -> (i32, i32) {
    %c0_i32 = arith.constant 0 : i32
    %c0_i32_0 = arith.constant 0 : i32
    %c0_i32_1 = arith.constant 0 : i32
    return %c0_i32, %c0_i32_0 : i32, i32
  }
  func.func @transform_20(%arg0: i32) -> (i32, i32) {
    %c0_i32 = arith.constant 0 : i32
    %c0_i32_0 = arith.constant 0 : i32
    %c0_i32_1 = arith.constant 0 : i32
    return %c0_i32, %c0_i32_0 : i32, i32
  }
  func.func @transform_21(%arg0: i32) -> (i32, i32) {
    %c0_i32 = arith.constant 0 : i32
    %c0_i32_0 = arith.constant 0 : i32
    %c0_i32_1 = arith.constant 0 : i32
    return %c0_i32, %c0_i32_0 : i32, i32
  }
  func.func @transform_22(%arg0: i32) -> (i32, i32) {
    %c0_i32 = arith.constant 0 : i32
    %c0_i32_0 = arith.constant 0 : i32
    %c0_i32_1 = arith.constant 0 : i32
    return %c0_i32, %c0_i32_0 : i32, i32
  }
  func.func @transform_23(%arg0: i32) -> (i32, i32, i32) {
    %c0_i32 = arith.constant 0 : i32
    %c0_i32_0 = arith.constant 0 : i32
    %c0_i32_1 = arith.constant 0 : i32
    return %arg0, %c0_i32, %c0_i32_0 : i32, i32, i32
  }
  func.func @transform_24(%arg0: i32) -> (i32, i32, i32) {
    %c0_i32 = arith.constant 0 : i32
    %c0_i32_0 = arith.constant 0 : i32
    %c0_i32_1 = arith.constant 0 : i32
    return %arg0, %c0_i32, %c0_i32_0 : i32, i32, i32
  }
}

</mosaic_0001>

<llo_original>
// kernel: model_feature_forward.1
$region0: #{model_feature_forward.1}
  #allocation0 [shape = 'u32[]', space=smem, size = 0x4, offset = 0x4, fixed_abs, tag = 'smem constant byte address 0x4 - core index']
  #allocation1 [shape = 'u32[144,128]{1,0:T(1,128)}', space=vmem, size = 0x12000, scoped, tag = 'internal scratch']
  %s0 = inlined_call_operand.vmem [shape: bf16[2,16,256], index: 0, kind: input, shape index: {}]
  %s1 = inlined_call_operand.vmem [shape: bf16[9,16,16], index: 1, kind: input, shape index: {}]
  %s2 = inlined_call_operand.vmem [shape: bf16[256,64], index: 2, kind: input, shape index: {}]
  %s3 = inlined_call_operand.vmem [shape: f32[1,64], index: 3, kind: input, shape index: {}]
  %s4 = inlined_call_operand.vmem [shape: bf16[576,32], index: 4, kind: input, shape index: {}]
  %s5 = inlined_call_operand.vmem [shape: f32[1,32], index: 5, kind: input, shape index: {}]
  %s6 = inlined_call_operand.vmem [shape: bf16[288,32], index: 6, kind: input, shape index: {}]
  %s7 = inlined_call_operand.vmem [shape: f32[1,32], index: 7, kind: input, shape index: {}]
  %s8 = inlined_call_operand.vmem [shape: bf16[2,288,8], index: 8, kind: input, shape index: {}]
  %s9 = inlined_call_operand.vmem [shape: bf16[2,8,32], index: 9, kind: input, shape index: {}]
  %s10 = inlined_call_operand.vmem [shape: bf16[32,8], index: 10, kind: input, shape index: {}]
  %s11 = inlined_call_operand.vmem [shape: f32[1,8], index: 11, kind: input, shape index: {}]
  %s12 = inlined_call_operand.vmem [shape: f32[128,8], index: 12, kind: input, shape index: {}]
  %s13 = inlined_call_operand.vmem [shape: f32[8,128], index: 13, kind: input, shape index: {}]
  %s14 = inlined_call_operand.vmem [shape: f32[1,128], index: 14, kind: input, shape index: {}]
  %s15 = inlined_call_operand.vmem [shape: bf16[72,32], index: 15, kind: input, shape index: {}]
  %s16 = inlined_call_operand.vmem [shape: f32[1,32], index: 16, kind: input, shape index: {}]
  %s17 = inlined_call_operand.vmem [shape: bf16[2,288,8], index: 17, kind: input, shape index: {}]
  %s18 = inlined_call_operand.vmem [shape: bf16[2,8,32], index: 18, kind: input, shape index: {}]
  %s19 = inlined_call_operand.vmem [shape: bf16[288,64], index: 19, kind: input, shape index: {}]
  %s20 = inlined_call_operand.vmem [shape: f32[1,64], index: 20, kind: input, shape index: {}]
  %s21 = inlined_call_operand.vmem [shape: bf16[576,128], index: 21, kind: input, shape index: {}]
  %s22 = inlined_call_operand.vmem [shape: f32[1,128], index: 22, kind: input, shape index: {}]
  %s23 = inlined_call_operand.vmem [shape: f32[2,16,128], index: 23, kind: output, shape index: {0}]
  %s24 = inlined_call_operand.vmem [shape: f32[2,2,128], index: 24, kind: output, shape index: {1}]
  %25 = xla_tuple %s23, %s24
  %s26 = sld [smem:[#allocation0]]
  $region133: #{model_feature_forward.1} parent=0
    _
  %s28 = ssub.s32 1, %s26
  %s29 = scalar_select 0, %s28, %s26
  loop: start=0, step=1, limit=4
  $region2: #{model_feature_forward.1} parent=0 // loop_pre_header
    _
  $region3: #{model_feature_forward.1} parent=0 // loop_header
    %s31 = sphi 0, %s35
    %p32 = scmp.ge.s32.totalorder %s31, 4
    %s41 = sphi 0, %s43
    %s44 = sphi 0, %s41
    %s45 = sphi 0, %s44
    %s61 = sphi 0, %s45
    %s65 = sphi 0, %s65
    %s67 = sphi 0, %s65
    %s68 = sphi 0, %s67
    %s82 = sphi 0, %s68
    %s86 = sphi 0, %s86
    %s88 = sphi 0, %s86
    %s89 = sphi 0, %s88
    %s103 = sphi 0, %s89
    %s107 = sphi 0, %s107
    %s109 = sphi 0, %s107
    %s110 = sphi 0, %s109
    %s124 = sphi 0, %s110
    %s128 = sphi 0, %s128
    %s130 = sphi 0, %s128
    %s131 = sphi 0, %s130
    %s145 = sphi 0, %s131
    %s149 = sphi 0, %s149
    %s151 = sphi 0, %s149
    %s152 = sphi 0, %s151
    %s166 = sphi 0, %s152
    %s170 = sphi 0, %s170
    %s172 = sphi 0, %s170
    %s173 = sphi 0, %s172
    %s187 = sphi 0, %s173
    %s191 = sphi 0, %s191
    %s193 = sphi 0, %s191
    %s194 = sphi 0, %s193
    %s208 = sphi 0, %s194
    %s212 = sphi 0, %s212
    %s214 = sphi 0, %s212
    %s215 = sphi 0, %s214
    %s229 = sphi 0, %s215
    %s233 = sphi 0, %s233
    %s235 = sphi 0, %s233
    %s236 = sphi 0, %s235
    %s250 = sphi 0, %s236
    %s254 = sphi 0, %s254
    %s256 = sphi 0, %s254
    %s257 = sphi 0, %s256
    %s271 = sphi 0, %s257
    %s275 = sphi 0, %s275
    %s277 = sphi 0, %s275
    %s278 = sphi 0, %s277
    %s292 = sphi 0, %s278
    %s296 = sphi 0, %s296
    %s298 = sphi 0, %s296
    %s299 = sphi 0, %s298
    %s313 = sphi 0, %s299
    %s317 = sphi 0, %s317
    %s319 = sphi 0, %s317
    %s320 = sphi 0, %s319
    %s334 = sphi 0, %s320
    %s338 = sphi 0, %s338
    %s340 = sphi 0, %s338
    %s341 = sphi 0, %s340
    %s355 = sphi 0, %s341
    %s359 = sphi 0, %s359
    %s361 = sphi 0, %s359
    %s362 = sphi 0, %s361
    %s376 = sphi 0, %s362
    %s380 = sphi 0, %s380
    %s382 = sphi 0, %s380
    %s383 = sphi 0, %s382
    %s397 = sphi 0, %s383
    %s401 = sphi 0, %s401
    %s403 = sphi 0, %s401
    %s404 = sphi 0, %s403
    %s418 = sphi 0, %s404
    %s422 = sphi 0, %s422
    %s424 = sphi 0, %s422
    %s425 = sphi 0, %s424
    %s439 = sphi 0, %s425
    %s443 = sphi 0, %s443
    %s445 = sphi 0, %s443
    %s446 = sphi 0, %s445
    %s460 = sphi 0, %s446
    %s464 = sphi 0, %s464
    %s466 = sphi 0, %s464
    %s467 = sphi 0, %s466
    %s481 = sphi 0, %s467
    %s485 = sphi 0, %s485
    %s487 = sphi 0, %s485
    %s488 = sphi 0, %s487
    %s502 = sphi 0, %s488
    %s506 = sphi 0, %s506
    %s508 = sphi 0, %s506
    %s509 = sphi 0, %s508
    %s523 = sphi 0, %s509
    %s529 = sphi 0, %s531
    %s532 = sphi 0, %s529
    %s533 = sphi 0, %s532
    %s549 = sphi 0, %s533
    %s555 = sphi 0, %s557
    %s558 = sphi 0, %s555
    %s559 = sphi 0, %s558
    %s575 = sphi 0, %s559
  $region4: #{model_feature_forward.1} parent=0 // loop_header_branch
    %34 = sbr.rel (%p32) target = $region8
  $region5: #{model_feature_forward.1} parent=0 // loop_body
    %s36 = ssub.s32 %s31, 1
    %s37 = ssub.s32 %s31, 2
    %s38 = sadd.s32 %s31, 1
    %s39 = ssub.s32 %s31, %s38
    %p40 = scmp.eq.s32.totalorder %s39, 0
    %s42 = sadd.s32 %s41, 1
    %s43 = scalar_select %p40, %s41, %s42
    %p46 = pneg %p40
    %p47 = scmp.eq.s32.totalorder %s31, 1
    %p48 = por %p46, %p47
    %p49 = scmp.ne.s32.totalorder %s41, %s44
    %p50 = scmp.eq.s32.totalorder %s31, 0
    %p51 = por %p49, %p50
    %p52 = scmp.ne.s32.totalorder %s41, %s44
    %p53 = scmp.eq.s32.totalorder %s36, 1
    %p54 = por %p52, %p53
    %p55 = scmp.ne.s32.totalorder %s44, %s45
    %p56 = scmp.eq.s32.totalorder %s36, 0
    %p57 = por %p55, %p56
    %p58 = scmp.ne.s32.totalorder %s44, %s45
    %p59 = scmp.eq.s32.totalorder %s37, 1
    %p60 = por %p58, %p59
    %p62 = scmp.ne.s32.totalorder %s45, %s61
    %p63 = scmp.eq.s32.totalorder %s37, 0
    %p64 = por %p62, %p63
    %s66 = sadd.s32 %s65, 1
    %p69 = scmp.eq.s32.totalorder %s31, 1
    %p70 = scmp.ne.s32.totalorder %s65, %s67
    %p71 = scmp.eq.s32.totalorder %s31, 0
    %p72 = por %p70, %p71
    %p73 = scmp.ne.s32.totalorder %s65, %s67
    %p74 = scmp.eq.s32.totalorder %s36, 1
    %p75 = por %p73, %p74
    %p76 = scmp.ne.s32.totalorder %s67, %s68
    %p77 = scmp.eq.s32.totalorder %s36, 0
    %p78 = por %p76, %p77
    %p79 = scmp.ne.s32.totalorder %s67, %s68
    %p80 = scmp.eq.s32.totalorder %s37, 1
    %p81 = por %p79, %p80
    %p83 = scmp.ne.s32.totalorder %s68, %s82
    %p84 = scmp.eq.s32.totalorder %s37, 0
    %p85 = por %p83, %p84
    %s87 = sadd.s32 %s86, 1
    %p90 = scmp.eq.s32.totalorder %s31, 1
    %p91 = scmp.ne.s32.totalorder %s86, %s88
    %p92 = scmp.eq.s32.totalorder %s31, 0
    %p93 = por %p91, %p92
    %p94 = scmp.ne.s32.totalorder %s86, %s88
    %p95 = scmp.eq.s32.totalorder %s36, 1
    %p96 = por %p94, %p95
    %p97 = scmp.ne.s32.totalorder %s88, %s89
    %p98 = scmp.eq.s32.totalorder %s36, 0
    %p99 = por %p97, %p98
    %p100 = scmp.ne.s32.totalorder %s88, %s89
    %p101 = scmp.eq.s32.totalorder %s37, 1
    %p102 = por %p100, %p101
    %p104 = scmp.ne.s32.totalorder %s89, %s103
    %p105 = scmp.eq.s32.totalorder %s37, 0
    %p106 = por %p104, %p105
    %s108 = sadd.s32 %s107, 1
    %p111 = scmp.eq.s32.totalorder %s31, 1
    %p112 = scmp.ne.s32.totalorder %s107, %s109
    %p113 = scmp.eq.s32.totalorder %s31, 0
    %p114 = por %p112, %p113
    %p115 = scmp.ne.s32.totalorder %s107, %s109
    %p116 = scmp.eq.s32.totalorder %s36, 1
    %p117 = por %p115, %p116
    %p118 = scmp.ne.s32.totalorder %s109, %s110
    %p119 = scmp.eq.s32.totalorder %s36, 0
    %p120 = por %p118, %p119
    %p121 = scmp.ne.s32.totalorder %s109, %s110
    %p122 = scmp.eq.s32.totalorder %s37, 1
    %p123 = por %p121, %p122
    %p125 = scmp.ne.s32.totalorder %s110, %s124
    %p126 = scmp.eq.s32.totalorder %s37, 0
    %p127 = por %p125, %p126
    %s129 = sadd.s32 %s128, 1
    %p132 = scmp.eq.s32.totalorder %s31, 1
    %p133 = scmp.ne.s32.totalorder %s128, %s130
    %p134 = scmp.eq.s32.totalorder %s31, 0
    %p135 = por %p133, %p134
    %p136 = scmp.ne.s32.totalorder %s128, %s130
    %p137 = scmp.eq.s32.totalorder %s36, 1
    %p138 = por %p136, %p137
    %p139 = scmp.ne.s32.totalorder %s130, %s131
    %p140 = scmp.eq.s32.totalorder %s36, 0
    %p141 = por %p139, %p140
    %p142 = scmp.ne.s32.totalorder %s130, %s131
    %p143 = scmp.eq.s32.totalorder %s37, 1
    %p144 = por %p142, %p143
    %p146 = scmp.ne.s32.totalorder %s131, %s145
    %p147 = scmp.eq.s32.totalorder %s37, 0
    %p148 = por %p146, %p147
    %s150 = sadd.s32 %s149, 1
    %p153 = scmp.eq.s32.totalorder %s31, 1
    %p154 = scmp.ne.s32.totalorder %s149, %s151
    %p155 = scmp.eq.s32.totalorder %s31, 0
    %p156 = por %p154, %p155
    %p157 = scmp.ne.s32.totalorder %s149, %s151
    %p158 = scmp.eq.s32.totalorder %s36, 1
    %p159 = por %p157, %p158
    %p160 = scmp.ne.s32.totalorder %s151, %s152
    %p161 = scmp.eq.s32.totalorder %s36, 0
    %p162 = por %p160, %p161
    %p163 = scmp.ne.s32.totalorder %s151, %s152
    %p164 = scmp.eq.s32.totalorder %s37, 1
    %p165 = por %p163, %p164
    %p167 = scmp.ne.s32.totalorder %s152, %s166
    %p168 = scmp.eq.s32.totalorder %s37, 0
    %p169 = por %p167, %p168
    %s171 = sadd.s32 %s170, 1
    %p174 = scmp.eq.s32.totalorder %s31, 1
    %p175 = scmp.ne.s32.totalorder %s170, %s172
    %p176 = scmp.eq.s32.totalorder %s31, 0
    %p177 = por %p175, %p176
    %p178 = scmp.ne.s32.totalorder %s170, %s172
    %p179 = scmp.eq.s32.totalorder %s36, 1
    %p180 = por %p178, %p179
    %p181 = scmp.ne.s32.totalorder %s172, %s173
    %p182 = scmp.eq.s32.totalorder %s36, 0
    %p183 = por %p181, %p182
    %p184 = scmp.ne.s32.totalorder %s172, %s173
    %p185 = scmp.eq.s32.totalorder %s37, 1
    %p186 = por %p184, %p185
    %p188 = scmp.ne.s32.totalorder %s173, %s187
    %p189 = scmp.eq.s32.totalorder %s37, 0
    %p190 = por %p188, %p189
    %s192 = sadd.s32 %s191, 1
    %p195 = scmp.eq.s32.totalorder %s31, 1
    %p196 = scmp.ne.s32.totalorder %s191, %s193
    %p197 = scmp.eq.s32.totalorder %s31, 0
    %p198 = por %p196, %p197
    %p199 = scmp.ne.s32.totalorder %s191, %s193
    %p200 = scmp.eq.s32.totalorder %s36, 1
    %p201 = por %p199, %p200
    %p202 = scmp.ne.s32.totalorder %s193, %s194
    %p203 = scmp.eq.s32.totalorder %s36, 0
    %p204 = por %p202, %p203
    %p205 = scmp.ne.s32.totalorder %s193, %s194
    %p206 = scmp.eq.s32.totalorder %s37, 1
    %p207 = por %p205, %p206
    %p209 = scmp.ne.s32.totalorder %s194, %s208
    %p210 = scmp.eq.s32.totalorder %s37, 0
    %p211 = por %p209, %p210
    %s213 = sadd.s32 %s212, 1
    %p216 = scmp.eq.s32.totalorder %s31, 1
    %p217 = scmp.ne.s32.totalorder %s212, %s214
    %p218 = scmp.eq.s32.totalorder %s31, 0
    %p219 = por %p217, %p218
    %p220 = scmp.ne.s32.totalorder %s212, %s214
    %p221 = scmp.eq.s32.totalorder %s36, 1
    %p222 = por %p220, %p221
    %p223 = scmp.ne.s32.totalorder %s214, %s215
    %p224 = scmp.eq.s32.totalorder %s36, 0
    %p225 = por %p223, %p224
    %p226 = scmp.ne.s32.totalorder %s214, %s215
    %p227 = scmp.eq.s32.totalorder %s37, 1
    %p228 = por %p226, %p227
    %p230 = scmp.ne.s32.totalorder %s215, %s229
    %p231 = scmp.eq.s32.totalorder %s37, 0
    %p232 = por %p230, %p231
    %s234 = sadd.s32 %s233, 1
    %p237 = scmp.eq.s32.totalorder %s31, 1
    %p238 = scmp.ne.s32.totalorder %s233, %s235
    %p239 = scmp.eq.s32.totalorder %s31, 0
    %p240 = por %p238, %p239
    %p241 = scmp.ne.s32.totalorder %s233, %s235
    %p242 = scmp.eq.s32.totalorder %s36, 1
    %p243 = por %p241, %p242
    %p244 = scmp.ne.s32.totalorder %s235, %s236
    %p245 = scmp.eq.s32.totalorder %s36, 0
    %p246 = por %p244, %p245
    %p247 = scmp.ne.s32.totalorder %s235, %s236
    %p248 = scmp.eq.s32.totalorder %s37, 1
    %p249 = por %p247, %p248
    %p251 = scmp.ne.s32.totalorder %s236, %s250
    %p252 = scmp.eq.s32.totalorder %s37, 0
    %p253 = por %p251, %p252
    %s255 = sadd.s32 %s254, 1
    %p258 = scmp.eq.s32.totalorder %s31, 1
    %p259 = scmp.ne.s32.totalorder %s254, %s256
    %p260 = scmp.eq.s32.totalorder %s31, 0
    %p261 = por %p259, %p260
    %p262 = scmp.ne.s32.totalorder %s254, %s256
    %p263 = scmp.eq.s32.totalorder %s36, 1
    %p264 = por %p262, %p263
    %p265 = scmp.ne.s32.totalorder %s256, %s257
    %p266 = scmp.eq.s32.totalorder %s36, 0
    %p267 = por %p265, %p266
    %p268 = scmp.ne.s32.totalorder %s256, %s257
    %p269 = scmp.eq.s32.totalorder %s37, 1
    %p270 = por %p268, %p269
    %p272 = scmp.ne.s32.totalorder %s257, %s271
    %p273 = scmp.eq.s32.totalorder %s37, 0
    %p274 = por %p272, %p273
    %s276 = sadd.s32 %s275, 1
    %p279 = scmp.eq.s32.totalorder %s31, 1
    %p280 = scmp.ne.s32.totalorder %s275, %s277
    %p281 = scmp.eq.s32.totalorder %s31, 0
    %p282 = por %p280, %p281
    %p283 = scmp.ne.s32.totalorder %s275, %s277
    %p284 = scmp.eq.s32.totalorder %s36, 1
    %p285 = por %p283, %p284
    %p286 = scmp.ne.s32.totalorder %s277, %s278
    %p287 = scmp.eq.s32.totalorder %s36, 0
    %p288 = por %p286, %p287
    %p289 = scmp.ne.s32.totalorder %s277, %s278
    %p290 = scmp.eq.s32.totalorder %s37, 1
    %p291 = por %p289, %p290
    %p293 = scmp.ne.s32.totalorder %s278, %s292
    %p294 = scmp.eq.s32.totalorder %s37, 0
    %p295 = por %p293, %p294
    %s297 = sadd.s32 %s296, 1
    %p300 = scmp.eq.s32.totalorder %s31, 1
    %p301 = scmp.ne.s32.totalorder %s296, %s298
    %p302 = scmp.eq.s32.totalorder %s31, 0
    %p303 = por %p301, %p302
    %p304 = scmp.ne.s32.totalorder %s296, %s298
    %p305 = scmp.eq.s32.totalorder %s36, 1
    %p306 = por %p304, %p305
    %p307 = scmp.ne.s32.totalorder %s298, %s299
    %p308 = scmp.eq.s32.totalorder %s36, 0
    %p309 = por %p307, %p308
    %p310 = scmp.ne.s32.totalorder %s298, %s299
    %p311 = scmp.eq.s32.totalorder %s37, 1
    %p312 = por %p310, %p311
    %p314 = scmp.ne.s32.totalorder %s299, %s313
    %p315 = scmp.eq.s32.totalorder %s37, 0
    %p316 = por %p314, %p315
    %s318 = sadd.s32 %s317, 1
    %p321 = scmp.eq.s32.totalorder %s31, 1
    %p322 = scmp.ne.s32.totalorder %s317, %s319
    %p323 = scmp.eq.s32.totalorder %s31, 0
    %p324 = por %p322, %p323
    %p325 = scmp.ne.s32.totalorder %s317, %s319
    %p326 = scmp.eq.s32.totalorder %s36, 1
    %p327 = por %p325, %p326
    %p328 = scmp.ne.s32.totalorder %s319, %s320
    %p329 = scmp.eq.s32.totalorder %s36, 0
    %p330 = por %p328, %p329
    %p331 = scmp.ne.s32.totalorder %s319, %s320
    %p332 = scmp.eq.s32.totalorder %s37, 1
    %p333 = por %p331, %p332
    %p335 = scmp.ne.s32.totalorder %s320, %s334
    %p336 = scmp.eq.s32.totalorder %s37, 0
    %p337 = por %p335, %p336
    %s339 = sadd.s32 %s338, 1
    %p342 = scmp.eq.s32.totalorder %s31, 1
    %p343 = scmp.ne.s32.totalorder %s338, %s340
    %p344 = scmp.eq.s32.totalorder %s31, 0
    %p345 = por %p343, %p344
    %p346 = scmp.ne.s32.totalorder %s338, %s340
    %p347 = scmp.eq.s32.totalorder %s36, 1
    %p348 = por %p346, %p347
    %p349 = scmp.ne.s32.totalorder %s340, %s341
    %p350 = scmp.eq.s32.totalorder %s36, 0
    %p351 = por %p349, %p350
    %p352 = scmp.ne.s32.totalorder %s340, %s341
    %p353 = scmp.eq.s32.totalorder %s37, 1
    %p354 = por %p352, %p353
    %p356 = scmp.ne.s32.totalorder %s341, %s355
    %p357 = scmp.eq.s32.totalorder %s37, 0
    %p358 = por %p356, %p357
    %s360 = sadd.s32 %s359, 1
    %p363 = scmp.eq.s32.totalorder %s31, 1
    %p364 = scmp.ne.s32.totalorder %s359, %s361
    %p365 = scmp.eq.s32.totalorder %s31, 0
    %p366 = por %p364, %p365
    %p367 = scmp.ne.s32.totalorder %s359, %s361
    %p368 = scmp.eq.s32.totalorder %s36, 1
    %p369 = por %p367, %p368
    %p370 = scmp.ne.s32.totalorder %s361, %s362
    %p371 = scmp.eq.s32.totalorder %s36, 0
    %p372 = por %p370, %p371
    %p373 = scmp.ne.s32.totalorder %s361, %s362
    %p374 = scmp.eq.s32.totalorder %s37, 1
    %p375 = por %p373, %p374
    %p377 = scmp.ne.s32.totalorder %s362, %s376
    %p378 = scmp.eq.s32.totalorder %s37, 0
    %p379 = por %p377, %p378
    %s381 = sadd.s32 %s380, 1
    %p384 = scmp.eq.s32.totalorder %s31, 1
    %p385 = scmp.ne.s32.totalorder %s380, %s382
    %p386 = scmp.eq.s32.totalorder %s31, 0
    %p387 = por %p385, %p386
    %p388 = scmp.ne.s32.totalorder %s380, %s382
    %p389 = scmp.eq.s32.totalorder %s36, 1
    %p390 = por %p388, %p389
    %p391 = scmp.ne.s32.totalorder %s382, %s383
    %p392 = scmp.eq.s32.totalorder %s36, 0
    %p393 = por %p391, %p392
    %p394 = scmp.ne.s32.totalorder %s382, %s383
    %p395 = scmp.eq.s32.totalorder %s37, 1
    %p396 = por %p394, %p395
    %p398 = scmp.ne.s32.totalorder %s383, %s397
    %p399 = scmp.eq.s32.totalorder %s37, 0
    %p400 = por %p398, %p399
    %s402 = sadd.s32 %s401, 1
    %p405 = scmp.eq.s32.totalorder %s31, 1
    %p406 = scmp.ne.s32.totalorder %s401, %s403
    %p407 = scmp.eq.s32.totalorder %s31, 0
    %p408 = por %p406, %p407
    %p409 = scmp.ne.s32.totalorder %s401, %s403
    %p410 = scmp.eq.s32.totalorder %s36, 1
    %p411 = por %p409, %p410
    %p412 = scmp.ne.s32.totalorder %s403, %s404
    %p413 = scmp.eq.s32.totalorder %s36, 0
    %p414 = por %p412, %p413
    %p415 = scmp.ne.s32.totalorder %s403, %s404
    %p416 = scmp.eq.s32.totalorder %s37, 1
    %p417 = por %p415, %p416
    %p419 = scmp.ne.s32.totalorder %s404, %s418
    %p420 = scmp.eq.s32.totalorder %s37, 0
    %p421 = por %p419, %p420
    %s423 = sadd.s32 %s422, 1
    %p426 = scmp.eq.s32.totalorder %s31, 1
    %p427 = scmp.ne.s32.totalorder %s422, %s424
    %p428 = scmp.eq.s32.totalorder %s31, 0
    %p429 = por %p427, %p428
    %p430 = scmp.ne.s32.totalorder %s422, %s424
    %p431 = scmp.eq.s32.totalorder %s36, 1
    %p432 = por %p430, %p431
    %p433 = scmp.ne.s32.totalorder %s424, %s425
    %p434 = scmp.eq.s32.totalorder %s36, 0
    %p435 = por %p433, %p434
    %p436 = scmp.ne.s32.totalorder %s424, %s425
    %p437 = scmp.eq.s32.totalorder %s37, 1
    %p438 = por %p436, %p437
    %p440 = scmp.ne.s32.totalorder %s425, %s439
    %p441 = scmp.eq.s32.totalorder %s37, 0
    %p442 = por %p440, %p441
    %s444 = sadd.s32 %s443, 1
    %p447 = scmp.eq.s32.totalorder %s31, 1
    %p448 = scmp.ne.s32.totalorder %s443, %s445
    %p449 = scmp.eq.s32.totalorder %s31, 0
    %p450 = por %p448, %p449
    %p451 = scmp.ne.s32.totalorder %s443, %s445
    %p452 = scmp.eq.s32.totalorder %s36, 1
    %p453 = por %p451, %p452
    %p454 = scmp.ne.s32.totalorder %s445, %s446
    %p455 = scmp.eq.s32.totalorder %s36, 0
    %p456 = por %p454, %p455
    %p457 = scmp.ne.s32.totalorder %s445, %s446
    %p458 = scmp.eq.s32.totalorder %s37, 1
    %p459 = por %p457, %p458
    %p461 = scmp.ne.s32.totalorder %s446, %s460
    %p462 = scmp.eq.s32.totalorder %s37, 0
    %p463 = por %p461, %p462
    %s465 = sadd.s32 %s464, 1
    %p468 = scmp.eq.s32.totalorder %s31, 1
    %p469 = scmp.ne.s32.totalorder %s464, %s466
    %p470 = scmp.eq.s32.totalorder %s31, 0
    %p471 = por %p469, %p470
    %p472 = scmp.ne.s32.totalorder %s464, %s466
    %p473 = scmp.eq.s32.totalorder %s36, 1
    %p474 = por %p472, %p473
    %p475 = scmp.ne.s32.totalorder %s466, %s467
    %p476 = scmp.eq.s32.totalorder %s36, 0
    %p477 = por %p475, %p476
    %p478 = scmp.ne.s32.totalorder %s466, %s467
    %p479 = scmp.eq.s32.totalorder %s37, 1
    %p480 = por %p478, %p479
    %p482 = scmp.ne.s32.totalorder %s467, %s481
    %p483 = scmp.eq.s32.totalorder %s37, 0
    %p484 = por %p482, %p483
    %s486 = sadd.s32 %s485, 1
    %p489 = scmp.eq.s32.totalorder %s31, 1
    %p490 = scmp.ne.s32.totalorder %s485, %s487
    %p491 = scmp.eq.s32.totalorder %s31, 0
    %p492 = por %p490, %p491
    %p493 = scmp.ne.s32.totalorder %s485, %s487
    %p494 = scmp.eq.s32.totalorder %s36, 1
    %p495 = por %p493, %p494
    %p496 = scmp.ne.s32.totalorder %s487, %s488
    %p497 = scmp.eq.s32.totalorder %s36, 0
    %p498 = por %p496, %p497
    %p499 = scmp.ne.s32.totalorder %s487, %s488
    %p500 = scmp.eq.s32.totalorder %s37, 1
    %p501 = por %p499, %p500
    %p503 = scmp.ne.s32.totalorder %s488, %s502
    %p504 = scmp.eq.s32.totalorder %s37, 0
    %p505 = por %p503, %p504
    %s507 = sadd.s32 %s506, 1
    %p510 = scmp.eq.s32.totalorder %s31, 1
    %p511 = scmp.ne.s32.totalorder %s506, %s508
    %p512 = scmp.eq.s32.totalorder %s31, 0
    %p513 = por %p511, %p512
    %p514 = scmp.ne.s32.totalorder %s506, %s508
    %p515 = scmp.eq.s32.totalorder %s36, 1
    %p516 = por %p514, %p515
    %p517 = scmp.ne.s32.totalorder %s508, %s509
    %p518 = scmp.eq.s32.totalorder %s36, 0
    %p519 = por %p517, %p518
    %p520 = scmp.ne.s32.totalorder %s508, %s509
    %p521 = scmp.eq.s32.totalorder %s37, 1
    %p522 = por %p520, %p521
    %p524 = scmp.ne.s32.totalorder %s509, %s523
    %p525 = scmp.eq.s32.totalorder %s37, 0
    %p526 = por %p524, %p525
    %s527 = ssub.s32 %s31, %s38
    %p528 = scmp.eq.s32.totalorder %s527, 0
    %s530 = sadd.s32 %s529, 1
    %s531 = scalar_select %p528, %s529, %s530
    %p534 = pneg %p528
    %p535 = scmp.eq.s32.totalorder %s31, 1
    %p536 = por %p534, %p535
    %p537 = scmp.ne.s32.totalorder %s529, %s532
    %p538 = scmp.eq.s32.totalorder %s31, 0
    %p539 = por %p537, %p538
    %p540 = scmp.ne.s32.totalorder %s529, %s532
    %p541 = scmp.eq.s32.totalorder %s36, 1
    %p542 = por %p540, %p541
    %p543 = scmp.ne.s32.totalorder %s532, %s533
    %p544 = scmp.eq.s32.totalorder %s36, 0
    %p545 = por %p543, %p544
    %p546 = scmp.ne.s32.totalorder %s532, %s533
    %p547 = scmp.eq.s32.totalorder %s37, 1
    %p548 = por %p546, %p547
    %p550 = scmp.ne.s32.totalorder %s533, %s549
    %p551 = scmp.eq.s32.totalorder %s37, 0
    %p552 = por %p550, %p551
    %s553 = ssub.s32 %s31, %s38
    %p554 = scmp.eq.s32.totalorder %s553, 0
    %s556 = sadd.s32 %s555, 1
    %s557 = scalar_select %p554, %s555, %s556
    %p560 = pneg %p554
    %p561 = scmp.eq.s32.totalorder %s31, 1
    %p562 = por %p560, %p561
    %p563 = scmp.ne.s32.totalorder %s555, %s558
    %p564 = scmp.eq.s32.totalorder %s31, 0
    %p565 = por %p563, %p564
    %p566 = scmp.ne.s32.totalorder %s555, %s558
    %p567 = scmp.eq.s32.totalorder %s36, 1
    %p568 = por %p566, %p567
    %p569 = scmp.ne.s32.totalorder %s558, %s559
    %p570 = scmp.eq.s32.totalorder %s36, 0
    %p571 = por %p569, %p570
    %p572 = scmp.ne.s32.totalorder %s558, %s559
    %p573 = scmp.eq.s32.totalorder %s37, 1
    %p574 = por %p572, %p573
    %p576 = scmp.ne.s32.totalorder %s559, %s575
    %p577 = scmp.eq.s32.totalorder %s37, 0
    %p578 = por %p576, %p577
    %p579 = scmp.le.s32.totalorder 1, %s31
    %p580 = scmp.lt.s32.totalorder %s31, 3
    %p581 = pnand %p579, %p580
    %p582 = pneg %p581
    // Predicated region
    $region9: #{model_feature_forward.1} parent=5 // pred_check
      _
    $region10: #{model_feature_forward.1} parent=5 // pred_check_branch
      %584 = sbr.rel (%p581) target = $region12
    $region11: #{model_feature_forward.1} parent=5 // pred_region
      %s585 = ssub.s32 %s31, 1
      // Predicated region
      $region13: #{model_feature_forward.1} parent=11 // pred_check
        %p586 = pneg %p78
      $region14: #{model_feature_forward.1} parent=11 // pred_check_branch
        %588 = sbr.rel (%p586) target = $region16
      $region15: #{model_feature_forward.1} parent=11 // pred_region
        _
      $region16: #{model_feature_forward.1} parent=11 // pred_fallthru
        _
      // Predicated region
      $region17: #{model_feature_forward.1} parent=11 // pred_check
        %p589 = pneg %p99
      $region18: #{model_feature_forward.1} parent=11 // pred_check_branch
        %591 = sbr.rel (%p589) target = $region20
      $region19: #{model_feature_forward.1} parent=11 // pred_region
        _
      $region20: #{model_feature_forward.1} parent=11 // pred_fallthru
        _
      // Predicated region
      $region21: #{model_feature_forward.1} parent=11 // pred_check
        %p592 = pneg %p120
      $region22: #{model_feature_forward.1} parent=11 // pred_check_branch
        %594 = sbr.rel (%p592) target = $region24
      $region23: #{model_feature_forward.1} parent=11 // pred_region
        _
      $region24: #{model_feature_forward.1} parent=11 // pred_fallthru
        _
      // Predicated region
      $region25: #{model_feature_forward.1} parent=11 // pred_check
        %p595 = pneg %p141
      $region26: #{model_feature_forward.1} parent=11 // pred_check_branch
        %597 = sbr.rel (%p595) target = $region28
      $region27: #{model_feature_forward.1} parent=11 // pred_region
        _
      $region28: #{model_feature_forward.1} parent=11 // pred_fallthru
        _
      // Predicated region
      $region29: #{model_feature_forward.1} parent=11 // pred_check
        %p598 = pneg %p162
      $region30: #{model_feature_forward.1} parent=11 // pred_check_branch
        %600 = sbr.rel (%p598) target = $region32
      $region31: #{model_feature_forward.1} parent=11 // pred_region
        _
      $region32: #{model_feature_forward.1} parent=11 // pred_fallthru
        _
      // Predicated region
      $region33: #{model_feature_forward.1} parent=11 // pred_check
        %p601 = pneg %p183
      $region34: #{model_feature_forward.1} parent=11 // pred_check_branch
        %603 = sbr.rel (%p601) target = $region36
      $region35: #{model_feature_forward.1} parent=11 // pred_region
        _
      $region36: #{model_feature_forward.1} parent=11 // pred_fallthru
        _
      // Predicated region
      $region37: #{model_feature_forward.1} parent=11 // pred_check
        %p604 = pneg %p204
      $region38: #{model_feature_forward.1} parent=11 // pred_check_branch
        %606 = sbr.rel (%p604) target = $region40
      $region39: #{model_feature_forward.1} parent=11 // pred_region
        _
      $region40: #{model_feature_forward.1} parent=11 // pred_fallthru
        _
      // Predicated region
      $region41: #{model_feature_forward.1} parent=11 // pred_check
        %p607 = pneg %p225
      $region42: #{model_feature_forward.1} parent=11 // pred_check_branch
        %609 = sbr.rel (%p607) target = $region44
      $region43: #{model_feature_forward.1} parent=11 // pred_region
        _
      $region44: #{model_feature_forward.1} parent=11 // pred_fallthru
        _
      // Predicated region
      $region45: #{model_feature_forward.1} parent=11 // pred_check
        %p610 = pneg %p246
      $region46: #{model_feature_forward.1} parent=11 // pred_check_branch
        %612 = sbr.rel (%p610) target = $region48
      $region47: #{model_feature_forward.1} parent=11 // pred_region
        _
      $region48: #{model_feature_forward.1} parent=11 // pred_fallthru
        _
      // Predicated region
      $region49: #{model_feature_forward.1} parent=11 // pred_check
        %p613 = pneg %p267
      $region50: #{model_feature_forward.1} parent=11 // pred_check_branch
        %615 = sbr.rel (%p613) target = $region52
      $region51: #{model_feature_forward.1} parent=11 // pred_region
        _
      $region52: #{model_feature_forward.1} parent=11 // pred_fallthru
        _
      // Predicated region
      $region53: #{model_feature_forward.1} parent=11 // pred_check
        %p616 = pneg %p288
      $region54: #{model_feature_forward.1} parent=11 // pred_check_branch
        %618 = sbr.rel (%p616) target = $region56
      $region55: #{model_feature_forward.1} parent=11 // pred_region
        _
      $region56: #{model_feature_forward.1} parent=11 // pred_fallthru
        _
      // Predicated region
      $region57: #{model_feature_forward.1} parent=11 // pred_check
        %p619 = pneg %p309
      $region58: #{model_feature_forward.1} parent=11 // pred_check_branch
        %621 = sbr.rel (%p619) target = $region60
      $region59: #{model_feature_forward.1} parent=11 // pred_region
        _
      $region60: #{model_feature_forward.1} parent=11 // pred_fallthru
        _
      // Predicated region
      $region61: #{model_feature_forward.1} parent=11 // pred_check
        %p622 = pneg %p330
      $region62: #{model_feature_forward.1} parent=11 // pred_check_branch
        %624 = sbr.rel (%p622) target = $region64
      $region63: #{model_feature_forward.1} parent=11 // pred_region
        _
      $region64: #{model_feature_forward.1} parent=11 // pred_fallthru
        _
      // Predicated region
      $region65: #{model_feature_forward.1} parent=11 // pred_check
        %p625 = pneg %p351
      $region66: #{model_feature_forward.1} parent=11 // pred_check_branch
        %627 = sbr.rel (%p625) target = $region68
      $region67: #{model_feature_forward.1} parent=11 // pred_region
        _
      $region68: #{model_feature_forward.1} parent=11 // pred_fallthru
        _
      // Predicated region
      $region69: #{model_feature_forward.1} parent=11 // pred_check
        %p628 = pneg %p372
      $region70: #{model_feature_forward.1} parent=11 // pred_check_branch
        %630 = sbr.rel (%p628) target = $region72
      $region71: #{model_feature_forward.1} parent=11 // pred_region
        _
      $region72: #{model_feature_forward.1} parent=11 // pred_fallthru
        _
      // Predicated region
      $region73: #{model_feature_forward.1} parent=11 // pred_check
        %p631 = pneg %p393
      $region74: #{model_feature_forward.1} parent=11 // pred_check_branch
        %633 = sbr.rel (%p631) target = $region76
      $region75: #{model_feature_forward.1} parent=11 // pred_region
        _
      $region76: #{model_feature_forward.1} parent=11 // pred_fallthru
        _
      // Predicated region
      $region77: #{model_feature_forward.1} parent=11 // pred_check
        %p634 = pneg %p414
      $region78: #{model_feature_forward.1} parent=11 // pred_check_branch
        %636 = sbr.rel (%p634) target = $region80
      $region79: #{model_feature_forward.1} parent=11 // pred_region
        _
      $region80: #{model_feature_forward.1} parent=11 // pred_fallthru
        _
      // Predicated region
      $region81: #{model_feature_forward.1} parent=11 // pred_check
        %p637 = pneg %p435
      $region82: #{model_feature_forward.1} parent=11 // pred_check_branch
        %639 = sbr.rel (%p637) target = $region84
      $region83: #{model_feature_forward.1} parent=11 // pred_region
        _
      $region84: #{model_feature_forward.1} parent=11 // pred_fallthru
        _
      // Predicated region
      $region85: #{model_feature_forward.1} parent=11 // pred_check
        %p640 = pneg %p456
      $region86: #{model_feature_forward.1} parent=11 // pred_check_branch
        %642 = sbr.rel (%p640) target = $region88
      $region87: #{model_feature_forward.1} parent=11 // pred_region
        _
      $region88: #{model_feature_forward.1} parent=11 // pred_fallthru
        _
      // Predicated region
      $region89: #{model_feature_forward.1} parent=11 // pred_check
        %p643 = pneg %p477
      $region90: #{model_feature_forward.1} parent=11 // pred_check_branch
        %645 = sbr.rel (%p643) target = $region92
      $region91: #{model_feature_forward.1} parent=11 // pred_region
        _
      $region92: #{model_feature_forward.1} parent=11 // pred_fallthru
        _
      // Predicated region
      $region93: #{model_feature_forward.1} parent=11 // pred_check
        %p646 = pneg %p498
      $region94: #{model_feature_forward.1} parent=11 // pred_check_branch
        %648 = sbr.rel (%p646) target = $region96
      $region95: #{model_feature_forward.1} parent=11 // pred_region
        _
      $region96: #{model_feature_forward.1} parent=11 // pred_fallthru
        _
      // Predicated region
      $region97: #{model_feature_forward.1} parent=11 // pred_check
        %p649 = pneg %p519
      $region98: #{model_feature_forward.1} parent=11 // pred_check_branch
        %651 = sbr.rel (%p649) target = $region100
      $region99: #{model_feature_forward.1} parent=11 // pred_region
        _
      $region100: #{model_feature_forward.1} parent=11 // pred_fallthru
        _
    $region12: #{model_feature_forward.1} parent=5 // pred_fallthru
      _
    %p652 = scmp.lt.s32.totalorder %s31, 2
    // Predicated region
    $region101: #{model_feature_forward.1} parent=5 // pred_check
      %p653 = pneg %p652
    $region102: #{model_feature_forward.1} parent=5 // pred_check_branch
      %655 = sbr.rel (%p653) target = $region104
    $region103: #{model_feature_forward.1} parent=5 // pred_region
      // Predicated region
      $region105: #{model_feature_forward.1} parent=103 // pred_check
        %p656 = pneg %p51
      $region106: #{model_feature_forward.1} parent=103 // pred_check_branch
        %658 = sbr.rel (%p656) target = $region108
      $region107: #{model_feature_forward.1} parent=103 // pred_region
        %p659 = scmp.lt.s32.totalorder %s31, 1
        %s660 = scalar_select %p659, %s31, 1
        %s661 = smul.addr %s660, 4
        %s662 = smul.addr %s661, 4
        %s663 = scalar_lea.vmem %s0, %s662
      $region108: #{model_feature_forward.1} parent=103 // pred_fallthru
        _
    $region104: #{model_feature_forward.1} parent=5 // pred_fallthru
      _
    %p664 = scmp.le.s32.totalorder 1, %s31
    %p665 = scmp.lt.s32.totalorder %s31, 3
    %p666 = pnand %p664, %p665
    %p667 = pneg %p666
    // Predicated region
    $region109: #{model_feature_forward.1} parent=5 // pred_check
      _
    $region110: #{model_feature_forward.1} parent=5 // pred_check_branch
      %669 = sbr.rel (%p666) target = $region112
    $region111: #{model_feature_forward.1} parent=5 // pred_region
      %s670 = ssub.s32 %s31, 1
      %p671 = scmp.lt.s32.totalorder %s36, 1
      %s672 = scalar_select %p671, %s36, 1
      %s673 = smul.addr %s672, 4
      %s674 = smul.addr %s673, 4
      %s675 = scalar_lea.vmem %s0, %s674
      %p676 = pneg %p57
      %p677 = pneg %p54
      %p678 = pneg %p78
      %p679 = pneg %p75
      %p680 = pneg %p99
      %p681 = pneg %p96
      %p682 = pneg %p120
      %p683 = pneg %p117
      %p684 = pneg %p141
      %p685 = pneg %p138
      %p686 = pneg %p162
      %p687 = pneg %p159
      %p688 = pneg %p183
      %p689 = pneg %p180
      %p690 = pneg %p204
      %p691 = pneg %p201
      %p692 = pneg %p225
      %p693 = pneg %p222
      %p694 = pneg %p246
      %p695 = pneg %p243
      %p696 = pneg %p267
      %p697 = pneg %p264
      %p698 = pneg %p288
      %p699 = pneg %p285
      %p700 = pneg %p309
      %p701 = pneg %p306
      %p702 = pneg %p330
      %p703 = pneg %p327
      %p704 = pneg %p351
      %p705 = pneg %p348
      %p706 = pneg %p372
      %p707 = pneg %p369
      %p708 = pneg %p393
      %p709 = pneg %p390
      %p710 = pneg %p414
      %p711 = pneg %p411
      %p712 = pneg %p435
      %p713 = pneg %p432
      %p714 = pneg %p456
      %p715 = pneg %p453
      %p716 = pneg %p477
      %p717 = pneg %p474
      %p718 = pneg %p498
      %p719 = pneg %p495
      %p720 = pneg %p519
      %p721 = pneg %p516
      %p722 = pneg %p545
      %p723 = pneg %p542
      %p724 = scmp.lt.s32.totalorder %s36, 1
      %s725 = scalar_select %p724, %s36, 1
      %s726 = smul.addr %s725, 2
      %s727 = smul.addr %s726, 8
      %s728 = scalar_lea.vmem %s23, %s727
      %p729 = pneg %p571
      %p730 = pneg %p568
      %p731 = scmp.lt.s32.totalorder %s36, 1
      %s732 = scalar_select %p731, %s36, 1
      %s733 = smul.addr %s732, 2
      %s734 = scalar_lea.vmem %s24, %s733
      %p735 = scmp.lt.s32.totalorder %s36, 1
      %s736 = scalar_select %p735, %s36, 1
      %s737 = smul.addr %s736, 4
      %s738 = smul.addr %s737, 4
      %s739 = scalar_lea.vmem %s0, %s738
      %p740 = scmp.lt.s32.totalorder %s36, 1
      %s741 = scalar_select %p740, %s36, 1
      %s742 = smul.addr %s741, 2
      %s743 = smul.addr %s742, 8
      %s744 = scalar_lea.vmem %s23, %s743
      %p745 = scmp.lt.s32.totalorder %s36, 1
      %s746 = scalar_select %p745, %s36, 1
      %s747 = smul.addr %s746, 2
      %s748 = scalar_lea.vmem %s24, %s747
      %v750 = vld [vmem:[%s1] sm:$0xf]
      %v751 = vld [vmem:[%s1 + $0x4] sm:$0xf]
      %v752 = vld [vmem:[%s1 + $0x8] sm:$0xf]
      %v753 = vld [vmem:[%s1 + $0xc] sm:$0xf]
      %v754 = vld [vmem:[%s1 + $0x10] sm:$0xf]
      %v755 = vld [vmem:[%s1 + $0x14] sm:$0xf]
      %v756 = vld [vmem:[%s1 + $0x18] sm:$0xf]
      %v757 = vld [vmem:[%s1 + $0x1c] sm:$0xf]
      %v758 = vld [vmem:[%s1 + $0x28] sm:$0xf]
      %v759 = vld [vmem:[%s1 + $0x2c] sm:$0xf]
      %v760 = vld [vmem:[%s1 + $0x30] sm:$0xf]
      %v761 = vld [vmem:[%s1 + $0x34] sm:$0xf]
      %v762 = vld [vmem:[%s1 + $0x38] sm:$0xf]
      %v763 = vld [vmem:[%s1 + $0x3c] sm:$0xf]
      %v764 = vld [vmem:[%s1 + $0x40] sm:$0xf]
      %v765 = vld [vmem:[%s1 + $0x44] sm:$0xf]
      %v766 = vld [vmem:[%s739] sm:$0xff]
      %v767 = vld [vmem:[%s739 + $0x8] sm:$0xff]
      %v768 = vld [vmem:[%s2] sm:$0xf]
      %v769 = vld [vmem:[%s2 + $0x4] sm:$0xf]
      %v770 = vld [vmem:[%s2 + $0x8] sm:$0xf]
      %v771 = vld [vmem:[%s2 + $0xc] sm:$0xf]
      %v772 = vld [vmem:[%s2 + $0x10] sm:$0xf]
      %v773 = vld [vmem:[%s2 + $0x14] sm:$0xf]
      %v774 = vld [vmem:[%s2 + $0x18] sm:$0xf]
      %v775 = vld [vmem:[%s2 + $0x1c] sm:$0xf]
      %v776 = vld [vmem:[%s2 + $0x20] sm:$0xf]
      %v777 = vld [vmem:[%s2 + $0x24] sm:$0xf]
      %v778 = vld [vmem:[%s2 + $0x28] sm:$0xf]
      %v779 = vld [vmem:[%s2 + $0x2c] sm:$0xf]
      %v780 = vld [vmem:[%s2 + $0x30] sm:$0xf]
      %v781 = vld [vmem:[%s2 + $0x34] sm:$0xf]
      %v782 = vld [vmem:[%s2 + $0x38] sm:$0xf]
      %v783 = vld [vmem:[%s2 + $0x3c] sm:$0xf]
      %v784 = vld [vmem:[%s2 + $0x40] sm:$0xf]
      %v785 = vld [vmem:[%s2 + $0x44] sm:$0xf]
      %v786 = vld [vmem:[%s2 + $0x48] sm:$0xf]
      %v787 = vld [vmem:[%s2 + $0x4c] sm:$0xf]
      %v788 = vld [vmem:[%s2 + $0x50] sm:$0xf]
      %v789 = vld [vmem:[%s2 + $0x54] sm:$0xf]
      %v790 = vld [vmem:[%s2 + $0x58] sm:$0xf]
      %v791 = vld [vmem:[%s2 + $0x5c] sm:$0xf]
      %v792 = vld [vmem:[%s2 + $0x60] sm:$0xf]
      %v793 = vld [vmem:[%s2 + $0x64] sm:$0xf]
      %v794 = vld [vmem:[%s2 + $0x68] sm:$0xf]
      %v795 = vld [vmem:[%s2 + $0x6c] sm:$0xf]
      %v796 = vld [vmem:[%s2 + $0x70] sm:$0xf]
      %v797 = vld [vmem:[%s2 + $0x74] sm:$0xf]
      %v798 = vld [vmem:[%s2 + $0x78] sm:$0xf]
      %v799 = vld [vmem:[%s2 + $0x7c] sm:$0xf]
      %v800 = vld [vmem:[%s3] sm:$0x1]
      %v802 = vlaneseq
      %v803 = vshrl.u32 %v802, 7
      %v804 = vsub.s32 0, %v803
      %v805 = vrot.slane %v800, %v804
      %v809 = vunpack.c.l.b16 %v766
      %v810 = vunpack.c.h.b16 %v766
      %v811 = vunpack.c.l.b16 %v767
      %v812 = vunpack.c.h.b16 %v767
      %v813 = vpack.c.b16 %v811, %v809
      %v814 = vpack.c.b16 %v812, %v810
      %v849 = vunpack.c.l.b16 %v768
      %v850 = vunpack.c.l.b16 %v769
      %v851 = vunpack.c.l.b16 %v770
      %v852 = vunpack.c.l.b16 %v771
      %v853 = vunpack.c.l.b16 %v772
      %v854 = vunpack.c.l.b16 %v773
      %v855 = vunpack.c.l.b16 %v774
      %v856 = vunpack.c.l.b16 %v775
      %v857 = vunpack.c.l.b16 %v776
      %v858 = vunpack.c.l.b16 %v777
      %v859 = vunpack.c.l.b16 %v778
      %v860 = vunpack.c.l.b16 %v779
      %v861 = vunpack.c.l.b16 %v780
      %v862 = vunpack.c.l.b16 %v781
      %v863 = vunpack.c.l.b16 %v782
      %v864 = vunpack.c.l.b16 %v783
      %v865 = vunpack.c.l.b16 %v784
      %v866 = vunpack.c.l.b16 %v785
      %v867 = vunpack.c.l.b16 %v786
      %v868 = vunpack.c.l.b16 %v787
      %v869 = vunpack.c.l.b16 %v788
      %v870 = vunpack.c.l.b16 %v789
      %v871 = vunpack.c.l.b16 %v790
      %v872 = vunpack.c.l.b16 %v791
      %v873 = vunpack.c.l.b16 %v792
      %v874 = vunpack.c.l.b16 %v793
      %v875 = vunpack.c.l.b16 %v794
      %v876 = vunpack.c.l.b16 %v795
      %v877 = vunpack.c.l.b16 %v796
      %v878 = vunpack.c.l.b16 %v797
      %v879 = vunpack.c.l.b16 %v798
      %v880 = vunpack.c.l.b16 %v799
      %v881 = vpack.c.b16 %v850, %v849
      %v882 = vpack.c.b16 %v852, %v851
      %v883 = vpack.c.b16 %v854, %v853
      %v884 = vpack.c.b16 %v856, %v855
      %v885 = vpack.c.b16 %v858, %v857
      %v886 = vpack.c.b16 %v860, %v859
      %v887 = vpack.c.b16 %v862, %v861
      %v888 = vpack.c.b16 %v864, %v863
      %v889 = vpack.c.b16 %v866, %v865
      %v890 = vpack.c.b16 %v868, %v867
      %v891 = vpack.c.b16 %v870, %v869
      %v892 = vpack.c.b16 %v872, %v871
      %v893 = vpack.c.b16 %v874, %v873
      %v894 = vpack.c.b16 %v876, %v875
      %v895 = vpack.c.b16 %v878, %v877
      %v896 = vpack.c.b16 %v880, %v879
      %913 = vmatprep.subr.bf16.mxu0 0
      %914 = vmatpush1.bf16.msra.mxu0 %v888
      %915 = vmatprep.subr.bf16.mxu0 0
      %916 = vmatpush1.bf16.msra.mxu0 %v887
      %917 = vmatprep.subr.bf16.mxu0 0
      %918 = vmatpush1.bf16.msra.mxu0 %v886
      %919 = vmatprep.subr.bf16.mxu0 0
      %920 = vmatpush1.bf16.msra.mxu0 %v885
      %921 = vmatprep.subr.bf16.mxu0 0
      %922 = vmatpush1.bf16.msra.mxu0 %v884
      %923 = vmatprep.subr.bf16.mxu0 0
      %924 = vmatpush1.bf16.msra.mxu0 %v883
      %925 = vmatprep.subr.bf16.mxu0 0
      %926 = vmatpush1.bf16.msra.mxu0 %v882
      %927 = vmatprep.subr.bf16.mxu0 0
      %928 = vmatpush1.bf16.msra.mxu0 %v881
      %929 = vmatprep.subr.bf16.mxu0 0
      %930 = vmatpush2.bf16.msra.mxu0 %v896
      %931 = vmatprep.subr.bf16.mxu0 0
      %932 = vmatpush2.bf16.msra.mxu0 %v895
      %933 = vmatprep.subr.bf16.mxu0 0
      %934 = vmatpush2.bf16.msra.mxu0 %v894
      %935 = vmatprep.subr.bf16.mxu0 0
      %936 = vmatpush2.bf16.msra.mxu0 %v893
      %937 = vmatprep.subr.bf16.mxu0 0
      %938 = vmatpush2.bf16.msra.mxu0 %v892
      %939 = vmatprep.subr.bf16.mxu0 0
      %940 = vmatpush2.bf16.msra.mxu0 %v891
      %941 = vmatprep.subr.bf16.mxu0 0
      %942 = vmatpush2.bf16.msra.mxu0 %v890
      %943 = vmatprep.subr.bf16.mxu0 0
      %944 = vmatpush2.bf16.msra.mxu0 %v889
      %945 = vmatprep.mubr.bf16.mxu0 %v814
      %946 = vmatmul.mubr.bf16.gmra.mxu0 %v813
      %v947 = vpop.f32.mrf.mxu0
      %v948 = vadd.f32 %v805, %v947
      %v949 = vpop.f32.mrf.mxu0
      %v950 = vpop.f32.mrf.mxu0
      %v951 = vadd.f32 %v805, %v950
      %v952 = vpop.f32.mrf.mxu0
      %953 = vdwg.mxu0
      %v954 = vmax.f32 %v948, 0.0
      %v955 = vmax.f32 %v951, 0.0
      %v956 = vld [vmem:[%s4] sm:$0xf]
      %v957 = vld [vmem:[%s4 + $0x4] sm:$0xf]
      %v958 = vld [vmem:[%s4 + $0x8] sm:$0xf]
      %v959 = vld [vmem:[%s4 + $0xc] sm:$0xf]
      %v960 = vld [vmem:[%s4 + $0x10] sm:$0xf]
      %v961 = vld [vmem:[%s4 + $0x14] sm:$0xf]
      %v962 = vld [vmem:[%s4 + $0x18] sm:$0xf]
      %v963 = vld [vmem:[%s4 + $0x1c] sm:$0xf]
      %v964 = vld [vmem:[%s4 + $0x20] sm:$0xf]
      %v965 = vld [vmem:[%s4 + $0x24] sm:$0xf]
      %v966 = vld [vmem:[%s4 + $0x28] sm:$0xf]
      %v967 = vld [vmem:[%s4 + $0x2c] sm:$0xf]
      %v968 = vld [vmem:[%s4 + $0x30] sm:$0xf]
      %v969 = vld [vmem:[%s4 + $0x34] sm:$0xf]
      %v970 = vld [vmem:[%s4 + $0x38] sm:$0xf]
      %v971 = vld [vmem:[%s4 + $0x3c] sm:$0xf]
      %v972 = vld [vmem:[%s4 + $0x40] sm:$0xf]
      %v973 = vld [vmem:[%s4 + $0x44] sm:$0xf]
      %v974 = vld [vmem:[%s4 + $0x48] sm:$0xf]
      %v975 = vld [vmem:[%s4 + $0x4c] sm:$0xf]
      %v976 = vld [vmem:[%s4 + $0x50] sm:$0xf]
      %v977 = vld [vmem:[%s4 + $0x54] sm:$0xf]
      %v978 = vld [vmem:[%s4 + $0x58] sm:$0xf]
      %v979 = vld [vmem:[%s4 + $0x5c] sm:$0xf]
      %v980 = vld [vmem:[%s4 + $0x60] sm:$0xf]
      %v981 = vld [vmem:[%s4 + $0x64] sm:$0xf]
      %v982 = vld [vmem:[%s4 + $0x68] sm:$0xf]
      %v983 = vld [vmem:[%s4 + $0x6c] sm:$0xf]
      %v984 = vld [vmem:[%s4 + $0x70] sm:$0xf]
      %v985 = vld [vmem:[%s4 + $0x74] sm:$0xf]
      %v986 = vld [vmem:[%s4 + $0x78] sm:$0xf]
      %v987 = vld [vmem:[%s4 + $0x7c] sm:$0xf]
      %v988 = vld [vmem:[%s4 + $0x80] sm:$0xf]
      %v989 = vld [vmem:[%s4 + $0x84] sm:$0xf]
      %v990 = vld [vmem:[%s4 + $0x88] sm:$0xf]
      %v991 = vld [vmem:[%s4 + $0x8c] sm:$0xf]
      %v992 = vld [vmem:[%s4 + $0x90] sm:$0xf]
      %v993 = vld [vmem:[%s4 + $0x94] sm:$0xf]
      %v994 = vld [vmem:[%s4 + $0x98] sm:$0xf]
      %v995 = vld [vmem:[%s4 + $0x9c] sm:$0xf]
      %v996 = vld [vmem:[%s4 + $0xa0] sm:$0xf]
      %v997 = vld [vmem:[%s4 + $0xa4] sm:$0xf]
      %v998 = vld [vmem:[%s4 + $0xa8] sm:$0xf]
      %v999 = vld [vmem:[%s4 + $0xac] sm:$0xf]
      %v1000 = vld [vmem:[%s4 + $0xb0] sm:$0xf]
      %v1001 = vld [vmem:[%s4 + $0xb4] sm:$0xf]
      %v1002 = vld [vmem:[%s4 + $0xb8] sm:$0xf]
      %v1003 = vld [vmem:[%s4 + $0xbc] sm:$0xf]
      %v1004 = vld [vmem:[%s4 + $0xc0] sm:$0xf]
      %v1005 = vld [vmem:[%s4 + $0xc4] sm:$0xf]
      %v1006 = vld [vmem:[%s4 + $0xc8] sm:$0xf]
      %v1007 = vld [vmem:[%s4 + $0xcc] sm:$0xf]
      %v1008 = vld [vmem:[%s4 + $0xd0] sm:$0xf]
      %v1009 = vld [vmem:[%s4 + $0xd4] sm:$0xf]
      %v1010 = vld [vmem:[%s4 + $0xd8] sm:$0xf]
      %v1011 = vld [vmem:[%s4 + $0xdc] sm:$0xf]
      %v1012 = vld [vmem:[%s4 + $0xe0] sm:$0xf]
      %v1013 = vld [vmem:[%s4 + $0xe4] sm:$0xf]
      %v1014 = vld [vmem:[%s4 + $0xe8] sm:$0xf]
      %v1015 = vld [vmem:[%s4 + $0xec] sm:$0xf]
      %v1016 = vld [vmem:[%s4 + $0xf0] sm:$0xf]
      %v1017 = vld [vmem:[%s4 + $0xf4] sm:$0xf]
      %v1018 = vld [vmem:[%s4 + $0xf8] sm:$0xf]
      %v1019 = vld [vmem:[%s4 + $0xfc] sm:$0xf]
      %v1020 = vld [vmem:[%s4 + $0x100] sm:$0xf]
      %v1021 = vld [vmem:[%s4 + $0x104] sm:$0xf]
      %v1022 = vld [vmem:[%s4 + $0x108] sm:$0xf]
      %v1023 = vld [vmem:[%s4 + $0x10c] sm:$0xf]
      %v1024 = vld [vmem:[%s4 + $0x110] sm:$0xf]
      %v1025 = vld [vmem:[%s4 + $0x114] sm:$0xf]
      %v1026 = vld [vmem:[%s4 + $0x118] sm:$0xf]
      %v1027 = vld [vmem:[%s4 + $0x11c] sm:$0xf]
      %v1028 = vld [vmem:[%s5] sm:$0x1]
      %v1029 = vpack.c.bf16 %v955, %v954
      %v1032 = vunpack.c.l.b16 %v750
      %v1033 = vunpack.c.l.b16 %v751
      %v1034 = vpack.c.b16 %v1033, %v1032
      %vm1035 = vcmask 130048
      %v1037 = vsel %vm1035, %v1034, 0
      %1039 = vmatprep.subr.bf16.mxu0 0
      %1040 = vmatpush1.bf16.msra.mxu0 0
      %1041 = vmatprep.subr.bf16.mxu0 0
      %1042 = vmatpush1.bf16.msra.mxu0 0
      %1043 = vmatprep.subr.bf16.mxu0 0
      %1044 = vmatpush1.bf16.msra.mxu0 0
      %1045 = vmatprep.subr.bf16.mxu0 0
      %1046 = vmatpush1.bf16.msra.mxu0 0
      %1047 = vmatprep.subr.bf16.mxu0 0
      %1048 = vmatpush1.bf16.msra.mxu0 0
      %1049 = vmatprep.subr.bf16.mxu0 0
      %1050 = vmatpush1.bf16.msra.mxu0 0
      %1051 = vmatprep.subr.bf16.mxu0 0
      %1052 = vmatpush1.bf16.msra.mxu0 0
      %1053 = vmatprep.subr.bf16.mxu0 0
      %1054 = vmatpush1.bf16.msra.mxu0 %v1029
      %1055 = vmatprep.subr.bf16.mxu0 0
      %1056 = vmatpush2.bf16.msra.mxu0 0
      %1057 = vmatprep.subr.bf16.mxu0 0
      %1058 = vmatpush2.bf16.msra.mxu0 0
      %1059 = vmatprep.subr.bf16.mxu0 0
      %1060 = vmatpush2.bf16.msra.mxu0 0
      %1061 = vmatprep.subr.bf16.mxu0 0
      %1062 = vmatpush2.bf16.msra.mxu0 0
      %1063 = vmatprep.subr.bf16.mxu0 0
      %1064 = vmatpush2.bf16.msra.mxu0 0
      %1065 = vmatprep.subr.bf16.mxu0 0
      %1066 = vmatpush2.bf16.msra.mxu0 0
      %1067 = vmatprep.subr.bf16.mxu0 0
      %1068 = vmatpush2.bf16.msra.mxu0 0
      %1069 = vmatprep.subr.bf16.mxu0 0
      %1070 = vmatpush2.bf16.msra.mxu0 0
      %1071 = vmatprep.mubr.bf16.mxu0 0
      %1072 = vmatmul.mubr.bf16.gmra.mxu0 %v1037
      %v1073 = vpop.f32.mrf.mxu0
      %v1074 = vadd.f32 0.0, %v1073
      %v1075 = vpop.f32.mrf.mxu0
      %v1076 = vpop.f32.mrf.mxu0
      %v1077 = vadd.f32 0.0, %v1076
      %v1078 = vpop.f32.mrf.mxu0
      %1079 = vdwg.mxu0
      %v1082 = vunpack.c.l.b16 %v752
      %v1083 = vunpack.c.l.b16 %v753
      %v1084 = vpack.c.b16 %v1083, %v1082
      %v1086 = vsel %vm1035, %v1084, 0
      %1088 = vmatprep.subr.bf16.mxu0 0
      %1089 = vmatpush1.bf16.msra.mxu0 0
      %1090 = vmatprep.subr.bf16.mxu0 0
      %1091 = vmatpush1.bf16.msra.mxu0 0
      %1092 = vmatprep.subr.bf16.mxu0 0
      %1093 = vmatpush1.bf16.msra.mxu0 0
      %1094 = vmatprep.subr.bf16.mxu0 0
      %1095 = vmatpush1.bf16.msra.mxu0 0
      %1096 = vmatprep.subr.bf16.mxu0 0
      %1097 = vmatpush1.bf16.msra.mxu0 0
      %1098 = vmatprep.subr.bf16.mxu0 0
      %1099 = vmatpush1.bf16.msra.mxu0 0
      %1100 = vmatprep.subr.bf16.mxu0 0
      %1101 = vmatpush1.bf16.msra.mxu0 0
      %1102 = vmatprep.subr.bf16.mxu0 0
      %1103 = vmatpush1.bf16.msra.mxu0 %v1029
      %1104 = vmatprep.subr.bf16.mxu0 0
      %1105 = vmatpush2.bf16.msra.mxu0 0
      %1106 = vmatprep.subr.bf16.mxu0 0
      %1107 = vmatpush2.bf16.msra.mxu0 0
      %1108 = vmatprep.subr.bf16.mxu0 0
      %1109 = vmatpush2.bf16.msra.mxu0 0
      %1110 = vmatprep.subr.bf16.mxu0 0
      %1111 = vmatpush2.bf16.msra.mxu0 0
      %1112 = vmatprep.subr.bf16.mxu0 0
      %1113 = vmatpush2.bf16.msra.mxu0 0
      %1114 = vmatprep.subr.bf16.mxu0 0
      %1115 = vmatpush2.bf16.msra.mxu0 0
      %1116 = vmatprep.subr.bf16.mxu0 0
      %1117 = vmatpush2.bf16.msra.mxu0 0
      %1118 = vmatprep.subr.bf16.mxu0 0
      %1119 = vmatpush2.bf16.msra.mxu0 0
      %1120 = vmatprep.mubr.bf16.mxu0 0
      %1121 = vmatmul.mubr.bf16.gmra.mxu0 %v1086
      %v1122 = vpop.f32.mrf.mxu0
      %v1123 = vadd.f32 0.0, %v1122
      %v1124 = vpop.f32.mrf.mxu0
      %v1125 = vpop.f32.mrf.mxu0
      %v1126 = vadd.f32 0.0, %v1125
      %v1127 = vpop.f32.mrf.mxu0
      %1128 = vdwg.mxu0
      %v1131 = vunpack.c.l.b16 %v754
      %v1132 = vunpack.c.l.b16 %v755
      %v1133 = vpack.c.b16 %v1132, %v1131
      %v1135 = vsel %vm1035, %v1133, 0
      %1137 = vmatprep.subr.bf16.mxu0 0
      %1138 = vmatpush1.bf16.msra.mxu0 0
      %1139 = vmatprep.subr.bf16.mxu0 0
      %1140 = vmatpush1.bf16.msra.mxu0 0
      %1141 = vmatprep.subr.bf16.mxu0 0
      %1142 = vmatpush1.bf16.msra.mxu0 0
      %1143 = vmatprep.subr.bf16.mxu0 0
      %1144 = vmatpush1.bf16.msra.mxu0 0
      %1145 = vmatprep.subr.bf16.mxu0 0
      %1146 = vmatpush1.bf16.msra.mxu0 0
      %1147 = vmatprep.subr.bf16.mxu0 0
      %1148 = vmatpush1.bf16.msra.mxu0 0
      %1149 = vmatprep.subr.bf16.mxu0 0
      %1150 = vmatpush1.bf16.msra.mxu0 0
      %1151 = vmatprep.subr.bf16.mxu0 0
      %1152 = vmatpush1.bf16.msra.mxu0 %v1029
      %1153 = vmatprep.subr.bf16.mxu0 0
      %1154 = vmatpush2.bf16.msra.mxu0 0
      %1155 = vmatprep.subr.bf16.mxu0 0
      %1156 = vmatpush2.bf16.msra.mxu0 0
      %1157 = vmatprep.subr.bf16.mxu0 0
      %1158 = vmatpush2.bf16.msra.mxu0 0
      %1159 = vmatprep.subr.bf16.mxu0 0
      %1160 = vmatpush2.bf16.msra.mxu0 0
      %1161 = vmatprep.subr.bf16.mxu0 0
      %1162 = vmatpush2.bf16.msra.mxu0 0
      %1163 = vmatprep.subr.bf16.mxu0 0
      %1164 = vmatpush2.bf16.msra.mxu0 0
      %1165 = vmatprep.subr.bf16.mxu0 0
      %1166 = vmatpush2.bf16.msra.mxu0 0
      %1167 = vmatprep.subr.bf16.mxu0 0
      %1168 = vmatpush2.bf16.msra.mxu0 0
      %1169 = vmatprep.mubr.bf16.mxu0 0
      %1170 = vmatmul.mubr.bf16.gmra.mxu0 %v1135
      %v1171 = vpop.f32.mrf.mxu0
      %v1172 = vadd.f32 0.0, %v1171
      %v1173 = vpop.f32.mrf.mxu0
      %v1174 = vpop.f32.mrf.mxu0
      %v1175 = vadd.f32 0.0, %v1174
      %v1176 = vpop.f32.mrf.mxu0
      %1177 = vdwg.mxu0
      %v1180 = vunpack.c.l.b16 %v756
      %v1181 = vunpack.c.l.b16 %v757
      %v1182 = vpack.c.b16 %v1181, %v1180
      %v1184 = vsel %vm1035, %v1182, 0
      %1186 = vmatprep.subr.bf16.mxu0 0
      %1187 = vmatpush1.bf16.msra.mxu0 0
      %1188 = vmatprep.subr.bf16.mxu0 0
      %1189 = vmatpush1.bf16.msra.mxu0 0
      %1190 = vmatprep.subr.bf16.mxu0 0
      %1191 = vmatpush1.bf16.msra.mxu0 0
      %1192 = vmatprep.subr.bf16.mxu0 0
      %1193 = vmatpush1.bf16.msra.mxu0 0
      %1194 = vmatprep.subr.bf16.mxu0 0
      %1195 = vmatpush1.bf16.msra.mxu0 0
      %1196 = vmatprep.subr.bf16.mxu0 0
      %1197 = vmatpush1.bf16.msra.mxu0 0
      %1198 = vmatprep.subr.bf16.mxu0 0
      %1199 = vmatpush1.bf16.msra.mxu0 0
      %1200 = vmatprep.subr.bf16.mxu0 0
      %1201 = vmatpush1.bf16.msra.mxu0 %v1029
      %1202 = vmatprep.subr.bf16.mxu0 0
      %1203 = vmatpush2.bf16.msra.mxu0 0
      %1204 = vmatprep.subr.bf16.mxu0 0
      %1205 = vmatpush2.bf16.msra.mxu0 0
      %1206 = vmatprep.subr.bf16.mxu0 0
      %1207 = vmatpush2.bf16.msra.mxu0 0
      %1208 = vmatprep.subr.bf16.mxu0 0
      %1209 = vmatpush2.bf16.msra.mxu0 0
      %1210 = vmatprep.subr.bf16.mxu0 0
      %1211 = vmatpush2.bf16.msra.mxu0 0
      %1212 = vmatprep.subr.bf16.mxu0 0
      %1213 = vmatpush2.bf16.msra.mxu0 0
      %1214 = vmatprep.subr.bf16.mxu0 0
      %1215 = vmatpush2.bf16.msra.mxu0 0
      %1216 = vmatprep.subr.bf16.mxu0 0
      %1217 = vmatpush2.bf16.msra.mxu0 0
      %1218 = vmatprep.mubr.bf16.mxu0 0
      %1219 = vmatmul.mubr.bf16.gmra.mxu0 %v1184
      %v1220 = vpop.f32.mrf.mxu0
      %v1221 = vadd.f32 0.0, %v1220
      %v1222 = vpop.f32.mrf.mxu0
      %v1223 = vpop.f32.mrf.mxu0
      %v1224 = vadd.f32 0.0, %v1223
      %v1225 = vpop.f32.mrf.mxu0
      %1226 = vdwg.mxu0
      %v1229 = vunpack.c.l.b16 %v758
      %v1230 = vunpack.c.l.b16 %v759
      %v1231 = vpack.c.b16 %v1230, %v1229
      %v1233 = vsel %vm1035, %v1231, 0
      %1235 = vmatprep.subr.bf16.mxu0 0
      %1236 = vmatpush1.bf16.msra.mxu0 0
      %1237 = vmatprep.subr.bf16.mxu0 0
      %1238 = vmatpush1.bf16.msra.mxu0 0
      %1239 = vmatprep.subr.bf16.mxu0 0
      %1240 = vmatpush1.bf16.msra.mxu0 0
      %1241 = vmatprep.subr.bf16.mxu0 0
      %1242 = vmatpush1.bf16.msra.mxu0 0
      %1243 = vmatprep.subr.bf16.mxu0 0
      %1244 = vmatpush1.bf16.msra.mxu0 0
      %1245 = vmatprep.subr.bf16.mxu0 0
      %1246 = vmatpush1.bf16.msra.mxu0 0
      %1247 = vmatprep.subr.bf16.mxu0 0
      %1248 = vmatpush1.bf16.msra.mxu0 0
      %1249 = vmatprep.subr.bf16.mxu0 0
      %1250 = vmatpush1.bf16.msra.mxu0 %v1029
      %1251 = vmatprep.subr.bf16.mxu0 0
      %1252 = vmatpush2.bf16.msra.mxu0 0
      %1253 = vmatprep.subr.bf16.mxu0 0
      %1254 = vmatpush2.bf16.msra.mxu0 0
      %1255 = vmatprep.subr.bf16.mxu0 0
      %1256 = vmatpush2.bf16.msra.mxu0 0
      %1257 = vmatprep.subr.bf16.mxu0 0
      %1258 = vmatpush2.bf16.msra.mxu0 0
      %1259 = vmatprep.subr.bf16.mxu0 0
      %1260 = vmatpush2.bf16.msra.mxu0 0
      %1261 = vmatprep.subr.bf16.mxu0 0
      %1262 = vmatpush2.bf16.msra.mxu0 0
      %1263 = vmatprep.subr.bf16.mxu0 0
      %1264 = vmatpush2.bf16.msra.mxu0 0
      %1265 = vmatprep.subr.bf16.mxu0 0
      %1266 = vmatpush2.bf16.msra.mxu0 0
      %1267 = vmatprep.mubr.bf16.mxu0 0
      %1268 = vmatmul.mubr.bf16.gmra.mxu0 %v1233
      %v1269 = vpop.f32.mrf.mxu0
      %v1270 = vadd.f32 0.0, %v1269
      %v1271 = vpop.f32.mrf.mxu0
      %v1272 = vpop.f32.mrf.mxu0
      %v1273 = vadd.f32 0.0, %v1272
      %v1274 = vpop.f32.mrf.mxu0
      %1275 = vdwg.mxu0
      %v1278 = vunpack.c.l.b16 %v760
      %v1279 = vunpack.c.l.b16 %v761
      %v1280 = vpack.c.b16 %v1279, %v1278
      %v1282 = vsel %vm1035, %v1280, 0
      %1284 = vmatprep.subr.bf16.mxu0 0
      %1285 = vmatpush1.bf16.msra.mxu0 0
      %1286 = vmatprep.subr.bf16.mxu0 0
      %1287 = vmatpush1.bf16.msra.mxu0 0
      %1288 = vmatprep.subr.bf16.mxu0 0
      %1289 = vmatpush1.bf16.msra.mxu0 0
      %1290 = vmatprep.subr.bf16.mxu0 0
      %1291 = vmatpush1.bf16.msra.mxu0 0
      %1292 = vmatprep.subr.bf16.mxu0 0
      %1293 = vmatpush1.bf16.msra.mxu0 0
      %1294 = vmatprep.subr.bf16.mxu0 0
      %1295 = vmatpush1.bf16.msra.mxu0 0
      %1296 = vmatprep.subr.bf16.mxu0 0
      %1297 = vmatpush1.bf16.msra.mxu0 0
      %1298 = vmatprep.subr.bf16.mxu0 0
      %1299 = vmatpush1.bf16.msra.mxu0 %v1029
      %1300 = vmatprep.subr.bf16.mxu0 0
      %1301 = vmatpush2.bf16.msra.mxu0 0
      %1302 = vmatprep.subr.bf16.mxu0 0
      %1303 = vmatpush2.bf16.msra.mxu0 0
      %1304 = vmatprep.subr.bf16.mxu0 0
      %1305 = vmatpush2.bf16.msra.mxu0 0
      %1306 = vmatprep.subr.bf16.mxu0 0
      %1307 = vmatpush2.bf16.msra.mxu0 0
      %1308 = vmatprep.subr.bf16.mxu0 0
      %1309 = vmatpush2.bf16.msra.mxu0 0
      %1310 = vmatprep.subr.bf16.mxu0 0
      %1311 = vmatpush2.bf16.msra.mxu0 0
      %1312 = vmatprep.subr.bf16.mxu0 0
      %1313 = vmatpush2.bf16.msra.mxu0 0
      %1314 = vmatprep.subr.bf16.mxu0 0
      %1315 = vmatpush2.bf16.msra.mxu0 0
      %1316 = vmatprep.mubr.bf16.mxu0 0
      %1317 = vmatmul.mubr.bf16.gmra.mxu0 %v1282
      %v1318 = vpop.f32.mrf.mxu0
      %v1319 = vadd.f32 0.0, %v1318
      %v1320 = vpop.f32.mrf.mxu0
      %v1321 = vpop.f32.mrf.mxu0
      %v1322 = vadd.f32 0.0, %v1321
      %v1323 = vpop.f32.mrf.mxu0
      %1324 = vdwg.mxu0
      %v1327 = vunpack.c.l.b16 %v762
      %v1328 = vunpack.c.l.b16 %v763
      %v1329 = vpack.c.b16 %v1328, %v1327
      %v1331 = vsel %vm1035, %v1329, 0
      %1333 = vmatprep.subr.bf16.mxu0 0
      %1334 = vmatpush1.bf16.msra.mxu0 0
      %1335 = vmatprep.subr.bf16.mxu0 0
      %1336 = vmatpush1.bf16.msra.mxu0 0
      %1337 = vmatprep.subr.bf16.mxu0 0
      %1338 = vmatpush1.bf16.msra.mxu0 0
      %1339 = vmatprep.subr.bf16.mxu0 0
      %1340 = vmatpush1.bf16.msra.mxu0 0
      %1341 = vmatprep.subr.bf16.mxu0 0
      %1342 = vmatpush1.bf16.msra.mxu0 0
      %1343 = vmatprep.subr.bf16.mxu0 0
      %1344 = vmatpush1.bf16.msra.mxu0 0
      %1345 = vmatprep.subr.bf16.mxu0 0
      %1346 = vmatpush1.bf16.msra.mxu0 0
      %1347 = vmatprep.subr.bf16.mxu0 0
      %1348 = vmatpush1.bf16.msra.mxu0 %v1029
      %1349 = vmatprep.subr.bf16.mxu0 0
      %1350 = vmatpush2.bf16.msra.mxu0 0
      %1351 = vmatprep.subr.bf16.mxu0 0
      %1352 = vmatpush2.bf16.msra.mxu0 0
      %1353 = vmatprep.subr.bf16.mxu0 0
      %1354 = vmatpush2.bf16.msra.mxu0 0
      %1355 = vmatprep.subr.bf16.mxu0 0
      %1356 = vmatpush2.bf16.msra.mxu0 0
      %1357 = vmatprep.subr.bf16.mxu0 0
      %1358 = vmatpush2.bf16.msra.mxu0 0
      %1359 = vmatprep.subr.bf16.mxu0 0
      %1360 = vmatpush2.bf16.msra.mxu0 0
      %1361 = vmatprep.subr.bf16.mxu0 0
      %1362 = vmatpush2.bf16.msra.mxu0 0
      %1363 = vmatprep.subr.bf16.mxu0 0
      %1364 = vmatpush2.bf16.msra.mxu0 0
      %1365 = vmatprep.mubr.bf16.mxu0 0
      %1366 = vmatmul.mubr.bf16.gmra.mxu0 %v1331
      %v1367 = vpop.f32.mrf.mxu0
      %v1368 = vadd.f32 0.0, %v1367
      %v1369 = vpop.f32.mrf.mxu0
      %v1370 = vpop.f32.mrf.mxu0
      %v1371 = vadd.f32 0.0, %v1370
      %v1372 = vpop.f32.mrf.mxu0
      %1373 = vdwg.mxu0
      %v1376 = vunpack.c.l.b16 %v764
      %v1377 = vunpack.c.l.b16 %v765
      %v1378 = vpack.c.b16 %v1377, %v1376
      %v1380 = vsel %vm1035, %v1378, 0
      %1382 = vmatprep.subr.bf16.mxu0 0
      %1383 = vmatpush1.bf16.msra.mxu0 0
      %1384 = vmatprep.subr.bf16.mxu0 0
      %1385 = vmatpush1.bf16.msra.mxu0 0
      %1386 = vmatprep.subr.bf16.mxu0 0
      %1387 = vmatpush1.bf16.msra.mxu0 0
      %1388 = vmatprep.subr.bf16.mxu0 0
      %1389 = vmatpush1.bf16.msra.mxu0 0
      %1390 = vmatprep.subr.bf16.mxu0 0
      %1391 = vmatpush1.bf16.msra.mxu0 0
      %1392 = vmatprep.subr.bf16.mxu0 0
      %1393 = vmatpush1.bf16.msra.mxu0 0
      %1394 = vmatprep.subr.bf16.mxu0 0
      %1395 = vmatpush1.bf16.msra.mxu0 0
      %1396 = vmatprep.subr.bf16.mxu0 0
      %1397 = vmatpush1.bf16.msra.mxu0 %v1029
      %1398 = vmatprep.subr.bf16.mxu0 0
      %1399 = vmatpush2.bf16.msra.mxu0 0
      %1400 = vmatprep.subr.bf16.mxu0 0
      %1401 = vmatpush2.bf16.msra.mxu0 0
      %1402 = vmatprep.subr.bf16.mxu0 0
      %1403 = vmatpush2.bf16.msra.mxu0 0
      %1404 = vmatprep.subr.bf16.mxu0 0
      %1405 = vmatpush2.bf16.msra.mxu0 0
      %1406 = vmatprep.subr.bf16.mxu0 0
      %1407 = vmatpush2.bf16.msra.mxu0 0
      %1408 = vmatprep.subr.bf16.mxu0 0
      %1409 = vmatpush2.bf16.msra.mxu0 0
      %1410 = vmatprep.subr.bf16.mxu0 0
      %1411 = vmatpush2.bf16.msra.mxu0 0
      %1412 = vmatprep.subr.bf16.mxu0 0
      %1413 = vmatpush2.bf16.msra.mxu0 0
      %1414 = vmatprep.mubr.bf16.mxu0 0
      %1415 = vmatmul.mubr.bf16.gmra.mxu0 %v1380
      %v1416 = vpop.f32.mrf.mxu0
      %v1417 = vadd.f32 0.0, %v1416
      %v1418 = vpop.f32.mrf.mxu0
      %v1419 = vpop.f32.mrf.mxu0
      %v1420 = vadd.f32 0.0, %v1419
      %v1421 = vpop.f32.mrf.mxu0
      %1422 = vdwg.mxu0
      %1425 = vrot.lane.b32.xlu0 %v1123, 64
      %v1426 = vpop.permute.xlu0 %1425
      %1427 = vrot.lane.b32.xlu0 %v1126, 64
      %v1428 = vpop.permute.xlu0 %1427
      %1433 = vrot.lane.b32.xlu0 %v1221, 64
      %v1434 = vpop.permute.xlu0 %1433
      %1435 = vrot.lane.b32.xlu0 %v1224, 64
      %v1436 = vpop.permute.xlu0 %1435
      %1441 = vrot.lane.b32.xlu0 %v1270, 64
      %v1442 = vpop.permute.xlu0 %1441
      %1443 = vrot.lane.b32.xlu0 %v1273, 64
      %v1444 = vpop.permute.xlu0 %1443
      %1449 = vrot.lane.b32.xlu0 %v1368, 64
      %v1450 = vpop.permute.xlu0 %1449
      %1451 = vrot.lane.b32.xlu0 %v1371, 64
      %v1452 = vpop.permute.xlu0 %1451
      %vm1455 = vcmask 523264
      %v1456 = vsel %vm1455, %v1074, %v1426
      %v1457 = vsel %vm1455, %v1077, %v1428
      %v1458 = vsel %vm1455, %v1172, %v1434
      %v1459 = vsel %vm1455, %v1175, %v1436
      %v1460 = vsel %vm1455, %v954, %v1442
      %v1461 = vsel %vm1455, %v955, %v1444
      %v1462 = vsel %vm1455, %v1319, %v1450
      %v1463 = vsel %vm1455, %v1322, %v1452
      %v1464 = vpack.c.bf16 %v1457, %v1456
      %v1465 = vpack.c.bf16 %v1459, %v1458
      %v1466 = vpack.c.bf16 %v1461, %v1460
      %v1467 = vpack.c.bf16 %v1463, %v1462
      %v1468 = vpack.c.bf16 %v1420, %v1417
      %v1470 = vlaneseq
      %v1471 = vshrl.u32 %v1470, 7
      %v1472 = vsub.s32 0, %v1471
      %v1473 = vrot.slane %v1028, %v1472
      %v1547 = vunpack.c.l.b16 %v956
      %v1548 = vunpack.c.l.b16 %v957
      %v1549 = vunpack.c.l.b16 %v958
      %v1550 = vunpack.c.l.b16 %v959
      %v1551 = vunpack.c.l.b16 %v960
      %v1552 = vunpack.c.l.b16 %v961
      %v1553 = vunpack.c.l.b16 %v962
      %v1554 = vunpack.c.l.b16 %v963
      %v1555 = vunpack.c.l.b16 %v964
      %v1556 = vunpack.c.l.b16 %v965
      %v1557 = vunpack.c.l.b16 %v966
      %v1558 = vunpack.c.l.b16 %v967
      %v1559 = vunpack.c.l.b16 %v968
      %v1560 = vunpack.c.l.b16 %v969
      %v1561 = vunpack.c.l.b16 %v970
      %v1562 = vunpack.c.l.b16 %v971
      %v1563 = vunpack.c.l.b16 %v972
      %v1564 = vunpack.c.l.b16 %v973
      %v1565 = vunpack.c.l.b16 %v974
      %v1566 = vunpack.c.l.b16 %v975
      %v1567 = vunpack.c.l.b16 %v976
      %v1568 = vunpack.c.l.b16 %v977
      %v1569 = vunpack.c.l.b16 %v978
      %v1570 = vunpack.c.l.b16 %v979
      %v1571 = vunpack.c.l.b16 %v980
      %v1572 = vunpack.c.l.b16 %v981
      %v1573 = vunpack.c.l.b16 %v982
      %v1574 = vunpack.c.l.b16 %v983
      %v1575 = vunpack.c.l.b16 %v984
      %v1576 = vunpack.c.l.b16 %v985
      %v1577 = vunpack.c.l.b16 %v986
      %v1578 = vunpack.c.l.b16 %v987
      %v1579 = vunpack.c.l.b16 %v988
      %v1580 = vunpack.c.l.b16 %v989
      %v1581 = vunpack.c.l.b16 %v990
      %v1582 = vunpack.c.l.b16 %v991
      %v1583 = vunpack.c.l.b16 %v992
      %v1584 = vunpack.c.l.b16 %v993
      %v1585 = vunpack.c.l.b16 %v994
      %v1586 = vunpack.c.l.b16 %v995
      %v1587 = vunpack.c.l.b16 %v996
      %v1588 = vunpack.c.l.b16 %v997
      %v1589 = vunpack.c.l.b16 %v998
      %v1590 = vunpack.c.l.b16 %v999
      %v1591 = vunpack.c.l.b16 %v1000
      %v1592 = vunpack.c.l.b16 %v1001
      %v1593 = vunpack.c.l.b16 %v1002
      %v1594 = vunpack.c.l.b16 %v1003
      %v1595 = vunpack.c.l.b16 %v1004
      %v1596 = vunpack.c.l.b16 %v1005
      %v1597 = vunpack.c.l.b16 %v1006
      %v1598 = vunpack.c.l.b16 %v1007
      %v1599 = vunpack.c.l.b16 %v1008
      %v1600 = vunpack.c.l.b16 %v1009
      %v1601 = vunpack.c.l.b16 %v1010
      %v1602 = vunpack.c.l.b16 %v1011
      %v1603 = vunpack.c.l.b16 %v1012
      %v1604 = vunpack.c.l.b16 %v1013
      %v1605 = vunpack.c.l.b16 %v1014
      %v1606 = vunpack.c.l.b16 %v1015
      %v1607 = vunpack.c.l.b16 %v1016
      %v1608 = vunpack.c.l.b16 %v1017
      %v1609 = vunpack.c.l.b16 %v1018
      %v1610 = vunpack.c.l.b16 %v1019
      %v1611 = vunpack.c.l.b16 %v1020
      %v1612 = vunpack.c.l.b16 %v1021
      %v1613 = vunpack.c.l.b16 %v1022
      %v1614 = vunpack.c.l.b16 %v1023
      %v1615 = vunpack.c.l.b16 %v1024
      %v1616 = vunpack.c.l.b16 %v1025
      %v1617 = vunpack.c.l.b16 %v1026
      %v1618 = vunpack.c.l.b16 %v1027
      %v1619 = vpack.c.b16 %v1548, %v1547
      %v1620 = vpack.c.b16 %v1550, %v1549
      %v1621 = vpack.c.b16 %v1552, %v1551
      %v1622 = vpack.c.b16 %v1554, %v1553
      %v1623 = vpack.c.b16 %v1556, %v1555
      %v1624 = vpack.c.b16 %v1558, %v1557
      %v1625 = vpack.c.b16 %v1560, %v1559
      %v1626 = vpack.c.b16 %v1562, %v1561
      %v1627 = vpack.c.b16 %v1564, %v1563
      %v1628 = vpack.c.b16 %v1566, %v1565
      %v1629 = vpack.c.b16 %v1568, %v1567
      %v1630 = vpack.c.b16 %v1570, %v1569
      %v1631 = vpack.c.b16 %v1572, %v1571
      %v1632 = vpack.c.b16 %v1574, %v1573
      %v1633 = vpack.c.b16 %v1576, %v1575
      %v1634 = vpack.c.b16 %v1578, %v1577
      %v1635 = vpack.c.b16 %v1580, %v1579
      %v1636 = vpack.c.b16 %v1582, %v1581
      %v1637 = vpack.c.b16 %v1584, %v1583
      %v1638 = vpack.c.b16 %v1586, %v1585
      %v1639 = vpack.c.b16 %v1588, %v1587
      %v1640 = vpack.c.b16 %v1590, %v1589
      %v1641 = vpack.c.b16 %v1592, %v1591
      %v1642 = vpack.c.b16 %v1594, %v1593
      %v1643 = vpack.c.b16 %v1596, %v1595
      %v1644 = vpack.c.b16 %v1598, %v1597
      %v1645 = vpack.c.b16 %v1600, %v1599
      %v1646 = vpack.c.b16 %v1602, %v1601
      %v1647 = vpack.c.b16 %v1604, %v1603
      %v1648 = vpack.c.b16 %v1606, %v1605
      %v1649 = vpack.c.b16 %v1608, %v1607
      %v1650 = vpack.c.b16 %v1610, %v1609
      %v1651 = vpack.c.b16 %v1612, %v1611
      %v1652 = vpack.c.b16 %v1614, %v1613
      %v1653 = vpack.c.b16 %v1616, %v1615
      %v1654 = vpack.c.b16 %v1618, %v1617
      %v1692 = vsel %vm1455, %v1468, 0
      %1694 = vmatprep.subr.bf16.mxu0 0
      %1695 = vmatpush1.bf16.msra.mxu0 %v1626
      %1696 = vmatprep.subr.bf16.mxu0 0
      %1697 = vmatpush1.bf16.msra.mxu0 %v1625
      %1698 = vmatprep.subr.bf16.mxu0 0
      %1699 = vmatpush1.bf16.msra.mxu0 %v1624
      %1700 = vmatprep.subr.bf16.mxu0 0
      %1701 = vmatpush1.bf16.msra.mxu0 %v1623
      %1702 = vmatprep.subr.bf16.mxu0 0
      %1703 = vmatpush1.bf16.msra.mxu0 %v1622
      %1704 = vmatprep.subr.bf16.mxu0 0
      %1705 = vmatpush1.bf16.msra.mxu0 %v1621
      %1706 = vmatprep.subr.bf16.mxu0 0
      %1707 = vmatpush1.bf16.msra.mxu0 %v1620
      %1708 = vmatprep.subr.bf16.mxu0 0
      %1709 = vmatpush1.bf16.msra.mxu0 %v1619
      %1710 = vmatprep.subr.bf16.mxu0 0
      %1711 = vmatpush2.bf16.msra.mxu0 %v1634
      %1712 = vmatprep.subr.bf16.mxu0 0
      %1713 = vmatpush2.bf16.msra.mxu0 %v1633
      %1714 = vmatprep.subr.bf16.mxu0 0
      %1715 = vmatpush2.bf16.msra.mxu0 %v1632
      %1716 = vmatprep.subr.bf16.mxu0 0
      %1717 = vmatpush2.bf16.msra.mxu0 %v1631
      %1718 = vmatprep.subr.bf16.mxu0 0
      %1719 = vmatpush2.bf16.msra.mxu0 %v1630
      %1720 = vmatprep.subr.bf16.mxu0 0
      %1721 = vmatpush2.bf16.msra.mxu0 %v1629
      %1722 = vmatprep.subr.bf16.mxu0 0
      %1723 = vmatpush2.bf16.msra.mxu0 %v1628
      %1724 = vmatprep.subr.bf16.mxu0 0
      %1725 = vmatpush2.bf16.msra.mxu0 %v1627
      %1726 = vmatprep.mubr.bf16.mxu0 %v1465
      %1727 = vmatmul.mubr.bf16.gmra.mxu0 %v1464
      %v1728 = vpop.f32.mrf.mxu0
      %v1729 = vadd.f32 %v1473, %v1728
      %v1730 = vpop.f32.mrf.mxu0
      %v1731 = vpop.f32.mrf.mxu0
      %v1732 = vadd.f32 %v1473, %v1731
      %v1733 = vpop.f32.mrf.mxu0
      %1734 = vdwg.mxu0
      %1735 = vmatprep.subr.bf16.mxu0 0
      %1736 = vmatpush1.bf16.msra.mxu0 %v1642
      %1737 = vmatprep.subr.bf16.mxu0 0
      %1738 = vmatpush1.bf16.msra.mxu0 %v1641
      %1739 = vmatprep.subr.bf16.mxu0 0
      %1740 = vmatpush1.bf16.msra.mxu0 %v1640
      %1741 = vmatprep.subr.bf16.mxu0 0
      %1742 = vmatpush1.bf16.msra.mxu0 %v1639
      %1743 = vmatprep.subr.bf16.mxu0 0
      %1744 = vmatpush1.bf16.msra.mxu0 %v1638
      %1745 = vmatprep.subr.bf16.mxu0 0
      %1746 = vmatpush1.bf16.msra.mxu0 %v1637
      %1747 = vmatprep.subr.bf16.mxu0 0
      %1748 = vmatpush1.bf16.msra.mxu0 %v1636
      %1749 = vmatprep.subr.bf16.mxu0 0
      %1750 = vmatpush1.bf16.msra.mxu0 %v1635
      %1751 = vmatprep.subr.bf16.mxu0 0
      %1752 = vmatpush2.bf16.msra.mxu0 %v1650
      %1753 = vmatprep.subr.bf16.mxu0 0
      %1754 = vmatpush2.bf16.msra.mxu0 %v1649
      %1755 = vmatprep.subr.bf16.mxu0 0
      %1756 = vmatpush2.bf16.msra.mxu0 %v1648
      %1757 = vmatprep.subr.bf16.mxu0 0
      %1758 = vmatpush2.bf16.msra.mxu0 %v1647
      %1759 = vmatprep.subr.bf16.mxu0 0
      %1760 = vmatpush2.bf16.msra.mxu0 %v1646
      %1761 = vmatprep.subr.bf16.mxu0 0
      %1762 = vmatpush2.bf16.msra.mxu0 %v1645
      %1763 = vmatprep.subr.bf16.mxu0 0
      %1764 = vmatpush2.bf16.msra.mxu0 %v1644
      %1765 = vmatprep.subr.bf16.mxu0 0
      %1766 = vmatpush2.bf16.msra.mxu0 %v1643
      %1767 = vmatprep.mubr.bf16.mxu0 %v1467
      %1768 = vmatmul.mubr.bf16.gmra.mxu0 %v1466
      %v1769 = vpop.f32.mrf.mxu0
      %v1770 = vadd.f32 %v1729, %v1769
      %v1771 = vpop.f32.mrf.mxu0
      %v1772 = vpop.f32.mrf.mxu0
      %v1773 = vadd.f32 %v1732, %v1772
      %v1774 = vpop.f32.mrf.mxu0
      %1775 = vdwg.mxu0
      %1776 = vmatprep.subr.bf16.mxu0 0
      %1777 = vmatpush1.bf16.msra.mxu0 0
      %1778 = vmatprep.subr.bf16.mxu0 0
      %1779 = vmatpush1.bf16.msra.mxu0 0
      %1780 = vmatprep.subr.bf16.mxu0 0
      %1781 = vmatpush1.bf16.msra.mxu0 0
      %1782 = vmatprep.subr.bf16.mxu0 0
      %1783 = vmatpush1.bf16.msra.mxu0 0
      %1784 = vmatprep.subr.bf16.mxu0 0
      %1785 = vmatpush1.bf16.msra.mxu0 %v1654
      %1786 = vmatprep.subr.bf16.mxu0 0
      %1787 = vmatpush1.bf16.msra.mxu0 %v1653
      %1788 = vmatprep.subr.bf16.mxu0 0
      %1789 = vmatpush1.bf16.msra.mxu0 %v1652
      %1790 = vmatprep.subr.bf16.mxu0 0
      %1791 = vmatpush1.bf16.msra.mxu0 %v1651
      %1792 = vmatprep.subr.bf16.mxu0 0
      %1793 = vmatpush2.bf16.msra.mxu0 0
      %1794 = vmatprep.subr.bf16.mxu0 0
      %1795 = vmatpush2.bf16.msra.mxu0 0
      %1796 = vmatprep.subr.bf16.mxu0 0
      %1797 = vmatpush2.bf16.msra.mxu0 0
      %1798 = vmatprep.subr.bf16.mxu0 0
      %1799 = vmatpush2.bf16.msra.mxu0 0
      %1800 = vmatprep.subr.bf16.mxu0 0
      %1801 = vmatpush2.bf16.msra.mxu0 0
      %1802 = vmatprep.subr.bf16.mxu0 0
      %1803 = vmatpush2.bf16.msra.mxu0 0
      %1804 = vmatprep.subr.bf16.mxu0 0
      %1805 = vmatpush2.bf16.msra.mxu0 0
      %1806 = vmatprep.subr.bf16.mxu0 0
      %1807 = vmatpush2.bf16.msra.mxu0 0
      %1808 = vmatprep.mubr.bf16.mxu0 0
      %1809 = vmatmul.mubr.bf16.gmra.mxu0 %v1692
      %v1810 = vpop.f32.mrf.mxu0
      %v1811 = vadd.f32 %v1770, %v1810
      %v1812 = vpop.f32.mrf.mxu0
      %v1813 = vpop.f32.mrf.mxu0
      %v1814 = vadd.f32 %v1773, %v1813
      %v1815 = vpop.f32.mrf.mxu0
      %1816 = vdwg.mxu0
      %v1817 = vmax.f32 %v1811, 0.0
      %v1818 = vmax.f32 %v1814, 0.0
      %v1819 = vld [vmem:[%s6] sm:$0xf]
      %v1820 = vld [vmem:[%s6 + $0x4] sm:$0xf]
      %v1821 = vld [vmem:[%s6 + $0x8] sm:$0xf]
      %v1822 = vld [vmem:[%s6 + $0xc] sm:$0xf]
      %v1823 = vld [vmem:[%s6 + $0x10] sm:$0xf]
      %v1824 = vld [vmem:[%s6 + $0x14] sm:$0xf]
      %v1825 = vld [vmem:[%s6 + $0x18] sm:$0xf]
      %v1826 = vld [vmem:[%s6 + $0x1c] sm:$0xf]
      %v1827 = vld [vmem:[%s6 + $0x20] sm:$0xf]
      %v1828 = vld [vmem:[%s6 + $0x24] sm:$0xf]
      %v1829 = vld [vmem:[%s6 + $0x28] sm:$0xf]
      %v1830 = vld [vmem:[%s6 + $0x2c] sm:$0xf]
      %v1831 = vld [vmem:[%s6 + $0x30] sm:$0xf]
      %v1832 = vld [vmem:[%s6 + $0x34] sm:$0xf]
      %v1833 = vld [vmem:[%s6 + $0x38] sm:$0xf]
      %v1834 = vld [vmem:[%s6 + $0x3c] sm:$0xf]
      %v1835 = vld [vmem:[%s6 + $0x40] sm:$0xf]
      %v1836 = vld [vmem:[%s6 + $0x44] sm:$0xf]
      %v1837 = vld [vmem:[%s6 + $0x48] sm:$0xf]
      %v1838 = vld [vmem:[%s6 + $0x4c] sm:$0xf]
      %v1839 = vld [vmem:[%s6 + $0x50] sm:$0xf]
      %v1840 = vld [vmem:[%s6 + $0x54] sm:$0xf]
      %v1841 = vld [vmem:[%s6 + $0x58] sm:$0xf]
      %v1842 = vld [vmem:[%s6 + $0x5c] sm:$0xf]
      %v1843 = vld [vmem:[%s6 + $0x60] sm:$0xf]
      %v1844 = vld [vmem:[%s6 + $0x64] sm:$0xf]
      %v1845 = vld [vmem:[%s6 + $0x68] sm:$0xf]
      %v1846 = vld [vmem:[%s6 + $0x6c] sm:$0xf]
      %v1847 = vld [vmem:[%s6 + $0x70] sm:$0xf]
      %v1848 = vld [vmem:[%s6 + $0x74] sm:$0xf]
      %v1849 = vld [vmem:[%s6 + $0x78] sm:$0xf]
      %v1850 = vld [vmem:[%s6 + $0x7c] sm:$0xf]
      %v1851 = vld [vmem:[%s6 + $0x80] sm:$0xf]
      %v1852 = vld [vmem:[%s6 + $0x84] sm:$0xf]
      %v1853 = vld [vmem:[%s6 + $0x88] sm:$0xf]
      %v1854 = vld [vmem:[%s6 + $0x8c] sm:$0xf]
      %v1855 = vld [vmem:[%s7] sm:$0x1]
      %v1856 = vpack.c.bf16 %v1818, %v1817
      %1857 = vmatprep.subr.bf16.mxu0 0
      %1858 = vmatpush1.bf16.msra.mxu0 0
      %1859 = vmatprep.subr.bf16.mxu0 0
      %1860 = vmatpush1.bf16.msra.mxu0 0
      %1861 = vmatprep.subr.bf16.mxu0 0
      %1862 = vmatpush1.bf16.msra.mxu0 0
      %1863 = vmatprep.subr.bf16.mxu0 0
      %1864 = vmatpush1.bf16.msra.mxu0 0
      %1865 = vmatprep.subr.bf16.mxu0 0
      %1866 = vmatpush1.bf16.msra.mxu0 0
      %1867 = vmatprep.subr.bf16.mxu0 0
      %1868 = vmatpush1.bf16.msra.mxu0 0
      %1869 = vmatprep.subr.bf16.mxu0 0
      %1870 = vmatpush1.bf16.msra.mxu0 0
      %1871 = vmatprep.subr.bf16.mxu0 0
      %1872 = vmatpush1.bf16.msra.mxu0 %v1856
      %1873 = vmatprep.subr.bf16.mxu0 0
      %1874 = vmatpush2.bf16.msra.mxu0 0
      %1875 = vmatprep.subr.bf16.mxu0 0
      %1876 = vmatpush2.bf16.msra.mxu0 0
      %1877 = vmatprep.subr.bf16.mxu0 0
      %1878 = vmatpush2.bf16.msra.mxu0 0
      %1879 = vmatprep.subr.bf16.mxu0 0
      %1880 = vmatpush2.bf16.msra.mxu0 0
      %1881 = vmatprep.subr.bf16.mxu0 0
      %1882 = vmatpush2.bf16.msra.mxu0 0
      %1883 = vmatprep.subr.bf16.mxu0 0
      %1884 = vmatpush2.bf16.msra.mxu0 0
      %1885 = vmatprep.subr.bf16.mxu0 0
      %1886 = vmatpush2.bf16.msra.mxu0 0
      %1887 = vmatprep.subr.bf16.mxu0 0
      %1888 = vmatpush2.bf16.msra.mxu0 0
      %1889 = vmatprep.mubr.bf16.mxu0 0
      %1890 = vmatmul.mubr.bf16.gmra.mxu0 %v1037
      %v1891 = vpop.f32.mrf.mxu0
      %v1892 = vadd.f32 0.0, %v1891
      %v1893 = vpop.f32.mrf.mxu0
      %v1894 = vpop.f32.mrf.mxu0
      %v1895 = vadd.f32 0.0, %v1894
      %v1896 = vpop.f32.mrf.mxu0
      %1897 = vdwg.mxu0
      %1898 = vmatprep.subr.bf16.mxu0 0
      %1899 = vmatpush1.bf16.msra.mxu0 0
      %1900 = vmatprep.subr.bf16.mxu0 0
      %1901 = vmatpush1.bf16.msra.mxu0 0
      %1902 = vmatprep.subr.bf16.mxu0 0
      %1903 = vmatpush1.bf16.msra.mxu0 0
      %1904 = vmatprep.subr.bf16.mxu0 0
      %1905 = vmatpush1.bf16.msra.mxu0 0
      %1906 = vmatprep.subr.bf16.mxu0 0
      %1907 = vmatpush1.bf16.msra.mxu0 0
      %1908 = vmatprep.subr.bf16.mxu0 0
      %1909 = vmatpush1.bf16.msra.mxu0 0
      %1910 = vmatprep.subr.bf16.mxu0 0
      %1911 = vmatpush1.bf16.msra.mxu0 0
      %1912 = vmatprep.subr.bf16.mxu0 0
      %1913 = vmatpush1.bf16.msra.mxu0 %v1856
      %1914 = vmatprep.subr.bf16.mxu0 0
      %1915 = vmatpush2.bf16.msra.mxu0 0
      %1916 = vmatprep.subr.bf16.mxu0 0
      %1917 = vmatpush2.bf16.msra.mxu0 0
      %1918 = vmatprep.subr.bf16.mxu0 0
      %1919 = vmatpush2.bf16.msra.mxu0 0
      %1920 = vmatprep.subr.bf16.mxu0 0
      %1921 = vmatpush2.bf16.msra.mxu0 0
      %1922 = vmatprep.subr.bf16.mxu0 0
      %1923 = vmatpush2.bf16.msra.mxu0 0
      %1924 = vmatprep.subr.bf16.mxu0 0
      %1925 = vmatpush2.bf16.msra.mxu0 0
      %1926 = vmatprep.subr.bf16.mxu0 0
      %1927 = vmatpush2.bf16.msra.mxu0 0
      %1928 = vmatprep.subr.bf16.mxu0 0
      %1929 = vmatpush2.bf16.msra.mxu0 0
      %1930 = vmatprep.mubr.bf16.mxu0 0
      %1931 = vmatmul.mubr.bf16.gmra.mxu0 %v1086
      %v1932 = vpop.f32.mrf.mxu0
      %v1933 = vadd.f32 0.0, %v1932
      %v1934 = vpop.f32.mrf.mxu0
      %v1935 = vpop.f32.mrf.mxu0
      %v1936 = vadd.f32 0.0, %v1935
      %v1937 = vpop.f32.mrf.mxu0
      %1938 = vdwg.mxu0
      %1939 = vmatprep.subr.bf16.mxu0 0
      %1940 = vmatpush1.bf16.msra.mxu0 0
      %1941 = vmatprep.subr.bf16.mxu0 0
      %1942 = vmatpush1.bf16.msra.mxu0 0
      %1943 = vmatprep.subr.bf16.mxu0 0
      %1944 = vmatpush1.bf16.msra.mxu0 0
      %1945 = vmatprep.subr.bf16.mxu0 0
      %1946 = vmatpush1.bf16.msra.mxu0 0
      %1947 = vmatprep.subr.bf16.mxu0 0
      %1948 = vmatpush1.bf16.msra.mxu0 0
      %1949 = vmatprep.subr.bf16.mxu0 0
      %1950 = vmatpush1.bf16.msra.mxu0 0
      %1951 = vmatprep.subr.bf16.mxu0 0
      %1952 = vmatpush1.bf16.msra.mxu0 0
      %1953 = vmatprep.subr.bf16.mxu0 0
      %1954 = vmatpush1.bf16.msra.mxu0 %v1856
      %1955 = vmatprep.subr.bf16.mxu0 0
      %1956 = vmatpush2.bf16.msra.mxu0 0
      %1957 = vmatprep.subr.bf16.mxu0 0
      %1958 = vmatpush2.bf16.msra.mxu0 0
      %1959 = vmatprep.subr.bf16.mxu0 0
      %1960 = vmatpush2.bf16.msra.mxu0 0
      %1961 = vmatprep.subr.bf16.mxu0 0
      %1962 = vmatpush2.bf16.msra.mxu0 0
      %1963 = vmatprep.subr.bf16.mxu0 0
      %1964 = vmatpush2.bf16.msra.mxu0 0
      %1965 = vmatprep.subr.bf16.mxu0 0
      %1966 = vmatpush2.bf16.msra.mxu0 0
      %1967 = vmatprep.subr.bf16.mxu0 0
      %1968 = vmatpush2.bf16.msra.mxu0 0
      %1969 = vmatprep.subr.bf16.mxu0 0
      %1970 = vmatpush2.bf16.msra.mxu0 0
      %1971 = vmatprep.mubr.bf16.mxu0 0
      %1972 = vmatmul.mubr.bf16.gmra.mxu0 %v1135
      %v1973 = vpop.f32.mrf.mxu0
      %v1974 = vadd.f32 0.0, %v1973
      %v1975 = vpop.f32.mrf.mxu0
      %v1976 = vpop.f32.mrf.mxu0
      %v1977 = vadd.f32 0.0, %v1976
      %v1978 = vpop.f32.mrf.mxu0
      %1979 = vdwg.mxu0
      %1980 = vmatprep.subr.bf16.mxu0 0
      %1981 = vmatpush1.bf16.msra.mxu0 0
      %1982 = vmatprep.subr.bf16.mxu0 0
      %1983 = vmatpush1.bf16.msra.mxu0 0
      %1984 = vmatprep.subr.bf16.mxu0 0
      %1985 = vmatpush1.bf16.msra.mxu0 0
      %1986 = vmatprep.subr.bf16.mxu0 0
      %1987 = vmatpush1.bf16.msra.mxu0 0
      %1988 = vmatprep.subr.bf16.mxu0 0
      %1989 = vmatpush1.bf16.msra.mxu0 0
      %1990 = vmatprep.subr.bf16.mxu0 0
      %1991 = vmatpush1.bf16.msra.mxu0 0
      %1992 = vmatprep.subr.bf16.mxu0 0
      %1993 = vmatpush1.bf16.msra.mxu0 0
      %1994 = vmatprep.subr.bf16.mxu0 0
      %1995 = vmatpush1.bf16.msra.mxu0 %v1856
      %1996 = vmatprep.subr.bf16.mxu0 0
      %1997 = vmatpush2.bf16.msra.mxu0 0
      %1998 = vmatprep.subr.bf16.mxu0 0
      %1999 = vmatpush2.bf16.msra.mxu0 0
      %2000 = vmatprep.subr.bf16.mxu0 0
      %2001 = vmatpush2.bf16.msra.mxu0 0
      %2002 = vmatprep.subr.bf16.mxu0 0
      %2003 = vmatpush2.bf16.msra.mxu0 0
      %2004 = vmatprep.subr.bf16.mxu0 0
      %2005 = vmatpush2.bf16.msra.mxu0 0
      %2006 = vmatprep.subr.bf16.mxu0 0
      %2007 = vmatpush2.bf16.msra.mxu0 0
      %2008 = vmatprep.subr.bf16.mxu0 0
      %2009 = vmatpush2.bf16.msra.mxu0 0
      %2010 = vmatprep.subr.bf16.mxu0 0
      %2011 = vmatpush2.bf16.msra.mxu0 0
      %2012 = vmatprep.mubr.bf16.mxu0 0
      %2013 = vmatmul.mubr.bf16.gmra.mxu0 %v1184
      %v2014 = vpop.f32.mrf.mxu0
      %v2015 = vadd.f32 0.0, %v2014
      %v2016 = vpop.f32.mrf.mxu0
      %v2017 = vpop.f32.mrf.mxu0
      %v2018 = vadd.f32 0.0, %v2017
      %v2019 = vpop.f32.mrf.mxu0
      %2020 = vdwg.mxu0
      %2021 = vmatprep.subr.bf16.mxu0 0
      %2022 = vmatpush1.bf16.msra.mxu0 0
      %2023 = vmatprep.subr.bf16.mxu0 0
      %2024 = vmatpush1.bf16.msra.mxu0 0
      %2025 = vmatprep.subr.bf16.mxu0 0
      %2026 = vmatpush1.bf16.msra.mxu0 0
      %2027 = vmatprep.subr.bf16.mxu0 0
      %2028 = vmatpush1.bf16.msra.mxu0 0
      %2029 = vmatprep.subr.bf16.mxu0 0
      %2030 = vmatpush1.bf16.msra.mxu0 0
      %2031 = vmatprep.subr.bf16.mxu0 0
      %2032 = vmatpush1.bf16.msra.mxu0 0
      %2033 = vmatprep.subr.bf16.mxu0 0
      %2034 = vmatpush1.bf16.msra.mxu0 0
      %2035 = vmatprep.subr.bf16.mxu0 0
      %2036 = vmatpush1.bf16.msra.mxu0 %v1856
      %2037 = vmatprep.subr.bf16.mxu0 0
      %2038 = vmatpush2.bf16.msra.mxu0 0
      %2039 = vmatprep.subr.bf16.mxu0 0
      %2040 = vmatpush2.bf16.msra.mxu0 0
      %2041 = vmatprep.subr.bf16.mxu0 0
      %2042 = vmatpush2.bf16.msra.mxu0 0
      %2043 = vmatprep.subr.bf16.mxu0 0
      %2044 = vmatpush2.bf16.msra.mxu0 0
      %2045 = vmatprep.subr.bf16.mxu0 0
      %2046 = vmatpush2.bf16.msra.mxu0 0
      %2047 = vmatprep.subr.bf16.mxu0 0
      %2048 = vmatpush2.bf16.msra.mxu0 0
      %2049 = vmatprep.subr.bf16.mxu0 0
      %2050 = vmatpush2.bf16.msra.mxu0 0
      %2051 = vmatprep.subr.bf16.mxu0 0
      %2052 = vmatpush2.bf16.msra.mxu0 0
      %2053 = vmatprep.mubr.bf16.mxu0 0
      %2054 = vmatmul.mubr.bf16.gmra.mxu0 %v1233
      %v2055 = vpop.f32.mrf.mxu0
      %v2056 = vadd.f32 0.0, %v2055
      %v2057 = vpop.f32.mrf.mxu0
      %v2058 = vpop.f32.mrf.mxu0
      %v2059 = vadd.f32 0.0, %v2058
      %v2060 = vpop.f32.mrf.mxu0
      %2061 = vdwg.mxu0
      %2062 = vmatprep.subr.bf16.mxu0 0
      %2063 = vmatpush1.bf16.msra.mxu0 0
      %2064 = vmatprep.subr.bf16.mxu0 0
      %2065 = vmatpush1.bf16.msra.mxu0 0
      %2066 = vmatprep.subr.bf16.mxu0 0
      %2067 = vmatpush1.bf16.msra.mxu0 0
      %2068 = vmatprep.subr.bf16.mxu0 0
      %2069 = vmatpush1.bf16.msra.mxu0 0
      %2070 = vmatprep.subr.bf16.mxu0 0
      %2071 = vmatpush1.bf16.msra.mxu0 0
      %2072 = vmatprep.subr.bf16.mxu0 0
      %2073 = vmatpush1.bf16.msra.mxu0 0
      %2074 = vmatprep.subr.bf16.mxu0 0
      %2075 = vmatpush1.bf16.msra.mxu0 0
      %2076 = vmatprep.subr.bf16.mxu0 0
      %2077 = vmatpush1.bf16.msra.mxu0 %v1856
      %2078 = vmatprep.subr.bf16.mxu0 0
      %2079 = vmatpush2.bf16.msra.mxu0 0
      %2080 = vmatprep.subr.bf16.mxu0 0
      %2081 = vmatpush2.bf16.msra.mxu0 0
      %2082 = vmatprep.subr.bf16.mxu0 0
      %2083 = vmatpush2.bf16.msra.mxu0 0
      %2084 = vmatprep.subr.bf16.mxu0 0
      %2085 = vmatpush2.bf16.msra.mxu0 0
      %2086 = vmatprep.subr.bf16.mxu0 0
      %2087 = vmatpush2.bf16.msra.mxu0 0
      %2088 = vmatprep.subr.bf16.mxu0 0
      %2089 = vmatpush2.bf16.msra.mxu0 0
      %2090 = vmatprep.subr.bf16.mxu0 0
      %2091 = vmatpush2.bf16.msra.mxu0 0
      %2092 = vmatprep.subr.bf16.mxu0 0
      %2093 = vmatpush2.bf16.msra.mxu0 0
      %2094 = vmatprep.mubr.bf16.mxu0 0
      %2095 = vmatmul.mubr.bf16.gmra.mxu0 %v1282
      %v2096 = vpop.f32.mrf.mxu0
      %v2097 = vadd.f32 0.0, %v2096
      %v2098 = vpop.f32.mrf.mxu0
      %v2099 = vpop.f32.mrf.mxu0
      %v2100 = vadd.f32 0.0, %v2099
      %v2101 = vpop.f32.mrf.mxu0
      %2102 = vdwg.mxu0
      %2103 = vmatprep.subr.bf16.mxu0 0
      %2104 = vmatpush1.bf16.msra.mxu0 0
      %2105 = vmatprep.subr.bf16.mxu0 0
      %2106 = vmatpush1.bf16.msra.mxu0 0
      %2107 = vmatprep.subr.bf16.mxu0 0
      %2108 = vmatpush1.bf16.msra.mxu0 0
      %2109 = vmatprep.subr.bf16.mxu0 0
      %2110 = vmatpush1.bf16.msra.mxu0 0
      %2111 = vmatprep.subr.bf16.mxu0 0
      %2112 = vmatpush1.bf16.msra.mxu0 0
      %2113 = vmatprep.subr.bf16.mxu0 0
      %2114 = vmatpush1.bf16.msra.mxu0 0
      %2115 = vmatprep.subr.bf16.mxu0 0
      %2116 = vmatpush1.bf16.msra.mxu0 0
      %2117 = vmatprep.subr.bf16.mxu0 0
      %2118 = vmatpush1.bf16.msra.mxu0 %v1856
      %2119 = vmatprep.subr.bf16.mxu0 0
      %2120 = vmatpush2.bf16.msra.mxu0 0
      %2121 = vmatprep.subr.bf16.mxu0 0
      %2122 = vmatpush2.bf16.msra.mxu0 0
      %2123 = vmatprep.subr.bf16.mxu0 0
      %2124 = vmatpush2.bf16.msra.mxu0 0
      %2125 = vmatprep.subr.bf16.mxu0 0
      %2126 = vmatpush2.bf16.msra.mxu0 0
      %2127 = vmatprep.subr.bf16.mxu0 0
      %2128 = vmatpush2.bf16.msra.mxu0 0
      %2129 = vmatprep.subr.bf16.mxu0 0
      %2130 = vmatpush2.bf16.msra.mxu0 0
      %2131 = vmatprep.subr.bf16.mxu0 0
      %2132 = vmatpush2.bf16.msra.mxu0 0
      %2133 = vmatprep.subr.bf16.mxu0 0
      %2134 = vmatpush2.bf16.msra.mxu0 0
      %2135 = vmatprep.mubr.bf16.mxu0 0
      %2136 = vmatmul.mubr.bf16.gmra.mxu0 %v1331
      %v2137 = vpop.f32.mrf.mxu0
      %v2138 = vadd.f32 0.0, %v2137
      %v2139 = vpop.f32.mrf.mxu0
      %v2140 = vpop.f32.mrf.mxu0
      %v2141 = vadd.f32 0.0, %v2140
      %v2142 = vpop.f32.mrf.mxu0
      %2143 = vdwg.mxu0
      %2144 = vmatprep.subr.bf16.mxu0 0
      %2145 = vmatpush1.bf16.msra.mxu0 0
      %2146 = vmatprep.subr.bf16.mxu0 0
      %2147 = vmatpush1.bf16.msra.mxu0 0
      %2148 = vmatprep.subr.bf16.mxu0 0
      %2149 = vmatpush1.bf16.msra.mxu0 0
      %2150 = vmatprep.subr.bf16.mxu0 0
      %2151 = vmatpush1.bf16.msra.mxu0 0
      %2152 = vmatprep.subr.bf16.mxu0 0
      %2153 = vmatpush1.bf16.msra.mxu0 0
      %2154 = vmatprep.subr.bf16.mxu0 0
      %2155 = vmatpush1.bf16.msra.mxu0 0
      %2156 = vmatprep.subr.bf16.mxu0 0
      %2157 = vmatpush1.bf16.msra.mxu0 0
      %2158 = vmatprep.subr.bf16.mxu0 0
      %2159 = vmatpush1.bf16.msra.mxu0 %v1856
      %2160 = vmatprep.subr.bf16.mxu0 0
      %2161 = vmatpush2.bf16.msra.mxu0 0
      %2162 = vmatprep.subr.bf16.mxu0 0
      %2163 = vmatpush2.bf16.msra.mxu0 0
      %2164 = vmatprep.subr.bf16.mxu0 0
      %2165 = vmatpush2.bf16.msra.mxu0 0
      %2166 = vmatprep.subr.bf16.mxu0 0
      %2167 = vmatpush2.bf16.msra.mxu0 0
      %2168 = vmatprep.subr.bf16.mxu0 0
      %2169 = vmatpush2.bf16.msra.mxu0 0
      %2170 = vmatprep.subr.bf16.mxu0 0
      %2171 = vmatpush2.bf16.msra.mxu0 0
      %2172 = vmatprep.subr.bf16.mxu0 0
      %2173 = vmatpush2.bf16.msra.mxu0 0
      %2174 = vmatprep.subr.bf16.mxu0 0
      %2175 = vmatpush2.bf16.msra.mxu0 0
      %2176 = vmatprep.mubr.bf16.mxu0 0
      %2177 = vmatmul.mubr.bf16.gmra.mxu0 %v1380
      %v2178 = vpop.f32.mrf.mxu0
      %v2179 = vadd.f32 0.0, %v2178
      %v2180 = vpop.f32.mrf.mxu0
      %v2181 = vpop.f32.mrf.mxu0
      %v2182 = vadd.f32 0.0, %v2181
      %v2183 = vpop.f32.mrf.mxu0
      %2184 = vdwg.mxu0
      %2187 = vrot.lane.b32.xlu0 %v1933, 32
      %v2188 = vpop.permute.xlu0 %2187
      %2189 = vrot.lane.b32.xlu0 %v1936, 32
      %v2190 = vpop.permute.xlu0 %2189
      %2195 = vrot.lane.b32.xlu0 %v1974, 64
      %v2196 = vpop.permute.xlu0 %2195
      %2197 = vrot.lane.b32.xlu0 %v1977, 64
      %v2198 = vpop.permute.xlu0 %2197
      %2203 = vrot.lane.b32.xlu0 %v2015, 96
      %v2204 = vpop.permute.xlu0 %2203
      %2205 = vrot.lane.b32.xlu0 %v2018, 96
      %v2206 = vpop.permute.xlu0 %2205
      %2211 = vrot.lane.b32.xlu0 %v2056, 32
      %v2212 = vpop.permute.xlu0 %2211
      %2213 = vrot.lane.b32.xlu0 %v2059, 32
      %v2214 = vpop.permute.xlu0 %2213
      %2219 = vrot.lane.b32.xlu0 %v2097, 64
      %v2220 = vpop.permute.xlu0 %2219
      %2221 = vrot.lane.b32.xlu0 %v2100, 64
      %v2222 = vpop.permute.xlu0 %2221
      %2227 = vrot.lane.b32.xlu0 %v2138, 96
      %v2228 = vpop.permute.xlu0 %2227
      %2229 = vrot.lane.b32.xlu0 %v2141, 96
      %v2230 = vpop.permute.xlu0 %2229
      %vm2233 = vcmask 261120
      %v2234 = vsel %vm2233, %v1892, %v2188
      %v2235 = vsel %vm2233, %v1895, %v2190
      %v2236 = vsel %vm1455, %v2234, %v2196
      %v2237 = vsel %vm1455, %v2235, %v2198
      %vm2238 = vcmask 785408
      %v2239 = vsel %vm2238, %v2236, %v2204
      %v2240 = vsel %vm2238, %v2237, %v2206
      %v2241 = vsel %vm2233, %v1817, %v2212
      %v2242 = vsel %vm2233, %v1818, %v2214
      %v2243 = vsel %vm1455, %v2241, %v2220
      %v2244 = vsel %vm1455, %v2242, %v2222
      %v2245 = vsel %vm2238, %v2243, %v2228
      %v2246 = vsel %vm2238, %v2244, %v2230
      %v2247 = vpack.c.bf16 %v2240, %v2239
      %v2248 = vpack.c.bf16 %v2246, %v2245
      %v2249 = vpack.c.bf16 %v2182, %v2179
      %v2251 = vlaneseq
      %v2252 = vshrl.u32 %v2251, 7
      %v2253 = vsub.s32 0, %v2252
      %v2254 = vrot.slane %v1855, %v2253
      %v2292 = vunpack.c.l.b16 %v1819
      %v2293 = vunpack.c.l.b16 %v1820
      %v2294 = vunpack.c.l.b16 %v1821
      %v2295 = vunpack.c.l.b16 %v1822
      %v2296 = vunpack.c.l.b16 %v1823
      %v2297 = vunpack.c.l.b16 %v1824
      %v2298 = vunpack.c.l.b16 %v1825
      %v2299 = vunpack.c.l.b16 %v1826
      %v2300 = vunpack.c.l.b16 %v1827
      %v2301 = vunpack.c.l.b16 %v1828
      %v2302 = vunpack.c.l.b16 %v1829
      %v2303 = vunpack.c.l.b16 %v1830
      %v2304 = vunpack.c.l.b16 %v1831
      %v2305 = vunpack.c.l.b16 %v1832
      %v2306 = vunpack.c.l.b16 %v1833
      %v2307 = vunpack.c.l.b16 %v1834
      %v2308 = vunpack.c.l.b16 %v1835
      %v2309 = vunpack.c.l.b16 %v1836
      %v2310 = vunpack.c.l.b16 %v1837
      %v2311 = vunpack.c.l.b16 %v1838
      %v2312 = vunpack.c.l.b16 %v1839
      %v2313 = vunpack.c.l.b16 %v1840
      %v2314 = vunpack.c.l.b16 %v1841
      %v2315 = vunpack.c.l.b16 %v1842
      %v2316 = vunpack.c.l.b16 %v1843
      %v2317 = vunpack.c.l.b16 %v1844
      %v2318 = vunpack.c.l.b16 %v1845
      %v2319 = vunpack.c.l.b16 %v1846
      %v2320 = vunpack.c.l.b16 %v1847
      %v2321 = vunpack.c.l.b16 %v1848
      %v2322 = vunpack.c.l.b16 %v1849
      %v2323 = vunpack.c.l.b16 %v1850
      %v2324 = vunpack.c.l.b16 %v1851
      %v2325 = vunpack.c.l.b16 %v1852
      %v2326 = vunpack.c.l.b16 %v1853
      %v2327 = vunpack.c.l.b16 %v1854
      %v2328 = vpack.c.b16 %v2293, %v2292
      %v2329 = vpack.c.b16 %v2295, %v2294
      %v2330 = vpack.c.b16 %v2297, %v2296
      %v2331 = vpack.c.b16 %v2299, %v2298
      %v2332 = vpack.c.b16 %v2301, %v2300
      %v2333 = vpack.c.b16 %v2303, %v2302
      %v2334 = vpack.c.b16 %v2305, %v2304
      %v2335 = vpack.c.b16 %v2307, %v2306
      %v2336 = vpack.c.b16 %v2309, %v2308
      %v2337 = vpack.c.b16 %v2311, %v2310
      %v2338 = vpack.c.b16 %v2313, %v2312
      %v2339 = vpack.c.b16 %v2315, %v2314
      %v2340 = vpack.c.b16 %v2317, %v2316
      %v2341 = vpack.c.b16 %v2319, %v2318
      %v2342 = vpack.c.b16 %v2321, %v2320
      %v2343 = vpack.c.b16 %v2323, %v2322
      %v2344 = vpack.c.b16 %v2325, %v2324
      %v2345 = vpack.c.b16 %v2327, %v2326
      %v2365 = vsel %vm2233, %v2249, 0
      %2367 = vmatprep.subr.bf16.mxu0 0
      %2368 = vmatpush1.bf16.msra.mxu0 %v2335
      %2369 = vmatprep.subr.bf16.mxu0 0
      %2370 = vmatpush1.bf16.msra.mxu0 %v2334
      %2371 = vmatprep.subr.bf16.mxu0 0
      %2372 = vmatpush1.bf16.msra.mxu0 %v2333
      %2373 = vmatprep.subr.bf16.mxu0 0
      %2374 = vmatpush1.bf16.msra.mxu0 %v2332
      %2375 = vmatprep.subr.bf16.mxu0 0
      %2376 = vmatpush1.bf16.msra.mxu0 %v2331
      %2377 = vmatprep.subr.bf16.mxu0 0
      %2378 = vmatpush1.bf16.msra.mxu0 %v2330
      %2379 = vmatprep.subr.bf16.mxu0 0
      %2380 = vmatpush1.bf16.msra.mxu0 %v2329
      %2381 = vmatprep.subr.bf16.mxu0 0
      %2382 = vmatpush1.bf16.msra.mxu0 %v2328
      %2383 = vmatprep.subr.bf16.mxu0 0
      %2384 = vmatpush2.bf16.msra.mxu0 %v2343
      %2385 = vmatprep.subr.bf16.mxu0 0
      %2386 = vmatpush2.bf16.msra.mxu0 %v2342
      %2387 = vmatprep.subr.bf16.mxu0 0
      %2388 = vmatpush2.bf16.msra.mxu0 %v2341
      %2389 = vmatprep.subr.bf16.mxu0 0
      %2390 = vmatpush2.bf16.msra.mxu0 %v2340
      %2391 = vmatprep.subr.bf16.mxu0 0
      %2392 = vmatpush2.bf16.msra.mxu0 %v2339
      %2393 = vmatprep.subr.bf16.mxu0 0
      %2394 = vmatpush2.bf16.msra.mxu0 %v2338
      %2395 = vmatprep.subr.bf16.mxu0 0
      %2396 = vmatpush2.bf16.msra.mxu0 %v2337
      %2397 = vmatprep.subr.bf16.mxu0 0
      %2398 = vmatpush2.bf16.msra.mxu0 %v2336
      %2399 = vmatprep.mubr.bf16.mxu0 %v2248
      %2400 = vmatmul.mubr.bf16.gmra.mxu0 %v2247
      %v2401 = vpop.f32.mrf.mxu0
      %v2402 = vadd.f32 %v2254, %v2401
      %v2403 = vpop.f32.mrf.mxu0
      %v2404 = vpop.f32.mrf.mxu0
      %v2405 = vadd.f32 %v2254, %v2404
      %v2406 = vpop.f32.mrf.mxu0
      %2407 = vdwg.mxu0
      %2408 = vmatprep.subr.bf16.mxu0 0
      %2409 = vmatpush1.bf16.msra.mxu0 0
      %2410 = vmatprep.subr.bf16.mxu0 0
      %2411 = vmatpush1.bf16.msra.mxu0 0
      %2412 = vmatprep.subr.bf16.mxu0 0
      %2413 = vmatpush1.bf16.msra.mxu0 0
      %2414 = vmatprep.subr.bf16.mxu0 0
      %2415 = vmatpush1.bf16.msra.mxu0 0
      %2416 = vmatprep.subr.bf16.mxu0 0
      %2417 = vmatpush1.bf16.msra.mxu0 0
      %2418 = vmatprep.subr.bf16.mxu0 0
      %2419 = vmatpush1.bf16.msra.mxu0 0
      %2420 = vmatprep.subr.bf16.mxu0 0
      %2421 = vmatpush1.bf16.msra.mxu0 %v2345
      %2422 = vmatprep.subr.bf16.mxu0 0
      %2423 = vmatpush1.bf16.msra.mxu0 %v2344
      %2424 = vmatprep.subr.bf16.mxu0 0
      %2425 = vmatpush2.bf16.msra.mxu0 0
      %2426 = vmatprep.subr.bf16.mxu0 0
      %2427 = vmatpush2.bf16.msra.mxu0 0
      %2428 = vmatprep.subr.bf16.mxu0 0
      %2429 = vmatpush2.bf16.msra.mxu0 0
      %2430 = vmatprep.subr.bf16.mxu0 0
      %2431 = vmatpush2.bf16.msra.mxu0 0
      %2432 = vmatprep.subr.bf16.mxu0 0
      %2433 = vmatpush2.bf16.msra.mxu0 0
      %2434 = vmatprep.subr.bf16.mxu0 0
      %2435 = vmatpush2.bf16.msra.mxu0 0
      %2436 = vmatprep.subr.bf16.mxu0 0
      %2437 = vmatpush2.bf16.msra.mxu0 0
      %2438 = vmatprep.subr.bf16.mxu0 0
      %2439 = vmatpush2.bf16.msra.mxu0 0
      %2440 = vmatprep.mubr.bf16.mxu0 0
      %2441 = vmatmul.mubr.bf16.gmra.mxu0 %v2365
      %v2442 = vpop.f32.mrf.mxu0
      %v2443 = vadd.f32 %v2402, %v2442
      %v2444 = vpop.f32.mrf.mxu0
      %v2445 = vpop.f32.mrf.mxu0
      %v2446 = vadd.f32 %v2405, %v2445
      %v2447 = vpop.f32.mrf.mxu0
      %2448 = vdwg.mxu0
      %v2449 = vmax.f32 %v2443, 0.0
      %v2450 = vmax.f32 %v2446, 0.0
      %v2451 = vld [vmem:[%s8] sm:$0xf]
      %v2452 = vld [vmem:[%s8 + $0x4] sm:$0xf]
      %v2453 = vld [vmem:[%s8 + $0x8] sm:$0xf]
      %v2454 = vld [vmem:[%s8 + $0xc] sm:$0xf]
      %v2455 = vld [vmem:[%s8 + $0x10] sm:$0xf]
      %v2456 = vld [vmem:[%s8 + $0x14] sm:$0xf]
      %v2457 = vld [vmem:[%s8 + $0x18] sm:$0xf]
      %v2458 = vld [vmem:[%s8 + $0x1c] sm:$0xf]
      %v2459 = vld [vmem:[%s8 + $0x20] sm:$0xf]
      %v2460 = vld [vmem:[%s8 + $0x24] sm:$0xf]
      %v2461 = vld [vmem:[%s8 + $0x28] sm:$0xf]
      %v2462 = vld [vmem:[%s8 + $0x2c] sm:$0xf]
      %v2463 = vld [vmem:[%s8 + $0x30] sm:$0xf]
      %v2464 = vld [vmem:[%s8 + $0x34] sm:$0xf]
      %v2465 = vld [vmem:[%s8 + $0x38] sm:$0xf]
      %v2466 = vld [vmem:[%s8 + $0x3c] sm:$0xf]
      %v2467 = vld [vmem:[%s8 + $0x40] sm:$0xf]
      %v2468 = vld [vmem:[%s8 + $0x44] sm:$0xf]
      %v2469 = vld [vmem:[%s8 + $0x48] sm:$0xf]
      %v2470 = vld [vmem:[%s8 + $0x4c] sm:$0xf]
      %v2471 = vld [vmem:[%s8 + $0x50] sm:$0xf]
      %v2472 = vld [vmem:[%s8 + $0x54] sm:$0xf]
      %v2473 = vld [vmem:[%s8 + $0x58] sm:$0xf]
      %v2474 = vld [vmem:[%s8 + $0x5c] sm:$0xf]
      %v2475 = vld [vmem:[%s8 + $0x60] sm:$0xf]
      %v2476 = vld [vmem:[%s8 + $0x64] sm:$0xf]
      %v2477 = vld [vmem:[%s8 + $0x68] sm:$0xf]
      %v2478 = vld [vmem:[%s8 + $0x6c] sm:$0xf]
      %v2479 = vld [vmem:[%s8 + $0x70] sm:$0xf]
      %v2480 = vld [vmem:[%s8 + $0x74] sm:$0xf]
      %v2481 = vld [vmem:[%s8 + $0x78] sm:$0xf]
      %v2482 = vld [vmem:[%s8 + $0x7c] sm:$0xf]
      %v2483 = vld [vmem:[%s8 + $0x80] sm:$0xf]
      %v2484 = vld [vmem:[%s8 + $0x84] sm:$0xf]
      %v2485 = vld [vmem:[%s8 + $0x88] sm:$0xf]
      %v2486 = vld [vmem:[%s8 + $0x8c] sm:$0xf]
      %v2487 = vpack.c.bf16 %v2450, %v2449
      %2488 = vmatprep.subr.bf16.mxu0 0
      %2489 = vmatpush1.bf16.msra.mxu0 0
      %2490 = vmatprep.subr.bf16.mxu0 0
      %2491 = vmatpush1.bf16.msra.mxu0 0
      %2492 = vmatprep.subr.bf16.mxu0 0
      %2493 = vmatpush1.bf16.msra.mxu0 0
      %2494 = vmatprep.subr.bf16.mxu0 0
      %2495 = vmatpush1.bf16.msra.mxu0 0
      %2496 = vmatprep.subr.bf16.mxu0 0
      %2497 = vmatpush1.bf16.msra.mxu0 0
      %2498 = vmatprep.subr.bf16.mxu0 0
      %2499 = vmatpush1.bf16.msra.mxu0 0
      %2500 = vmatprep.subr.bf16.mxu0 0
      %2501 = vmatpush1.bf16.msra.mxu0 0
      %2502 = vmatprep.subr.bf16.mxu0 0
      %2503 = vmatpush1.bf16.msra.mxu0 %v2487
      %2504 = vmatprep.subr.bf16.mxu0 0
      %2505 = vmatpush2.bf16.msra.mxu0 0
      %2506 = vmatprep.subr.bf16.mxu0 0
      %2507 = vmatpush2.bf16.msra.mxu0 0
      %2508 = vmatprep.subr.bf16.mxu0 0
      %2509 = vmatpush2.bf16.msra.mxu0 0
      %2510 = vmatprep.subr.bf16.mxu0 0
      %2511 = vmatpush2.bf16.msra.mxu0 0
      %2512 = vmatprep.subr.bf16.mxu0 0
      %2513 = vmatpush2.bf16.msra.mxu0 0
      %2514 = vmatprep.subr.bf16.mxu0 0
      %2515 = vmatpush2.bf16.msra.mxu0 0
      %2516 = vmatprep.subr.bf16.mxu0 0
      %2517 = vmatpush2.bf16.msra.mxu0 0
      %2518 = vmatprep.subr.bf16.mxu0 0
      %2519 = vmatpush2.bf16.msra.mxu0 0
      %2520 = vmatprep.mubr.bf16.mxu0 0
      %2521 = vmatmul.mubr.bf16.gmra.mxu0 %v1037
      %v2522 = vpop.f32.mrf.mxu0
      %v2523 = vadd.f32 0.0, %v2522
      %v2524 = vpop.f32.mrf.mxu0
      %v2525 = vpop.f32.mrf.mxu0
      %v2526 = vadd.f32 0.0, %v2525
      %v2527 = vpop.f32.mrf.mxu0
      %2528 = vdwg.mxu0
      %2529 = vmatprep.subr.bf16.mxu0 0
      %2530 = vmatpush1.bf16.msra.mxu0 0
      %2531 = vmatprep.subr.bf16.mxu0 0
      %2532 = vmatpush1.bf16.msra.mxu0 0
      %2533 = vmatprep.subr.bf16.mxu0 0
      %2534 = vmatpush1.bf16.msra.mxu0 0
      %2535 = vmatprep.subr.bf16.mxu0 0
      %2536 = vmatpush1.bf16.msra.mxu0 0
      %2537 = vmatprep.subr.bf16.mxu0 0
      %2538 = vmatpush1.bf16.msra.mxu0 0
      %2539 = vmatprep.subr.bf16.mxu0 0
      %2540 = vmatpush1.bf16.msra.mxu0 0
      %2541 = vmatprep.subr.bf16.mxu0 0
      %2542 = vmatpush1.bf16.msra.mxu0 0
      %2543 = vmatprep.subr.bf16.mxu0 0
      %2544 = vmatpush1.bf16.msra.mxu0 %v2487
      %2545 = vmatprep.subr.bf16.mxu0 0
      %2546 = vmatpush2.bf16.msra.mxu0 0
      %2547 = vmatprep.subr.bf16.mxu0 0
      %2548 = vmatpush2.bf16.msra.mxu0 0
      %2549 = vmatprep.subr.bf16.mxu0 0
      %2550 = vmatpush2.bf16.msra.mxu0 0
      %2551 = vmatprep.subr.bf16.mxu0 0
      %2552 = vmatpush2.bf16.msra.mxu0 0
      %2553 = vmatprep.subr.bf16.mxu0 0
      %2554 = vmatpush2.bf16.msra.mxu0 0
      %2555 = vmatprep.subr.bf16.mxu0 0
      %2556 = vmatpush2.bf16.msra.mxu0 0
      %2557 = vmatprep.subr.bf16.mxu0 0
      %2558 = vmatpush2.bf16.msra.mxu0 0
      %2559 = vmatprep.subr.bf16.mxu0 0
      %2560 = vmatpush2.bf16.msra.mxu0 0
      %2561 = vmatprep.mubr.bf16.mxu0 0
      %2562 = vmatmul.mubr.bf16.gmra.mxu0 %v1086
      %v2563 = vpop.f32.mrf.mxu0
      %v2564 = vadd.f32 0.0, %v2563
      %v2565 = vpop.f32.mrf.mxu0
      %v2566 = vpop.f32.mrf.mxu0
      %v2567 = vadd.f32 0.0, %v2566
      %v2568 = vpop.f32.mrf.mxu0
      %2569 = vdwg.mxu0
      %2570 = vmatprep.subr.bf16.mxu0 0
      %2571 = vmatpush1.bf16.msra.mxu0 0
      %2572 = vmatprep.subr.bf16.mxu0 0
      %2573 = vmatpush1.bf16.msra.mxu0 0
      %2574 = vmatprep.subr.bf16.mxu0 0
      %2575 = vmatpush1.bf16.msra.mxu0 0
      %2576 = vmatprep.subr.bf16.mxu0 0
      %2577 = vmatpush1.bf16.msra.mxu0 0
      %2578 = vmatprep.subr.bf16.mxu0 0
      %2579 = vmatpush1.bf16.msra.mxu0 0
      %2580 = vmatprep.subr.bf16.mxu0 0
      %2581 = vmatpush1.bf16.msra.mxu0 0
      %2582 = vmatprep.subr.bf16.mxu0 0
      %2583 = vmatpush1.bf16.msra.mxu0 0
      %2584 = vmatprep.subr.bf16.mxu0 0
      %2585 = vmatpush1.bf16.msra.mxu0 %v2487
      %2586 = vmatprep.subr.bf16.mxu0 0
      %2587 = vmatpush2.bf16.msra.mxu0 0
      %2588 = vmatprep.subr.bf16.mxu0 0
      %2589 = vmatpush2.bf16.msra.mxu0 0
      %2590 = vmatprep.subr.bf16.mxu0 0
      %2591 = vmatpush2.bf16.msra.mxu0 0
      %2592 = vmatprep.subr.bf16.mxu0 0
      %2593 = vmatpush2.bf16.msra.mxu0 0
      %2594 = vmatprep.subr.bf16.mxu0 0
      %2595 = vmatpush2.bf16.msra.mxu0 0
      %2596 = vmatprep.subr.bf16.mxu0 0
      %2597 = vmatpush2.bf16.msra.mxu0 0
      %2598 = vmatprep.subr.bf16.mxu0 0
      %2599 = vmatpush2.bf16.msra.mxu0 0
      %2600 = vmatprep.subr.bf16.mxu0 0
      %2601 = vmatpush2.bf16.msra.mxu0 0
      %2602 = vmatprep.mubr.bf16.mxu0 0
      %2603 = vmatmul.mubr.bf16.gmra.mxu0 %v1135
      %v2604 = vpop.f32.mrf.mxu0
      %v2605 = vadd.f32 0.0, %v2604
      %v2606 = vpop.f32.mrf.mxu0
      %v2607 = vpop.f32.mrf.mxu0
      %v2608 = vadd.f32 0.0, %v2607
      %v2609 = vpop.f32.mrf.mxu0
      %2610 = vdwg.mxu0
      %2611 = vmatprep.subr.bf16.mxu0 0
      %2612 = vmatpush1.bf16.msra.mxu0 0
      %2613 = vmatprep.subr.bf16.mxu0 0
      %2614 = vmatpush1.bf16.msra.mxu0 0
      %2615 = vmatprep.subr.bf16.mxu0 0
      %2616 = vmatpush1.bf16.msra.mxu0 0
      %2617 = vmatprep.subr.bf16.mxu0 0
      %2618 = vmatpush1.bf16.msra.mxu0 0
      %2619 = vmatprep.subr.bf16.mxu0 0
      %2620 = vmatpush1.bf16.msra.mxu0 0
      %2621 = vmatprep.subr.bf16.mxu0 0
      %2622 = vmatpush1.bf16.msra.mxu0 0
      %2623 = vmatprep.subr.bf16.mxu0 0
      %2624 = vmatpush1.bf16.msra.mxu0 0
      %2625 = vmatprep.subr.bf16.mxu0 0
      %2626 = vmatpush1.bf16.msra.mxu0 %v2487
      %2627 = vmatprep.subr.bf16.mxu0 0
      %2628 = vmatpush2.bf16.msra.mxu0 0
      %2629 = vmatprep.subr.bf16.mxu0 0
      %2630 = vmatpush2.bf16.msra.mxu0 0
      %2631 = vmatprep.subr.bf16.mxu0 0
      %2632 = vmatpush2.bf16.msra.mxu0 0
      %2633 = vmatprep.subr.bf16.mxu0 0
      %2634 = vmatpush2.bf16.msra.mxu0 0
      %2635 = vmatprep.subr.bf16.mxu0 0
      %2636 = vmatpush2.bf16.msra.mxu0 0
      %2637 = vmatprep.subr.bf16.mxu0 0
      %2638 = vmatpush2.bf16.msra.mxu0 0
      %2639 = vmatprep.subr.bf16.mxu0 0
      %2640 = vmatpush2.bf16.msra.mxu0 0
      %2641 = vmatprep.subr.bf16.mxu0 0
      %2642 = vmatpush2.bf16.msra.mxu0 0
      %2643 = vmatprep.mubr.bf16.mxu0 0
      %2644 = vmatmul.mubr.bf16.gmra.mxu0 %v1184
      %v2645 = vpop.f32.mrf.mxu0
      %v2646 = vadd.f32 0.0, %v2645
      %v2647 = vpop.f32.mrf.mxu0
      %v2648 = vpop.f32.mrf.mxu0
      %v2649 = vadd.f32 0.0, %v2648
      %v2650 = vpop.f32.mrf.mxu0
      %2651 = vdwg.mxu0
      %2652 = vmatprep.subr.bf16.mxu0 0
      %2653 = vmatpush1.bf16.msra.mxu0 0
      %2654 = vmatprep.subr.bf16.mxu0 0
      %2655 = vmatpush1.bf16.msra.mxu0 0
      %2656 = vmatprep.subr.bf16.mxu0 0
      %2657 = vmatpush1.bf16.msra.mxu0 0
      %2658 = vmatprep.subr.bf16.mxu0 0
      %2659 = vmatpush1.bf16.msra.mxu0 0
      %2660 = vmatprep.subr.bf16.mxu0 0
      %2661 = vmatpush1.bf16.msra.mxu0 0
      %2662 = vmatprep.subr.bf16.mxu0 0
      %2663 = vmatpush1.bf16.msra.mxu0 0
      %2664 = vmatprep.subr.bf16.mxu0 0
      %2665 = vmatpush1.bf16.msra.mxu0 0
      %2666 = vmatprep.subr.bf16.mxu0 0
      %2667 = vmatpush1.bf16.msra.mxu0 %v2487
      %2668 = vmatprep.subr.bf16.mxu0 0
      %2669 = vmatpush2.bf16.msra.mxu0 0
      %2670 = vmatprep.subr.bf16.mxu0 0
      %2671 = vmatpush2.bf16.msra.mxu0 0
      %2672 = vmatprep.subr.bf16.mxu0 0
      %2673 = vmatpush2.bf16.msra.mxu0 0
      %2674 = vmatprep.subr.bf16.mxu0 0
      %2675 = vmatpush2.bf16.msra.mxu0 0
      %2676 = vmatprep.subr.bf16.mxu0 0
      %2677 = vmatpush2.bf16.msra.mxu0 0
      %2678 = vmatprep.subr.bf16.mxu0 0
      %2679 = vmatpush2.bf16.msra.mxu0 0
      %2680 = vmatprep.subr.bf16.mxu0 0
      %2681 = vmatpush2.bf16.msra.mxu0 0
      %2682 = vmatprep.subr.bf16.mxu0 0
      %2683 = vmatpush2.bf16.msra.mxu0 0
      %2684 = vmatprep.mubr.bf16.mxu0 0
      %2685 = vmatmul.mubr.bf16.gmra.mxu0 %v1233
      %v2686 = vpop.f32.mrf.mxu0
      %v2687 = vadd.f32 0.0, %v2686
      %v2688 = vpop.f32.mrf.mxu0
      %v2689 = vpop.f32.mrf.mxu0
      %v2690 = vadd.f32 0.0, %v2689
      %v2691 = vpop.f32.mrf.mxu0
      %2692 = vdwg.mxu0
      %2693 = vmatprep.subr.bf16.mxu0 0
      %2694 = vmatpush1.bf16.msra.mxu0 0
      %2695 = vmatprep.subr.bf16.mxu0 0
      %2696 = vmatpush1.bf16.msra.mxu0 0
      %2697 = vmatprep.subr.bf16.mxu0 0
      %2698 = vmatpush1.bf16.msra.mxu0 0
      %2699 = vmatprep.subr.bf16.mxu0 0
      %2700 = vmatpush1.bf16.msra.mxu0 0
      %2701 = vmatprep.subr.bf16.mxu0 0
      %2702 = vmatpush1.bf16.msra.mxu0 0
      %2703 = vmatprep.subr.bf16.mxu0 0
      %2704 = vmatpush1.bf16.msra.mxu0 0
      %2705 = vmatprep.subr.bf16.mxu0 0
      %2706 = vmatpush1.bf16.msra.mxu0 0
      %2707 = vmatprep.subr.bf16.mxu0 0
      %2708 = vmatpush1.bf16.msra.mxu0 %v2487
      %2709 = vmatprep.subr.bf16.mxu0 0
      %2710 = vmatpush2.bf16.msra.mxu0 0
      %2711 = vmatprep.subr.bf16.mxu0 0
      %2712 = vmatpush2.bf16.msra.mxu0 0
      %2713 = vmatprep.subr.bf16.mxu0 0
      %2714 = vmatpush2.bf16.msra.mxu0 0
      %2715 = vmatprep.subr.bf16.mxu0 0
      %2716 = vmatpush2.bf16.msra.mxu0 0
      %2717 = vmatprep.subr.bf16.mxu0 0
      %2718 = vmatpush2.bf16.msra.mxu0 0
      %2719 = vmatprep.subr.bf16.mxu0 0
      %2720 = vmatpush2.bf16.msra.mxu0 0
      %2721 = vmatprep.subr.bf16.mxu0 0
      %2722 = vmatpush2.bf16.msra.mxu0 0
      %2723 = vmatprep.subr.bf16.mxu0 0
      %2724 = vmatpush2.bf16.msra.mxu0 0
      %2725 = vmatprep.mubr.bf16.mxu0 0
      %2726 = vmatmul.mubr.bf16.gmra.mxu0 %v1282
      %v2727 = vpop.f32.mrf.mxu0
      %v2728 = vadd.f32 0.0, %v2727
      %v2729 = vpop.f32.mrf.mxu0
      %v2730 = vpop.f32.mrf.mxu0
      %v2731 = vadd.f32 0.0, %v2730
      %v2732 = vpop.f32.mrf.mxu0
      %2733 = vdwg.mxu0
      %2734 = vmatprep.subr.bf16.mxu0 0
      %2735 = vmatpush1.bf16.msra.mxu0 0
      %2736 = vmatprep.subr.bf16.mxu0 0
      %2737 = vmatpush1.bf16.msra.mxu0 0
      %2738 = vmatprep.subr.bf16.mxu0 0
      %2739 = vmatpush1.bf16.msra.mxu0 0
      %2740 = vmatprep.subr.bf16.mxu0 0
      %2741 = vmatpush1.bf16.msra.mxu0 0
      %2742 = vmatprep.subr.bf16.mxu0 0
      %2743 = vmatpush1.bf16.msra.mxu0 0
      %2744 = vmatprep.subr.bf16.mxu0 0
      %2745 = vmatpush1.bf16.msra.mxu0 0
      %2746 = vmatprep.subr.bf16.mxu0 0
      %2747 = vmatpush1.bf16.msra.mxu0 0
      %2748 = vmatprep.subr.bf16.mxu0 0
      %2749 = vmatpush1.bf16.msra.mxu0 %v2487
      %2750 = vmatprep.subr.bf16.mxu0 0
      %2751 = vmatpush2.bf16.msra.mxu0 0
      %2752 = vmatprep.subr.bf16.mxu0 0
      %2753 = vmatpush2.bf16.msra.mxu0 0
      %2754 = vmatprep.subr.bf16.mxu0 0
      %2755 = vmatpush2.bf16.msra.mxu0 0
      %2756 = vmatprep.subr.bf16.mxu0 0
      %2757 = vmatpush2.bf16.msra.mxu0 0
      %2758 = vmatprep.subr.bf16.mxu0 0
      %2759 = vmatpush2.bf16.msra.mxu0 0
      %2760 = vmatprep.subr.bf16.mxu0 0
      %2761 = vmatpush2.bf16.msra.mxu0 0
      %2762 = vmatprep.subr.bf16.mxu0 0
      %2763 = vmatpush2.bf16.msra.mxu0 0
      %2764 = vmatprep.subr.bf16.mxu0 0
      %2765 = vmatpush2.bf16.msra.mxu0 0
      %2766 = vmatprep.mubr.bf16.mxu0 0
      %2767 = vmatmul.mubr.bf16.gmra.mxu0 %v1331
      %v2768 = vpop.f32.mrf.mxu0
      %v2769 = vadd.f32 0.0, %v2768
      %v2770 = vpop.f32.mrf.mxu0
      %v2771 = vpop.f32.mrf.mxu0
      %v2772 = vadd.f32 0.0, %v2771
      %v2773 = vpop.f32.mrf.mxu0
      %2774 = vdwg.mxu0
      %2775 = vmatprep.subr.bf16.mxu0 0
      %2776 = vmatpush1.bf16.msra.mxu0 0
      %2777 = vmatprep.subr.bf16.mxu0 0
      %2778 = vmatpush1.bf16.msra.mxu0 0
      %2779 = vmatprep.subr.bf16.mxu0 0
      %2780 = vmatpush1.bf16.msra.mxu0 0
      %2781 = vmatprep.subr.bf16.mxu0 0
      %2782 = vmatpush1.bf16.msra.mxu0 0
      %2783 = vmatprep.subr.bf16.mxu0 0
      %2784 = vmatpush1.bf16.msra.mxu0 0
      %2785 = vmatprep.subr.bf16.mxu0 0
      %2786 = vmatpush1.bf16.msra.mxu0 0
      %2787 = vmatprep.subr.bf16.mxu0 0
      %2788 = vmatpush1.bf16.msra.mxu0 0
      %2789 = vmatprep.subr.bf16.mxu0 0
      %2790 = vmatpush1.bf16.msra.mxu0 %v2487
      %2791 = vmatprep.subr.bf16.mxu0 0
      %2792 = vmatpush2.bf16.msra.mxu0 0
      %2793 = vmatprep.subr.bf16.mxu0 0
      %2794 = vmatpush2.bf16.msra.mxu0 0
      %2795 = vmatprep.subr.bf16.mxu0 0
      %2796 = vmatpush2.bf16.msra.mxu0 0
      %2797 = vmatprep.subr.bf16.mxu0 0
      %2798 = vmatpush2.bf16.msra.mxu0 0
      %2799 = vmatprep.subr.bf16.mxu0 0
      %2800 = vmatpush2.bf16.msra.mxu0 0
      %2801 = vmatprep.subr.bf16.mxu0 0
      %2802 = vmatpush2.bf16.msra.mxu0 0
      %2803 = vmatprep.subr.bf16.mxu0 0
      %2804 = vmatpush2.bf16.msra.mxu0 0
      %2805 = vmatprep.subr.bf16.mxu0 0
      %2806 = vmatpush2.bf16.msra.mxu0 0
      %2807 = vmatprep.mubr.bf16.mxu0 0
      %2808 = vmatmul.mubr.bf16.gmra.mxu0 %v1380
      %v2809 = vpop.f32.mrf.mxu0
      %v2810 = vadd.f32 0.0, %v2809
      %v2811 = vpop.f32.mrf.mxu0
      %v2812 = vpop.f32.mrf.mxu0
      %v2813 = vadd.f32 0.0, %v2812
      %v2814 = vpop.f32.mrf.mxu0
      %2815 = vdwg.mxu0
      %2818 = vrot.lane.b32.xlu0 %v2564, 32
      %v2819 = vpop.permute.xlu0 %2818
      %2820 = vrot.lane.b32.xlu0 %v2567, 32
      %v2821 = vpop.permute.xlu0 %2820
      %2826 = vrot.lane.b32.xlu0 %v2605, 64
      %v2827 = vpop.permute.xlu0 %2826
      %2828 = vrot.lane.b32.xlu0 %v2608, 64
      %v2829 = vpop.permute.xlu0 %2828
      %2834 = vrot.lane.b32.xlu0 %v2646, 96
      %v2835 = vpop.permute.xlu0 %2834
      %2836 = vrot.lane.b32.xlu0 %v2649, 96
      %v2837 = vpop.permute.xlu0 %2836
      %2842 = vrot.lane.b32.xlu0 %v2687, 32
      %v2843 = vpop.permute.xlu0 %2842
      %2844 = vrot.lane.b32.xlu0 %v2690, 32
      %v2845 = vpop.permute.xlu0 %2844
      %2850 = vrot.lane.b32.xlu0 %v2728, 64
      %v2851 = vpop.permute.xlu0 %2850
      %2852 = vrot.lane.b32.xlu0 %v2731, 64
      %v2853 = vpop.permute.xlu0 %2852
      %2858 = vrot.lane.b32.xlu0 %v2769, 96
      %v2859 = vpop.permute.xlu0 %2858
      %2860 = vrot.lane.b32.xlu0 %v2772, 96
      %v2861 = vpop.permute.xlu0 %2860
      %v2864 = vsel %vm2233, %v2523, %v2819
      %v2865 = vsel %vm2233, %v2526, %v2821
      %v2866 = vsel %vm1455, %v2864, %v2827
      %v2867 = vsel %vm1455, %v2865, %v2829
      %v2868 = vsel %vm2238, %v2866, %v2835
      %v2869 = vsel %vm2238, %v2867, %v2837
      %v2870 = vsel %vm2233, %v2449, %v2843
      %v2871 = vsel %vm2233, %v2450, %v2845
      %v2872 = vsel %vm1455, %v2870, %v2851
      %v2873 = vsel %vm1455, %v2871, %v2853
      %v2874 = vsel %vm2238, %v2872, %v2859
      %v2875 = vsel %vm2238, %v2873, %v2861
      %v2876 = vpack.c.bf16 %v2869, %v2868
      %v2877 = vpack.c.bf16 %v2875, %v2874
      %v2878 = vpack.c.bf16 %v2813, %v2810
      %v2915 = vunpack.c.l.b16 %v2451
      %v2916 = vunpack.c.l.b16 %v2452
      %v2917 = vunpack.c.l.b16 %v2453
      %v2918 = vunpack.c.l.b16 %v2454
      %v2919 = vunpack.c.l.b16 %v2455
      %v2920 = vunpack.c.l.b16 %v2456
      %v2921 = vunpack.c.l.b16 %v2457
      %v2922 = vunpack.c.l.b16 %v2458
      %v2923 = vunpack.c.l.b16 %v2459
      %v2924 = vunpack.c.l.b16 %v2460
      %v2925 = vunpack.c.l.b16 %v2461
      %v2926 = vunpack.c.l.b16 %v2462
      %v2927 = vunpack.c.l.b16 %v2463
      %v2928 = vunpack.c.l.b16 %v2464
      %v2929 = vunpack.c.l.b16 %v2465
      %v2930 = vunpack.c.l.b16 %v2466
      %v2931 = vunpack.c.l.b16 %v2467
      %v2932 = vunpack.c.l.b16 %v2468
      %v2933 = vunpack.c.l.b16 %v2469
      %v2934 = vunpack.c.l.b16 %v2470
      %v2935 = vunpack.c.l.b16 %v2471
      %v2936 = vunpack.c.l.b16 %v2472
      %v2937 = vunpack.c.l.b16 %v2473
      %v2938 = vunpack.c.l.b16 %v2474
      %v2939 = vunpack.c.l.b16 %v2475
      %v2940 = vunpack.c.l.b16 %v2476
      %v2941 = vunpack.c.l.b16 %v2477
      %v2942 = vunpack.c.l.b16 %v2478
      %v2943 = vunpack.c.l.b16 %v2479
      %v2944 = vunpack.c.l.b16 %v2480
      %v2945 = vunpack.c.l.b16 %v2481
      %v2946 = vunpack.c.l.b16 %v2482
      %v2947 = vunpack.c.l.b16 %v2483
      %v2948 = vunpack.c.l.b16 %v2484
      %v2949 = vunpack.c.l.b16 %v2485
      %v2950 = vunpack.c.l.b16 %v2486
      %v2951 = vpack.c.b16 %v2916, %v2915
      %v2952 = vpack.c.b16 %v2918, %v2917
      %v2953 = vpack.c.b16 %v2920, %v2919
      %v2954 = vpack.c.b16 %v2922, %v2921
      %v2955 = vpack.c.b16 %v2924, %v2923
      %v2956 = vpack.c.b16 %v2926, %v2925
      %v2957 = vpack.c.b16 %v2928, %v2927
      %v2958 = vpack.c.b16 %v2930, %v2929
      %v2959 = vpack.c.b16 %v2932, %v2931
      %v2960 = vpack.c.b16 %v2934, %v2933
      %v2961 = vpack.c.b16 %v2936, %v2935
      %v2962 = vpack.c.b16 %v2938, %v2937
      %v2963 = vpack.c.b16 %v2940, %v2939
      %v2964 = vpack.c.b16 %v2942, %v2941
      %v2965 = vpack.c.b16 %v2944, %v2943
      %v2966 = vpack.c.b16 %v2946, %v2945
      %v2967 = vpack.c.b16 %v2948, %v2947
      %v2968 = vpack.c.b16 %v2950, %v2949
      %v2988 = vsel %vm2233, %v2878, 0
      %2990 = vmatprep.subr.bf16.mxu0 0
      %2991 = vmatpush1.bf16.msra.mxu0 %v2958
      %2992 = vmatprep.subr.bf16.mxu0 0
      %2993 = vmatpush1.bf16.msra.mxu0 %v2957
      %2994 = vmatprep.subr.bf16.mxu0 0
      %2995 = vmatpush1.bf16.msra.mxu0 %v2956
      %2996 = vmatprep.subr.bf16.mxu0 0
      %2997 = vmatpush1.bf16.msra.mxu0 %v2955
      %2998 = vmatprep.subr.bf16.mxu0 0
      %2999 = vmatpush1.bf16.msra.mxu0 %v2954
      %3000 = vmatprep.subr.bf16.mxu0 0
      %3001 = vmatpush1.bf16.msra.mxu0 %v2953
      %3002 = vmatprep.subr.bf16.mxu0 0
      %3003 = vmatpush1.bf16.msra.mxu0 %v2952
      %3004 = vmatprep.subr.bf16.mxu0 0
      %3005 = vmatpush1.bf16.msra.mxu0 %v2951
      %3006 = vmatprep.subr.bf16.mxu0 0
      %3007 = vmatpush2.bf16.msra.mxu0 %v2966
      %3008 = vmatprep.subr.bf16.mxu0 0
      %3009 = vmatpush2.bf16.msra.mxu0 %v2965
      %3010 = vmatprep.subr.bf16.mxu0 0
      %3011 = vmatpush2.bf16.msra.mxu0 %v2964
      %3012 = vmatprep.subr.bf16.mxu0 0
      %3013 = vmatpush2.bf16.msra.mxu0 %v2963
      %3014 = vmatprep.subr.bf16.mxu0 0
      %3015 = vmatpush2.bf16.msra.mxu0 %v2962
      %3016 = vmatprep.subr.bf16.mxu0 0
      %3017 = vmatpush2.bf16.msra.mxu0 %v2961
      %3018 = vmatprep.subr.bf16.mxu0 0
      %3019 = vmatpush2.bf16.msra.mxu0 %v2960
      %3020 = vmatprep.subr.bf16.mxu0 0
      %3021 = vmatpush2.bf16.msra.mxu0 %v2959
      %3022 = vmatprep.mubr.bf16.mxu0 %v2877
      %3023 = vmatmul.mubr.bf16.gmra.mxu0 %v2876
      %v3024 = vpop.f32.mrf.mxu0
      %v3025 = vadd.f32 0.0, %v3024
      %v3026 = vpop.f32.mrf.mxu0
      %v3027 = vpop.f32.mrf.mxu0
      %v3028 = vadd.f32 0.0, %v3027
      %v3029 = vpop.f32.mrf.mxu0
      %3030 = vdwg.mxu0
      %3031 = vmatprep.subr.bf16.mxu0 0
      %3032 = vmatpush1.bf16.msra.mxu0 0
      %3033 = vmatprep.subr.bf16.mxu0 0
      %3034 = vmatpush1.bf16.msra.mxu0 0
      %3035 = vmatprep.subr.bf16.mxu0 0
      %3036 = vmatpush1.bf16.msra.mxu0 0
      %3037 = vmatprep.subr.bf16.mxu0 0
      %3038 = vmatpush1.bf16.msra.mxu0 0
      %3039 = vmatprep.subr.bf16.mxu0 0
      %3040 = vmatpush1.bf16.msra.mxu0 0
      %3041 = vmatprep.subr.bf16.mxu0 0
      %3042 = vmatpush1.bf16.msra.mxu0 0
      %3043 = vmatprep.subr.bf16.mxu0 0
      %3044 = vmatpush1.bf16.msra.mxu0 %v2968
      %3045 = vmatprep.subr.bf16.mxu0 0
      %3046 = vmatpush1.bf16.msra.mxu0 %v2967
      %3047 = vmatprep.subr.bf16.mxu0 0
      %3048 = vmatpush2.bf16.msra.mxu0 0
      %3049 = vmatprep.subr.bf16.mxu0 0
      %3050 = vmatpush2.bf16.msra.mxu0 0
      %3051 = vmatprep.subr.bf16.mxu0 0
      %3052 = vmatpush2.bf16.msra.mxu0 0
      %3053 = vmatprep.subr.bf16.mxu0 0
      %3054 = vmatpush2.bf16.msra.mxu0 0
      %3055 = vmatprep.subr.bf16.mxu0 0
      %3056 = vmatpush2.bf16.msra.mxu0 0
      %3057 = vmatprep.subr.bf16.mxu0 0
      %3058 = vmatpush2.bf16.msra.mxu0 0
      %3059 = vmatprep.subr.bf16.mxu0 0
      %3060 = vmatpush2.bf16.msra.mxu0 0
      %3061 = vmatprep.subr.bf16.mxu0 0
      %3062 = vmatpush2.bf16.msra.mxu0 0
      %3063 = vmatprep.mubr.bf16.mxu0 0
      %3064 = vmatmul.mubr.bf16.gmra.mxu0 %v2988
      %v3065 = vpop.f32.mrf.mxu0
      %v3066 = vadd.f32 %v3025, %v3065
      %v3067 = vpop.f32.mrf.mxu0
      %v3068 = vpop.f32.mrf.mxu0
      %v3069 = vadd.f32 %v3028, %v3068
      %v3070 = vpop.f32.mrf.mxu0
      %3071 = vdwg.mxu0
      %v3072 = vmax.f32 %v3066, 0.0
      %v3073 = vmax.f32 %v3069, 0.0
      %v3074 = vpack.c.bf16 %v3073, %v3072
      %v3075 = vld [vmem:[%s9] sm:$0xf]
      %vm3076 = vcmask 64512
      %v3078 = vsel %vm3076, %v3074, 0
      %vm3080 = vcmask 1043456
      %v3082 = vsel %vm3080, %v3075, 0
      %3084 = vmatprep.subr.bf16.mxu0 0
      %3085 = vmatpush1.bf16.msra.mxu0 0
      %3086 = vmatprep.subr.bf16.mxu0 0
      %3087 = vmatpush1.bf16.msra.mxu0 0
      %3088 = vmatprep.subr.bf16.mxu0 0
      %3089 = vmatpush1.bf16.msra.mxu0 0
      %3090 = vmatprep.subr.bf16.mxu0 0
      %3091 = vmatpush1.bf16.msra.mxu0 0
      %3092 = vmatprep.subr.bf16.mxu0 0
      %3093 = vmatpush1.bf16.msra.mxu0 0
      %3094 = vmatprep.subr.bf16.mxu0 0
      %3095 = vmatpush1.bf16.msra.mxu0 0
      %3096 = vmatprep.subr.bf16.mxu0 0
      %3097 = vmatpush1.bf16.msra.mxu0 0
      %3098 = vmatprep.subr.bf16.mxu0 0
      %3099 = vmatpush1.bf16.msra.mxu0 %v3082
      %3100 = vmatprep.subr.bf16.mxu0 0
      %3101 = vmatpush2.bf16.msra.mxu0 0
      %3102 = vmatprep.subr.bf16.mxu0 0
      %3103 = vmatpush2.bf16.msra.mxu0 0
      %3104 = vmatprep.subr.bf16.mxu0 0
      %3105 = vmatpush2.bf16.msra.mxu0 0
      %3106 = vmatprep.subr.bf16.mxu0 0
      %3107 = vmatpush2.bf16.msra.mxu0 0
      %3108 = vmatprep.subr.bf16.mxu0 0
      %3109 = vmatpush2.bf16.msra.mxu0 0
      %3110 = vmatprep.subr.bf16.mxu0 0
      %3111 = vmatpush2.bf16.msra.mxu0 0
      %3112 = vmatprep.subr.bf16.mxu0 0
      %3113 = vmatpush2.bf16.msra.mxu0 0
      %3114 = vmatprep.subr.bf16.mxu0 0
      %3115 = vmatpush2.bf16.msra.mxu0 0
      %3116 = vmatprep.mubr.bf16.mxu0 0
      %3117 = vmatmul.mubr.bf16.gmra.mxu0 %v3078
      %v3118 = vpop.f32.mrf.mxu0
      %v3119 = vadd.f32 0.0, %v3118
      %v3120 = vpop.f32.mrf.mxu0
      %v3121 = vpop.f32.mrf.mxu0
      %v3122 = vadd.f32 0.0, %v3121
      %v3123 = vpop.f32.mrf.mxu0
      %3124 = vdwg.mxu0
      %v3125 = vadd.f32 %v2443, %v3119
      %v3126 = vadd.f32 %v2446, %v3122
      %v3127 = vmax.f32 %v3125, 0.0
      %v3128 = vmax.f32 %v3126, 0.0
      %s3129 = scalar_lea.vmem %s8, 144
      %v3130 = vld [vmem:[%s3129] sm:$0xf]
      %v3131 = vld [vmem:[%s3129 + $0x4] sm:$0xf]
      %v3132 = vld [vmem:[%s3129 + $0x8] sm:$0xf]
      %v3133 = vld [vmem:[%s3129 + $0xc] sm:$0xf]
      %v3134 = vld [vmem:[%s3129 + $0x10] sm:$0xf]
      %v3135 = vld [vmem:[%s3129 + $0x14] sm:$0xf]
      %v3136 = vld [vmem:[%s3129 + $0x18] sm:$0xf]
      %v3137 = vld [vmem:[%s3129 + $0x1c] sm:$0xf]
      %v3138 = vld [vmem:[%s3129 + $0x20] sm:$0xf]
      %v3139 = vld [vmem:[%s3129 + $0x24] sm:$0xf]
      %v3140 = vld [vmem:[%s3129 + $0x28] sm:$0xf]
      %v3141 = vld [vmem:[%s3129 + $0x2c] sm:$0xf]
      %v3142 = vld [vmem:[%s3129 + $0x30] sm:$0xf]
      %v3143 = vld [vmem:[%s3129 + $0x34] sm:$0xf]
      %v3144 = vld [vmem:[%s3129 + $0x38] sm:$0xf]
      %v3145 = vld [vmem:[%s3129 + $0x3c] sm:$0xf]
      %v3146 = vld [vmem:[%s3129 + $0x40] sm:$0xf]
      %v3147 = vld [vmem:[%s3129 + $0x44] sm:$0xf]
      %v3148 = vld [vmem:[%s3129 + $0x48] sm:$0xf]
      %v3149 = vld [vmem:[%s3129 + $0x4c] sm:$0xf]
      %v3150 = vld [vmem:[%s3129 + $0x50] sm:$0xf]
      %v3151 = vld [vmem:[%s3129 + $0x54] sm:$0xf]
      %v3152 = vld [vmem:[%s3129 + $0x58] sm:$0xf]
      %v3153 = vld [vmem:[%s3129 + $0x5c] sm:$0xf]
      %v3154 = vld [vmem:[%s3129 + $0x60] sm:$0xf]
      %v3155 = vld [vmem:[%s3129 + $0x64] sm:$0xf]
      %v3156 = vld [vmem:[%s3129 + $0x68] sm:$0xf]
      %v3157 = vld [vmem:[%s3129 + $0x6c] sm:$0xf]
      %v3158 = vld [vmem:[%s3129 + $0x70] sm:$0xf]
      %v3159 = vld [vmem:[%s3129 + $0x74] sm:$0xf]
      %v3160 = vld [vmem:[%s3129 + $0x78] sm:$0xf]
      %v3161 = vld [vmem:[%s3129 + $0x7c] sm:$0xf]
      %v3162 = vld [vmem:[%s3129 + $0x80] sm:$0xf]
      %v3163 = vld [vmem:[%s3129 + $0x84] sm:$0xf]
      %v3164 = vld [vmem:[%s3129 + $0x88] sm:$0xf]
      %v3165 = vld [vmem:[%s3129 + $0x8c] sm:$0xf]
      %v3166 = vpack.c.bf16 %v3128, %v3127
      %3167 = vmatprep.subr.bf16.mxu0 0
      %3168 = vmatpush1.bf16.msra.mxu0 0
      %3169 = vmatprep.subr.bf16.mxu0 0
      %3170 = vmatpush1.bf16.msra.mxu0 0
      %3171 = vmatprep.subr.bf16.mxu0 0
      %3172 = vmatpush1.bf16.msra.mxu0 0
      %3173 = vmatprep.subr.bf16.mxu0 0
      %3174 = vmatpush1.bf16.msra.mxu0 0
      %3175 = vmatprep.subr.bf16.mxu0 0
      %3176 = vmatpush1.bf16.msra.mxu0 0
      %3177 = vmatprep.subr.bf16.mxu0 0
      %3178 = vmatpush1.bf16.msra.mxu0 0
      %3179 = vmatprep.subr.bf16.mxu0 0
      %3180 = vmatpush1.bf16.msra.mxu0 0
      %3181 = vmatprep.subr.bf16.mxu0 0
      %3182 = vmatpush1.bf16.msra.mxu0 %v3166
      %3183 = vmatprep.subr.bf16.mxu0 0
      %3184 = vmatpush2.bf16.msra.mxu0 0
      %3185 = vmatprep.subr.bf16.mxu0 0
      %3186 = vmatpush2.bf16.msra.mxu0 0
      %3187 = vmatprep.subr.bf16.mxu0 0
      %3188 = vmatpush2.bf16.msra.mxu0 0
      %3189 = vmatprep.subr.bf16.mxu0 0
      %3190 = vmatpush2.bf16.msra.mxu0 0
      %3191 = vmatprep.subr.bf16.mxu0 0
      %3192 = vmatpush2.bf16.msra.mxu0 0
      %3193 = vmatprep.subr.bf16.mxu0 0
      %3194 = vmatpush2.bf16.msra.mxu0 0
      %3195 = vmatprep.subr.bf16.mxu0 0
      %3196 = vmatpush2.bf16.msra.mxu0 0
      %3197 = vmatprep.subr.bf16.mxu0 0
      %3198 = vmatpush2.bf16.msra.mxu0 0
      %3199 = vmatprep.mubr.bf16.mxu0 0
      %3200 = vmatmul.mubr.bf16.gmra.mxu0 %v1037
      %v3201 = vpop.f32.mrf.mxu0
      %v3202 = vadd.f32 0.0, %v3201
      %v3203 = vpop.f32.mrf.mxu0
      %v3204 = vpop.f32.mrf.mxu0
      %v3205 = vadd.f32 0.0, %v3204
      %v3206 = vpop.f32.mrf.mxu0
      %3207 = vdwg.mxu0
      %3208 = vmatprep.subr.bf16.mxu0 0
      %3209 = vmatpush1.bf16.msra.mxu0 0
      %3210 = vmatprep.subr.bf16.mxu0 0
      %3211 = vmatpush1.bf16.msra.mxu0 0
      %3212 = vmatprep.subr.bf16.mxu0 0
      %3213 = vmatpush1.bf16.msra.mxu0 0
      %3214 = vmatprep.subr.bf16.mxu0 0
      %3215 = vmatpush1.bf16.msra.mxu0 0
      %3216 = vmatprep.subr.bf16.mxu0 0
      %3217 = vmatpush1.bf16.msra.mxu0 0
      %3218 = vmatprep.subr.bf16.mxu0 0
      %3219 = vmatpush1.bf16.msra.mxu0 0
      %3220 = vmatprep.subr.bf16.mxu0 0
      %3221 = vmatpush1.bf16.msra.mxu0 0
      %3222 = vmatprep.subr.bf16.mxu0 0
      %3223 = vmatpush1.bf16.msra.mxu0 %v3166
      %3224 = vmatprep.subr.bf16.mxu0 0
      %3225 = vmatpush2.bf16.msra.mxu0 0
      %3226 = vmatprep.subr.bf16.mxu0 0
      %3227 = vmatpush2.bf16.msra.mxu0 0
      %3228 = vmatprep.subr.bf16.mxu0 0
      %3229 = vmatpush2.bf16.msra.mxu0 0
      %3230 = vmatprep.subr.bf16.mxu0 0
      %3231 = vmatpush2.bf16.msra.mxu0 0
      %3232 = vmatprep.subr.bf16.mxu0 0
      %3233 = vmatpush2.bf16.msra.mxu0 0
      %3234 = vmatprep.subr.bf16.mxu0 0
      %3235 = vmatpush2.bf16.msra.mxu0 0
      %3236 = vmatprep.subr.bf16.mxu0 0
      %3237 = vmatpush2.bf16.msra.mxu0 0
      %3238 = vmatprep.subr.bf16.mxu0 0
      %3239 = vmatpush2.bf16.msra.mxu0 0
      %3240 = vmatprep.mubr.bf16.mxu0 0
      %3241 = vmatmul.mubr.bf16.gmra.mxu0 %v1086
      %v3242 = vpop.f32.mrf.mxu0
      %v3243 = vadd.f32 0.0, %v3242
      %v3244 = vpop.f32.mrf.mxu0
      %v3245 = vpop.f32.mrf.mxu0
      %v3246 = vadd.f32 0.0, %v3245
      %v3247 = vpop.f32.mrf.mxu0
      %3248 = vdwg.mxu0
      %3249 = vmatprep.subr.bf16.mxu0 0
      %3250 = vmatpush1.bf16.msra.mxu0 0
      %3251 = vmatprep.subr.bf16.mxu0 0
      %3252 = vmatpush1.bf16.msra.mxu0 0
      %3253 = vmatprep.subr.bf16.mxu0 0
      %3254 = vmatpush1.bf16.msra.mxu0 0
      %3255 = vmatprep.subr.bf16.mxu0 0
      %3256 = vmatpush1.bf16.msra.mxu0 0
      %3257 = vmatprep.subr.bf16.mxu0 0
      %3258 = vmatpush1.bf16.msra.mxu0 0
      %3259 = vmatprep.subr.bf16.mxu0 0
      %3260 = vmatpush1.bf16.msra.mxu0 0
      %3261 = vmatprep.subr.bf16.mxu0 0
      %3262 = vmatpush1.bf16.msra.mxu0 0
      %3263 = vmatprep.subr.bf16.mxu0 0
      %3264 = vmatpush1.bf16.msra.mxu0 %v3166
      %3265 = vmatprep.subr.bf16.mxu0 0
      %3266 = vmatpush2.bf16.msra.mxu0 0
      %3267 = vmatprep.subr.bf16.mxu0 0
      %3268 = vmatpush2.bf16.msra.mxu0 0
      %3269 = vmatprep.subr.bf16.mxu0 0
      %3270 = vmatpush2.bf16.msra.mxu0 0
      %3271 = vmatprep.subr.bf16.mxu0 0
      %3272 = vmatpush2.bf16.msra.mxu0 0
      %3273 = vmatprep.subr.bf16.mxu0 0
      %3274 = vmatpush2.bf16.msra.mxu0 0
      %3275 = vmatprep.subr.bf16.mxu0 0
      %3276 = vmatpush2.bf16.msra.mxu0 0
      %3277 = vmatprep.subr.bf16.mxu0 0
      %3278 = vmatpush2.bf16.msra.mxu0 0
      %3279 = vmatprep.subr.bf16.mxu0 0
      %3280 = vmatpush2.bf16.msra.mxu0 0
      %3281 = vmatprep.mubr.bf16.mxu0 0
      %3282 = vmatmul.mubr.bf16.gmra.mxu0 %v1135
      %v3283 = vpop.f32.mrf.mxu0
      %v3284 = vadd.f32 0.0, %v3283
      %v3285 = vpop.f32.mrf.mxu0
      %v3286 = vpop.f32.mrf.mxu0
      %v3287 = vadd.f32 0.0, %v3286
      %v3288 = vpop.f32.mrf.mxu0
      %3289 = vdwg.mxu0
      %3290 = vmatprep.subr.bf16.mxu0 0
      %3291 = vmatpush1.bf16.msra.mxu0 0
      %3292 = vmatprep.subr.bf16.mxu0 0
      %3293 = vmatpush1.bf16.msra.mxu0 0
      %3294 = vmatprep.subr.bf16.mxu0 0
      %3295 = vmatpush1.bf16.msra.mxu0 0
      %3296 = vmatprep.subr.bf16.mxu0 0
      %3297 = vmatpush1.bf16.msra.mxu0 0
      %3298 = vmatprep.subr.bf16.mxu0 0
      %3299 = vmatpush1.bf16.msra.mxu0 0
      %3300 = vmatprep.subr.bf16.mxu0 0
      %3301 = vmatpush1.bf16.msra.mxu0 0
      %3302 = vmatprep.subr.bf16.mxu0 0
      %3303 = vmatpush1.bf16.msra.mxu0 0
      %3304 = vmatprep.subr.bf16.mxu0 0
      %3305 = vmatpush1.bf16.msra.mxu0 %v3166
      %3306 = vmatprep.subr.bf16.mxu0 0
      %3307 = vmatpush2.bf16.msra.mxu0 0
      %3308 = vmatprep.subr.bf16.mxu0 0
      %3309 = vmatpush2.bf16.msra.mxu0 0
      %3310 = vmatprep.subr.bf16.mxu0 0
      %3311 = vmatpush2.bf16.msra.mxu0 0
      %3312 = vmatprep.subr.bf16.mxu0 0
      %3313 = vmatpush2.bf16.msra.mxu0 0
      %3314 = vmatprep.subr.bf16.mxu0 0
      %3315 = vmatpush2.bf16.msra.mxu0 0
      %3316 = vmatprep.subr.bf16.mxu0 0
      %3317 = vmatpush2.bf16.msra.mxu0 0
      %3318 = vmatprep.subr.bf16.mxu0 0
      %3319 = vmatpush2.bf16.msra.mxu0 0
      %3320 = vmatprep.subr.bf16.mxu0 0
      %3321 = vmatpush2.bf16.msra.mxu0 0
      %3322 = vmatprep.mubr.bf16.mxu0 0
      %3323 = vmatmul.mubr.bf16.gmra.mxu0 %v1184
      %v3324 = vpop.f32.mrf.mxu0
      %v3325 = vadd.f32 0.0, %v3324
      %v3326 = vpop.f32.mrf.mxu0
      %v3327 = vpop.f32.mrf.mxu0
      %v3328 = vadd.f32 0.0, %v3327
      %v3329 = vpop.f32.mrf.mxu0
      %3330 = vdwg.mxu0
      %3331 = vmatprep.subr.bf16.mxu0 0
      %3332 = vmatpush1.bf16.msra.mxu0 0
      %3333 = vmatprep.subr.bf16.mxu0 0
      %3334 = vmatpush1.bf16.msra.mxu0 0
      %3335 = vmatprep.subr.bf16.mxu0 0
      %3336 = vmatpush1.bf16.msra.mxu0 0
      %3337 = vmatprep.subr.bf16.mxu0 0
      %3338 = vmatpush1.bf16.msra.mxu0 0
      %3339 = vmatprep.subr.bf16.mxu0 0
      %3340 = vmatpush1.bf16.msra.mxu0 0
      %3341 = vmatprep.subr.bf16.mxu0 0
      %3342 = vmatpush1.bf16.msra.mxu0 0
      %3343 = vmatprep.subr.bf16.mxu0 0
      %3344 = vmatpush1.bf16.msra.mxu0 0
      %3345 = vmatprep.subr.bf16.mxu0 0
      %3346 = vmatpush1.bf16.msra.mxu0 %v3166
      %3347 = vmatprep.subr.bf16.mxu0 0
      %3348 = vmatpush2.bf16.msra.mxu0 0
      %3349 = vmatprep.subr.bf16.mxu0 0
      %3350 = vmatpush2.bf16.msra.mxu0 0
      %3351 = vmatprep.subr.bf16.mxu0 0
      %3352 = vmatpush2.bf16.msra.mxu0 0
      %3353 = vmatprep.subr.bf16.mxu0 0
      %3354 = vmatpush2.bf16.msra.mxu0 0
      %3355 = vmatprep.subr.bf16.mxu0 0
      %3356 = vmatpush2.bf16.msra.mxu0 0
      %3357 = vmatprep.subr.bf16.mxu0 0
      %3358 = vmatpush2.bf16.msra.mxu0 0
      %3359 = vmatprep.subr.bf16.mxu0 0
      %3360 = vmatpush2.bf16.msra.mxu0 0
      %3361 = vmatprep.subr.bf16.mxu0 0
      %3362 = vmatpush2.bf16.msra.mxu0 0
      %3363 = vmatprep.mubr.bf16.mxu0 0
      %3364 = vmatmul.mubr.bf16.gmra.mxu0 %v1233
      %v3365 = vpop.f32.mrf.mxu0
      %v3366 = vadd.f32 0.0, %v3365
      %v3367 = vpop.f32.mrf.mxu0
      %v3368 = vpop.f32.mrf.mxu0
      %v3369 = vadd.f32 0.0, %v3368
      %v3370 = vpop.f32.mrf.mxu0
      %3371 = vdwg.mxu0
      %3372 = vmatprep.subr.bf16.mxu0 0
      %3373 = vmatpush1.bf16.msra.mxu0 0
      %3374 = vmatprep.subr.bf16.mxu0 0
      %3375 = vmatpush1.bf16.msra.mxu0 0
      %3376 = vmatprep.subr.bf16.mxu0 0
      %3377 = vmatpush1.bf16.msra.mxu0 0
      %3378 = vmatprep.subr.bf16.mxu0 0
      %3379 = vmatpush1.bf16.msra.mxu0 0
      %3380 = vmatprep.subr.bf16.mxu0 0
      %3381 = vmatpush1.bf16.msra.mxu0 0
      %3382 = vmatprep.subr.bf16.mxu0 0
      %3383 = vmatpush1.bf16.msra.mxu0 0
      %3384 = vmatprep.subr.bf16.mxu0 0
      %3385 = vmatpush1.bf16.msra.mxu0 0
      %3386 = vmatprep.subr.bf16.mxu0 0
      %3387 = vmatpush1.bf16.msra.mxu0 %v3166
      %3388 = vmatprep.subr.bf16.mxu0 0
      %3389 = vmatpush2.bf16.msra.mxu0 0
      %3390 = vmatprep.subr.bf16.mxu0 0
      %3391 = vmatpush2.bf16.msra.mxu0 0
      %3392 = vmatprep.subr.bf16.mxu0 0
      %3393 = vmatpush2.bf16.msra.mxu0 0
      %3394 = vmatprep.subr.bf16.mxu0 0
      %3395 = vmatpush2.bf16.msra.mxu0 0
      %3396 = vmatprep.subr.bf16.mxu0 0
      %3397 = vmatpush2.bf16.msra.mxu0 0
      %3398 = vmatprep.subr.bf16.mxu0 0
      %3399 = vmatpush2.bf16.msra.mxu0 0
      %3400 = vmatprep.subr.bf16.mxu0 0
      %3401 = vmatpush2.bf16.msra.mxu0 0
      %3402 = vmatprep.subr.bf16.mxu0 0
      %3403 = vmatpush2.bf16.msra.mxu0 0
      %3404 = vmatprep.mubr.bf16.mxu0 0
      %3405 = vmatmul.mubr.bf16.gmra.mxu0 %v1282
      %v3406 = vpop.f32.mrf.mxu0
      %v3407 = vadd.f32 0.0, %v3406
      %v3408 = vpop.f32.mrf.mxu0
      %v3409 = vpop.f32.mrf.mxu0
      %v3410 = vadd.f32 0.0, %v3409
      %v3411 = vpop.f32.mrf.mxu0
      %3412 = vdwg.mxu0
      %3413 = vmatprep.subr.bf16.mxu0 0
      %3414 = vmatpush1.bf16.msra.mxu0 0
      %3415 = vmatprep.subr.bf16.mxu0 0
      %3416 = vmatpush1.bf16.msra.mxu0 0
      %3417 = vmatprep.subr.bf16.mxu0 0
      %3418 = vmatpush1.bf16.msra.mxu0 0
      %3419 = vmatprep.subr.bf16.mxu0 0
      %3420 = vmatpush1.bf16.msra.mxu0 0
      %3421 = vmatprep.subr.bf16.mxu0 0
      %3422 = vmatpush1.bf16.msra.mxu0 0
      %3423 = vmatprep.subr.bf16.mxu0 0
      %3424 = vmatpush1.bf16.msra.mxu0 0
      %3425 = vmatprep.subr.bf16.mxu0 0
      %3426 = vmatpush1.bf16.msra.mxu0 0
      %3427 = vmatprep.subr.bf16.mxu0 0
      %3428 = vmatpush1.bf16.msra.mxu0 %v3166
      %3429 = vmatprep.subr.bf16.mxu0 0
      %3430 = vmatpush2.bf16.msra.mxu0 0
      %3431 = vmatprep.subr.bf16.mxu0 0
      %3432 = vmatpush2.bf16.msra.mxu0 0
      %3433 = vmatprep.subr.bf16.mxu0 0
      %3434 = vmatpush2.bf16.msra.mxu0 0
      %3435 = vmatprep.subr.bf16.mxu0 0
      %3436 = vmatpush2.bf16.msra.mxu0 0
      %3437 = vmatprep.subr.bf16.mxu0 0
      %3438 = vmatpush2.bf16.msra.mxu0 0
      %3439 = vmatprep.subr.bf16.mxu0 0
      %3440 = vmatpush2.bf16.msra.mxu0 0
      %3441 = vmatprep.subr.bf16.mxu0 0
      %3442 = vmatpush2.bf16.msra.mxu0 0
      %3443 = vmatprep.subr.bf16.mxu0 0
      %3444 = vmatpush2.bf16.msra.mxu0 0
      %3445 = vmatprep.mubr.bf16.mxu0 0
      %3446 = vmatmul.mubr.bf16.gmra.mxu0 %v1331
      %v3447 = vpop.f32.mrf.mxu0
      %v3448 = vadd.f32 0.0, %v3447
      %v3449 = vpop.f32.mrf.mxu0
      %v3450 = vpop.f32.mrf.mxu0
      %v3451 = vadd.f32 0.0, %v3450
      %v3452 = vpop.f32.mrf.mxu0
      %3453 = vdwg.mxu0
      %3454 = vmatprep.subr.bf16.mxu0 0
      %3455 = vmatpush1.bf16.msra.mxu0 0
      %3456 = vmatprep.subr.bf16.mxu0 0
      %3457 = vmatpush1.bf16.msra.mxu0 0
      %3458 = vmatprep.subr.bf16.mxu0 0
      %3459 = vmatpush1.bf16.msra.mxu0 0
      %3460 = vmatprep.subr.bf16.mxu0 0
      %3461 = vmatpush1.bf16.msra.mxu0 0
      %3462 = vmatprep.subr.bf16.mxu0 0
      %3463 = vmatpush1.bf16.msra.mxu0 0
      %3464 = vmatprep.subr.bf16.mxu0 0
      %3465 = vmatpush1.bf16.msra.mxu0 0
      %3466 = vmatprep.subr.bf16.mxu0 0
      %3467 = vmatpush1.bf16.msra.mxu0 0
      %3468 = vmatprep.subr.bf16.mxu0 0
      %3469 = vmatpush1.bf16.msra.mxu0 %v3166
      %3470 = vmatprep.subr.bf16.mxu0 0
      %3471 = vmatpush2.bf16.msra.mxu0 0
      %3472 = vmatprep.subr.bf16.mxu0 0
      %3473 = vmatpush2.bf16.msra.mxu0 0
      %3474 = vmatprep.subr.bf16.mxu0 0
      %3475 = vmatpush2.bf16.msra.mxu0 0
      %3476 = vmatprep.subr.bf16.mxu0 0
      %3477 = vmatpush2.bf16.msra.mxu0 0
      %3478 = vmatprep.subr.bf16.mxu0 0
      %3479 = vmatpush2.bf16.msra.mxu0 0
      %3480 = vmatprep.subr.bf16.mxu0 0
      %3481 = vmatpush2.bf16.msra.mxu0 0
      %3482 = vmatprep.subr.bf16.mxu0 0
      %3483 = vmatpush2.bf16.msra.mxu0 0
      %3484 = vmatprep.subr.bf16.mxu0 0
      %3485 = vmatpush2.bf16.msra.mxu0 0
      %3486 = vmatprep.mubr.bf16.mxu0 0
      %3487 = vmatmul.mubr.bf16.gmra.mxu0 %v1380
      %v3488 = vpop.f32.mrf.mxu0
      %v3489 = vadd.f32 0.0, %v3488
      %v3490 = vpop.f32.mrf.mxu0
      %v3491 = vpop.f32.mrf.mxu0
      %v3492 = vadd.f32 0.0, %v3491
      %v3493 = vpop.f32.mrf.mxu0
      %3494 = vdwg.mxu0
      %3497 = vrot.lane.b32.xlu0 %v3243, 32
      %v3498 = vpop.permute.xlu0 %3497
      %3499 = vrot.lane.b32.xlu0 %v3246, 32
      %v3500 = vpop.permute.xlu0 %3499
      %3505 = vrot.lane.b32.xlu0 %v3284, 64
      %v3506 = vpop.permute.xlu0 %3505
      %3507 = vrot.lane.b32.xlu0 %v3287, 64
      %v3508 = vpop.permute.xlu0 %3507
      %3513 = vrot.lane.b32.xlu0 %v3325, 96
      %v3514 = vpop.permute.xlu0 %3513
      %3515 = vrot.lane.b32.xlu0 %v3328, 96
      %v3516 = vpop.permute.xlu0 %3515
      %3521 = vrot.lane.b32.xlu0 %v3366, 32
      %v3522 = vpop.permute.xlu0 %3521
      %3523 = vrot.lane.b32.xlu0 %v3369, 32
      %v3524 = vpop.permute.xlu0 %3523
      %3529 = vrot.lane.b32.xlu0 %v3407, 64
      %v3530 = vpop.permute.xlu0 %3529
      %3531 = vrot.lane.b32.xlu0 %v3410, 64
      %v3532 = vpop.permute.xlu0 %3531
      %3537 = vrot.lane.b32.xlu0 %v3448, 96
      %v3538 = vpop.permute.xlu0 %3537
      %3539 = vrot.lane.b32.xlu0 %v3451, 96
      %v3540 = vpop.permute.xlu0 %3539
      %v3543 = vsel %vm2233, %v3202, %v3498
      %v3544 = vsel %vm2233, %v3205, %v3500
      %v3545 = vsel %vm1455, %v3543, %v3506
      %v3546 = vsel %vm1455, %v3544, %v3508
      %v3547 = vsel %vm2238, %v3545, %v3514
      %v3548 = vsel %vm2238, %v3546, %v3516
      %v3549 = vsel %vm2233, %v3127, %v3522
      %v3550 = vsel %vm2233, %v3128, %v3524
      %v3551 = vsel %vm1455, %v3549, %v3530
      %v3552 = vsel %vm1455, %v3550, %v3532
      %v3553 = vsel %vm2238, %v3551, %v3538
      %v3554 = vsel %vm2238, %v3552, %v3540
      %v3555 = vpack.c.bf16 %v3548, %v3547
      %v3556 = vpack.c.bf16 %v3554, %v3553
      %v3557 = vpack.c.bf16 %v3492, %v3489
      %v3594 = vunpack.c.l.b16 %v3130
      %v3595 = vunpack.c.l.b16 %v3131
      %v3596 = vunpack.c.l.b16 %v3132
      %v3597 = vunpack.c.l.b16 %v3133
      %v3598 = vunpack.c.l.b16 %v3134
      %v3599 = vunpack.c.l.b16 %v3135
      %v3600 = vunpack.c.l.b16 %v3136
      %v3601 = vunpack.c.l.b16 %v3137
      %v3602 = vunpack.c.l.b16 %v3138
      %v3603 = vunpack.c.l.b16 %v3139
      %v3604 = vunpack.c.l.b16 %v3140
      %v3605 = vunpack.c.l.b16 %v3141
      %v3606 = vunpack.c.l.b16 %v3142
      %v3607 = vunpack.c.l.b16 %v3143
      %v3608 = vunpack.c.l.b16 %v3144
      %v3609 = vunpack.c.l.b16 %v3145
      %v3610 = vunpack.c.l.b16 %v3146
      %v3611 = vunpack.c.l.b16 %v3147
      %v3612 = vunpack.c.l.b16 %v3148
      %v3613 = vunpack.c.l.b16 %v3149
      %v3614 = vunpack.c.l.b16 %v3150
      %v3615 = vunpack.c.l.b16 %v3151
      %v3616 = vunpack.c.l.b16 %v3152
      %v3617 = vunpack.c.l.b16 %v3153
      %v3618 = vunpack.c.l.b16 %v3154
      %v3619 = vunpack.c.l.b16 %v3155
      %v3620 = vunpack.c.l.b16 %v3156
      %v3621 = vunpack.c.l.b16 %v3157
      %v3622 = vunpack.c.l.b16 %v3158
      %v3623 = vunpack.c.l.b16 %v3159
      %v3624 = vunpack.c.l.b16 %v3160
      %v3625 = vunpack.c.l.b16 %v3161
      %v3626 = vunpack.c.l.b16 %v3162
      %v3627 = vunpack.c.l.b16 %v3163
      %v3628 = vunpack.c.l.b16 %v3164
      %v3629 = vunpack.c.l.b16 %v3165
      %v3630 = vpack.c.b16 %v3595, %v3594
      %v3631 = vpack.c.b16 %v3597, %v3596
      %v3632 = vpack.c.b16 %v3599, %v3598
      %v3633 = vpack.c.b16 %v3601, %v3600
      %v3634 = vpack.c.b16 %v3603, %v3602
      %v3635 = vpack.c.b16 %v3605, %v3604
      %v3636 = vpack.c.b16 %v3607, %v3606
      %v3637 = vpack.c.b16 %v3609, %v3608
      %v3638 = vpack.c.b16 %v3611, %v3610
      %v3639 = vpack.c.b16 %v3613, %v3612
      %v3640 = vpack.c.b16 %v3615, %v3614
      %v3641 = vpack.c.b16 %v3617, %v3616
      %v3642 = vpack.c.b16 %v3619, %v3618
      %v3643 = vpack.c.b16 %v3621, %v3620
      %v3644 = vpack.c.b16 %v3623, %v3622
      %v3645 = vpack.c.b16 %v3625, %v3624
      %v3646 = vpack.c.b16 %v3627, %v3626
      %v3647 = vpack.c.b16 %v3629, %v3628
      %v3667 = vsel %vm2233, %v3557, 0
      %3669 = vmatprep.subr.bf16.mxu0 0
      %3670 = vmatpush1.bf16.msra.mxu0 %v3637
      %3671 = vmatprep.subr.bf16.mxu0 0
      %3672 = vmatpush1.bf16.msra.mxu0 %v3636
      %3673 = vmatprep.subr.bf16.mxu0 0
      %3674 = vmatpush1.bf16.msra.mxu0 %v3635
      %3675 = vmatprep.subr.bf16.mxu0 0
      %3676 = vmatpush1.bf16.msra.mxu0 %v3634
      %3677 = vmatprep.subr.bf16.mxu0 0
      %3678 = vmatpush1.bf16.msra.mxu0 %v3633
      %3679 = vmatprep.subr.bf16.mxu0 0
      %3680 = vmatpush1.bf16.msra.mxu0 %v3632
      %3681 = vmatprep.subr.bf16.mxu0 0
      %3682 = vmatpush1.bf16.msra.mxu0 %v3631
      %3683 = vmatprep.subr.bf16.mxu0 0
      %3684 = vmatpush1.bf16.msra.mxu0 %v3630
      %3685 = vmatprep.subr.bf16.mxu0 0
      %3686 = vmatpush2.bf16.msra.mxu0 %v3645
      %3687 = vmatprep.subr.bf16.mxu0 0
      %3688 = vmatpush2.bf16.msra.mxu0 %v3644
      %3689 = vmatprep.subr.bf16.mxu0 0
      %3690 = vmatpush2.bf16.msra.mxu0 %v3643
      %3691 = vmatprep.subr.bf16.mxu0 0
      %3692 = vmatpush2.bf16.msra.mxu0 %v3642
      %3693 = vmatprep.subr.bf16.mxu0 0
      %3694 = vmatpush2.bf16.msra.mxu0 %v3641
      %3695 = vmatprep.subr.bf16.mxu0 0
      %3696 = vmatpush2.bf16.msra.mxu0 %v3640
      %3697 = vmatprep.subr.bf16.mxu0 0
      %3698 = vmatpush2.bf16.msra.mxu0 %v3639
      %3699 = vmatprep.subr.bf16.mxu0 0
      %3700 = vmatpush2.bf16.msra.mxu0 %v3638
      %3701 = vmatprep.mubr.bf16.mxu0 %v3556
      %3702 = vmatmul.mubr.bf16.gmra.mxu0 %v3555
      %v3703 = vpop.f32.mrf.mxu0
      %v3704 = vadd.f32 0.0, %v3703
      %v3705 = vpop.f32.mrf.mxu0
      %v3706 = vpop.f32.mrf.mxu0
      %v3707 = vadd.f32 0.0, %v3706
      %v3708 = vpop.f32.mrf.mxu0
      %3709 = vdwg.mxu0
      %3710 = vmatprep.subr.bf16.mxu0 0
      %3711 = vmatpush1.bf16.msra.mxu0 0
      %3712 = vmatprep.subr.bf16.mxu0 0
      %3713 = vmatpush1.bf16.msra.mxu0 0
      %3714 = vmatprep.subr.bf16.mxu0 0
      %3715 = vmatpush1.bf16.msra.mxu0 0
      %3716 = vmatprep.subr.bf16.mxu0 0
      %3717 = vmatpush1.bf16.msra.mxu0 0
      %3718 = vmatprep.subr.bf16.mxu0 0
      %3719 = vmatpush1.bf16.msra.mxu0 0
      %3720 = vmatprep.subr.bf16.mxu0 0
      %3721 = vmatpush1.bf16.msra.mxu0 0
      %3722 = vmatprep.subr.bf16.mxu0 0
      %3723 = vmatpush1.bf16.msra.mxu0 %v3647
      %3724 = vmatprep.subr.bf16.mxu0 0
      %3725 = vmatpush1.bf16.msra.mxu0 %v3646
      %3726 = vmatprep.subr.bf16.mxu0 0
      %3727 = vmatpush2.bf16.msra.mxu0 0
      %3728 = vmatprep.subr.bf16.mxu0 0
      %3729 = vmatpush2.bf16.msra.mxu0 0
      %3730 = vmatprep.subr.bf16.mxu0 0
      %3731 = vmatpush2.bf16.msra.mxu0 0
      %3732 = vmatprep.subr.bf16.mxu0 0
      %3733 = vmatpush2.bf16.msra.mxu0 0
      %3734 = vmatprep.subr.bf16.mxu0 0
      %3735 = vmatpush2.bf16.msra.mxu0 0
      %3736 = vmatprep.subr.bf16.mxu0 0
      %3737 = vmatpush2.bf16.msra.mxu0 0
      %3738 = vmatprep.subr.bf16.mxu0 0
      %3739 = vmatpush2.bf16.msra.mxu0 0
      %3740 = vmatprep.subr.bf16.mxu0 0
      %3741 = vmatpush2.bf16.msra.mxu0 0
      %3742 = vmatprep.mubr.bf16.mxu0 0
      %3743 = vmatmul.mubr.bf16.gmra.mxu0 %v3667
      %v3744 = vpop.f32.mrf.mxu0
      %v3745 = vadd.f32 %v3704, %v3744
      %v3746 = vpop.f32.mrf.mxu0
      %v3747 = vpop.f32.mrf.mxu0
      %v3748 = vadd.f32 %v3707, %v3747
      %v3749 = vpop.f32.mrf.mxu0
      %3750 = vdwg.mxu0
      %v3751 = vmax.f32 %v3745, 0.0
      %v3752 = vmax.f32 %v3748, 0.0
      %v3753 = vpack.c.bf16 %v3752, %v3751
      %s3754 = scalar_lea.vmem %s9, 4
      %v3755 = vld [vmem:[%s3754] sm:$0xf]
      %v3757 = vsel %vm3076, %v3753, 0
      %v3760 = vsel %vm3080, %v3755, 0
      %3762 = vmatprep.subr.bf16.mxu0 0
      %3763 = vmatpush1.bf16.msra.mxu0 0
      %3764 = vmatprep.subr.bf16.mxu0 0
      %3765 = vmatpush1.bf16.msra.mxu0 0
      %3766 = vmatprep.subr.bf16.mxu0 0
      %3767 = vmatpush1.bf16.msra.mxu0 0
      %3768 = vmatprep.subr.bf16.mxu0 0
      %3769 = vmatpush1.bf16.msra.mxu0 0
      %3770 = vmatprep.subr.bf16.mxu0 0
      %3771 = vmatpush1.bf16.msra.mxu0 0
      %3772 = vmatprep.subr.bf16.mxu0 0
      %3773 = vmatpush1.bf16.msra.mxu0 0
      %3774 = vmatprep.subr.bf16.mxu0 0
      %3775 = vmatpush1.bf16.msra.mxu0 0
      %3776 = vmatprep.subr.bf16.mxu0 0
      %3777 = vmatpush1.bf16.msra.mxu0 %v3760
      %3778 = vmatprep.subr.bf16.mxu0 0
      %3779 = vmatpush2.bf16.msra.mxu0 0
      %3780 = vmatprep.subr.bf16.mxu0 0
      %3781 = vmatpush2.bf16.msra.mxu0 0
      %3782 = vmatprep.subr.bf16.mxu0 0
      %3783 = vmatpush2.bf16.msra.mxu0 0
      %3784 = vmatprep.subr.bf16.mxu0 0
      %3785 = vmatpush2.bf16.msra.mxu0 0
      %3786 = vmatprep.subr.bf16.mxu0 0
      %3787 = vmatpush2.bf16.msra.mxu0 0
      %3788 = vmatprep.subr.bf16.mxu0 0
      %3789 = vmatpush2.bf16.msra.mxu0 0
      %3790 = vmatprep.subr.bf16.mxu0 0
      %3791 = vmatpush2.bf16.msra.mxu0 0
      %3792 = vmatprep.subr.bf16.mxu0 0
      %3793 = vmatpush2.bf16.msra.mxu0 0
      %3794 = vmatprep.mubr.bf16.mxu0 0
      %3795 = vmatmul.mubr.bf16.gmra.mxu0 %v3757
      %v3796 = vpop.f32.mrf.mxu0
      %v3797 = vadd.f32 0.0, %v3796
      %v3798 = vpop.f32.mrf.mxu0
      %v3799 = vpop.f32.mrf.mxu0
      %v3800 = vadd.f32 0.0, %v3799
      %v3801 = vpop.f32.mrf.mxu0
      %3802 = vdwg.mxu0
      %v3803 = vadd.f32 %v3125, %v3797
      %v3804 = vadd.f32 %v3126, %v3800
      %v3805 = vmax.f32 %v3803, 0.0
      %v3806 = vmax.f32 %v3804, 0.0
      %v3807 = vpack.c.bf16 %v3806, %v3805
      %v3808 = vld [vmem:[%s10] sm:$0xf]
      %v3809 = vld [vmem:[%s10 + $0x4] sm:$0xf]
      %v3810 = vld [vmem:[%s10 + $0x8] sm:$0xf]
      %v3811 = vld [vmem:[%s10 + $0xc] sm:$0xf]
      %v3812 = vld [vmem:[%s11] sm:$0x1]
      %v3814 = vlaneseq
      %v3815 = vshrl.u32 %v3814, 7
      %v3816 = vsub.s32 0, %v3815
      %v3817 = vrot.slane %v3812, %v3816
      %v3823 = vunpack.c.l.b16 %v3808
      %v3824 = vunpack.c.l.b16 %v3809
      %v3825 = vunpack.c.l.b16 %v3810
      %v3826 = vunpack.c.l.b16 %v3811
      %v3827 = vpack.c.b16 %v3824, %v3823
      %v3828 = vpack.c.b16 %v3826, %v3825
      %v3832 = vsel %vm2233, %v3807, 0
      %3834 = vmatprep.subr.bf16.mxu0 0
      %3835 = vmatpush1.bf16.msra.mxu0 0
      %3836 = vmatprep.subr.bf16.mxu0 0
      %3837 = vmatpush1.bf16.msra.mxu0 0
      %3838 = vmatprep.subr.bf16.mxu0 0
      %3839 = vmatpush1.bf16.msra.mxu0 0
      %3840 = vmatprep.subr.bf16.mxu0 0
      %3841 = vmatpush1.bf16.msra.mxu0 0
      %3842 = vmatprep.subr.bf16.mxu0 0
      %3843 = vmatpush1.bf16.msra.mxu0 0
      %3844 = vmatprep.subr.bf16.mxu0 0
      %3845 = vmatpush1.bf16.msra.mxu0 0
      %3846 = vmatprep.subr.bf16.mxu0 0
      %3847 = vmatpush1.bf16.msra.mxu0 %v3828
      %3848 = vmatprep.subr.bf16.mxu0 0
      %3849 = vmatpush1.bf16.msra.mxu0 %v3827
      %3850 = vmatprep.subr.bf16.mxu0 0
      %3851 = vmatpush2.bf16.msra.mxu0 0
      %3852 = vmatprep.subr.bf16.mxu0 0
      %3853 = vmatpush2.bf16.msra.mxu0 0
      %3854 = vmatprep.subr.bf16.mxu0 0
      %3855 = vmatpush2.bf16.msra.mxu0 0
      %3856 = vmatprep.subr.bf16.mxu0 0
      %3857 = vmatpush2.bf16.msra.mxu0 0
      %3858 = vmatprep.subr.bf16.mxu0 0
      %3859 = vmatpush2.bf16.msra.mxu0 0
      %3860 = vmatprep.subr.bf16.mxu0 0
      %3861 = vmatpush2.bf16.msra.mxu0 0
      %3862 = vmatprep.subr.bf16.mxu0 0
      %3863 = vmatpush2.bf16.msra.mxu0 0
      %3864 = vmatprep.subr.bf16.mxu0 0
      %3865 = vmatpush2.bf16.msra.mxu0 0
      %3866 = vmatprep.mubr.bf16.mxu0 0
      %3867 = vmatmul.mubr.bf16.gmra.mxu0 %v3832
      %v3868 = vpop.f32.mrf.mxu0
      %v3869 = vadd.f32 %v3817, %v3868
      %v3870 = vpop.f32.mrf.mxu0
      %v3871 = vpop.f32.mrf.mxu0
      %v3872 = vadd.f32 %v3817, %v3871
      %v3873 = vpop.f32.mrf.mxu0
      %3874 = vdwg.mxu0
      %v3875 = vmul.f32 %v3869, %v3869
      %v3876 = vmul.f32 %v3872, %v3872
      %v3877 = vsel %vm3076, %v3875, 0.0
      %3878 = vadd.xlane.f32.xlu0 %v3877
      %v3879 = vpop.xlane.xlu0 %3878
      %v3880 = vsel %vm3076, %v3876, 0.0
      %3881 = vadd.xlane.f32.xlu0 %v3880
      %v3882 = vpop.xlane.xlu0 %3881
      %v3883 = vld [vmem:[%s14] sm:$0x1]
      %v3885 = vlaneseq
      %v3886 = vshrl.u32 %v3885, 7
      %v3887 = vsub.s32 0, %v3886
      %v3888 = vrot.slane %v3883, %v3887
      %v3890 = vadd.f32 %v3879, %v3888
      %v3891 = vadd.f32 %v3882, %v3888
      %v3892 = vld [vmem:[%s13] sm:$0xff]
      %v3894 = vsel %vm3076, %v3869, 0
      %v3897 = vsel %vm3076, %v3872, 0
      %3899 = vmatprep.subr.mxu0 0.0
      %3900 = vmatpush1.msra.mxu0 0.0
      %3901 = vmatprep.subr.mxu0 0.0
      %3902 = vmatpush1.msra.mxu0 0.0
      %3903 = vmatprep.subr.mxu0 0.0
      %3904 = vmatpush1.msra.mxu0 0.0
      %3905 = vmatprep.subr.mxu0 0.0
      %3906 = vmatpush1.msra.mxu0 0.0
      %3907 = vmatprep.subr.mxu0 0.0
      %3908 = vmatpush1.msra.mxu0 0.0
      %3909 = vmatprep.subr.mxu0 0.0
      %3910 = vmatpush1.msra.mxu0 0.0
      %3911 = vmatprep.subr.mxu0 0.0
      %3912 = vmatpush1.msra.mxu0 0.0
      %3913 = vmatprep.subr.mxu0 0.0
      %3914 = vmatpush1.msra.mxu0 0.0
      %3915 = vmatprep.subr.mxu0 0.0
      %3916 = vmatpush1.msra.mxu0 0.0
      %3917 = vmatprep.subr.mxu0 0.0
      %3918 = vmatpush1.msra.mxu0 0.0
      %3919 = vmatprep.subr.mxu0 0.0
      %3920 = vmatpush1.msra.mxu0 0.0
      %3921 = vmatprep.subr.mxu0 0.0
      %3922 = vmatpush1.msra.mxu0 0.0
      %3923 = vmatprep.subr.mxu0 0.0
      %3924 = vmatpush1.msra.mxu0 0.0
      %3925 = vmatprep.subr.mxu0 0.0
      %3926 = vmatpush1.msra.mxu0 0.0
      %3927 = vmatprep.subr.mxu0 0.0
      %3928 = vmatpush1.msra.mxu0 0.0
      %3929 = vmatprep.subr.mxu0 0.0
      %3930 = vmatpush1.msra.mxu0 %v3892
      %3931 = vmatprep.subr.mxu0 0.0
      %3932 = vmatpush2.msra.mxu0 0.0
      %3933 = vmatprep.subr.mxu0 0.0
      %3934 = vmatpush2.msra.mxu0 0.0
      %3935 = vmatprep.subr.mxu0 0.0
      %3936 = vmatpush2.msra.mxu0 0.0
      %3937 = vmatprep.subr.mxu0 0.0
      %3938 = vmatpush2.msra.mxu0 0.0
      %3939 = vmatprep.subr.mxu0 0.0
      %3940 = vmatpush2.msra.mxu0 0.0
      %3941 = vmatprep.subr.mxu0 0.0
      %3942 = vmatpush2.msra.mxu0 0.0
      %3943 = vmatprep.subr.mxu0 0.0
      %3944 = vmatpush2.msra.mxu0 0.0
      %3945 = vmatprep.subr.mxu0 0.0
      %3946 = vmatpush2.msra.mxu0 0.0
      %3947 = vmatprep.subr.mxu0 0.0
      %3948 = vmatpush2.msra.mxu0 0.0
      %3949 = vmatprep.subr.mxu0 0.0
      %3950 = vmatpush2.msra.mxu0 0.0
      %3951 = vmatprep.subr.mxu0 0.0
      %3952 = vmatpush2.msra.mxu0 0.0
      %3953 = vmatprep.subr.mxu0 0.0
      %3954 = vmatpush2.msra.mxu0 0.0
      %3955 = vmatprep.subr.mxu0 0.0
      %3956 = vmatpush2.msra.mxu0 0.0
      %3957 = vmatprep.subr.mxu0 0.0
      %3958 = vmatpush2.msra.mxu0 0.0
      %3959 = vmatprep.subr.mxu0 0.0
      %3960 = vmatpush2.msra.mxu0 0.0
      %3961 = vmatprep.subr.mxu0 0.0
      %3962 = vmatpush2.msra.mxu0 0.0
      %3963 = vmatprep.mubr.f32.mxu0 0.0
      %3964 = vmatmul.mubr.f32.gmra.mxu0 %v3894
      %v3965 = vpop.f32.mrf.mxu0
      %v3966 = vadd.f32 0.0, %v3965
      %v3967 = vpop.f32.mrf.mxu0
      %3968 = vmatprep.mubr.f32.mxu0 0.0
      %3969 = vmatmul.mubr.f32.gmra.mxu0 %v3897
      %v3970 = vpop.f32.mrf.mxu0
      %v3971 = vadd.f32 0.0, %v3970
      %v3972 = vpop.f32.mrf.mxu0
      %3973 = vdwg.mxu0
      %v3974 = vmul.f32 %v3966, 2.0
      %v3975 = vmul.f32 %v3971, 2.0
      %v3976 = vsub.f32 %v3890, %v3974
      %v3977 = vsub.f32 %v3891, %v3975
      %v3978 = vlaneseq
      %v3979 = vand.u32 %v3978, 127
      %3980 = vmin.xlane.f32.xlu0 %v3976
      %v3981 = vpop.xlane.xlu0 %3980
      %3982 = vmin.xlane.f32.xlu0 %v3977
      %v3983 = vpop.xlane.xlu0 %3982
      %vm3984 = vcmp.eq.f32.partialorder %v3976, %v3981
      %vm3985 = vcmp.eq.f32.partialorder %v3977, %v3983
      %v3986 = vsel %vm3984, %v3979, 128
      %v3987 = vsel %vm3985, %v3979, 128
      %v3988 = vand.u32 %v3986, 65535
      %v3989 = vshra.s32 %v3986, 16
      %v3990 = vcvt.s32.f32 %v3988
      %v3991 = vcvt.s32.f32 %v3989
      %3992 = vmin.xlane.f32.xlu0 %v3991
      %v3993 = vpop.xlane.xlu0 %3992
      %vm3994 = vcmp.eq.f32.partialorder %v3991, %v3993
      %v3995 = vsel %vm3994, %v3990, inf
      %3996 = vmin.xlane.f32.xlu0 %v3995
      %v3997 = vpop.xlane.xlu0 %3996
      %v3998 = vcvt.f32.s32 %v3997
      %v3999 = vcvt.f32.s32 %v3993
      %v4000 = vshll.u32 %v3999, 16
      %v4001 = vadd.s32 %v4000, %v3998
      %v4002 = vand.u32 %v3987, 65535
      %v4003 = vshra.s32 %v3987, 16
      %v4004 = vcvt.s32.f32 %v4002
      %v4005 = vcvt.s32.f32 %v4003
      %4006 = vmin.xlane.f32.xlu0 %v4005
      %v4007 = vpop.xlane.xlu0 %4006
      %vm4008 = vcmp.eq.f32.partialorder %v4005, %v4007
      %v4009 = vsel %vm4008, %v4004, inf
      %4010 = vmin.xlane.f32.xlu0 %v4009
      %v4011 = vpop.xlane.xlu0 %4010
      %v4012 = vcvt.f32.s32 %v4011
      %v4013 = vcvt.f32.s32 %v4007
      %v4014 = vshll.u32 %v4013, 16
      %v4015 = vadd.s32 %v4014, %v4012
      %vm4016 = vcmp.eq.s32.totalorder %v3979, %v4001
      %vm4017 = vcmp.eq.s32.totalorder %v3979, %v4015
      %v4018 = vsel %vm4016, 1, 0
      %v4019 = vsel %vm4017, 1, 0
      %v4020 = vcvt.s32.f32 %v4018
      %v4021 = vcvt.s32.f32 %v4019
      %v4022 = vld [vmem:[%s12] sm:$0xff]
      %v4023 = vld [vmem:[%s12 + $0x8] sm:$0xff]
      %v4024 = vld [vmem:[%s12 + $0x10] sm:$0xff]
      %v4025 = vld [vmem:[%s12 + $0x18] sm:$0xff]
      %v4026 = vld [vmem:[%s12 + $0x20] sm:$0xff]
      %v4027 = vld [vmem:[%s12 + $0x28] sm:$0xff]
      %v4028 = vld [vmem:[%s12 + $0x30] sm:$0xff]
      %v4029 = vld [vmem:[%s12 + $0x38] sm:$0xff]
      %v4030 = vld [vmem:[%s12 + $0x40] sm:$0xff]
      %v4031 = vld [vmem:[%s12 + $0x48] sm:$0xff]
      %v4032 = vld [vmem:[%s12 + $0x50] sm:$0xff]
      %v4033 = vld [vmem:[%s12 + $0x58] sm:$0xff]
      %v4034 = vld [vmem:[%s12 + $0x60] sm:$0xff]
      %v4035 = vld [vmem:[%s12 + $0x68] sm:$0xff]
      %v4036 = vld [vmem:[%s12 + $0x70] sm:$0xff]
      %v4037 = vld [vmem:[%s12 + $0x78] sm:$0xff]
      %4038 = vmatprep.subr.mxu0 0.0
      %4039 = vmatpush1.msra.mxu0 %v4037
      %4040 = vmatprep.subr.mxu0 0.0
      %4041 = vmatpush1.msra.mxu0 %v4036
      %4042 = vmatprep.subr.mxu0 0.0
      %4043 = vmatpush1.msra.mxu0 %v4035
      %4044 = vmatprep.subr.mxu0 0.0
      %4045 = vmatpush1.msra.mxu0 %v4034
      %4046 = vmatprep.subr.mxu0 0.0
      %4047 = vmatpush1.msra.mxu0 %v4033
      %4048 = vmatprep.subr.mxu0 0.0
      %4049 = vmatpush1.msra.mxu0 %v4032
      %4050 = vmatprep.subr.mxu0 0.0
      %4051 = vmatpush1.msra.mxu0 %v4031
      %4052 = vmatprep.subr.mxu0 0.0
      %4053 = vmatpush1.msra.mxu0 %v4030
      %4054 = vmatprep.subr.mxu0 0.0
      %4055 = vmatpush1.msra.mxu0 %v4029
      %4056 = vmatprep.subr.mxu0 0.0
      %4057 = vmatpush1.msra.mxu0 %v4028
      %4058 = vmatprep.subr.mxu0 0.0
      %4059 = vmatpush1.msra.mxu0 %v4027
      %4060 = vmatprep.subr.mxu0 0.0
      %4061 = vmatpush1.msra.mxu0 %v4026
      %4062 = vmatprep.subr.mxu0 0.0
      %4063 = vmatpush1.msra.mxu0 %v4025
      %4064 = vmatprep.subr.mxu0 0.0
      %4065 = vmatpush1.msra.mxu0 %v4024
      %4066 = vmatprep.subr.mxu0 0.0
      %4067 = vmatpush1.msra.mxu0 %v4023
      %4068 = vmatprep.subr.mxu0 0.0
      %4069 = vmatpush1.msra.mxu0 %v4022
      %4070 = vmatprep.subr.mxu0 0.0
      %4071 = vmatpush2.msra.mxu0 0.0
      %4072 = vmatprep.subr.mxu0 0.0
      %4073 = vmatpush2.msra.mxu0 0.0
      %4074 = vmatprep.subr.mxu0 0.0
      %4075 = vmatpush2.msra.mxu0 0.0
      %4076 = vmatprep.subr.mxu0 0.0
      %4077 = vmatpush2.msra.mxu0 0.0
      %4078 = vmatprep.subr.mxu0 0.0
      %4079 = vmatpush2.msra.mxu0 0.0
      %4080 = vmatprep.subr.mxu0 0.0
      %4081 = vmatpush2.msra.mxu0 0.0
      %4082 = vmatprep.subr.mxu0 0.0
      %4083 = vmatpush2.msra.mxu0 0.0
      %4084 = vmatprep.subr.mxu0 0.0
      %4085 = vmatpush2.msra.mxu0 0.0
      %4086 = vmatprep.subr.mxu0 0.0
      %4087 = vmatpush2.msra.mxu0 0.0
      %4088 = vmatprep.subr.mxu0 0.0
      %4089 = vmatpush2.msra.mxu0 0.0
      %4090 = vmatprep.subr.mxu0 0.0
      %4091 = vmatpush2.msra.mxu0 0.0
      %4092 = vmatprep.subr.mxu0 0.0
      %4093 = vmatpush2.msra.mxu0 0.0
      %4094 = vmatprep.subr.mxu0 0.0
      %4095 = vmatpush2.msra.mxu0 0.0
      %4096 = vmatprep.subr.mxu0 0.0
      %4097 = vmatpush2.msra.mxu0 0.0
      %4098 = vmatprep.subr.mxu0 0.0
      %4099 = vmatpush2.msra.mxu0 0.0
      %4100 = vmatprep.subr.mxu0 0.0
      %4101 = vmatpush2.msra.mxu0 0.0
      %4102 = vmatprep.mubr.f32.mxu0 0.0
      %4103 = vmatmul.mubr.f32.gmra.mxu0 %v4020
      %v4104 = vpop.f32.mrf.mxu0
      %v4105 = vadd.f32 0.0, %v4104
      %v4106 = vpop.f32.mrf.mxu0
      %4107 = vmatprep.mubr.f32.mxu0 0.0
      %4108 = vmatmul.mubr.f32.gmra.mxu0 %v4021
      %v4109 = vpop.f32.mrf.mxu0
      %v4110 = vadd.f32 0.0, %v4109
      %v4111 = vpop.f32.mrf.mxu0
      %4112 = vdwg.mxu0
      %v4113 = vsub.f32 %v4105, %v3869
      %v4114 = vsub.f32 %v4110, %v3872
      %v4115 = vmul.f32 %v4113, %v4113
      %v4116 = vmul.f32 %v4114, %v4114
      %v4117 = vsel %vm3076, %v4115, 0.0
      %v4118 = vsel %vm3076, %v4116, 0.0
      %v4119 = vadd.f32 %v4117, %v4118
      %4120 = vadd.xlane.f32.xlu0 %v4119
      %v4121 = vpop.xlane.xlu0 %4120
      %v4122 = vrot.slane %v4121, 4
      %v4123 = vadd.f32 %v4121, %v4122
      %v4124 = vrot.slane %v4123, 2
      %v4125 = vadd.f32 %v4123, %v4124
      %v4126 = vrot.slane %v4125, 1
      %v4127 = vadd.f32 %v4125, %v4126
      %s4128 = vtos %v4127
      %v4129 = vadd.f32 %v4020, %v4021
      %v4130 = vrot.slane %v4129, 4
      %v4131 = vadd.f32 %v4129, %v4130
      %v4132 = vrot.slane %v4131, 2
      %v4133 = vadd.f32 %v4131, %v4132
      %v4134 = vrot.slane %v4133, 1
      %v4135 = vadd.f32 %v4133, %v4134
      %v4136 = vlaneseq
      %v4137 = vshrl.u32 %v4136, 7
      %vm4138 = vcmp.eq.s32.totalorder %v4137, 0
      %v4139 = vstv %s4128
      %v4140 = vsel %vm4138, %v4135, %v4139
      %4141 = vst [vmem:[%s748] sm:$0x3] %v4140
      %v4142 = vld [vmem:[%s15] sm:$0xf]
      %v4143 = vld [vmem:[%s15 + $0x4] sm:$0xf]
      %v4144 = vld [vmem:[%s15 + $0x8] sm:$0xf]
      %v4145 = vld [vmem:[%s15 + $0xc] sm:$0xf]
      %v4146 = vld [vmem:[%s15 + $0x10] sm:$0xf]
      %v4147 = vld [vmem:[%s15 + $0x14] sm:$0xf]
      %v4148 = vld [vmem:[%s15 + $0x18] sm:$0xf]
      %v4149 = vld [vmem:[%s15 + $0x1c] sm:$0xf]
      %v4150 = vld [vmem:[%s15 + $0x20] sm:$0xf]
      %v4151 = vld [vmem:[%s16] sm:$0x1]
      %v4152 = vpack.c.bf16 %v4110, %v4105
      %4153 = vmatprep.subr.bf16.mxu0 0
      %4154 = vmatpush1.bf16.msra.mxu0 0
      %4155 = vmatprep.subr.bf16.mxu0 0
      %4156 = vmatpush1.bf16.msra.mxu0 0
      %4157 = vmatprep.subr.bf16.mxu0 0
      %4158 = vmatpush1.bf16.msra.mxu0 0
      %4159 = vmatprep.subr.bf16.mxu0 0
      %4160 = vmatpush1.bf16.msra.mxu0 0
      %4161 = vmatprep.subr.bf16.mxu0 0
      %4162 = vmatpush1.bf16.msra.mxu0 0
      %4163 = vmatprep.subr.bf16.mxu0 0
      %4164 = vmatpush1.bf16.msra.mxu0 0
      %4165 = vmatprep.subr.bf16.mxu0 0
      %4166 = vmatpush1.bf16.msra.mxu0 0
      %4167 = vmatprep.subr.bf16.mxu0 0
      %4168 = vmatpush1.bf16.msra.mxu0 %v4152
      %4169 = vmatprep.subr.bf16.mxu0 0
      %4170 = vmatpush2.bf16.msra.mxu0 0
      %4171 = vmatprep.subr.bf16.mxu0 0
      %4172 = vmatpush2.bf16.msra.mxu0 0
      %4173 = vmatprep.subr.bf16.mxu0 0
      %4174 = vmatpush2.bf16.msra.mxu0 0
      %4175 = vmatprep.subr.bf16.mxu0 0
      %4176 = vmatpush2.bf16.msra.mxu0 0
      %4177 = vmatprep.subr.bf16.mxu0 0
      %4178 = vmatpush2.bf16.msra.mxu0 0
      %4179 = vmatprep.subr.bf16.mxu0 0
      %4180 = vmatpush2.bf16.msra.mxu0 0
      %4181 = vmatprep.subr.bf16.mxu0 0
      %4182 = vmatpush2.bf16.msra.mxu0 0
      %4183 = vmatprep.subr.bf16.mxu0 0
      %4184 = vmatpush2.bf16.msra.mxu0 0
      %4185 = vmatprep.mubr.bf16.mxu0 0
      %4186 = vmatmul.mubr.bf16.gmra.mxu0 %v1037
      %v4187 = vpop.f32.mrf.mxu0
      %v4188 = vadd.f32 0.0, %v4187
      %v4189 = vpop.f32.mrf.mxu0
      %v4190 = vpop.f32.mrf.mxu0
      %v4191 = vadd.f32 0.0, %v4190
      %v4192 = vpop.f32.mrf.mxu0
      %4193 = vdwg.mxu0
      %4194 = vmatprep.subr.bf16.mxu0 0
      %4195 = vmatpush1.bf16.msra.mxu0 0
      %4196 = vmatprep.subr.bf16.mxu0 0
      %4197 = vmatpush1.bf16.msra.mxu0 0
      %4198 = vmatprep.subr.bf16.mxu0 0
      %4199 = vmatpush1.bf16.msra.mxu0 0
      %4200 = vmatprep.subr.bf16.mxu0 0
      %4201 = vmatpush1.bf16.msra.mxu0 0
      %4202 = vmatprep.subr.bf16.mxu0 0
      %4203 = vmatpush1.bf16.msra.mxu0 0
      %4204 = vmatprep.subr.bf16.mxu0 0
      %4205 = vmatpush1.bf16.msra.mxu0 0
      %4206 = vmatprep.subr.bf16.mxu0 0
      %4207 = vmatpush1.bf16.msra.mxu0 0
      %4208 = vmatprep.subr.bf16.mxu0 0
      %4209 = vmatpush1.bf16.msra.mxu0 %v4152
      %4210 = vmatprep.subr.bf16.mxu0 0
      %4211 = vmatpush2.bf16.msra.mxu0 0
      %4212 = vmatprep.subr.bf16.mxu0 0
      %4213 = vmatpush2.bf16.msra.mxu0 0
      %4214 = vmatprep.subr.bf16.mxu0 0
      %4215 = vmatpush2.bf16.msra.mxu0 0
      %4216 = vmatprep.subr.bf16.mxu0 0
      %4217 = vmatpush2.bf16.msra.mxu0 0
      %4218 = vmatprep.subr.bf16.mxu0 0
      %4219 = vmatpush2.bf16.msra.mxu0 0
      %4220 = vmatprep.subr.bf16.mxu0 0
      %4221 = vmatpush2.bf16.msra.mxu0 0
      %4222 = vmatprep.subr.bf16.mxu0 0
      %4223 = vmatpush2.bf16.msra.mxu0 0
      %4224 = vmatprep.subr.bf16.mxu0 0
      %4225 = vmatpush2.bf16.msra.mxu0 0
      %4226 = vmatprep.mubr.bf16.mxu0 0
      %4227 = vmatmul.mubr.bf16.gmra.mxu0 %v1086
      %v4228 = vpop.f32.mrf.mxu0
      %v4229 = vadd.f32 0.0, %v4228
      %v4230 = vpop.f32.mrf.mxu0
      %v4231 = vpop.f32.mrf.mxu0
      %v4232 = vadd.f32 0.0, %v4231
      %v4233 = vpop.f32.mrf.mxu0
      %4234 = vdwg.mxu0
      %4235 = vmatprep.subr.bf16.mxu0 0
      %4236 = vmatpush1.bf16.msra.mxu0 0
      %4237 = vmatprep.subr.bf16.mxu0 0
      %4238 = vmatpush1.bf16.msra.mxu0 0
      %4239 = vmatprep.subr.bf16.mxu0 0
      %4240 = vmatpush1.bf16.msra.mxu0 0
      %4241 = vmatprep.subr.bf16.mxu0 0
      %4242 = vmatpush1.bf16.msra.mxu0 0
      %4243 = vmatprep.subr.bf16.mxu0 0
      %4244 = vmatpush1.bf16.msra.mxu0 0
      %4245 = vmatprep.subr.bf16.mxu0 0
      %4246 = vmatpush1.bf16.msra.mxu0 0
      %4247 = vmatprep.subr.bf16.mxu0 0
      %4248 = vmatpush1.bf16.msra.mxu0 0
      %4249 = vmatprep.subr.bf16.mxu0 0
      %4250 = vmatpush1.bf16.msra.mxu0 %v4152
      %4251 = vmatprep.subr.bf16.mxu0 0
      %4252 = vmatpush2.bf16.msra.mxu0 0
      %4253 = vmatprep.subr.bf16.mxu0 0
      %4254 = vmatpush2.bf16.msra.mxu0 0
      %4255 = vmatprep.subr.bf16.mxu0 0
      %4256 = vmatpush2.bf16.msra.mxu0 0
      %4257 = vmatprep.subr.bf16.mxu0 0
      %4258 = vmatpush2.bf16.msra.mxu0 0
      %4259 = vmatprep.subr.bf16.mxu0 0
      %4260 = vmatpush2.bf16.msra.mxu0 0
      %4261 = vmatprep.subr.bf16.mxu0 0
      %4262 = vmatpush2.bf16.msra.mxu0 0
      %4263 = vmatprep.subr.bf16.mxu0 0
      %4264 = vmatpush2.bf16.msra.mxu0 0
      %4265 = vmatprep.subr.bf16.mxu0 0
      %4266 = vmatpush2.bf16.msra.mxu0 0
      %4267 = vmatprep.mubr.bf16.mxu0 0
      %4268 = vmatmul.mubr.bf16.gmra.mxu0 %v1135
      %v4269 = vpop.f32.mrf.mxu0
      %v4270 = vadd.f32 0.0, %v4269
      %v4271 = vpop.f32.mrf.mxu0
      %v4272 = vpop.f32.mrf.mxu0
      %v4273 = vadd.f32 0.0, %v4272
      %v4274 = vpop.f32.mrf.mxu0
      %4275 = vdwg.mxu0
      %4276 = vmatprep.subr.bf16.mxu0 0
      %4277 = vmatpush1.bf16.msra.mxu0 0
      %4278 = vmatprep.subr.bf16.mxu0 0
      %4279 = vmatpush1.bf16.msra.mxu0 0
      %4280 = vmatprep.subr.bf16.mxu0 0
      %4281 = vmatpush1.bf16.msra.mxu0 0
      %4282 = vmatprep.subr.bf16.mxu0 0
      %4283 = vmatpush1.bf16.msra.mxu0 0
      %4284 = vmatprep.subr.bf16.mxu0 0
      %4285 = vmatpush1.bf16.msra.mxu0 0
      %4286 = vmatprep.subr.bf16.mxu0 0
      %4287 = vmatpush1.bf16.msra.mxu0 0
      %4288 = vmatprep.subr.bf16.mxu0 0
      %4289 = vmatpush1.bf16.msra.mxu0 0
      %4290 = vmatprep.subr.bf16.mxu0 0
      %4291 = vmatpush1.bf16.msra.mxu0 %v4152
      %4292 = vmatprep.subr.bf16.mxu0 0
      %4293 = vmatpush2.bf16.msra.mxu0 0
      %4294 = vmatprep.subr.bf16.mxu0 0
      %4295 = vmatpush2.bf16.msra.mxu0 0
      %4296 = vmatprep.subr.bf16.mxu0 0
      %4297 = vmatpush2.bf16.msra.mxu0 0
      %4298 = vmatprep.subr.bf16.mxu0 0
      %4299 = vmatpush2.bf16.msra.mxu0 0
      %4300 = vmatprep.subr.bf16.mxu0 0
      %4301 = vmatpush2.bf16.msra.mxu0 0
      %4302 = vmatprep.subr.bf16.mxu0 0
      %4303 = vmatpush2.bf16.msra.mxu0 0
      %4304 = vmatprep.subr.bf16.mxu0 0
      %4305 = vmatpush2.bf16.msra.mxu0 0
      %4306 = vmatprep.subr.bf16.mxu0 0
      %4307 = vmatpush2.bf16.msra.mxu0 0
      %4308 = vmatprep.mubr.bf16.mxu0 0
      %4309 = vmatmul.mubr.bf16.gmra.mxu0 %v1184
      %v4310 = vpop.f32.mrf.mxu0
      %v4311 = vadd.f32 0.0, %v4310
      %v4312 = vpop.f32.mrf.mxu0
      %v4313 = vpop.f32.mrf.mxu0
      %v4314 = vadd.f32 0.0, %v4313
      %v4315 = vpop.f32.mrf.mxu0
      %4316 = vdwg.mxu0
      %4317 = vmatprep.subr.bf16.mxu0 0
      %4318 = vmatpush1.bf16.msra.mxu0 0
      %4319 = vmatprep.subr.bf16.mxu0 0
      %4320 = vmatpush1.bf16.msra.mxu0 0
      %4321 = vmatprep.subr.bf16.mxu0 0
      %4322 = vmatpush1.bf16.msra.mxu0 0
      %4323 = vmatprep.subr.bf16.mxu0 0
      %4324 = vmatpush1.bf16.msra.mxu0 0
      %4325 = vmatprep.subr.bf16.mxu0 0
      %4326 = vmatpush1.bf16.msra.mxu0 0
      %4327 = vmatprep.subr.bf16.mxu0 0
      %4328 = vmatpush1.bf16.msra.mxu0 0
      %4329 = vmatprep.subr.bf16.mxu0 0
      %4330 = vmatpush1.bf16.msra.mxu0 0
      %4331 = vmatprep.subr.bf16.mxu0 0
      %4332 = vmatpush1.bf16.msra.mxu0 %v4152
      %4333 = vmatprep.subr.bf16.mxu0 0
      %4334 = vmatpush2.bf16.msra.mxu0 0
      %4335 = vmatprep.subr.bf16.mxu0 0
      %4336 = vmatpush2.bf16.msra.mxu0 0
      %4337 = vmatprep.subr.bf16.mxu0 0
      %4338 = vmatpush2.bf16.msra.mxu0 0
      %4339 = vmatprep.subr.bf16.mxu0 0
      %4340 = vmatpush2.bf16.msra.mxu0 0
      %4341 = vmatprep.subr.bf16.mxu0 0
      %4342 = vmatpush2.bf16.msra.mxu0 0
      %4343 = vmatprep.subr.bf16.mxu0 0
      %4344 = vmatpush2.bf16.msra.mxu0 0
      %4345 = vmatprep.subr.bf16.mxu0 0
      %4346 = vmatpush2.bf16.msra.mxu0 0
      %4347 = vmatprep.subr.bf16.mxu0 0
      %4348 = vmatpush2.bf16.msra.mxu0 0
      %4349 = vmatprep.mubr.bf16.mxu0 0
      %4350 = vmatmul.mubr.bf16.gmra.mxu0 %v1233
      %v4351 = vpop.f32.mrf.mxu0
      %v4352 = vadd.f32 0.0, %v4351
      %v4353 = vpop.f32.mrf.mxu0
      %v4354 = vpop.f32.mrf.mxu0
      %v4355 = vadd.f32 0.0, %v4354
      %v4356 = vpop.f32.mrf.mxu0
      %4357 = vdwg.mxu0
      %4358 = vmatprep.subr.bf16.mxu0 0
      %4359 = vmatpush1.bf16.msra.mxu0 0
      %4360 = vmatprep.subr.bf16.mxu0 0
      %4361 = vmatpush1.bf16.msra.mxu0 0
      %4362 = vmatprep.subr.bf16.mxu0 0
      %4363 = vmatpush1.bf16.msra.mxu0 0
      %4364 = vmatprep.subr.bf16.mxu0 0
      %4365 = vmatpush1.bf16.msra.mxu0 0
      %4366 = vmatprep.subr.bf16.mxu0 0
      %4367 = vmatpush1.bf16.msra.mxu0 0
      %4368 = vmatprep.subr.bf16.mxu0 0
      %4369 = vmatpush1.bf16.msra.mxu0 0
      %4370 = vmatprep.subr.bf16.mxu0 0
      %4371 = vmatpush1.bf16.msra.mxu0 0
      %4372 = vmatprep.subr.bf16.mxu0 0
      %4373 = vmatpush1.bf16.msra.mxu0 %v4152
      %4374 = vmatprep.subr.bf16.mxu0 0
      %4375 = vmatpush2.bf16.msra.mxu0 0
      %4376 = vmatprep.subr.bf16.mxu0 0
      %4377 = vmatpush2.bf16.msra.mxu0 0
      %4378 = vmatprep.subr.bf16.mxu0 0
      %4379 = vmatpush2.bf16.msra.mxu0 0
      %4380 = vmatprep.subr.bf16.mxu0 0
      %4381 = vmatpush2.bf16.msra.mxu0 0
      %4382 = vmatprep.subr.bf16.mxu0 0
      %4383 = vmatpush2.bf16.msra.mxu0 0
      %4384 = vmatprep.subr.bf16.mxu0 0
      %4385 = vmatpush2.bf16.msra.mxu0 0
      %4386 = vmatprep.subr.bf16.mxu0 0
      %4387 = vmatpush2.bf16.msra.mxu0 0
      %4388 = vmatprep.subr.bf16.mxu0 0
      %4389 = vmatpush2.bf16.msra.mxu0 0
      %4390 = vmatprep.mubr.bf16.mxu0 0
      %4391 = vmatmul.mubr.bf16.gmra.mxu0 %v1282
      %v4392 = vpop.f32.mrf.mxu0
      %v4393 = vadd.f32 0.0, %v4392
      %v4394 = vpop.f32.mrf.mxu0
      %v4395 = vpop.f32.mrf.mxu0
      %v4396 = vadd.f32 0.0, %v4395
      %v4397 = vpop.f32.mrf.mxu0
      %4398 = vdwg.mxu0
      %4399 = vmatprep.subr.bf16.mxu0 0
      %4400 = vmatpush1.bf16.msra.mxu0 0
      %4401 = vmatprep.subr.bf16.mxu0 0
      %4402 = vmatpush1.bf16.msra.mxu0 0
      %4403 = vmatprep.subr.bf16.mxu0 0
      %4404 = vmatpush1.bf16.msra.mxu0 0
      %4405 = vmatprep.subr.bf16.mxu0 0
      %4406 = vmatpush1.bf16.msra.mxu0 0
      %4407 = vmatprep.subr.bf16.mxu0 0
      %4408 = vmatpush1.bf16.msra.mxu0 0
      %4409 = vmatprep.subr.bf16.mxu0 0
      %4410 = vmatpush1.bf16.msra.mxu0 0
      %4411 = vmatprep.subr.bf16.mxu0 0
      %4412 = vmatpush1.bf16.msra.mxu0 0
      %4413 = vmatprep.subr.bf16.mxu0 0
      %4414 = vmatpush1.bf16.msra.mxu0 %v4152
      %4415 = vmatprep.subr.bf16.mxu0 0
      %4416 = vmatpush2.bf16.msra.mxu0 0
      %4417 = vmatprep.subr.bf16.mxu0 0
      %4418 = vmatpush2.bf16.msra.mxu0 0
      %4419 = vmatprep.subr.bf16.mxu0 0
      %4420 = vmatpush2.bf16.msra.mxu0 0
      %4421 = vmatprep.subr.bf16.mxu0 0
      %4422 = vmatpush2.bf16.msra.mxu0 0
      %4423 = vmatprep.subr.bf16.mxu0 0
      %4424 = vmatpush2.bf16.msra.mxu0 0
      %4425 = vmatprep.subr.bf16.mxu0 0
      %4426 = vmatpush2.bf16.msra.mxu0 0
      %4427 = vmatprep.subr.bf16.mxu0 0
      %4428 = vmatpush2.bf16.msra.mxu0 0
      %4429 = vmatprep.subr.bf16.mxu0 0
      %4430 = vmatpush2.bf16.msra.mxu0 0
      %4431 = vmatprep.mubr.bf16.mxu0 0
      %4432 = vmatmul.mubr.bf16.gmra.mxu0 %v1331
      %v4433 = vpop.f32.mrf.mxu0
      %v4434 = vadd.f32 0.0, %v4433
      %v4435 = vpop.f32.mrf.mxu0
      %v4436 = vpop.f32.mrf.mxu0
      %v4437 = vadd.f32 0.0, %v4436
      %v4438 = vpop.f32.mrf.mxu0
      %4439 = vdwg.mxu0
      %4440 = vmatprep.subr.bf16.mxu0 0
      %4441 = vmatpush1.bf16.msra.mxu0 0
      %4442 = vmatprep.subr.bf16.mxu0 0
      %4443 = vmatpush1.bf16.msra.mxu0 0
      %4444 = vmatprep.subr.bf16.mxu0 0
      %4445 = vmatpush1.bf16.msra.mxu0 0
      %4446 = vmatprep.subr.bf16.mxu0 0
      %4447 = vmatpush1.bf16.msra.mxu0 0
      %4448 = vmatprep.subr.bf16.mxu0 0
      %4449 = vmatpush1.bf16.msra.mxu0 0
      %4450 = vmatprep.subr.bf16.mxu0 0
      %4451 = vmatpush1.bf16.msra.mxu0 0
      %4452 = vmatprep.subr.bf16.mxu0 0
      %4453 = vmatpush1.bf16.msra.mxu0 0
      %4454 = vmatprep.subr.bf16.mxu0 0
      %4455 = vmatpush1.bf16.msra.mxu0 %v4152
      %4456 = vmatprep.subr.bf16.mxu0 0
      %4457 = vmatpush2.bf16.msra.mxu0 0
      %4458 = vmatprep.subr.bf16.mxu0 0
      %4459 = vmatpush2.bf16.msra.mxu0 0
      %4460 = vmatprep.subr.bf16.mxu0 0
      %4461 = vmatpush2.bf16.msra.mxu0 0
      %4462 = vmatprep.subr.bf16.mxu0 0
      %4463 = vmatpush2.bf16.msra.mxu0 0
      %4464 = vmatprep.subr.bf16.mxu0 0
      %4465 = vmatpush2.bf16.msra.mxu0 0
      %4466 = vmatprep.subr.bf16.mxu0 0
      %4467 = vmatpush2.bf16.msra.mxu0 0
      %4468 = vmatprep.subr.bf16.mxu0 0
      %4469 = vmatpush2.bf16.msra.mxu0 0
      %4470 = vmatprep.subr.bf16.mxu0 0
      %4471 = vmatpush2.bf16.msra.mxu0 0
      %4472 = vmatprep.mubr.bf16.mxu0 0
      %4473 = vmatmul.mubr.bf16.gmra.mxu0 %v1380
      %v4474 = vpop.f32.mrf.mxu0
      %v4475 = vadd.f32 0.0, %v4474
      %v4476 = vpop.f32.mrf.mxu0
      %v4477 = vpop.f32.mrf.mxu0
      %v4478 = vadd.f32 0.0, %v4477
      %v4479 = vpop.f32.mrf.mxu0
      %4480 = vdwg.mxu0
      %4483 = vrot.lane.b32.xlu0 %v4229, 8
      %v4484 = vpop.permute.xlu0 %4483
      %4485 = vrot.lane.b32.xlu0 %v4232, 8
      %v4486 = vpop.permute.xlu0 %4485
      %4491 = vrot.lane.b32.xlu0 %v4270, 16
      %v4492 = vpop.permute.xlu0 %4491
      %4493 = vrot.lane.b32.xlu0 %v4273, 16
      %v4494 = vpop.permute.xlu0 %4493
      %4499 = vrot.lane.b32.xlu0 %v4311, 24
      %v4500 = vpop.permute.xlu0 %4499
      %4501 = vrot.lane.b32.xlu0 %v4314, 24
      %v4502 = vpop.permute.xlu0 %4501
      %4507 = vrot.lane.b32.xlu0 %v4105, 32
      %v4508 = vpop.permute.xlu0 %4507
      %4509 = vrot.lane.b32.xlu0 %v4110, 32
      %v4510 = vpop.permute.xlu0 %4509
      %4515 = vrot.lane.b32.xlu0 %v4352, 40
      %v4516 = vpop.permute.xlu0 %4515
      %4517 = vrot.lane.b32.xlu0 %v4355, 40
      %v4518 = vpop.permute.xlu0 %4517
      %4523 = vrot.lane.b32.xlu0 %v4393, 48
      %v4524 = vpop.permute.xlu0 %4523
      %4525 = vrot.lane.b32.xlu0 %v4396, 48
      %v4526 = vpop.permute.xlu0 %4525
      %4531 = vrot.lane.b32.xlu0 %v4434, 56
      %v4532 = vpop.permute.xlu0 %4531
      %4533 = vrot.lane.b32.xlu0 %v4437, 56
      %v4534 = vpop.permute.xlu0 %4533
      %4539 = vrot.lane.b32.xlu0 %v4475, 64
      %v4540 = vpop.permute.xlu0 %4539
      %4541 = vrot.lane.b32.xlu0 %v4478, 64
      %v4542 = vpop.permute.xlu0 %4541
      %v4545 = vsel %vm3076, %v4188, %v4484
      %v4546 = vsel %vm3076, %v4191, %v4486
      %v4547 = vsel %vm1035, %v4545, %v4492
      %v4548 = vsel %vm1035, %v4546, %v4494
      %vm4549 = vcmask 195584
      %v4550 = vsel %vm4549, %v4547, %v4500
      %v4551 = vsel %vm4549, %v4548, %v4502
      %v4552 = vsel %vm2233, %v4550, %v4508
      %v4553 = vsel %vm2233, %v4551, %v4510
      %vm4554 = vcmask 326656
      %v4555 = vsel %vm4554, %v4552, %v4516
      %v4556 = vsel %vm4554, %v4553, %v4518
      %vm4557 = vcmask 392192
      %v4558 = vsel %vm4557, %v4555, %v4524
      %v4559 = vsel %vm4557, %v4556, %v4526
      %vm4560 = vcmask 457728
      %v4561 = vsel %vm4560, %v4558, %v4532
      %v4562 = vsel %vm4560, %v4559, %v4534
      %v4563 = vsel %vm1455, %v4561, %v4540
      %v4564 = vsel %vm1455, %v4562, %v4542
      %v4565 = vpack.c.bf16 %v4564, %v4563
      %v4567 = vlaneseq
      %v4568 = vshrl.u32 %v4567, 7
      %v4569 = vsub.s32 0, %v4568
      %v4570 = vrot.slane %v4151, %v4569
      %v4581 = vunpack.c.l.b16 %v4142
      %v4582 = vunpack.c.l.b16 %v4143
      %v4583 = vunpack.c.l.b16 %v4144
      %v4584 = vunpack.c.l.b16 %v4145
      %v4585 = vunpack.c.l.b16 %v4146
      %v4586 = vunpack.c.l.b16 %v4147
      %v4587 = vunpack.c.l.b16 %v4148
      %v4588 = vunpack.c.l.b16 %v4149
      %v4589 = vunpack.c.l.b16 %v4150
      %v4590 = vpack.c.b16 %v4582, %v4581
      %v4591 = vpack.c.b16 %v4584, %v4583
      %v4592 = vpack.c.b16 %v4586, %v4585
      %v4593 = vpack.c.b16 %v4588, %v4587
      %v4594 = vpack.c.b16 %v4589, %v4589
      %vm4599 = vcmask 588800
      %v4601 = vsel %vm4599, %v4565, 0
      %v4604 = vsel %vm3080, %v4594, 0
      %4606 = vmatprep.subr.bf16.mxu0 0
      %4607 = vmatpush1.bf16.msra.mxu0 0
      %4608 = vmatprep.subr.bf16.mxu0 0
      %4609 = vmatpush1.bf16.msra.mxu0 0
      %4610 = vmatprep.subr.bf16.mxu0 0
      %4611 = vmatpush1.bf16.msra.mxu0 0
      %4612 = vmatprep.subr.bf16.mxu0 0
      %4613 = vmatpush1.bf16.msra.mxu0 %v4604
      %4614 = vmatprep.subr.bf16.mxu0 0
      %4615 = vmatpush1.bf16.msra.mxu0 %v4593
      %4616 = vmatprep.subr.bf16.mxu0 0
      %4617 = vmatpush1.bf16.msra.mxu0 %v4592
      %4618 = vmatprep.subr.bf16.mxu0 0
      %4619 = vmatpush1.bf16.msra.mxu0 %v4591
      %4620 = vmatprep.subr.bf16.mxu0 0
      %4621 = vmatpush1.bf16.msra.mxu0 %v4590
      %4622 = vmatprep.subr.bf16.mxu0 0
      %4623 = vmatpush2.bf16.msra.mxu0 0
      %4624 = vmatprep.subr.bf16.mxu0 0
      %4625 = vmatpush2.bf16.msra.mxu0 0
      %4626 = vmatprep.subr.bf16.mxu0 0
      %4627 = vmatpush2.bf16.msra.mxu0 0
      %4628 = vmatprep.subr.bf16.mxu0 0
      %4629 = vmatpush2.bf16.msra.mxu0 0
      %4630 = vmatprep.subr.bf16.mxu0 0
      %4631 = vmatpush2.bf16.msra.mxu0 0
      %4632 = vmatprep.subr.bf16.mxu0 0
      %4633 = vmatpush2.bf16.msra.mxu0 0
      %4634 = vmatprep.subr.bf16.mxu0 0
      %4635 = vmatpush2.bf16.msra.mxu0 0
      %4636 = vmatprep.subr.bf16.mxu0 0
      %4637 = vmatpush2.bf16.msra.mxu0 0
      %4638 = vmatprep.mubr.bf16.mxu0 0
      %4639 = vmatmul.mubr.bf16.gmra.mxu0 %v4601
      %v4640 = vpop.f32.mrf.mxu0
      %v4641 = vadd.f32 %v4570, %v4640
      %v4642 = vpop.f32.mrf.mxu0
      %v4643 = vpop.f32.mrf.mxu0
      %v4644 = vadd.f32 %v4570, %v4643
      %v4645 = vpop.f32.mrf.mxu0
      %4646 = vdwg.mxu0
      %v4647 = vmax.f32 %v4641, 0.0
      %v4648 = vmax.f32 %v4644, 0.0
      %v4649 = vld [vmem:[%s17] sm:$0xf]
      %v4650 = vld [vmem:[%s17 + $0x4] sm:$0xf]
      %v4651 = vld [vmem:[%s17 + $0x8] sm:$0xf]
      %v4652 = vld [vmem:[%s17 + $0xc] sm:$0xf]
      %v4653 = vld [vmem:[%s17 + $0x10] sm:$0xf]
      %v4654 = vld [vmem:[%s17 + $0x14] sm:$0xf]
      %v4655 = vld [vmem:[%s17 + $0x18] sm:$0xf]
      %v4656 = vld [vmem:[%s17 + $0x1c] sm:$0xf]
      %v4657 = vld [vmem:[%s17 + $0x20] sm:$0xf]
      %v4658 = vld [vmem:[%s17 + $0x24] sm:$0xf]
      %v4659 = vld [vmem:[%s17 + $0x28] sm:$0xf]
      %v4660 = vld [vmem:[%s17 + $0x2c] sm:$0xf]
      %v4661 = vld [vmem:[%s17 + $0x30] sm:$0xf]
      %v4662 = vld [vmem:[%s17 + $0x34] sm:$0xf]
      %v4663 = vld [vmem:[%s17 + $0x38] sm:$0xf]
      %v4664 = vld [vmem:[%s17 + $0x3c] sm:$0xf]
      %v4665 = vld [vmem:[%s17 + $0x40] sm:$0xf]
      %v4666 = vld [vmem:[%s17 + $0x44] sm:$0xf]
      %v4667 = vld [vmem:[%s17 + $0x48] sm:$0xf]
      %v4668 = vld [vmem:[%s17 + $0x4c] sm:$0xf]
      %v4669 = vld [vmem:[%s17 + $0x50] sm:$0xf]
      %v4670 = vld [vmem:[%s17 + $0x54] sm:$0xf]
      %v4671 = vld [vmem:[%s17 + $0x58] sm:$0xf]
      %v4672 = vld [vmem:[%s17 + $0x5c] sm:$0xf]
      %v4673 = vld [vmem:[%s17 + $0x60] sm:$0xf]
      %v4674 = vld [vmem:[%s17 + $0x64] sm:$0xf]
      %v4675 = vld [vmem:[%s17 + $0x68] sm:$0xf]
      %v4676 = vld [vmem:[%s17 + $0x6c] sm:$0xf]
      %v4677 = vld [vmem:[%s17 + $0x70] sm:$0xf]
      %v4678 = vld [vmem:[%s17 + $0x74] sm:$0xf]
      %v4679 = vld [vmem:[%s17 + $0x78] sm:$0xf]
      %v4680 = vld [vmem:[%s17 + $0x7c] sm:$0xf]
      %v4681 = vld [vmem:[%s17 + $0x80] sm:$0xf]
      %v4682 = vld [vmem:[%s17 + $0x84] sm:$0xf]
      %v4683 = vld [vmem:[%s17 + $0x88] sm:$0xf]
      %v4684 = vld [vmem:[%s17 + $0x8c] sm:$0xf]
      %v4685 = vpack.c.bf16 %v4648, %v4647
      %4686 = vmatprep.subr.bf16.mxu0 0
      %4687 = vmatpush1.bf16.msra.mxu0 0
      %4688 = vmatprep.subr.bf16.mxu0 0
      %4689 = vmatpush1.bf16.msra.mxu0 0
      %4690 = vmatprep.subr.bf16.mxu0 0
      %4691 = vmatpush1.bf16.msra.mxu0 0
      %4692 = vmatprep.subr.bf16.mxu0 0
      %4693 = vmatpush1.bf16.msra.mxu0 0
      %4694 = vmatprep.subr.bf16.mxu0 0
      %4695 = vmatpush1.bf16.msra.mxu0 0
      %4696 = vmatprep.subr.bf16.mxu0 0
      %4697 = vmatpush1.bf16.msra.mxu0 0
      %4698 = vmatprep.subr.bf16.mxu0 0
      %4699 = vmatpush1.bf16.msra.mxu0 0
      %4700 = vmatprep.subr.bf16.mxu0 0
      %4701 = vmatpush1.bf16.msra.mxu0 %v4685
      %4702 = vmatprep.subr.bf16.mxu0 0
      %4703 = vmatpush2.bf16.msra.mxu0 0
      %4704 = vmatprep.subr.bf16.mxu0 0
      %4705 = vmatpush2.bf16.msra.mxu0 0
      %4706 = vmatprep.subr.bf16.mxu0 0
      %4707 = vmatpush2.bf16.msra.mxu0 0
      %4708 = vmatprep.subr.bf16.mxu0 0
      %4709 = vmatpush2.bf16.msra.mxu0 0
      %4710 = vmatprep.subr.bf16.mxu0 0
      %4711 = vmatpush2.bf16.msra.mxu0 0
      %4712 = vmatprep.subr.bf16.mxu0 0
      %4713 = vmatpush2.bf16.msra.mxu0 0
      %4714 = vmatprep.subr.bf16.mxu0 0
      %4715 = vmatpush2.bf16.msra.mxu0 0
      %4716 = vmatprep.subr.bf16.mxu0 0
      %4717 = vmatpush2.bf16.msra.mxu0 0
      %4718 = vmatprep.mubr.bf16.mxu0 0
      %4719 = vmatmul.mubr.bf16.gmra.mxu0 %v1037
      %v4720 = vpop.f32.mrf.mxu0
      %v4721 = vadd.f32 0.0, %v4720
      %v4722 = vpop.f32.mrf.mxu0
      %v4723 = vpop.f32.mrf.mxu0
      %v4724 = vadd.f32 0.0, %v4723
      %v4725 = vpop.f32.mrf.mxu0
      %4726 = vdwg.mxu0
      %4727 = vmatprep.subr.bf16.mxu0 0
      %4728 = vmatpush1.bf16.msra.mxu0 0
      %4729 = vmatprep.subr.bf16.mxu0 0
      %4730 = vmatpush1.bf16.msra.mxu0 0
      %4731 = vmatprep.subr.bf16.mxu0 0
      %4732 = vmatpush1.bf16.msra.mxu0 0
      %4733 = vmatprep.subr.bf16.mxu0 0
      %4734 = vmatpush1.bf16.msra.mxu0 0
      %4735 = vmatprep.subr.bf16.mxu0 0
      %4736 = vmatpush1.bf16.msra.mxu0 0
      %4737 = vmatprep.subr.bf16.mxu0 0
      %4738 = vmatpush1.bf16.msra.mxu0 0
      %4739 = vmatprep.subr.bf16.mxu0 0
      %4740 = vmatpush1.bf16.msra.mxu0 0
      %4741 = vmatprep.subr.bf16.mxu0 0
      %4742 = vmatpush1.bf16.msra.mxu0 %v4685
      %4743 = vmatprep.subr.bf16.mxu0 0
      %4744 = vmatpush2.bf16.msra.mxu0 0
      %4745 = vmatprep.subr.bf16.mxu0 0
      %4746 = vmatpush2.bf16.msra.mxu0 0
      %4747 = vmatprep.subr.bf16.mxu0 0
      %4748 = vmatpush2.bf16.msra.mxu0 0
      %4749 = vmatprep.subr.bf16.mxu0 0
      %4750 = vmatpush2.bf16.msra.mxu0 0
      %4751 = vmatprep.subr.bf16.mxu0 0
      %4752 = vmatpush2.bf16.msra.mxu0 0
      %4753 = vmatprep.subr.bf16.mxu0 0
      %4754 = vmatpush2.bf16.msra.mxu0 0
      %4755 = vmatprep.subr.bf16.mxu0 0
      %4756 = vmatpush2.bf16.msra.mxu0 0
      %4757 = vmatprep.subr.bf16.mxu0 0
      %4758 = vmatpush2.bf16.msra.mxu0 0
      %4759 = vmatprep.mubr.bf16.mxu0 0
      %4760 = vmatmul.mubr.bf16.gmra.mxu0 %v1086
      %v4761 = vpop.f32.mrf.mxu0
      %v4762 = vadd.f32 0.0, %v4761
      %v4763 = vpop.f32.mrf.mxu0
      %v4764 = vpop.f32.mrf.mxu0
      %v4765 = vadd.f32 0.0, %v4764
      %v4766 = vpop.f32.mrf.mxu0
      %4767 = vdwg.mxu0
      %4768 = vmatprep.subr.bf16.mxu0 0
      %4769 = vmatpush1.bf16.msra.mxu0 0
      %4770 = vmatprep.subr.bf16.mxu0 0
      %4771 = vmatpush1.bf16.msra.mxu0 0
      %4772 = vmatprep.subr.bf16.mxu0 0
      %4773 = vmatpush1.bf16.msra.mxu0 0
      %4774 = vmatprep.subr.bf16.mxu0 0
      %4775 = vmatpush1.bf16.msra.mxu0 0
      %4776 = vmatprep.subr.bf16.mxu0 0
      %4777 = vmatpush1.bf16.msra.mxu0 0
      %4778 = vmatprep.subr.bf16.mxu0 0
      %4779 = vmatpush1.bf16.msra.mxu0 0
      %4780 = vmatprep.subr.bf16.mxu0 0
      %4781 = vmatpush1.bf16.msra.mxu0 0
      %4782 = vmatprep.subr.bf16.mxu0 0
      %4783 = vmatpush1.bf16.msra.mxu0 %v4685
      %4784 = vmatprep.subr.bf16.mxu0 0
      %4785 = vmatpush2.bf16.msra.mxu0 0
      %4786 = vmatprep.subr.bf16.mxu0 0
      %4787 = vmatpush2.bf16.msra.mxu0 0
      %4788 = vmatprep.subr.bf16.mxu0 0
      %4789 = vmatpush2.bf16.msra.mxu0 0
      %4790 = vmatprep.subr.bf16.mxu0 0
      %4791 = vmatpush2.bf16.msra.mxu0 0
      %4792 = vmatprep.subr.bf16.mxu0 0
      %4793 = vmatpush2.bf16.msra.mxu0 0
      %4794 = vmatprep.subr.bf16.mxu0 0
      %4795 = vmatpush2.bf16.msra.mxu0 0
      %4796 = vmatprep.subr.bf16.mxu0 0
      %4797 = vmatpush2.bf16.msra.mxu0 0
      %4798 = vmatprep.subr.bf16.mxu0 0
      %4799 = vmatpush2.bf16.msra.mxu0 0
      %4800 = vmatprep.mubr.bf16.mxu0 0
      %4801 = vmatmul.mubr.bf16.gmra.mxu0 %v1135
      %v4802 = vpop.f32.mrf.mxu0
      %v4803 = vadd.f32 0.0, %v4802
      %v4804 = vpop.f32.mrf.mxu0
      %v4805 = vpop.f32.mrf.mxu0
      %v4806 = vadd.f32 0.0, %v4805
      %v4807 = vpop.f32.mrf.mxu0
      %4808 = vdwg.mxu0
      %4809 = vmatprep.subr.bf16.mxu0 0
      %4810 = vmatpush1.bf16.msra.mxu0 0
      %4811 = vmatprep.subr.bf16.mxu0 0
      %4812 = vmatpush1.bf16.msra.mxu0 0
      %4813 = vmatprep.subr.bf16.mxu0 0
      %4814 = vmatpush1.bf16.msra.mxu0 0
      %4815 = vmatprep.subr.bf16.mxu0 0
      %4816 = vmatpush1.bf16.msra.mxu0 0
      %4817 = vmatprep.subr.bf16.mxu0 0
      %4818 = vmatpush1.bf16.msra.mxu0 0
      %4819 = vmatprep.subr.bf16.mxu0 0
      %4820 = vmatpush1.bf16.msra.mxu0 0
      %4821 = vmatprep.subr.bf16.mxu0 0
      %4822 = vmatpush1.bf16.msra.mxu0 0
      %4823 = vmatprep.subr.bf16.mxu0 0
      %4824 = vmatpush1.bf16.msra.mxu0 %v4685
      %4825 = vmatprep.subr.bf16.mxu0 0
      %4826 = vmatpush2.bf16.msra.mxu0 0
      %4827 = vmatprep.subr.bf16.mxu0 0
      %4828 = vmatpush2.bf16.msra.mxu0 0
      %4829 = vmatprep.subr.bf16.mxu0 0
      %4830 = vmatpush2.bf16.msra.mxu0 0
      %4831 = vmatprep.subr.bf16.mxu0 0
      %4832 = vmatpush2.bf16.msra.mxu0 0
      %4833 = vmatprep.subr.bf16.mxu0 0
      %4834 = vmatpush2.bf16.msra.mxu0 0
      %4835 = vmatprep.subr.bf16.mxu0 0
      %4836 = vmatpush2.bf16.msra.mxu0 0
      %4837 = vmatprep.subr.bf16.mxu0 0
      %4838 = vmatpush2.bf16.msra.mxu0 0
      %4839 = vmatprep.subr.bf16.mxu0 0
      %4840 = vmatpush2.bf16.msra.mxu0 0
      %4841 = vmatprep.mubr.bf16.mxu0 0
      %4842 = vmatmul.mubr.bf16.gmra.mxu0 %v1184
      %v4843 = vpop.f32.mrf.mxu0
      %v4844 = vadd.f32 0.0, %v4843
      %v4845 = vpop.f32.mrf.mxu0
      %v4846 = vpop.f32.mrf.mxu0
      %v4847 = vadd.f32 0.0, %v4846
      %v4848 = vpop.f32.mrf.mxu0
      %4849 = vdwg.mxu0
      %4850 = vmatprep.subr.bf16.mxu0 0
      %4851 = vmatpush1.bf16.msra.mxu0 0
      %4852 = vmatprep.subr.bf16.mxu0 0
      %4853 = vmatpush1.bf16.msra.mxu0 0
      %4854 = vmatprep.subr.bf16.mxu0 0
      %4855 = vmatpush1.bf16.msra.mxu0 0
      %4856 = vmatprep.subr.bf16.mxu0 0
      %4857 = vmatpush1.bf16.msra.mxu0 0
      %4858 = vmatprep.subr.bf16.mxu0 0
      %4859 = vmatpush1.bf16.msra.mxu0 0
      %4860 = vmatprep.subr.bf16.mxu0 0
      %4861 = vmatpush1.bf16.msra.mxu0 0
      %4862 = vmatprep.subr.bf16.mxu0 0
      %4863 = vmatpush1.bf16.msra.mxu0 0
      %4864 = vmatprep.subr.bf16.mxu0 0
      %4865 = vmatpush1.bf16.msra.mxu0 %v4685
      %4866 = vmatprep.subr.bf16.mxu0 0
      %4867 = vmatpush2.bf16.msra.mxu0 0
      %4868 = vmatprep.subr.bf16.mxu0 0
      %4869 = vmatpush2.bf16.msra.mxu0 0
      %4870 = vmatprep.subr.bf16.mxu0 0
      %4871 = vmatpush2.bf16.msra.mxu0 0
      %4872 = vmatprep.subr.bf16.mxu0 0
      %4873 = vmatpush2.bf16.msra.mxu0 0
      %4874 = vmatprep.subr.bf16.mxu0 0
      %4875 = vmatpush2.bf16.msra.mxu0 0
      %4876 = vmatprep.subr.bf16.mxu0 0
      %4877 = vmatpush2.bf16.msra.mxu0 0
      %4878 = vmatprep.subr.bf16.mxu0 0
      %4879 = vmatpush2.bf16.msra.mxu0 0
      %4880 = vmatprep.subr.bf16.mxu0 0
      %4881 = vmatpush2.bf16.msra.mxu0 0
      %4882 = vmatprep.mubr.bf16.mxu0 0
      %4883 = vmatmul.mubr.bf16.gmra.mxu0 %v1233
      %v4884 = vpop.f32.mrf.mxu0
      %v4885 = vadd.f32 0.0, %v4884
      %v4886 = vpop.f32.mrf.mxu0
      %v4887 = vpop.f32.mrf.mxu0
      %v4888 = vadd.f32 0.0, %v4887
      %v4889 = vpop.f32.mrf.mxu0
      %4890 = vdwg.mxu0
      %4891 = vmatprep.subr.bf16.mxu0 0
      %4892 = vmatpush1.bf16.msra.mxu0 0
      %4893 = vmatprep.subr.bf16.mxu0 0
      %4894 = vmatpush1.bf16.msra.mxu0 0
      %4895 = vmatprep.subr.bf16.mxu0 0
      %4896 = vmatpush1.bf16.msra.mxu0 0
      %4897 = vmatprep.subr.bf16.mxu0 0
      %4898 = vmatpush1.bf16.msra.mxu0 0
      %4899 = vmatprep.subr.bf16.mxu0 0
      %4900 = vmatpush1.bf16.msra.mxu0 0
      %4901 = vmatprep.subr.bf16.mxu0 0
      %4902 = vmatpush1.bf16.msra.mxu0 0
      %4903 = vmatprep.subr.bf16.mxu0 0
      %4904 = vmatpush1.bf16.msra.mxu0 0
      %4905 = vmatprep.subr.bf16.mxu0 0
      %4906 = vmatpush1.bf16.msra.mxu0 %v4685
      %4907 = vmatprep.subr.bf16.mxu0 0
      %4908 = vmatpush2.bf16.msra.mxu0 0
      %4909 = vmatprep.subr.bf16.mxu0 0
      %4910 = vmatpush2.bf16.msra.mxu0 0
      %4911 = vmatprep.subr.bf16.mxu0 0
      %4912 = vmatpush2.bf16.msra.mxu0 0
      %4913 = vmatprep.subr.bf16.mxu0 0
      %4914 = vmatpush2.bf16.msra.mxu0 0
      %4915 = vmatprep.subr.bf16.mxu0 0
      %4916 = vmatpush2.bf16.msra.mxu0 0
      %4917 = vmatprep.subr.bf16.mxu0 0
      %4918 = vmatpush2.bf16.msra.mxu0 0
      %4919 = vmatprep.subr.bf16.mxu0 0
      %4920 = vmatpush2.bf16.msra.mxu0 0
      %4921 = vmatprep.subr.bf16.mxu0 0
      %4922 = vmatpush2.bf16.msra.mxu0 0
      %4923 = vmatprep.mubr.bf16.mxu0 0
      %4924 = vmatmul.mubr.bf16.gmra.mxu0 %v1282
      %v4925 = vpop.f32.mrf.mxu0
      %v4926 = vadd.f32 0.0, %v4925
      %v4927 = vpop.f32.mrf.mxu0
      %v4928 = vpop.f32.mrf.mxu0
      %v4929 = vadd.f32 0.0, %v4928
      %v4930 = vpop.f32.mrf.mxu0
      %4931 = vdwg.mxu0
      %4932 = vmatprep.subr.bf16.mxu0 0
      %4933 = vmatpush1.bf16.msra.mxu0 0
      %4934 = vmatprep.subr.bf16.mxu0 0
      %4935 = vmatpush1.bf16.msra.mxu0 0
      %4936 = vmatprep.subr.bf16.mxu0 0
      %4937 = vmatpush1.bf16.msra.mxu0 0
      %4938 = vmatprep.subr.bf16.mxu0 0
      %4939 = vmatpush1.bf16.msra.mxu0 0
      %4940 = vmatprep.subr.bf16.mxu0 0
      %4941 = vmatpush1.bf16.msra.mxu0 0
      %4942 = vmatprep.subr.bf16.mxu0 0
      %4943 = vmatpush1.bf16.msra.mxu0 0
      %4944 = vmatprep.subr.bf16.mxu0 0
      %4945 = vmatpush1.bf16.msra.mxu0 0
      %4946 = vmatprep.subr.bf16.mxu0 0
      %4947 = vmatpush1.bf16.msra.mxu0 %v4685
      %4948 = vmatprep.subr.bf16.mxu0 0
      %4949 = vmatpush2.bf16.msra.mxu0 0
      %4950 = vmatprep.subr.bf16.mxu0 0
      %4951 = vmatpush2.bf16.msra.mxu0 0
      %4952 = vmatprep.subr.bf16.mxu0 0
      %4953 = vmatpush2.bf16.msra.mxu0 0
      %4954 = vmatprep.subr.bf16.mxu0 0
      %4955 = vmatpush2.bf16.msra.mxu0 0
      %4956 = vmatprep.subr.bf16.mxu0 0
      %4957 = vmatpush2.bf16.msra.mxu0 0
      %4958 = vmatprep.subr.bf16.mxu0 0
      %4959 = vmatpush2.bf16.msra.mxu0 0
      %4960 = vmatprep.subr.bf16.mxu0 0
      %4961 = vmatpush2.bf16.msra.mxu0 0
      %4962 = vmatprep.subr.bf16.mxu0 0
      %4963 = vmatpush2.bf16.msra.mxu0 0
      %4964 = vmatprep.mubr.bf16.mxu0 0
      %4965 = vmatmul.mubr.bf16.gmra.mxu0 %v1331
      %v4966 = vpop.f32.mrf.mxu0
      %v4967 = vadd.f32 0.0, %v4966
      %v4968 = vpop.f32.mrf.mxu0
      %v4969 = vpop.f32.mrf.mxu0
      %v4970 = vadd.f32 0.0, %v4969
      %v4971 = vpop.f32.mrf.mxu0
      %4972 = vdwg.mxu0
      %4973 = vmatprep.subr.bf16.mxu0 0
      %4974 = vmatpush1.bf16.msra.mxu0 0
      %4975 = vmatprep.subr.bf16.mxu0 0
      %4976 = vmatpush1.bf16.msra.mxu0 0
      %4977 = vmatprep.subr.bf16.mxu0 0
      %4978 = vmatpush1.bf16.msra.mxu0 0
      %4979 = vmatprep.subr.bf16.mxu0 0
      %4980 = vmatpush1.bf16.msra.mxu0 0
      %4981 = vmatprep.subr.bf16.mxu0 0
      %4982 = vmatpush1.bf16.msra.mxu0 0
      %4983 = vmatprep.subr.bf16.mxu0 0
      %4984 = vmatpush1.bf16.msra.mxu0 0
      %4985 = vmatprep.subr.bf16.mxu0 0
      %4986 = vmatpush1.bf16.msra.mxu0 0
      %4987 = vmatprep.subr.bf16.mxu0 0
      %4988 = vmatpush1.bf16.msra.mxu0 %v4685
      %4989 = vmatprep.subr.bf16.mxu0 0
      %4990 = vmatpush2.bf16.msra.mxu0 0
      %4991 = vmatprep.subr.bf16.mxu0 0
      %4992 = vmatpush2.bf16.msra.mxu0 0
      %4993 = vmatprep.subr.bf16.mxu0 0
      %4994 = vmatpush2.bf16.msra.mxu0 0
      %4995 = vmatprep.subr.bf16.mxu0 0
      %4996 = vmatpush2.bf16.msra.mxu0 0
      %4997 = vmatprep.subr.bf16.mxu0 0
      %4998 = vmatpush2.bf16.msra.mxu0 0
      %4999 = vmatprep.subr.bf16.mxu0 0
      %5000 = vmatpush2.bf16.msra.mxu0 0
      %5001 = vmatprep.subr.bf16.mxu0 0
      %5002 = vmatpush2.bf16.msra.mxu0 0
      %5003 = vmatprep.subr.bf16.mxu0 0
      %5004 = vmatpush2.bf16.msra.mxu0 0
      %5005 = vmatprep.mubr.bf16.mxu0 0
      %5006 = vmatmul.mubr.bf16.gmra.mxu0 %v1380
      %v5007 = vpop.f32.mrf.mxu0
      %v5008 = vadd.f32 0.0, %v5007
      %v5009 = vpop.f32.mrf.mxu0
      %v5010 = vpop.f32.mrf.mxu0
      %v5011 = vadd.f32 0.0, %v5010
      %v5012 = vpop.f32.mrf.mxu0
      %5013 = vdwg.mxu0
      %5016 = vrot.lane.b32.xlu0 %v4762, 32
      %v5017 = vpop.permute.xlu0 %5016
      %5018 = vrot.lane.b32.xlu0 %v4765, 32
      %v5019 = vpop.permute.xlu0 %5018
      %5024 = vrot.lane.b32.xlu0 %v4803, 64
      %v5025 = vpop.permute.xlu0 %5024
      %5026 = vrot.lane.b32.xlu0 %v4806, 64
      %v5027 = vpop.permute.xlu0 %5026
      %5032 = vrot.lane.b32.xlu0 %v4844, 96
      %v5033 = vpop.permute.xlu0 %5032
      %5034 = vrot.lane.b32.xlu0 %v4847, 96
      %v5035 = vpop.permute.xlu0 %5034
      %5040 = vrot.lane.b32.xlu0 %v4885, 32
      %v5041 = vpop.permute.xlu0 %5040
      %5042 = vrot.lane.b32.xlu0 %v4888, 32
      %v5043 = vpop.permute.xlu0 %5042
      %5048 = vrot.lane.b32.xlu0 %v4926, 64
      %v5049 = vpop.permute.xlu0 %5048
      %5050 = vrot.lane.b32.xlu0 %v4929, 64
      %v5051 = vpop.permute.xlu0 %5050
      %5056 = vrot.lane.b32.xlu0 %v4967, 96
      %v5057 = vpop.permute.xlu0 %5056
      %5058 = vrot.lane.b32.xlu0 %v4970, 96
      %v5059 = vpop.permute.xlu0 %5058
      %v5062 = vsel %vm2233, %v4721, %v5017
      %v5063 = vsel %vm2233, %v4724, %v5019
      %v5064 = vsel %vm1455, %v5062, %v5025
      %v5065 = vsel %vm1455, %v5063, %v5027
      %v5066 = vsel %vm2238, %v5064, %v5033
      %v5067 = vsel %vm2238, %v5065, %v5035
      %v5068 = vsel %vm2233, %v4647, %v5041
      %v5069 = vsel %vm2233, %v4648, %v5043
      %v5070 = vsel %vm1455, %v5068, %v5049
      %v5071 = vsel %vm1455, %v5069, %v5051
      %v5072 = vsel %vm2238, %v5070, %v5057
      %v5073 = vsel %vm2238, %v5071, %v5059
      %v5074 = vpack.c.bf16 %v5067, %v5066
      %v5075 = vpack.c.bf16 %v5073, %v5072
      %v5076 = vpack.c.bf16 %v5011, %v5008
      %v5113 = vunpack.c.l.b16 %v4649
      %v5114 = vunpack.c.l.b16 %v4650
      %v5115 = vunpack.c.l.b16 %v4651
      %v5116 = vunpack.c.l.b16 %v4652
      %v5117 = vunpack.c.l.b16 %v4653
      %v5118 = vunpack.c.l.b16 %v4654
      %v5119 = vunpack.c.l.b16 %v4655
      %v5120 = vunpack.c.l.b16 %v4656
      %v5121 = vunpack.c.l.b16 %v4657
      %v5122 = vunpack.c.l.b16 %v4658
      %v5123 = vunpack.c.l.b16 %v4659
      %v5124 = vunpack.c.l.b16 %v4660
      %v5125 = vunpack.c.l.b16 %v4661
      %v5126 = vunpack.c.l.b16 %v4662
      %v5127 = vunpack.c.l.b16 %v4663
      %v5128 = vunpack.c.l.b16 %v4664
      %v5129 = vunpack.c.l.b16 %v4665
      %v5130 = vunpack.c.l.b16 %v4666
      %v5131 = vunpack.c.l.b16 %v4667
      %v5132 = vunpack.c.l.b16 %v4668
      %v5133 = vunpack.c.l.b16 %v4669
      %v5134 = vunpack.c.l.b16 %v4670
      %v5135 = vunpack.c.l.b16 %v4671
      %v5136 = vunpack.c.l.b16 %v4672
      %v5137 = vunpack.c.l.b16 %v4673
      %v5138 = vunpack.c.l.b16 %v4674
      %v5139 = vunpack.c.l.b16 %v4675
      %v5140 = vunpack.c.l.b16 %v4676
      %v5141 = vunpack.c.l.b16 %v4677
      %v5142 = vunpack.c.l.b16 %v4678
      %v5143 = vunpack.c.l.b16 %v4679
      %v5144 = vunpack.c.l.b16 %v4680
      %v5145 = vunpack.c.l.b16 %v4681
      %v5146 = vunpack.c.l.b16 %v4682
      %v5147 = vunpack.c.l.b16 %v4683
      %v5148 = vunpack.c.l.b16 %v4684
      %v5149 = vpack.c.b16 %v5114, %v5113
      %v5150 = vpack.c.b16 %v5116, %v5115
      %v5151 = vpack.c.b16 %v5118, %v5117
      %v5152 = vpack.c.b16 %v5120, %v5119
      %v5153 = vpack.c.b16 %v5122, %v5121
      %v5154 = vpack.c.b16 %v5124, %v5123
      %v5155 = vpack.c.b16 %v5126, %v5125
      %v5156 = vpack.c.b16 %v5128, %v5127
      %v5157 = vpack.c.b16 %v5130, %v5129
      %v5158 = vpack.c.b16 %v5132, %v5131
      %v5159 = vpack.c.b16 %v5134, %v5133
      %v5160 = vpack.c.b16 %v5136, %v5135
      %v5161 = vpack.c.b16 %v5138, %v5137
      %v5162 = vpack.c.b16 %v5140, %v5139
      %v5163 = vpack.c.b16 %v5142, %v5141
      %v5164 = vpack.c.b16 %v5144, %v5143
      %v5165 = vpack.c.b16 %v5146, %v5145
      %v5166 = vpack.c.b16 %v5148, %v5147
      %v5186 = vsel %vm2233, %v5076, 0
      %5188 = vmatprep.subr.bf16.mxu0 0
      %5189 = vmatpush1.bf16.msra.mxu0 %v5156
      %5190 = vmatprep.subr.bf16.mxu0 0
      %5191 = vmatpush1.bf16.msra.mxu0 %v5155
      %5192 = vmatprep.subr.bf16.mxu0 0
      %5193 = vmatpush1.bf16.msra.mxu0 %v5154
      %5194 = vmatprep.subr.bf16.mxu0 0
      %5195 = vmatpush1.bf16.msra.mxu0 %v5153
      %5196 = vmatprep.subr.bf16.mxu0 0
      %5197 = vmatpush1.bf16.msra.mxu0 %v5152
      %5198 = vmatprep.subr.bf16.mxu0 0
      %5199 = vmatpush1.bf16.msra.mxu0 %v5151
      %5200 = vmatprep.subr.bf16.mxu0 0
      %5201 = vmatpush1.bf16.msra.mxu0 %v5150
      %5202 = vmatprep.subr.bf16.mxu0 0
      %5203 = vmatpush1.bf16.msra.mxu0 %v5149
      %5204 = vmatprep.subr.bf16.mxu0 0
      %5205 = vmatpush2.bf16.msra.mxu0 %v5164
      %5206 = vmatprep.subr.bf16.mxu0 0
      %5207 = vmatpush2.bf16.msra.mxu0 %v5163
      %5208 = vmatprep.subr.bf16.mxu0 0
      %5209 = vmatpush2.bf16.msra.mxu0 %v5162
      %5210 = vmatprep.subr.bf16.mxu0 0
      %5211 = vmatpush2.bf16.msra.mxu0 %v5161
      %5212 = vmatprep.subr.bf16.mxu0 0
      %5213 = vmatpush2.bf16.msra.mxu0 %v5160
      %5214 = vmatprep.subr.bf16.mxu0 0
      %5215 = vmatpush2.bf16.msra.mxu0 %v5159
      %5216 = vmatprep.subr.bf16.mxu0 0
      %5217 = vmatpush2.bf16.msra.mxu0 %v5158
      %5218 = vmatprep.subr.bf16.mxu0 0
      %5219 = vmatpush2.bf16.msra.mxu0 %v5157
      %5220 = vmatprep.mubr.bf16.mxu0 %v5075
      %5221 = vmatmul.mubr.bf16.gmra.mxu0 %v5074
      %v5222 = vpop.f32.mrf.mxu0
      %v5223 = vadd.f32 0.0, %v5222
      %v5224 = vpop.f32.mrf.mxu0
      %v5225 = vpop.f32.mrf.mxu0
      %v5226 = vadd.f32 0.0, %v5225
      %v5227 = vpop.f32.mrf.mxu0
      %5228 = vdwg.mxu0
      %5229 = vmatprep.subr.bf16.mxu0 0
      %5230 = vmatpush1.bf16.msra.mxu0 0
      %5231 = vmatprep.subr.bf16.mxu0 0
      %5232 = vmatpush1.bf16.msra.mxu0 0
      %5233 = vmatprep.subr.bf16.mxu0 0
      %5234 = vmatpush1.bf16.msra.mxu0 0
      %5235 = vmatprep.subr.bf16.mxu0 0
      %5236 = vmatpush1.bf16.msra.mxu0 0
      %5237 = vmatprep.subr.bf16.mxu0 0
      %5238 = vmatpush1.bf16.msra.mxu0 0
      %5239 = vmatprep.subr.bf16.mxu0 0
      %5240 = vmatpush1.bf16.msra.mxu0 0
      %5241 = vmatprep.subr.bf16.mxu0 0
      %5242 = vmatpush1.bf16.msra.mxu0 %v5166
      %5243 = vmatprep.subr.bf16.mxu0 0
      %5244 = vmatpush1.bf16.msra.mxu0 %v5165
      %5245 = vmatprep.subr.bf16.mxu0 0
      %5246 = vmatpush2.bf16.msra.mxu0 0
      %5247 = vmatprep.subr.bf16.mxu0 0
      %5248 = vmatpush2.bf16.msra.mxu0 0
      %5249 = vmatprep.subr.bf16.mxu0 0
      %5250 = vmatpush2.bf16.msra.mxu0 0
      %5251 = vmatprep.subr.bf16.mxu0 0
      %5252 = vmatpush2.bf16.msra.mxu0 0
      %5253 = vmatprep.subr.bf16.mxu0 0
      %5254 = vmatpush2.bf16.msra.mxu0 0
      %5255 = vmatprep.subr.bf16.mxu0 0
      %5256 = vmatpush2.bf16.msra.mxu0 0
      %5257 = vmatprep.subr.bf16.mxu0 0
      %5258 = vmatpush2.bf16.msra.mxu0 0
      %5259 = vmatprep.subr.bf16.mxu0 0
      %5260 = vmatpush2.bf16.msra.mxu0 0
      %5261 = vmatprep.mubr.bf16.mxu0 0
      %5262 = vmatmul.mubr.bf16.gmra.mxu0 %v5186
      %v5263 = vpop.f32.mrf.mxu0
      %v5264 = vadd.f32 %v5223, %v5263
      %v5265 = vpop.f32.mrf.mxu0
      %v5266 = vpop.f32.mrf.mxu0
      %v5267 = vadd.f32 %v5226, %v5266
      %v5268 = vpop.f32.mrf.mxu0
      %5269 = vdwg.mxu0
      %v5270 = vmax.f32 %v5264, 0.0
      %v5271 = vmax.f32 %v5267, 0.0
      %v5272 = vpack.c.bf16 %v5271, %v5270
      %v5273 = vld [vmem:[%s18] sm:$0xf]
      %v5275 = vsel %vm3076, %v5272, 0
      %v5278 = vsel %vm3080, %v5273, 0
      %5280 = vmatprep.subr.bf16.mxu0 0
      %5281 = vmatpush1.bf16.msra.mxu0 0
      %5282 = vmatprep.subr.bf16.mxu0 0
      %5283 = vmatpush1.bf16.msra.mxu0 0
      %5284 = vmatprep.subr.bf16.mxu0 0
      %5285 = vmatpush1.bf16.msra.mxu0 0
      %5286 = vmatprep.subr.bf16.mxu0 0
      %5287 = vmatpush1.bf16.msra.mxu0 0
      %5288 = vmatprep.subr.bf16.mxu0 0
      %5289 = vmatpush1.bf16.msra.mxu0 0
      %5290 = vmatprep.subr.bf16.mxu0 0
      %5291 = vmatpush1.bf16.msra.mxu0 0
      %5292 = vmatprep.subr.bf16.mxu0 0
      %5293 = vmatpush1.bf16.msra.mxu0 0
      %5294 = vmatprep.subr.bf16.mxu0 0
      %5295 = vmatpush1.bf16.msra.mxu0 %v5278
      %5296 = vmatprep.subr.bf16.mxu0 0
      %5297 = vmatpush2.bf16.msra.mxu0 0
      %5298 = vmatprep.subr.bf16.mxu0 0
      %5299 = vmatpush2.bf16.msra.mxu0 0
      %5300 = vmatprep.subr.bf16.mxu0 0
      %5301 = vmatpush2.bf16.msra.mxu0 0
      %5302 = vmatprep.subr.bf16.mxu0 0
      %5303 = vmatpush2.bf16.msra.mxu0 0
      %5304 = vmatprep.subr.bf16.mxu0 0
      %5305 = vmatpush2.bf16.msra.mxu0 0
      %5306 = vmatprep.subr.bf16.mxu0 0
      %5307 = vmatpush2.bf16.msra.mxu0 0
      %5308 = vmatprep.subr.bf16.mxu0 0
      %5309 = vmatpush2.bf16.msra.mxu0 0
      %5310 = vmatprep.subr.bf16.mxu0 0
      %5311 = vmatpush2.bf16.msra.mxu0 0
      %5312 = vmatprep.mubr.bf16.mxu0 0
      %5313 = vmatmul.mubr.bf16.gmra.mxu0 %v5275
      %v5314 = vpop.f32.mrf.mxu0
      %v5315 = vadd.f32 0.0, %v5314
      %v5316 = vpop.f32.mrf.mxu0
      %v5317 = vpop.f32.mrf.mxu0
      %v5318 = vadd.f32 0.0, %v5317
      %v5319 = vpop.f32.mrf.mxu0
      %5320 = vdwg.mxu0
      %v5321 = vadd.f32 %v4641, %v5315
      %v5322 = vadd.f32 %v4644, %v5318
      %v5323 = vmax.f32 %v5321, 0.0
      %v5324 = vmax.f32 %v5322, 0.0
      %s5325 = scalar_lea.vmem %s17, 144
      %v5326 = vld [vmem:[%s5325] sm:$0xf]
      %v5327 = vld [vmem:[%s5325 + $0x4] sm:$0xf]
      %v5328 = vld [vmem:[%s5325 + $0x8] sm:$0xf]
      %v5329 = vld [vmem:[%s5325 + $0xc] sm:$0xf]
      %v5330 = vld [vmem:[%s5325 + $0x10] sm:$0xf]
      %v5331 = vld [vmem:[%s5325 + $0x14] sm:$0xf]
      %v5332 = vld [vmem:[%s5325 + $0x18] sm:$0xf]
      %v5333 = vld [vmem:[%s5325 + $0x1c] sm:$0xf]
      %v5334 = vld [vmem:[%s5325 + $0x20] sm:$0xf]
      %v5335 = vld [vmem:[%s5325 + $0x24] sm:$0xf]
      %v5336 = vld [vmem:[%s5325 + $0x28] sm:$0xf]
      %v5337 = vld [vmem:[%s5325 + $0x2c] sm:$0xf]
      %v5338 = vld [vmem:[%s5325 + $0x30] sm:$0xf]
      %v5339 = vld [vmem:[%s5325 + $0x34] sm:$0xf]
      %v5340 = vld [vmem:[%s5325 + $0x38] sm:$0xf]
      %v5341 = vld [vmem:[%s5325 + $0x3c] sm:$0xf]
      %v5342 = vld [vmem:[%s5325 + $0x40] sm:$0xf]
      %v5343 = vld [vmem:[%s5325 + $0x44] sm:$0xf]
      %v5344 = vld [vmem:[%s5325 + $0x48] sm:$0xf]
      %v5345 = vld [vmem:[%s5325 + $0x4c] sm:$0xf]
      %v5346 = vld [vmem:[%s5325 + $0x50] sm:$0xf]
      %v5347 = vld [vmem:[%s5325 + $0x54] sm:$0xf]
      %v5348 = vld [vmem:[%s5325 + $0x58] sm:$0xf]
      %v5349 = vld [vmem:[%s5325 + $0x5c] sm:$0xf]
      %v5350 = vld [vmem:[%s5325 + $0x60] sm:$0xf]
      %v5351 = vld [vmem:[%s5325 + $0x64] sm:$0xf]
      %v5352 = vld [vmem:[%s5325 + $0x68] sm:$0xf]
      %v5353 = vld [vmem:[%s5325 + $0x6c] sm:$0xf]
      %v5354 = vld [vmem:[%s5325 + $0x70] sm:$0xf]
      %v5355 = vld [vmem:[%s5325 + $0x74] sm:$0xf]
      %v5356 = vld [vmem:[%s5325 + $0x78] sm:$0xf]
      %v5357 = vld [vmem:[%s5325 + $0x7c] sm:$0xf]
      %v5358 = vld [vmem:[%s5325 + $0x80] sm:$0xf]
      %v5359 = vld [vmem:[%s5325 + $0x84] sm:$0xf]
      %v5360 = vld [vmem:[%s5325 + $0x88] sm:$0xf]
      %v5361 = vld [vmem:[%s5325 + $0x8c] sm:$0xf]
      %v5362 = vpack.c.bf16 %v5324, %v5323
      %5363 = vmatprep.subr.bf16.mxu0 0
      %5364 = vmatpush1.bf16.msra.mxu0 0
      %5365 = vmatprep.subr.bf16.mxu0 0
      %5366 = vmatpush1.bf16.msra.mxu0 0
      %5367 = vmatprep.subr.bf16.mxu0 0
      %5368 = vmatpush1.bf16.msra.mxu0 0
      %5369 = vmatprep.subr.bf16.mxu0 0
      %5370 = vmatpush1.bf16.msra.mxu0 0
      %5371 = vmatprep.subr.bf16.mxu0 0
      %5372 = vmatpush1.bf16.msra.mxu0 0
      %5373 = vmatprep.subr.bf16.mxu0 0
      %5374 = vmatpush1.bf16.msra.mxu0 0
      %5375 = vmatprep.subr.bf16.mxu0 0
      %5376 = vmatpush1.bf16.msra.mxu0 0
      %5377 = vmatprep.subr.bf16.mxu0 0
      %5378 = vmatpush1.bf16.msra.mxu0 %v5362
      %5379 = vmatprep.subr.bf16.mxu0 0
      %5380 = vmatpush2.bf16.msra.mxu0 0
      %5381 = vmatprep.subr.bf16.mxu0 0
      %5382 = vmatpush2.bf16.msra.mxu0 0
      %5383 = vmatprep.subr.bf16.mxu0 0
      %5384 = vmatpush2.bf16.msra.mxu0 0
      %5385 = vmatprep.subr.bf16.mxu0 0
      %5386 = vmatpush2.bf16.msra.mxu0 0
      %5387 = vmatprep.subr.bf16.mxu0 0
      %5388 = vmatpush2.bf16.msra.mxu0 0
      %5389 = vmatprep.subr.bf16.mxu0 0
      %5390 = vmatpush2.bf16.msra.mxu0 0
      %5391 = vmatprep.subr.bf16.mxu0 0
      %5392 = vmatpush2.bf16.msra.mxu0 0
      %5393 = vmatprep.subr.bf16.mxu0 0
      %5394 = vmatpush2.bf16.msra.mxu0 0
      %5395 = vmatprep.mubr.bf16.mxu0 0
      %5396 = vmatmul.mubr.bf16.gmra.mxu0 %v1037
      %v5397 = vpop.f32.mrf.mxu0
      %v5398 = vadd.f32 0.0, %v5397
      %v5399 = vpop.f32.mrf.mxu0
      %v5400 = vpop.f32.mrf.mxu0
      %v5401 = vadd.f32 0.0, %v5400
      %v5402 = vpop.f32.mrf.mxu0
      %5403 = vdwg.mxu0
      %5404 = vmatprep.subr.bf16.mxu0 0
      %5405 = vmatpush1.bf16.msra.mxu0 0
      %5406 = vmatprep.subr.bf16.mxu0 0
      %5407 = vmatpush1.bf16.msra.mxu0 0
      %5408 = vmatprep.subr.bf16.mxu0 0
      %5409 = vmatpush1.bf16.msra.mxu0 0
      %5410 = vmatprep.subr.bf16.mxu0 0
      %5411 = vmatpush1.bf16.msra.mxu0 0
      %5412 = vmatprep.subr.bf16.mxu0 0
      %5413 = vmatpush1.bf16.msra.mxu0 0
      %5414 = vmatprep.subr.bf16.mxu0 0
      %5415 = vmatpush1.bf16.msra.mxu0 0
      %5416 = vmatprep.subr.bf16.mxu0 0
      %5417 = vmatpush1.bf16.msra.mxu0 0
      %5418 = vmatprep.subr.bf16.mxu0 0
      %5419 = vmatpush1.bf16.msra.mxu0 %v5362
      %5420 = vmatprep.subr.bf16.mxu0 0
      %5421 = vmatpush2.bf16.msra.mxu0 0
      %5422 = vmatprep.subr.bf16.mxu0 0
      %5423 = vmatpush2.bf16.msra.mxu0 0
      %5424 = vmatprep.subr.bf16.mxu0 0
      %5425 = vmatpush2.bf16.msra.mxu0 0
      %5426 = vmatprep.subr.bf16.mxu0 0
      %5427 = vmatpush2.bf16.msra.mxu0 0
      %5428 = vmatprep.subr.bf16.mxu0 0
      %5429 = vmatpush2.bf16.msra.mxu0 0
      %5430 = vmatprep.subr.bf16.mxu0 0
      %5431 = vmatpush2.bf16.msra.mxu0 0
      %5432 = vmatprep.subr.bf16.mxu0 0
      %5433 = vmatpush2.bf16.msra.mxu0 0
      %5434 = vmatprep.subr.bf16.mxu0 0
      %5435 = vmatpush2.bf16.msra.mxu0 0
      %5436 = vmatprep.mubr.bf16.mxu0 0
      %5437 = vmatmul.mubr.bf16.gmra.mxu0 %v1086
      %v5438 = vpop.f32.mrf.mxu0
      %v5439 = vadd.f32 0.0, %v5438
      %v5440 = vpop.f32.mrf.mxu0
      %v5441 = vpop.f32.mrf.mxu0
      %v5442 = vadd.f32 0.0, %v5441
      %v5443 = vpop.f32.mrf.mxu0
      %5444 = vdwg.mxu0
      %5445 = vmatprep.subr.bf16.mxu0 0
      %5446 = vmatpush1.bf16.msra.mxu0 0
      %5447 = vmatprep.subr.bf16.mxu0 0
      %5448 = vmatpush1.bf16.msra.mxu0 0
      %5449 = vmatprep.subr.bf16.mxu0 0
      %5450 = vmatpush1.bf16.msra.mxu0 0
      %5451 = vmatprep.subr.bf16.mxu0 0
      %5452 = vmatpush1.bf16.msra.mxu0 0
      %5453 = vmatprep.subr.bf16.mxu0 0
      %5454 = vmatpush1.bf16.msra.mxu0 0
      %5455 = vmatprep.subr.bf16.mxu0 0
      %5456 = vmatpush1.bf16.msra.mxu0 0
      %5457 = vmatprep.subr.bf16.mxu0 0
      %5458 = vmatpush1.bf16.msra.mxu0 0
      %5459 = vmatprep.subr.bf16.mxu0 0
      %5460 = vmatpush1.bf16.msra.mxu0 %v5362
      %5461 = vmatprep.subr.bf16.mxu0 0
      %5462 = vmatpush2.bf16.msra.mxu0 0
      %5463 = vmatprep.subr.bf16.mxu0 0
      %5464 = vmatpush2.bf16.msra.mxu0 0
      %5465 = vmatprep.subr.bf16.mxu0 0
      %5466 = vmatpush2.bf16.msra.mxu0 0
      %5467 = vmatprep.subr.bf16.mxu0 0
      %5468 = vmatpush2.bf16.msra.mxu0 0
      %5469 = vmatprep.subr.bf16.mxu0 0
      %5470 = vmatpush2.bf16.msra.mxu0 0
      %5471 = vmatprep.subr.bf16.mxu0 0
      %5472 = vmatpush2.bf16.msra.mxu0 0
      %5473 = vmatprep.subr.bf16.mxu0 0
      %5474 = vmatpush2.bf16.msra.mxu0 0
      %5475 = vmatprep.subr.bf16.mxu0 0
      %5476 = vmatpush2.bf16.msra.mxu0 0
      %5477 = vmatprep.mubr.bf16.mxu0 0
      %5478 = vmatmul.mubr.bf16.gmra.mxu0 %v1135
      %v5479 = vpop.f32.mrf.mxu0
      %v5480 = vadd.f32 0.0, %v5479
      %v5481 = vpop.f32.mrf.mxu0
      %v5482 = vpop.f32.mrf.mxu0
      %v5483 = vadd.f32 0.0, %v5482
      %v5484 = vpop.f32.mrf.mxu0
      %5485 = vdwg.mxu0
      %5486 = vmatprep.subr.bf16.mxu0 0
      %5487 = vmatpush1.bf16.msra.mxu0 0
      %5488 = vmatprep.subr.bf16.mxu0 0
      %5489 = vmatpush1.bf16.msra.mxu0 0
      %5490 = vmatprep.subr.bf16.mxu0 0
      %5491 = vmatpush1.bf16.msra.mxu0 0
      %5492 = vmatprep.subr.bf16.mxu0 0
      %5493 = vmatpush1.bf16.msra.mxu0 0
      %5494 = vmatprep.subr.bf16.mxu0 0
      %5495 = vmatpush1.bf16.msra.mxu0 0
      %5496 = vmatprep.subr.bf16.mxu0 0
      %5497 = vmatpush1.bf16.msra.mxu0 0
      %5498 = vmatprep.subr.bf16.mxu0 0
      %5499 = vmatpush1.bf16.msra.mxu0 0
      %5500 = vmatprep.subr.bf16.mxu0 0
      %5501 = vmatpush1.bf16.msra.mxu0 %v5362
      %5502 = vmatprep.subr.bf16.mxu0 0
      %5503 = vmatpush2.bf16.msra.mxu0 0
      %5504 = vmatprep.subr.bf16.mxu0 0
      %5505 = vmatpush2.bf16.msra.mxu0 0
      %5506 = vmatprep.subr.bf16.mxu0 0
      %5507 = vmatpush2.bf16.msra.mxu0 0
      %5508 = vmatprep.subr.bf16.mxu0 0
      %5509 = vmatpush2.bf16.msra.mxu0 0
      %5510 = vmatprep.subr.bf16.mxu0 0
      %5511 = vmatpush2.bf16.msra.mxu0 0
      %5512 = vmatprep.subr.bf16.mxu0 0
      %5513 = vmatpush2.bf16.msra.mxu0 0
      %5514 = vmatprep.subr.bf16.mxu0 0
      %5515 = vmatpush2.bf16.msra.mxu0 0
      %5516 = vmatprep.subr.bf16.mxu0 0
      %5517 = vmatpush2.bf16.msra.mxu0 0
      %5518 = vmatprep.mubr.bf16.mxu0 0
      %5519 = vmatmul.mubr.bf16.gmra.mxu0 %v1184
      %v5520 = vpop.f32.mrf.mxu0
      %v5521 = vadd.f32 0.0, %v5520
      %v5522 = vpop.f32.mrf.mxu0
      %v5523 = vpop.f32.mrf.mxu0
      %v5524 = vadd.f32 0.0, %v5523
      %v5525 = vpop.f32.mrf.mxu0
      %5526 = vdwg.mxu0
      %5527 = vmatprep.subr.bf16.mxu0 0
      %5528 = vmatpush1.bf16.msra.mxu0 0
      %5529 = vmatprep.subr.bf16.mxu0 0
      %5530 = vmatpush1.bf16.msra.mxu0 0
      %5531 = vmatprep.subr.bf16.mxu0 0
      %5532 = vmatpush1.bf16.msra.mxu0 0
      %5533 = vmatprep.subr.bf16.mxu0 0
      %5534 = vmatpush1.bf16.msra.mxu0 0
      %5535 = vmatprep.subr.bf16.mxu0 0
      %5536 = vmatpush1.bf16.msra.mxu0 0
      %5537 = vmatprep.subr.bf16.mxu0 0
      %5538 = vmatpush1.bf16.msra.mxu0 0
      %5539 = vmatprep.subr.bf16.mxu0 0
      %5540 = vmatpush1.bf16.msra.mxu0 0
      %5541 = vmatprep.subr.bf16.mxu0 0
      %5542 = vmatpush1.bf16.msra.mxu0 %v5362
      %5543 = vmatprep.subr.bf16.mxu0 0
      %5544 = vmatpush2.bf16.msra.mxu0 0
      %5545 = vmatprep.subr.bf16.mxu0 0
      %5546 = vmatpush2.bf16.msra.mxu0 0
      %5547 = vmatprep.subr.bf16.mxu0 0
      %5548 = vmatpush2.bf16.msra.mxu0 0
      %5549 = vmatprep.subr.bf16.mxu0 0
      %5550 = vmatpush2.bf16.msra.mxu0 0
      %5551 = vmatprep.subr.bf16.mxu0 0
      %5552 = vmatpush2.bf16.msra.mxu0 0
      %5553 = vmatprep.subr.bf16.mxu0 0
      %5554 = vmatpush2.bf16.msra.mxu0 0
      %5555 = vmatprep.subr.bf16.mxu0 0
      %5556 = vmatpush2.bf16.msra.mxu0 0
      %5557 = vmatprep.subr.bf16.mxu0 0
      %5558 = vmatpush2.bf16.msra.mxu0 0
      %5559 = vmatprep.mubr.bf16.mxu0 0
      %5560 = vmatmul.mubr.bf16.gmra.mxu0 %v1233
      %v5561 = vpop.f32.mrf.mxu0
      %v5562 = vadd.f32 0.0, %v5561
      %v5563 = vpop.f32.mrf.mxu0
      %v5564 = vpop.f32.mrf.mxu0
      %v5565 = vadd.f32 0.0, %v5564
      %v5566 = vpop.f32.mrf.mxu0
      %5567 = vdwg.mxu0
      %5568 = vmatprep.subr.bf16.mxu0 0
      %5569 = vmatpush1.bf16.msra.mxu0 0
      %5570 = vmatprep.subr.bf16.mxu0 0
      %5571 = vmatpush1.bf16.msra.mxu0 0
      %5572 = vmatprep.subr.bf16.mxu0 0
      %5573 = vmatpush1.bf16.msra.mxu0 0
      %5574 = vmatprep.subr.bf16.mxu0 0
      %5575 = vmatpush1.bf16.msra.mxu0 0
      %5576 = vmatprep.subr.bf16.mxu0 0
      %5577 = vmatpush1.bf16.msra.mxu0 0
      %5578 = vmatprep.subr.bf16.mxu0 0
      %5579 = vmatpush1.bf16.msra.mxu0 0
      %5580 = vmatprep.subr.bf16.mxu0 0
      %5581 = vmatpush1.bf16.msra.mxu0 0
      %5582 = vmatprep.subr.bf16.mxu0 0
      %5583 = vmatpush1.bf16.msra.mxu0 %v5362
      %5584 = vmatprep.subr.bf16.mxu0 0
      %5585 = vmatpush2.bf16.msra.mxu0 0
      %5586 = vmatprep.subr.bf16.mxu0 0
      %5587 = vmatpush2.bf16.msra.mxu0 0
      %5588 = vmatprep.subr.bf16.mxu0 0
      %5589 = vmatpush2.bf16.msra.mxu0 0
      %5590 = vmatprep.subr.bf16.mxu0 0
      %5591 = vmatpush2.bf16.msra.mxu0 0
      %5592 = vmatprep.subr.bf16.mxu0 0
      %5593 = vmatpush2.bf16.msra.mxu0 0
      %5594 = vmatprep.subr.bf16.mxu0 0
      %5595 = vmatpush2.bf16.msra.mxu0 0
      %5596 = vmatprep.subr.bf16.mxu0 0
      %5597 = vmatpush2.bf16.msra.mxu0 0
      %5598 = vmatprep.subr.bf16.mxu0 0
      %5599 = vmatpush2.bf16.msra.mxu0 0
      %5600 = vmatprep.mubr.bf16.mxu0 0
      %5601 = vmatmul.mubr.bf16.gmra.mxu0 %v1282
      %v5602 = vpop.f32.mrf.mxu0
      %v5603 = vadd.f32 0.0, %v5602
      %v5604 = vpop.f32.mrf.mxu0
      %v5605 = vpop.f32.mrf.mxu0
      %v5606 = vadd.f32 0.0, %v5605
      %v5607 = vpop.f32.mrf.mxu0
      %5608 = vdwg.mxu0
      %5609 = vmatprep.subr.bf16.mxu0 0
      %5610 = vmatpush1.bf16.msra.mxu0 0
      %5611 = vmatprep.subr.bf16.mxu0 0
      %5612 = vmatpush1.bf16.msra.mxu0 0
      %5613 = vmatprep.subr.bf16.mxu0 0
      %5614 = vmatpush1.bf16.msra.mxu0 0
      %5615 = vmatprep.subr.bf16.mxu0 0
      %5616 = vmatpush1.bf16.msra.mxu0 0
      %5617 = vmatprep.subr.bf16.mxu0 0
      %5618 = vmatpush1.bf16.msra.mxu0 0
      %5619 = vmatprep.subr.bf16.mxu0 0
      %5620 = vmatpush1.bf16.msra.mxu0 0
      %5621 = vmatprep.subr.bf16.mxu0 0
      %5622 = vmatpush1.bf16.msra.mxu0 0
      %5623 = vmatprep.subr.bf16.mxu0 0
      %5624 = vmatpush1.bf16.msra.mxu0 %v5362
      %5625 = vmatprep.subr.bf16.mxu0 0
      %5626 = vmatpush2.bf16.msra.mxu0 0
      %5627 = vmatprep.subr.bf16.mxu0 0
      %5628 = vmatpush2.bf16.msra.mxu0 0
      %5629 = vmatprep.subr.bf16.mxu0 0
      %5630 = vmatpush2.bf16.msra.mxu0 0
      %5631 = vmatprep.subr.bf16.mxu0 0
      %5632 = vmatpush2.bf16.msra.mxu0 0
      %5633 = vmatprep.subr.bf16.mxu0 0
      %5634 = vmatpush2.bf16.msra.mxu0 0
      %5635 = vmatprep.subr.bf16.mxu0 0
      %5636 = vmatpush2.bf16.msra.mxu0 0
      %5637 = vmatprep.subr.bf16.mxu0 0
      %5638 = vmatpush2.bf16.msra.mxu0 0
      %5639 = vmatprep.subr.bf16.mxu0 0
      %5640 = vmatpush2.bf16.msra.mxu0 0
      %5641 = vmatprep.mubr.bf16.mxu0 0
      %5642 = vmatmul.mubr.bf16.gmra.mxu0 %v1331
      %v5643 = vpop.f32.mrf.mxu0
      %v5644 = vadd.f32 0.0, %v5643
      %v5645 = vpop.f32.mrf.mxu0
      %v5646 = vpop.f32.mrf.mxu0
      %v5647 = vadd.f32 0.0, %v5646
      %v5648 = vpop.f32.mrf.mxu0
      %5649 = vdwg.mxu0
      %5650 = vmatprep.subr.bf16.mxu0 0
      %5651 = vmatpush1.bf16.msra.mxu0 0
      %5652 = vmatprep.subr.bf16.mxu0 0
      %5653 = vmatpush1.bf16.msra.mxu0 0
      %5654 = vmatprep.subr.bf16.mxu0 0
      %5655 = vmatpush1.bf16.msra.mxu0 0
      %5656 = vmatprep.subr.bf16.mxu0 0
      %5657 = vmatpush1.bf16.msra.mxu0 0
      %5658 = vmatprep.subr.bf16.mxu0 0
      %5659 = vmatpush1.bf16.msra.mxu0 0
      %5660 = vmatprep.subr.bf16.mxu0 0
      %5661 = vmatpush1.bf16.msra.mxu0 0
      %5662 = vmatprep.subr.bf16.mxu0 0
      %5663 = vmatpush1.bf16.msra.mxu0 0
      %5664 = vmatprep.subr.bf16.mxu0 0
      %5665 = vmatpush1.bf16.msra.mxu0 %v5362
      %5666 = vmatprep.subr.bf16.mxu0 0
      %5667 = vmatpush2.bf16.msra.mxu0 0
      %5668 = vmatprep.subr.bf16.mxu0 0
      %5669 = vmatpush2.bf16.msra.mxu0 0
      %5670 = vmatprep.subr.bf16.mxu0 0
      %5671 = vmatpush2.bf16.msra.mxu0 0
      %5672 = vmatprep.subr.bf16.mxu0 0
      %5673 = vmatpush2.bf16.msra.mxu0 0
      %5674 = vmatprep.subr.bf16.mxu0 0
      %5675 = vmatpush2.bf16.msra.mxu0 0
      %5676 = vmatprep.subr.bf16.mxu0 0
      %5677 = vmatpush2.bf16.msra.mxu0 0
      %5678 = vmatprep.subr.bf16.mxu0 0
      %5679 = vmatpush2.bf16.msra.mxu0 0
      %5680 = vmatprep.subr.bf16.mxu0 0
      %5681 = vmatpush2.bf16.msra.mxu0 0
      %5682 = vmatprep.mubr.bf16.mxu0 0
      %5683 = vmatmul.mubr.bf16.gmra.mxu0 %v1380
      %v5684 = vpop.f32.mrf.mxu0
      %v5685 = vadd.f32 0.0, %v5684
      %v5686 = vpop.f32.mrf.mxu0
      %v5687 = vpop.f32.mrf.mxu0
      %v5688 = vadd.f32 0.0, %v5687
      %v5689 = vpop.f32.mrf.mxu0
      %5690 = vdwg.mxu0
      %5693 = vrot.lane.b32.xlu0 %v5439, 32
      %v5694 = vpop.permute.xlu0 %5693
      %5695 = vrot.lane.b32.xlu0 %v5442, 32
      %v5696 = vpop.permute.xlu0 %5695
      %5701 = vrot.lane.b32.xlu0 %v5480, 64
      %v5702 = vpop.permute.xlu0 %5701
      %5703 = vrot.lane.b32.xlu0 %v5483, 64
      %v5704 = vpop.permute.xlu0 %5703
      %5709 = vrot.lane.b32.xlu0 %v5521, 96
      %v5710 = vpop.permute.xlu0 %5709
      %5711 = vrot.lane.b32.xlu0 %v5524, 96
      %v5712 = vpop.permute.xlu0 %5711
      %5717 = vrot.lane.b32.xlu0 %v5562, 32
      %v5718 = vpop.permute.xlu0 %5717
      %5719 = vrot.lane.b32.xlu0 %v5565, 32
      %v5720 = vpop.permute.xlu0 %5719
      %5725 = vrot.lane.b32.xlu0 %v5603, 64
      %v5726 = vpop.permute.xlu0 %5725
      %5727 = vrot.lane.b32.xlu0 %v5606, 64
      %v5728 = vpop.permute.xlu0 %5727
      %5733 = vrot.lane.b32.xlu0 %v5644, 96
      %v5734 = vpop.permute.xlu0 %5733
      %5735 = vrot.lane.b32.xlu0 %v5647, 96
      %v5736 = vpop.permute.xlu0 %5735
      %v5739 = vsel %vm2233, %v5398, %v5694
      %v5740 = vsel %vm2233, %v5401, %v5696
      %v5741 = vsel %vm1455, %v5739, %v5702
      %v5742 = vsel %vm1455, %v5740, %v5704
      %v5743 = vsel %vm2238, %v5741, %v5710
      %v5744 = vsel %vm2238, %v5742, %v5712
      %v5745 = vsel %vm2233, %v5323, %v5718
      %v5746 = vsel %vm2233, %v5324, %v5720
      %v5747 = vsel %vm1455, %v5745, %v5726
      %v5748 = vsel %vm1455, %v5746, %v5728
      %v5749 = vsel %vm2238, %v5747, %v5734
      %v5750 = vsel %vm2238, %v5748, %v5736
      %v5751 = vpack.c.bf16 %v5744, %v5743
      %v5752 = vpack.c.bf16 %v5750, %v5749
      %v5753 = vpack.c.bf16 %v5688, %v5685
      %v5790 = vunpack.c.l.b16 %v5326
      %v5791 = vunpack.c.l.b16 %v5327
      %v5792 = vunpack.c.l.b16 %v5328
      %v5793 = vunpack.c.l.b16 %v5329
      %v5794 = vunpack.c.l.b16 %v5330
      %v5795 = vunpack.c.l.b16 %v5331
      %v5796 = vunpack.c.l.b16 %v5332
      %v5797 = vunpack.c.l.b16 %v5333
      %v5798 = vunpack.c.l.b16 %v5334
      %v5799 = vunpack.c.l.b16 %v5335
      %v5800 = vunpack.c.l.b16 %v5336
      %v5801 = vunpack.c.l.b16 %v5337
      %v5802 = vunpack.c.l.b16 %v5338
      %v5803 = vunpack.c.l.b16 %v5339
      %v5804 = vunpack.c.l.b16 %v5340
      %v5805 = vunpack.c.l.b16 %v5341
      %v5806 = vunpack.c.l.b16 %v5342
      %v5807 = vunpack.c.l.b16 %v5343
      %v5808 = vunpack.c.l.b16 %v5344
      %v5809 = vunpack.c.l.b16 %v5345
      %v5810 = vunpack.c.l.b16 %v5346
      %v5811 = vunpack.c.l.b16 %v5347
      %v5812 = vunpack.c.l.b16 %v5348
      %v5813 = vunpack.c.l.b16 %v5349
      %v5814 = vunpack.c.l.b16 %v5350
      %v5815 = vunpack.c.l.b16 %v5351
      %v5816 = vunpack.c.l.b16 %v5352
      %v5817 = vunpack.c.l.b16 %v5353
      %v5818 = vunpack.c.l.b16 %v5354
      %v5819 = vunpack.c.l.b16 %v5355
      %v5820 = vunpack.c.l.b16 %v5356
      %v5821 = vunpack.c.l.b16 %v5357
      %v5822 = vunpack.c.l.b16 %v5358
      %v5823 = vunpack.c.l.b16 %v5359
      %v5824 = vunpack.c.l.b16 %v5360
      %v5825 = vunpack.c.l.b16 %v5361
      %v5826 = vpack.c.b16 %v5791, %v5790
      %v5827 = vpack.c.b16 %v5793, %v5792
      %v5828 = vpack.c.b16 %v5795, %v5794
      %v5829 = vpack.c.b16 %v5797, %v5796
      %v5830 = vpack.c.b16 %v5799, %v5798
      %v5831 = vpack.c.b16 %v5801, %v5800
      %v5832 = vpack.c.b16 %v5803, %v5802
      %v5833 = vpack.c.b16 %v5805, %v5804
      %v5834 = vpack.c.b16 %v5807, %v5806
      %v5835 = vpack.c.b16 %v5809, %v5808
      %v5836 = vpack.c.b16 %v5811, %v5810
      %v5837 = vpack.c.b16 %v5813, %v5812
      %v5838 = vpack.c.b16 %v5815, %v5814
      %v5839 = vpack.c.b16 %v5817, %v5816
      %v5840 = vpack.c.b16 %v5819, %v5818
      %v5841 = vpack.c.b16 %v5821, %v5820
      %v5842 = vpack.c.b16 %v5823, %v5822
      %v5843 = vpack.c.b16 %v5825, %v5824
      %v5863 = vsel %vm2233, %v5753, 0
      %5865 = vmatprep.subr.bf16.mxu0 0
      %5866 = vmatpush1.bf16.msra.mxu0 %v5833
      %5867 = vmatprep.subr.bf16.mxu0 0
      %5868 = vmatpush1.bf16.msra.mxu0 %v5832
      %5869 = vmatprep.subr.bf16.mxu0 0
      %5870 = vmatpush1.bf16.msra.mxu0 %v5831
      %5871 = vmatprep.subr.bf16.mxu0 0
      %5872 = vmatpush1.bf16.msra.mxu0 %v5830
      %5873 = vmatprep.subr.bf16.mxu0 0
      %5874 = vmatpush1.bf16.msra.mxu0 %v5829
      %5875 = vmatprep.subr.bf16.mxu0 0
      %5876 = vmatpush1.bf16.msra.mxu0 %v5828
      %5877 = vmatprep.subr.bf16.mxu0 0
      %5878 = vmatpush1.bf16.msra.mxu0 %v5827
      %5879 = vmatprep.subr.bf16.mxu0 0
      %5880 = vmatpush1.bf16.msra.mxu0 %v5826
      %5881 = vmatprep.subr.bf16.mxu0 0
      %5882 = vmatpush2.bf16.msra.mxu0 %v5841
      %5883 = vmatprep.subr.bf16.mxu0 0
      %5884 = vmatpush2.bf16.msra.mxu0 %v5840
      %5885 = vmatprep.subr.bf16.mxu0 0
      %5886 = vmatpush2.bf16.msra.mxu0 %v5839
      %5887 = vmatprep.subr.bf16.mxu0 0
      %5888 = vmatpush2.bf16.msra.mxu0 %v5838
      %5889 = vmatprep.subr.bf16.mxu0 0
      %5890 = vmatpush2.bf16.msra.mxu0 %v5837
      %5891 = vmatprep.subr.bf16.mxu0 0
      %5892 = vmatpush2.bf16.msra.mxu0 %v5836
      %5893 = vmatprep.subr.bf16.mxu0 0
      %5894 = vmatpush2.bf16.msra.mxu0 %v5835
      %5895 = vmatprep.subr.bf16.mxu0 0
      %5896 = vmatpush2.bf16.msra.mxu0 %v5834
      %5897 = vmatprep.mubr.bf16.mxu0 %v5752
      %5898 = vmatmul.mubr.bf16.gmra.mxu0 %v5751
      %v5899 = vpop.f32.mrf.mxu0
      %v5900 = vadd.f32 0.0, %v5899
      %v5901 = vpop.f32.mrf.mxu0
      %v5902 = vpop.f32.mrf.mxu0
      %v5903 = vadd.f32 0.0, %v5902
      %v5904 = vpop.f32.mrf.mxu0
      %5905 = vdwg.mxu0
      %5906 = vmatprep.subr.bf16.mxu0 0
      %5907 = vmatpush1.bf16.msra.mxu0 0
      %5908 = vmatprep.subr.bf16.mxu0 0
      %5909 = vmatpush1.bf16.msra.mxu0 0
      %5910 = vmatprep.subr.bf16.mxu0 0
      %5911 = vmatpush1.bf16.msra.mxu0 0
      %5912 = vmatprep.subr.bf16.mxu0 0
      %5913 = vmatpush1.bf16.msra.mxu0 0
      %5914 = vmatprep.subr.bf16.mxu0 0
      %5915 = vmatpush1.bf16.msra.mxu0 0
      %5916 = vmatprep.subr.bf16.mxu0 0
      %5917 = vmatpush1.bf16.msra.mxu0 0
      %5918 = vmatprep.subr.bf16.mxu0 0
      %5919 = vmatpush1.bf16.msra.mxu0 %v5843
      %5920 = vmatprep.subr.bf16.mxu0 0
      %5921 = vmatpush1.bf16.msra.mxu0 %v5842
      %5922 = vmatprep.subr.bf16.mxu0 0
      %5923 = vmatpush2.bf16.msra.mxu0 0
      %5924 = vmatprep.subr.bf16.mxu0 0
      %5925 = vmatpush2.bf16.msra.mxu0 0
      %5926 = vmatprep.subr.bf16.mxu0 0
      %5927 = vmatpush2.bf16.msra.mxu0 0
      %5928 = vmatprep.subr.bf16.mxu0 0
      %5929 = vmatpush2.bf16.msra.mxu0 0
      %5930 = vmatprep.subr.bf16.mxu0 0
      %5931 = vmatpush2.bf16.msra.mxu0 0
      %5932 = vmatprep.subr.bf16.mxu0 0
      %5933 = vmatpush2.bf16.msra.mxu0 0
      %5934 = vmatprep.subr.bf16.mxu0 0
      %5935 = vmatpush2.bf16.msra.mxu0 0
      %5936 = vmatprep.subr.bf16.mxu0 0
      %5937 = vmatpush2.bf16.msra.mxu0 0
      %5938 = vmatprep.mubr.bf16.mxu0 0
      %5939 = vmatmul.mubr.bf16.gmra.mxu0 %v5863
      %v5940 = vpop.f32.mrf.mxu0
      %v5941 = vadd.f32 %v5900, %v5940
      %v5942 = vpop.f32.mrf.mxu0
      %v5943 = vpop.f32.mrf.mxu0
      %v5944 = vadd.f32 %v5903, %v5943
      %v5945 = vpop.f32.mrf.mxu0
      %5946 = vdwg.mxu0
      %v5947 = vmax.f32 %v5941, 0.0
      %v5948 = vmax.f32 %v5944, 0.0
      %v5949 = vpack.c.bf16 %v5948, %v5947
      %s5950 = scalar_lea.vmem %s18, 4
      %v5951 = vld [vmem:[%s5950] sm:$0xf]
      %v5953 = vsel %vm3076, %v5949, 0
      %v5956 = vsel %vm3080, %v5951, 0
      %5958 = vmatprep.subr.bf16.mxu0 0
      %5959 = vmatpush1.bf16.msra.mxu0 0
      %5960 = vmatprep.subr.bf16.mxu0 0
      %5961 = vmatpush1.bf16.msra.mxu0 0
      %5962 = vmatprep.subr.bf16.mxu0 0
      %5963 = vmatpush1.bf16.msra.mxu0 0
      %5964 = vmatprep.subr.bf16.mxu0 0
      %5965 = vmatpush1.bf16.msra.mxu0 0
      %5966 = vmatprep.subr.bf16.mxu0 0
      %5967 = vmatpush1.bf16.msra.mxu0 0
      %5968 = vmatprep.subr.bf16.mxu0 0
      %5969 = vmatpush1.bf16.msra.mxu0 0
      %5970 = vmatprep.subr.bf16.mxu0 0
      %5971 = vmatpush1.bf16.msra.mxu0 0
      %5972 = vmatprep.subr.bf16.mxu0 0
      %5973 = vmatpush1.bf16.msra.mxu0 %v5956
      %5974 = vmatprep.subr.bf16.mxu0 0
      %5975 = vmatpush2.bf16.msra.mxu0 0
      %5976 = vmatprep.subr.bf16.mxu0 0
      %5977 = vmatpush2.bf16.msra.mxu0 0
      %5978 = vmatprep.subr.bf16.mxu0 0
      %5979 = vmatpush2.bf16.msra.mxu0 0
      %5980 = vmatprep.subr.bf16.mxu0 0
      %5981 = vmatpush2.bf16.msra.mxu0 0
      %5982 = vmatprep.subr.bf16.mxu0 0
      %5983 = vmatpush2.bf16.msra.mxu0 0
      %5984 = vmatprep.subr.bf16.mxu0 0
      %5985 = vmatpush2.bf16.msra.mxu0 0
      %5986 = vmatprep.subr.bf16.mxu0 0
      %5987 = vmatpush2.bf16.msra.mxu0 0
      %5988 = vmatprep.subr.bf16.mxu0 0
      %5989 = vmatpush2.bf16.msra.mxu0 0
      %5990 = vmatprep.mubr.bf16.mxu0 0
      %5991 = vmatmul.mubr.bf16.gmra.mxu0 %v5953
      %v5992 = vpop.f32.mrf.mxu0
      %v5993 = vadd.f32 0.0, %v5992
      %v5994 = vpop.f32.mrf.mxu0
      %v5995 = vpop.f32.mrf.mxu0
      %v5996 = vadd.f32 0.0, %v5995
      %v5997 = vpop.f32.mrf.mxu0
      %5998 = vdwg.mxu0
      %v5999 = vadd.f32 %v5321, %v5993
      %v6000 = vadd.f32 %v5322, %v5996
      %v6001 = vmax.f32 %v5999, 0.0
      %v6002 = vmax.f32 %v6000, 0.0
      %v6003 = vld [vmem:[%s19] sm:$0xf]
      %v6004 = vld [vmem:[%s19 + $0x4] sm:$0xf]
      %v6005 = vld [vmem:[%s19 + $0x8] sm:$0xf]
      %v6006 = vld [vmem:[%s19 + $0xc] sm:$0xf]
      %v6007 = vld [vmem:[%s19 + $0x10] sm:$0xf]
      %v6008 = vld [vmem:[%s19 + $0x14] sm:$0xf]
      %v6009 = vld [vmem:[%s19 + $0x18] sm:$0xf]
      %v6010 = vld [vmem:[%s19 + $0x1c] sm:$0xf]
      %v6011 = vld [vmem:[%s19 + $0x20] sm:$0xf]
      %v6012 = vld [vmem:[%s19 + $0x24] sm:$0xf]
      %v6013 = vld [vmem:[%s19 + $0x28] sm:$0xf]
      %v6014 = vld [vmem:[%s19 + $0x2c] sm:$0xf]
      %v6015 = vld [vmem:[%s19 + $0x30] sm:$0xf]
      %v6016 = vld [vmem:[%s19 + $0x34] sm:$0xf]
      %v6017 = vld [vmem:[%s19 + $0x38] sm:$0xf]
      %v6018 = vld [vmem:[%s19 + $0x3c] sm:$0xf]
      %v6019 = vld [vmem:[%s19 + $0x40] sm:$0xf]
      %v6020 = vld [vmem:[%s19 + $0x44] sm:$0xf]
      %v6021 = vld [vmem:[%s19 + $0x48] sm:$0xf]
      %v6022 = vld [vmem:[%s19 + $0x4c] sm:$0xf]
      %v6023 = vld [vmem:[%s19 + $0x50] sm:$0xf]
      %v6024 = vld [vmem:[%s19 + $0x54] sm:$0xf]
      %v6025 = vld [vmem:[%s19 + $0x58] sm:$0xf]
      %v6026 = vld [vmem:[%s19 + $0x5c] sm:$0xf]
      %v6027 = vld [vmem:[%s19 + $0x60] sm:$0xf]
      %v6028 = vld [vmem:[%s19 + $0x64] sm:$0xf]
      %v6029 = vld [vmem:[%s19 + $0x68] sm:$0xf]
      %v6030 = vld [vmem:[%s19 + $0x6c] sm:$0xf]
      %v6031 = vld [vmem:[%s19 + $0x70] sm:$0xf]
      %v6032 = vld [vmem:[%s19 + $0x74] sm:$0xf]
      %v6033 = vld [vmem:[%s19 + $0x78] sm:$0xf]
      %v6034 = vld [vmem:[%s19 + $0x7c] sm:$0xf]
      %v6035 = vld [vmem:[%s19 + $0x80] sm:$0xf]
      %v6036 = vld [vmem:[%s19 + $0x84] sm:$0xf]
      %v6037 = vld [vmem:[%s19 + $0x88] sm:$0xf]
      %v6038 = vld [vmem:[%s19 + $0x8c] sm:$0xf]
      %v6039 = vld [vmem:[%s20] sm:$0x1]
      %v6040 = vpack.c.bf16 %v6002, %v6001
      %6041 = vmatprep.subr.bf16.mxu0 0
      %6042 = vmatpush1.bf16.msra.mxu0 0
      %6043 = vmatprep.subr.bf16.mxu0 0
      %6044 = vmatpush1.bf16.msra.mxu0 0
      %6045 = vmatprep.subr.bf16.mxu0 0
      %6046 = vmatpush1.bf16.msra.mxu0 0
      %6047 = vmatprep.subr.bf16.mxu0 0
      %6048 = vmatpush1.bf16.msra.mxu0 0
      %6049 = vmatprep.subr.bf16.mxu0 0
      %6050 = vmatpush1.bf16.msra.mxu0 0
      %6051 = vmatprep.subr.bf16.mxu0 0
      %6052 = vmatpush1.bf16.msra.mxu0 0
      %6053 = vmatprep.subr.bf16.mxu0 0
      %6054 = vmatpush1.bf16.msra.mxu0 0
      %6055 = vmatprep.subr.bf16.mxu0 0
      %6056 = vmatpush1.bf16.msra.mxu0 %v6040
      %6057 = vmatprep.subr.bf16.mxu0 0
      %6058 = vmatpush2.bf16.msra.mxu0 0
      %6059 = vmatprep.subr.bf16.mxu0 0
      %6060 = vmatpush2.bf16.msra.mxu0 0
      %6061 = vmatprep.subr.bf16.mxu0 0
      %6062 = vmatpush2.bf16.msra.mxu0 0
      %6063 = vmatprep.subr.bf16.mxu0 0
      %6064 = vmatpush2.bf16.msra.mxu0 0
      %6065 = vmatprep.subr.bf16.mxu0 0
      %6066 = vmatpush2.bf16.msra.mxu0 0
      %6067 = vmatprep.subr.bf16.mxu0 0
      %6068 = vmatpush2.bf16.msra.mxu0 0
      %6069 = vmatprep.subr.bf16.mxu0 0
      %6070 = vmatpush2.bf16.msra.mxu0 0
      %6071 = vmatprep.subr.bf16.mxu0 0
      %6072 = vmatpush2.bf16.msra.mxu0 0
      %6073 = vmatprep.mubr.bf16.mxu0 0
      %6074 = vmatmul.mubr.bf16.gmra.mxu0 %v1037
      %v6075 = vpop.f32.mrf.mxu0
      %v6076 = vadd.f32 0.0, %v6075
      %v6077 = vpop.f32.mrf.mxu0
      %v6078 = vpop.f32.mrf.mxu0
      %v6079 = vadd.f32 0.0, %v6078
      %v6080 = vpop.f32.mrf.mxu0
      %6081 = vdwg.mxu0
      %6082 = vmatprep.subr.bf16.mxu0 0
      %6083 = vmatpush1.bf16.msra.mxu0 0
      %6084 = vmatprep.subr.bf16.mxu0 0
      %6085 = vmatpush1.bf16.msra.mxu0 0
      %6086 = vmatprep.subr.bf16.mxu0 0
      %6087 = vmatpush1.bf16.msra.mxu0 0
      %6088 = vmatprep.subr.bf16.mxu0 0
      %6089 = vmatpush1.bf16.msra.mxu0 0
      %6090 = vmatprep.subr.bf16.mxu0 0
      %6091 = vmatpush1.bf16.msra.mxu0 0
      %6092 = vmatprep.subr.bf16.mxu0 0
      %6093 = vmatpush1.bf16.msra.mxu0 0
      %6094 = vmatprep.subr.bf16.mxu0 0
      %6095 = vmatpush1.bf16.msra.mxu0 0
      %6096 = vmatprep.subr.bf16.mxu0 0
      %6097 = vmatpush1.bf16.msra.mxu0 %v6040
      %6098 = vmatprep.subr.bf16.mxu0 0
      %6099 = vmatpush2.bf16.msra.mxu0 0
      %6100 = vmatprep.subr.bf16.mxu0 0
      %6101 = vmatpush2.bf16.msra.mxu0 0
      %6102 = vmatprep.subr.bf16.mxu0 0
      %6103 = vmatpush2.bf16.msra.mxu0 0
      %6104 = vmatprep.subr.bf16.mxu0 0
      %6105 = vmatpush2.bf16.msra.mxu0 0
      %6106 = vmatprep.subr.bf16.mxu0 0
      %6107 = vmatpush2.bf16.msra.mxu0 0
      %6108 = vmatprep.subr.bf16.mxu0 0
      %6109 = vmatpush2.bf16.msra.mxu0 0
      %6110 = vmatprep.subr.bf16.mxu0 0
      %6111 = vmatpush2.bf16.msra.mxu0 0
      %6112 = vmatprep.subr.bf16.mxu0 0
      %6113 = vmatpush2.bf16.msra.mxu0 0
      %6114 = vmatprep.mubr.bf16.mxu0 0
      %6115 = vmatmul.mubr.bf16.gmra.mxu0 %v1086
      %v6116 = vpop.f32.mrf.mxu0
      %v6117 = vadd.f32 0.0, %v6116
      %v6118 = vpop.f32.mrf.mxu0
      %v6119 = vpop.f32.mrf.mxu0
      %v6120 = vadd.f32 0.0, %v6119
      %v6121 = vpop.f32.mrf.mxu0
      %6122 = vdwg.mxu0
      %6123 = vmatprep.subr.bf16.mxu0 0
      %6124 = vmatpush1.bf16.msra.mxu0 0
      %6125 = vmatprep.subr.bf16.mxu0 0
      %6126 = vmatpush1.bf16.msra.mxu0 0
      %6127 = vmatprep.subr.bf16.mxu0 0
      %6128 = vmatpush1.bf16.msra.mxu0 0
      %6129 = vmatprep.subr.bf16.mxu0 0
      %6130 = vmatpush1.bf16.msra.mxu0 0
      %6131 = vmatprep.subr.bf16.mxu0 0
      %6132 = vmatpush1.bf16.msra.mxu0 0
      %6133 = vmatprep.subr.bf16.mxu0 0
      %6134 = vmatpush1.bf16.msra.mxu0 0
      %6135 = vmatprep.subr.bf16.mxu0 0
      %6136 = vmatpush1.bf16.msra.mxu0 0
      %6137 = vmatprep.subr.bf16.mxu0 0
      %6138 = vmatpush1.bf16.msra.mxu0 %v6040
      %6139 = vmatprep.subr.bf16.mxu0 0
      %6140 = vmatpush2.bf16.msra.mxu0 0
      %6141 = vmatprep.subr.bf16.mxu0 0
      %6142 = vmatpush2.bf16.msra.mxu0 0
      %6143 = vmatprep.subr.bf16.mxu0 0
      %6144 = vmatpush2.bf16.msra.mxu0 0
      %6145 = vmatprep.subr.bf16.mxu0 0
      %6146 = vmatpush2.bf16.msra.mxu0 0
      %6147 = vmatprep.subr.bf16.mxu0 0
      %6148 = vmatpush2.bf16.msra.mxu0 0
      %6149 = vmatprep.subr.bf16.mxu0 0
      %6150 = vmatpush2.bf16.msra.mxu0 0
      %6151 = vmatprep.subr.bf16.mxu0 0
      %6152 = vmatpush2.bf16.msra.mxu0 0
      %6153 = vmatprep.subr.bf16.mxu0 0
      %6154 = vmatpush2.bf16.msra.mxu0 0
      %6155 = vmatprep.mubr.bf16.mxu0 0
      %6156 = vmatmul.mubr.bf16.gmra.mxu0 %v1135
      %v6157 = vpop.f32.mrf.mxu0
      %v6158 = vadd.f32 0.0, %v6157
      %v6159 = vpop.f32.mrf.mxu0
      %v6160 = vpop.f32.mrf.mxu0
      %v6161 = vadd.f32 0.0, %v6160
      %v6162 = vpop.f32.mrf.mxu0
      %6163 = vdwg.mxu0
      %6164 = vmatprep.subr.bf16.mxu0 0
      %6165 = vmatpush1.bf16.msra.mxu0 0
      %6166 = vmatprep.subr.bf16.mxu0 0
      %6167 = vmatpush1.bf16.msra.mxu0 0
      %6168 = vmatprep.subr.bf16.mxu0 0
      %6169 = vmatpush1.bf16.msra.mxu0 0
      %6170 = vmatprep.subr.bf16.mxu0 0
      %6171 = vmatpush1.bf16.msra.mxu0 0
      %6172 = vmatprep.subr.bf16.mxu0 0
      %6173 = vmatpush1.bf16.msra.mxu0 0
      %6174 = vmatprep.subr.bf16.mxu0 0
      %6175 = vmatpush1.bf16.msra.mxu0 0
      %6176 = vmatprep.subr.bf16.mxu0 0
      %6177 = vmatpush1.bf16.msra.mxu0 0
      %6178 = vmatprep.subr.bf16.mxu0 0
      %6179 = vmatpush1.bf16.msra.mxu0 %v6040
      %6180 = vmatprep.subr.bf16.mxu0 0
      %6181 = vmatpush2.bf16.msra.mxu0 0
      %6182 = vmatprep.subr.bf16.mxu0 0
      %6183 = vmatpush2.bf16.msra.mxu0 0
      %6184 = vmatprep.subr.bf16.mxu0 0
      %6185 = vmatpush2.bf16.msra.mxu0 0
      %6186 = vmatprep.subr.bf16.mxu0 0
      %6187 = vmatpush2.bf16.msra.mxu0 0
      %6188 = vmatprep.subr.bf16.mxu0 0
      %6189 = vmatpush2.bf16.msra.mxu0 0
      %6190 = vmatprep.subr.bf16.mxu0 0
      %6191 = vmatpush2.bf16.msra.mxu0 0
      %6192 = vmatprep.subr.bf16.mxu0 0
      %6193 = vmatpush2.bf16.msra.mxu0 0
      %6194 = vmatprep.subr.bf16.mxu0 0
      %6195 = vmatpush2.bf16.msra.mxu0 0
      %6196 = vmatprep.mubr.bf16.mxu0 0
      %6197 = vmatmul.mubr.bf16.gmra.mxu0 %v1184
      %v6198 = vpop.f32.mrf.mxu0
      %v6199 = vadd.f32 0.0, %v6198
      %v6200 = vpop.f32.mrf.mxu0
      %v6201 = vpop.f32.mrf.mxu0
      %v6202 = vadd.f32 0.0, %v6201
      %v6203 = vpop.f32.mrf.mxu0
      %6204 = vdwg.mxu0
      %6205 = vmatprep.subr.bf16.mxu0 0
      %6206 = vmatpush1.bf16.msra.mxu0 0
      %6207 = vmatprep.subr.bf16.mxu0 0
      %6208 = vmatpush1.bf16.msra.mxu0 0
      %6209 = vmatprep.subr.bf16.mxu0 0
      %6210 = vmatpush1.bf16.msra.mxu0 0
      %6211 = vmatprep.subr.bf16.mxu0 0
      %6212 = vmatpush1.bf16.msra.mxu0 0
      %6213 = vmatprep.subr.bf16.mxu0 0
      %6214 = vmatpush1.bf16.msra.mxu0 0
      %6215 = vmatprep.subr.bf16.mxu0 0
      %6216 = vmatpush1.bf16.msra.mxu0 0
      %6217 = vmatprep.subr.bf16.mxu0 0
      %6218 = vmatpush1.bf16.msra.mxu0 0
      %6219 = vmatprep.subr.bf16.mxu0 0
      %6220 = vmatpush1.bf16.msra.mxu0 %v6040
      %6221 = vmatprep.subr.bf16.mxu0 0
      %6222 = vmatpush2.bf16.msra.mxu0 0
      %6223 = vmatprep.subr.bf16.mxu0 0
      %6224 = vmatpush2.bf16.msra.mxu0 0
      %6225 = vmatprep.subr.bf16.mxu0 0
      %6226 = vmatpush2.bf16.msra.mxu0 0
      %6227 = vmatprep.subr.bf16.mxu0 0
      %6228 = vmatpush2.bf16.msra.mxu0 0
      %6229 = vmatprep.subr.bf16.mxu0 0
      %6230 = vmatpush2.bf16.msra.mxu0 0
      %6231 = vmatprep.subr.bf16.mxu0 0
      %6232 = vmatpush2.bf16.msra.mxu0 0
      %6233 = vmatprep.subr.bf16.mxu0 0
      %6234 = vmatpush2.bf16.msra.mxu0 0
      %6235 = vmatprep.subr.bf16.mxu0 0
      %6236 = vmatpush2.bf16.msra.mxu0 0
      %6237 = vmatprep.mubr.bf16.mxu0 0
      %6238 = vmatmul.mubr.bf16.gmra.mxu0 %v1233
      %v6239 = vpop.f32.mrf.mxu0
      %v6240 = vadd.f32 0.0, %v6239
      %v6241 = vpop.f32.mrf.mxu0
      %v6242 = vpop.f32.mrf.mxu0
      %v6243 = vadd.f32 0.0, %v6242
      %v6244 = vpop.f32.mrf.mxu0
      %6245 = vdwg.mxu0
      %6246 = vmatprep.subr.bf16.mxu0 0
      %6247 = vmatpush1.bf16.msra.mxu0 0
      %6248 = vmatprep.subr.bf16.mxu0 0
      %6249 = vmatpush1.bf16.msra.mxu0 0
      %6250 = vmatprep.subr.bf16.mxu0 0
      %6251 = vmatpush1.bf16.msra.mxu0 0
      %6252 = vmatprep.subr.bf16.mxu0 0
      %6253 = vmatpush1.bf16.msra.mxu0 0
      %6254 = vmatprep.subr.bf16.mxu0 0
      %6255 = vmatpush1.bf16.msra.mxu0 0
      %6256 = vmatprep.subr.bf16.mxu0 0
      %6257 = vmatpush1.bf16.msra.mxu0 0
      %6258 = vmatprep.subr.bf16.mxu0 0
      %6259 = vmatpush1.bf16.msra.mxu0 0
      %6260 = vmatprep.subr.bf16.mxu0 0
      %6261 = vmatpush1.bf16.msra.mxu0 %v6040
      %6262 = vmatprep.subr.bf16.mxu0 0
      %6263 = vmatpush2.bf16.msra.mxu0 0
      %6264 = vmatprep.subr.bf16.mxu0 0
      %6265 = vmatpush2.bf16.msra.mxu0 0
      %6266 = vmatprep.subr.bf16.mxu0 0
      %6267 = vmatpush2.bf16.msra.mxu0 0
      %6268 = vmatprep.subr.bf16.mxu0 0
      %6269 = vmatpush2.bf16.msra.mxu0 0
      %6270 = vmatprep.subr.bf16.mxu0 0
      %6271 = vmatpush2.bf16.msra.mxu0 0
      %6272 = vmatprep.subr.bf16.mxu0 0
      %6273 = vmatpush2.bf16.msra.mxu0 0
      %6274 = vmatprep.subr.bf16.mxu0 0
      %6275 = vmatpush2.bf16.msra.mxu0 0
      %6276 = vmatprep.subr.bf16.mxu0 0
      %6277 = vmatpush2.bf16.msra.mxu0 0
      %6278 = vmatprep.mubr.bf16.mxu0 0
      %6279 = vmatmul.mubr.bf16.gmra.mxu0 %v1282
      %v6280 = vpop.f32.mrf.mxu0
      %v6281 = vadd.f32 0.0, %v6280
      %v6282 = vpop.f32.mrf.mxu0
      %v6283 = vpop.f32.mrf.mxu0
      %v6284 = vadd.f32 0.0, %v6283
      %v6285 = vpop.f32.mrf.mxu0
      %6286 = vdwg.mxu0
      %6287 = vmatprep.subr.bf16.mxu0 0
      %6288 = vmatpush1.bf16.msra.mxu0 0
      %6289 = vmatprep.subr.bf16.mxu0 0
      %6290 = vmatpush1.bf16.msra.mxu0 0
      %6291 = vmatprep.subr.bf16.mxu0 0
      %6292 = vmatpush1.bf16.msra.mxu0 0
      %6293 = vmatprep.subr.bf16.mxu0 0
      %6294 = vmatpush1.bf16.msra.mxu0 0
      %6295 = vmatprep.subr.bf16.mxu0 0
      %6296 = vmatpush1.bf16.msra.mxu0 0
      %6297 = vmatprep.subr.bf16.mxu0 0
      %6298 = vmatpush1.bf16.msra.mxu0 0
      %6299 = vmatprep.subr.bf16.mxu0 0
      %6300 = vmatpush1.bf16.msra.mxu0 0
      %6301 = vmatprep.subr.bf16.mxu0 0
      %6302 = vmatpush1.bf16.msra.mxu0 %v6040
      %6303 = vmatprep.subr.bf16.mxu0 0
      %6304 = vmatpush2.bf16.msra.mxu0 0
      %6305 = vmatprep.subr.bf16.mxu0 0
      %6306 = vmatpush2.bf16.msra.mxu0 0
      %6307 = vmatprep.subr.bf16.mxu0 0
      %6308 = vmatpush2.bf16.msra.mxu0 0
      %6309 = vmatprep.subr.bf16.mxu0 0
      %6310 = vmatpush2.bf16.msra.mxu0 0
      %6311 = vmatprep.subr.bf16.mxu0 0
      %6312 = vmatpush2.bf16.msra.mxu0 0
      %6313 = vmatprep.subr.bf16.mxu0 0
      %6314 = vmatpush2.bf16.msra.mxu0 0
      %6315 = vmatprep.subr.bf16.mxu0 0
      %6316 = vmatpush2.bf16.msra.mxu0 0
      %6317 = vmatprep.subr.bf16.mxu0 0
      %6318 = vmatpush2.bf16.msra.mxu0 0
      %6319 = vmatprep.mubr.bf16.mxu0 0
      %6320 = vmatmul.mubr.bf16.gmra.mxu0 %v1331
      %v6321 = vpop.f32.mrf.mxu0
      %v6322 = vadd.f32 0.0, %v6321
      %v6323 = vpop.f32.mrf.mxu0
      %v6324 = vpop.f32.mrf.mxu0
      %v6325 = vadd.f32 0.0, %v6324
      %v6326 = vpop.f32.mrf.mxu0
      %6327 = vdwg.mxu0
      %6328 = vmatprep.subr.bf16.mxu0 0
      %6329 = vmatpush1.bf16.msra.mxu0 0
      %6330 = vmatprep.subr.bf16.mxu0 0
      %6331 = vmatpush1.bf16.msra.mxu0 0
      %6332 = vmatprep.subr.bf16.mxu0 0
      %6333 = vmatpush1.bf16.msra.mxu0 0
      %6334 = vmatprep.subr.bf16.mxu0 0
      %6335 = vmatpush1.bf16.msra.mxu0 0
      %6336 = vmatprep.subr.bf16.mxu0 0
      %6337 = vmatpush1.bf16.msra.mxu0 0
      %6338 = vmatprep.subr.bf16.mxu0 0
      %6339 = vmatpush1.bf16.msra.mxu0 0
      %6340 = vmatprep.subr.bf16.mxu0 0
      %6341 = vmatpush1.bf16.msra.mxu0 0
      %6342 = vmatprep.subr.bf16.mxu0 0
      %6343 = vmatpush1.bf16.msra.mxu0 %v6040
      %6344 = vmatprep.subr.bf16.mxu0 0
      %6345 = vmatpush2.bf16.msra.mxu0 0
      %6346 = vmatprep.subr.bf16.mxu0 0
      %6347 = vmatpush2.bf16.msra.mxu0 0
      %6348 = vmatprep.subr.bf16.mxu0 0
      %6349 = vmatpush2.bf16.msra.mxu0 0
      %6350 = vmatprep.subr.bf16.mxu0 0
      %6351 = vmatpush2.bf16.msra.mxu0 0
      %6352 = vmatprep.subr.bf16.mxu0 0
      %6353 = vmatpush2.bf16.msra.mxu0 0
      %6354 = vmatprep.subr.bf16.mxu0 0
      %6355 = vmatpush2.bf16.msra.mxu0 0
      %6356 = vmatprep.subr.bf16.mxu0 0
      %6357 = vmatpush2.bf16.msra.mxu0 0
      %6358 = vmatprep.subr.bf16.mxu0 0
      %6359 = vmatpush2.bf16.msra.mxu0 0
      %6360 = vmatprep.mubr.bf16.mxu0 0
      %6361 = vmatmul.mubr.bf16.gmra.mxu0 %v1380
      %v6362 = vpop.f32.mrf.mxu0
      %v6363 = vadd.f32 0.0, %v6362
      %v6364 = vpop.f32.mrf.mxu0
      %v6365 = vpop.f32.mrf.mxu0
      %v6366 = vadd.f32 0.0, %v6365
      %v6367 = vpop.f32.mrf.mxu0
      %6368 = vdwg.mxu0
      %6371 = vrot.lane.b32.xlu0 %v6117, 32
      %v6372 = vpop.permute.xlu0 %6371
      %6373 = vrot.lane.b32.xlu0 %v6120, 32
      %v6374 = vpop.permute.xlu0 %6373
      %6379 = vrot.lane.b32.xlu0 %v6158, 64
      %v6380 = vpop.permute.xlu0 %6379
      %6381 = vrot.lane.b32.xlu0 %v6161, 64
      %v6382 = vpop.permute.xlu0 %6381
      %6387 = vrot.lane.b32.xlu0 %v6199, 96
      %v6388 = vpop.permute.xlu0 %6387
      %6389 = vrot.lane.b32.xlu0 %v6202, 96
      %v6390 = vpop.permute.xlu0 %6389
      %6395 = vrot.lane.b32.xlu0 %v6240, 32
      %v6396 = vpop.permute.xlu0 %6395
      %6397 = vrot.lane.b32.xlu0 %v6243, 32
      %v6398 = vpop.permute.xlu0 %6397
      %6403 = vrot.lane.b32.xlu0 %v6281, 64
      %v6404 = vpop.permute.xlu0 %6403
      %6405 = vrot.lane.b32.xlu0 %v6284, 64
      %v6406 = vpop.permute.xlu0 %6405
      %6411 = vrot.lane.b32.xlu0 %v6322, 96
      %v6412 = vpop.permute.xlu0 %6411
      %6413 = vrot.lane.b32.xlu0 %v6325, 96
      %v6414 = vpop.permute.xlu0 %6413
      %v6417 = vsel %vm2233, %v6076, %v6372
      %v6418 = vsel %vm2233, %v6079, %v6374
      %v6419 = vsel %vm1455, %v6417, %v6380
      %v6420 = vsel %vm1455, %v6418, %v6382
      %v6421 = vsel %vm2238, %v6419, %v6388
      %v6422 = vsel %vm2238, %v6420, %v6390
      %v6423 = vsel %vm2233, %v6001, %v6396
      %v6424 = vsel %vm2233, %v6002, %v6398
      %v6425 = vsel %vm1455, %v6423, %v6404
      %v6426 = vsel %vm1455, %v6424, %v6406
      %v6427 = vsel %vm2238, %v6425, %v6412
      %v6428 = vsel %vm2238, %v6426, %v6414
      %v6429 = vpack.c.bf16 %v6422, %v6421
      %v6430 = vpack.c.bf16 %v6428, %v6427
      %v6431 = vpack.c.bf16 %v6366, %v6363
      %v6433 = vlaneseq
      %v6434 = vshrl.u32 %v6433, 7
      %v6435 = vsub.s32 0, %v6434
      %v6436 = vrot.slane %v6039, %v6435
      %v6474 = vunpack.c.l.b16 %v6003
      %v6475 = vunpack.c.l.b16 %v6004
      %v6476 = vunpack.c.l.b16 %v6005
      %v6477 = vunpack.c.l.b16 %v6006
      %v6478 = vunpack.c.l.b16 %v6007
      %v6479 = vunpack.c.l.b16 %v6008
      %v6480 = vunpack.c.l.b16 %v6009
      %v6481 = vunpack.c.l.b16 %v6010
      %v6482 = vunpack.c.l.b16 %v6011
      %v6483 = vunpack.c.l.b16 %v6012
      %v6484 = vunpack.c.l.b16 %v6013
      %v6485 = vunpack.c.l.b16 %v6014
      %v6486 = vunpack.c.l.b16 %v6015
      %v6487 = vunpack.c.l.b16 %v6016
      %v6488 = vunpack.c.l.b16 %v6017
      %v6489 = vunpack.c.l.b16 %v6018
      %v6490 = vunpack.c.l.b16 %v6019
      %v6491 = vunpack.c.l.b16 %v6020
      %v6492 = vunpack.c.l.b16 %v6021
      %v6493 = vunpack.c.l.b16 %v6022
      %v6494 = vunpack.c.l.b16 %v6023
      %v6495 = vunpack.c.l.b16 %v6024
      %v6496 = vunpack.c.l.b16 %v6025
      %v6497 = vunpack.c.l.b16 %v6026
      %v6498 = vunpack.c.l.b16 %v6027
      %v6499 = vunpack.c.l.b16 %v6028
      %v6500 = vunpack.c.l.b16 %v6029
      %v6501 = vunpack.c.l.b16 %v6030
      %v6502 = vunpack.c.l.b16 %v6031
      %v6503 = vunpack.c.l.b16 %v6032
      %v6504 = vunpack.c.l.b16 %v6033
      %v6505 = vunpack.c.l.b16 %v6034
      %v6506 = vunpack.c.l.b16 %v6035
      %v6507 = vunpack.c.l.b16 %v6036
      %v6508 = vunpack.c.l.b16 %v6037
      %v6509 = vunpack.c.l.b16 %v6038
      %v6510 = vpack.c.b16 %v6475, %v6474
      %v6511 = vpack.c.b16 %v6477, %v6476
      %v6512 = vpack.c.b16 %v6479, %v6478
      %v6513 = vpack.c.b16 %v6481, %v6480
      %v6514 = vpack.c.b16 %v6483, %v6482
      %v6515 = vpack.c.b16 %v6485, %v6484
      %v6516 = vpack.c.b16 %v6487, %v6486
      %v6517 = vpack.c.b16 %v6489, %v6488
      %v6518 = vpack.c.b16 %v6491, %v6490
      %v6519 = vpack.c.b16 %v6493, %v6492
      %v6520 = vpack.c.b16 %v6495, %v6494
      %v6521 = vpack.c.b16 %v6497, %v6496
      %v6522 = vpack.c.b16 %v6499, %v6498
      %v6523 = vpack.c.b16 %v6501, %v6500
      %v6524 = vpack.c.b16 %v6503, %v6502
      %v6525 = vpack.c.b16 %v6505, %v6504
      %v6526 = vpack.c.b16 %v6507, %v6506
      %v6527 = vpack.c.b16 %v6509, %v6508
      %v6547 = vsel %vm2233, %v6431, 0
      %6549 = vmatprep.subr.bf16.mxu0 0
      %6550 = vmatpush1.bf16.msra.mxu0 %v6517
      %6551 = vmatprep.subr.bf16.mxu0 0
      %6552 = vmatpush1.bf16.msra.mxu0 %v6516
      %6553 = vmatprep.subr.bf16.mxu0 0
      %6554 = vmatpush1.bf16.msra.mxu0 %v6515
      %6555 = vmatprep.subr.bf16.mxu0 0
      %6556 = vmatpush1.bf16.msra.mxu0 %v6514
      %6557 = vmatprep.subr.bf16.mxu0 0
      %6558 = vmatpush1.bf16.msra.mxu0 %v6513
      %6559 = vmatprep.subr.bf16.mxu0 0
      %6560 = vmatpush1.bf16.msra.mxu0 %v6512
      %6561 = vmatprep.subr.bf16.mxu0 0
      %6562 = vmatpush1.bf16.msra.mxu0 %v6511
      %6563 = vmatprep.subr.bf16.mxu0 0
      %6564 = vmatpush1.bf16.msra.mxu0 %v6510
      %6565 = vmatprep.subr.bf16.mxu0 0
      %6566 = vmatpush2.bf16.msra.mxu0 %v6525
      %6567 = vmatprep.subr.bf16.mxu0 0
      %6568 = vmatpush2.bf16.msra.mxu0 %v6524
      %6569 = vmatprep.subr.bf16.mxu0 0
      %6570 = vmatpush2.bf16.msra.mxu0 %v6523
      %6571 = vmatprep.subr.bf16.mxu0 0
      %6572 = vmatpush2.bf16.msra.mxu0 %v6522
      %6573 = vmatprep.subr.bf16.mxu0 0
      %6574 = vmatpush2.bf16.msra.mxu0 %v6521
      %6575 = vmatprep.subr.bf16.mxu0 0
      %6576 = vmatpush2.bf16.msra.mxu0 %v6520
      %6577 = vmatprep.subr.bf16.mxu0 0
      %6578 = vmatpush2.bf16.msra.mxu0 %v6519
      %6579 = vmatprep.subr.bf16.mxu0 0
      %6580 = vmatpush2.bf16.msra.mxu0 %v6518
      %6581 = vmatprep.mubr.bf16.mxu0 %v6430
      %6582 = vmatmul.mubr.bf16.gmra.mxu0 %v6429
      %v6583 = vpop.f32.mrf.mxu0
      %v6584 = vadd.f32 %v6436, %v6583
      %v6585 = vpop.f32.mrf.mxu0
      %v6586 = vpop.f32.mrf.mxu0
      %v6587 = vadd.f32 %v6436, %v6586
      %v6588 = vpop.f32.mrf.mxu0
      %6589 = vdwg.mxu0
      %6590 = vmatprep.subr.bf16.mxu0 0
      %6591 = vmatpush1.bf16.msra.mxu0 0
      %6592 = vmatprep.subr.bf16.mxu0 0
      %6593 = vmatpush1.bf16.msra.mxu0 0
      %6594 = vmatprep.subr.bf16.mxu0 0
      %6595 = vmatpush1.bf16.msra.mxu0 0
      %6596 = vmatprep.subr.bf16.mxu0 0
      %6597 = vmatpush1.bf16.msra.mxu0 0
      %6598 = vmatprep.subr.bf16.mxu0 0
      %6599 = vmatpush1.bf16.msra.mxu0 0
      %6600 = vmatprep.subr.bf16.mxu0 0
      %6601 = vmatpush1.bf16.msra.mxu0 0
      %6602 = vmatprep.subr.bf16.mxu0 0
      %6603 = vmatpush1.bf16.msra.mxu0 %v6527
      %6604 = vmatprep.subr.bf16.mxu0 0
      %6605 = vmatpush1.bf16.msra.mxu0 %v6526
      %6606 = vmatprep.subr.bf16.mxu0 0
      %6607 = vmatpush2.bf16.msra.mxu0 0
      %6608 = vmatprep.subr.bf16.mxu0 0
      %6609 = vmatpush2.bf16.msra.mxu0 0
      %6610 = vmatprep.subr.bf16.mxu0 0
      %6611 = vmatpush2.bf16.msra.mxu0 0
      %6612 = vmatprep.subr.bf16.mxu0 0
      %6613 = vmatpush2.bf16.msra.mxu0 0
      %6614 = vmatprep.subr.bf16.mxu0 0
      %6615 = vmatpush2.bf16.msra.mxu0 0
      %6616 = vmatprep.subr.bf16.mxu0 0
      %6617 = vmatpush2.bf16.msra.mxu0 0
      %6618 = vmatprep.subr.bf16.mxu0 0
      %6619 = vmatpush2.bf16.msra.mxu0 0
      %6620 = vmatprep.subr.bf16.mxu0 0
      %6621 = vmatpush2.bf16.msra.mxu0 0
      %6622 = vmatprep.mubr.bf16.mxu0 0
      %6623 = vmatmul.mubr.bf16.gmra.mxu0 %v6547
      %v6624 = vpop.f32.mrf.mxu0
      %v6625 = vadd.f32 %v6584, %v6624
      %v6626 = vpop.f32.mrf.mxu0
      %v6627 = vpop.f32.mrf.mxu0
      %v6628 = vadd.f32 %v6587, %v6627
      %v6629 = vpop.f32.mrf.mxu0
      %6630 = vdwg.mxu0
      %v6631 = vmax.f32 %v6625, 0.0
      %v6632 = vmax.f32 %v6628, 0.0
      %v6633 = vld [vmem:[%s21] sm:$0xf]
      %v6634 = vld [vmem:[%s21 + $0x4] sm:$0xf]
      %v6635 = vld [vmem:[%s21 + $0x8] sm:$0xf]
      %v6636 = vld [vmem:[%s21 + $0xc] sm:$0xf]
      %v6637 = vld [vmem:[%s21 + $0x10] sm:$0xf]
      %v6638 = vld [vmem:[%s21 + $0x14] sm:$0xf]
      %v6639 = vld [vmem:[%s21 + $0x18] sm:$0xf]
      %v6640 = vld [vmem:[%s21 + $0x1c] sm:$0xf]
      %v6641 = vld [vmem:[%s21 + $0x20] sm:$0xf]
      %v6642 = vld [vmem:[%s21 + $0x24] sm:$0xf]
      %v6643 = vld [vmem:[%s21 + $0x28] sm:$0xf]
      %v6644 = vld [vmem:[%s21 + $0x2c] sm:$0xf]
      %v6645 = vld [vmem:[%s21 + $0x30] sm:$0xf]
      %v6646 = vld [vmem:[%s21 + $0x34] sm:$0xf]
      %v6647 = vld [vmem:[%s21 + $0x38] sm:$0xf]
      %v6648 = vld [vmem:[%s21 + $0x3c] sm:$0xf]
      %v6649 = vld [vmem:[%s21 + $0x40] sm:$0xf]
      %v6650 = vld [vmem:[%s21 + $0x44] sm:$0xf]
      %v6651 = vld [vmem:[%s21 + $0x48] sm:$0xf]
      %v6652 = vld [vmem:[%s21 + $0x4c] sm:$0xf]
      %v6653 = vld [vmem:[%s21 + $0x50] sm:$0xf]
      %v6654 = vld [vmem:[%s21 + $0x54] sm:$0xf]
      %v6655 = vld [vmem:[%s21 + $0x58] sm:$0xf]
      %v6656 = vld [vmem:[%s21 + $0x5c] sm:$0xf]
      %v6657 = vld [vmem:[%s21 + $0x60] sm:$0xf]
      %v6658 = vld [vmem:[%s21 + $0x64] sm:$0xf]
      %v6659 = vld [vmem:[%s21 + $0x68] sm:$0xf]
      %v6660 = vld [vmem:[%s21 + $0x6c] sm:$0xf]
      %v6661 = vld [vmem:[%s21 + $0x70] sm:$0xf]
      %v6662 = vld [vmem:[%s21 + $0x74] sm:$0xf]
      %v6663 = vld [vmem:[%s21 + $0x78] sm:$0xf]
      %v6664 = vld [vmem:[%s21 + $0x7c] sm:$0xf]
      %v6665 = vld [vmem:[%s21 + $0x80] sm:$0xf]
      %v6666 = vld [vmem:[%s21 + $0x84] sm:$0xf]
      %v6667 = vld [vmem:[%s21 + $0x88] sm:$0xf]
      %v6668 = vld [vmem:[%s21 + $0x8c] sm:$0xf]
      %v6669 = vld [vmem:[%s21 + $0x90] sm:$0xf]
      %v6670 = vld [vmem:[%s21 + $0x94] sm:$0xf]
      %v6671 = vld [vmem:[%s21 + $0x98] sm:$0xf]
      %v6672 = vld [vmem:[%s21 + $0x9c] sm:$0xf]
      %v6673 = vld [vmem:[%s21 + $0xa0] sm:$0xf]
      %v6674 = vld [vmem:[%s21 + $0xa4] sm:$0xf]
      %v6675 = vld [vmem:[%s21 + $0xa8] sm:$0xf]
      %v6676 = vld [vmem:[%s21 + $0xac] sm:$0xf]
      %v6677 = vld [vmem:[%s21 + $0xb0] sm:$0xf]
      %v6678 = vld [vmem:[%s21 + $0xb4] sm:$0xf]
      %v6679 = vld [vmem:[%s21 + $0xb8] sm:$0xf]
      %v6680 = vld [vmem:[%s21 + $0xbc] sm:$0xf]
      %v6681 = vld [vmem:[%s21 + $0xc0] sm:$0xf]
      %v6682 = vld [vmem:[%s21 + $0xc4] sm:$0xf]
      %v6683 = vld [vmem:[%s21 + $0xc8] sm:$0xf]
      %v6684 = vld [vmem:[%s21 + $0xcc] sm:$0xf]
      %v6685 = vld [vmem:[%s21 + $0xd0] sm:$0xf]
      %v6686 = vld [vmem:[%s21 + $0xd4] sm:$0xf]
      %v6687 = vld [vmem:[%s21 + $0xd8] sm:$0xf]
      %v6688 = vld [vmem:[%s21 + $0xdc] sm:$0xf]
      %v6689 = vld [vmem:[%s21 + $0xe0] sm:$0xf]
      %v6690 = vld [vmem:[%s21 + $0xe4] sm:$0xf]
      %v6691 = vld [vmem:[%s21 + $0xe8] sm:$0xf]
      %v6692 = vld [vmem:[%s21 + $0xec] sm:$0xf]
      %v6693 = vld [vmem:[%s21 + $0xf0] sm:$0xf]
      %v6694 = vld [vmem:[%s21 + $0xf4] sm:$0xf]
      %v6695 = vld [vmem:[%s21 + $0xf8] sm:$0xf]
      %v6696 = vld [vmem:[%s21 + $0xfc] sm:$0xf]
      %v6697 = vld [vmem:[%s21 + $0x100] sm:$0xf]
      %v6698 = vld [vmem:[%s21 + $0x104] sm:$0xf]
      %v6699 = vld [vmem:[%s21 + $0x108] sm:$0xf]
      %v6700 = vld [vmem:[%s21 + $0x10c] sm:$0xf]
      %v6701 = vld [vmem:[%s21 + $0x110] sm:$0xf]
      %v6702 = vld [vmem:[%s21 + $0x114] sm:$0xf]
      %v6703 = vld [vmem:[%s21 + $0x118] sm:$0xf]
      %v6704 = vld [vmem:[%s21 + $0x11c] sm:$0xf]
      %v6705 = vld [vmem:[%s22] sm:$0x1]
      %v6706 = vpack.c.bf16 %v6632, %v6631
      %6707 = vmatprep.subr.bf16.mxu0 0
      %6708 = vmatpush1.bf16.msra.mxu0 0
      %6709 = vmatprep.subr.bf16.mxu0 0
      %6710 = vmatpush1.bf16.msra.mxu0 0
      %6711 = vmatprep.subr.bf16.mxu0 0
      %6712 = vmatpush1.bf16.msra.mxu0 0
      %6713 = vmatprep.subr.bf16.mxu0 0
      %6714 = vmatpush1.bf16.msra.mxu0 0
      %6715 = vmatprep.subr.bf16.mxu0 0
      %6716 = vmatpush1.bf16.msra.mxu0 0
      %6717 = vmatprep.subr.bf16.mxu0 0
      %6718 = vmatpush1.bf16.msra.mxu0 0
      %6719 = vmatprep.subr.bf16.mxu0 0
      %6720 = vmatpush1.bf16.msra.mxu0 0
      %6721 = vmatprep.subr.bf16.mxu0 0
      %6722 = vmatpush1.bf16.msra.mxu0 %v6706
      %6723 = vmatprep.subr.bf16.mxu0 0
      %6724 = vmatpush2.bf16.msra.mxu0 0
      %6725 = vmatprep.subr.bf16.mxu0 0
      %6726 = vmatpush2.bf16.msra.mxu0 0
      %6727 = vmatprep.subr.bf16.mxu0 0
      %6728 = vmatpush2.bf16.msra.mxu0 0
      %6729 = vmatprep.subr.bf16.mxu0 0
      %6730 = vmatpush2.bf16.msra.mxu0 0
      %6731 = vmatprep.subr.bf16.mxu0 0
      %6732 = vmatpush2.bf16.msra.mxu0 0
      %6733 = vmatprep.subr.bf16.mxu0 0
      %6734 = vmatpush2.bf16.msra.mxu0 0
      %6735 = vmatprep.subr.bf16.mxu0 0
      %6736 = vmatpush2.bf16.msra.mxu0 0
      %6737 = vmatprep.subr.bf16.mxu0 0
      %6738 = vmatpush2.bf16.msra.mxu0 0
      %6739 = vmatprep.mubr.bf16.mxu0 0
      %6740 = vmatmul.mubr.bf16.gmra.mxu0 %v1037
      %v6741 = vpop.f32.mrf.mxu0
      %v6742 = vadd.f32 0.0, %v6741
      %v6743 = vpop.f32.mrf.mxu0
      %v6744 = vpop.f32.mrf.mxu0
      %v6745 = vadd.f32 0.0, %v6744
      %v6746 = vpop.f32.mrf.mxu0
      %6747 = vdwg.mxu0
      %6748 = vmatprep.subr.bf16.mxu0 0
      %6749 = vmatpush1.bf16.msra.mxu0 0
      %6750 = vmatprep.subr.bf16.mxu0 0
      %6751 = vmatpush1.bf16.msra.mxu0 0
      %6752 = vmatprep.subr.bf16.mxu0 0
      %6753 = vmatpush1.bf16.msra.mxu0 0
      %6754 = vmatprep.subr.bf16.mxu0 0
      %6755 = vmatpush1.bf16.msra.mxu0 0
      %6756 = vmatprep.subr.bf16.mxu0 0
      %6757 = vmatpush1.bf16.msra.mxu0 0
      %6758 = vmatprep.subr.bf16.mxu0 0
      %6759 = vmatpush1.bf16.msra.mxu0 0
      %6760 = vmatprep.subr.bf16.mxu0 0
      %6761 = vmatpush1.bf16.msra.mxu0 0
      %6762 = vmatprep.subr.bf16.mxu0 0
      %6763 = vmatpush1.bf16.msra.mxu0 %v6706
      %6764 = vmatprep.subr.bf16.mxu0 0
      %6765 = vmatpush2.bf16.msra.mxu0 0
      %6766 = vmatprep.subr.bf16.mxu0 0
      %6767 = vmatpush2.bf16.msra.mxu0 0
      %6768 = vmatprep.subr.bf16.mxu0 0
      %6769 = vmatpush2.bf16.msra.mxu0 0
      %6770 = vmatprep.subr.bf16.mxu0 0
      %6771 = vmatpush2.bf16.msra.mxu0 0
      %6772 = vmatprep.subr.bf16.mxu0 0
      %6773 = vmatpush2.bf16.msra.mxu0 0
      %6774 = vmatprep.subr.bf16.mxu0 0
      %6775 = vmatpush2.bf16.msra.mxu0 0
      %6776 = vmatprep.subr.bf16.mxu0 0
      %6777 = vmatpush2.bf16.msra.mxu0 0
      %6778 = vmatprep.subr.bf16.mxu0 0
      %6779 = vmatpush2.bf16.msra.mxu0 0
      %6780 = vmatprep.mubr.bf16.mxu0 0
      %6781 = vmatmul.mubr.bf16.gmra.mxu0 %v1086
      %v6782 = vpop.f32.mrf.mxu0
      %v6783 = vadd.f32 0.0, %v6782
      %v6784 = vpop.f32.mrf.mxu0
      %v6785 = vpop.f32.mrf.mxu0
      %v6786 = vadd.f32 0.0, %v6785
      %v6787 = vpop.f32.mrf.mxu0
      %6788 = vdwg.mxu0
      %6789 = vmatprep.subr.bf16.mxu0 0
      %6790 = vmatpush1.bf16.msra.mxu0 0
      %6791 = vmatprep.subr.bf16.mxu0 0
      %6792 = vmatpush1.bf16.msra.mxu0 0
      %6793 = vmatprep.subr.bf16.mxu0 0
      %6794 = vmatpush1.bf16.msra.mxu0 0
      %6795 = vmatprep.subr.bf16.mxu0 0
      %6796 = vmatpush1.bf16.msra.mxu0 0
      %6797 = vmatprep.subr.bf16.mxu0 0
      %6798 = vmatpush1.bf16.msra.mxu0 0
      %6799 = vmatprep.subr.bf16.mxu0 0
      %6800 = vmatpush1.bf16.msra.mxu0 0
      %6801 = vmatprep.subr.bf16.mxu0 0
      %6802 = vmatpush1.bf16.msra.mxu0 0
      %6803 = vmatprep.subr.bf16.mxu0 0
      %6804 = vmatpush1.bf16.msra.mxu0 %v6706
      %6805 = vmatprep.subr.bf16.mxu0 0
      %6806 = vmatpush2.bf16.msra.mxu0 0
      %6807 = vmatprep.subr.bf16.mxu0 0
      %6808 = vmatpush2.bf16.msra.mxu0 0
      %6809 = vmatprep.subr.bf16.mxu0 0
      %6810 = vmatpush2.bf16.msra.mxu0 0
      %6811 = vmatprep.subr.bf16.mxu0 0
      %6812 = vmatpush2.bf16.msra.mxu0 0
      %6813 = vmatprep.subr.bf16.mxu0 0
      %6814 = vmatpush2.bf16.msra.mxu0 0
      %6815 = vmatprep.subr.bf16.mxu0 0
      %6816 = vmatpush2.bf16.msra.mxu0 0
      %6817 = vmatprep.subr.bf16.mxu0 0
      %6818 = vmatpush2.bf16.msra.mxu0 0
      %6819 = vmatprep.subr.bf16.mxu0 0
      %6820 = vmatpush2.bf16.msra.mxu0 0
      %6821 = vmatprep.mubr.bf16.mxu0 0
      %6822 = vmatmul.mubr.bf16.gmra.mxu0 %v1135
      %v6823 = vpop.f32.mrf.mxu0
      %v6824 = vadd.f32 0.0, %v6823
      %v6825 = vpop.f32.mrf.mxu0
      %v6826 = vpop.f32.mrf.mxu0
      %v6827 = vadd.f32 0.0, %v6826
      %v6828 = vpop.f32.mrf.mxu0
      %6829 = vdwg.mxu0
      %6830 = vmatprep.subr.bf16.mxu0 0
      %6831 = vmatpush1.bf16.msra.mxu0 0
      %6832 = vmatprep.subr.bf16.mxu0 0
      %6833 = vmatpush1.bf16.msra.mxu0 0
      %6834 = vmatprep.subr.bf16.mxu0 0
      %6835 = vmatpush1.bf16.msra.mxu0 0
      %6836 = vmatprep.subr.bf16.mxu0 0
      %6837 = vmatpush1.bf16.msra.mxu0 0
      %6838 = vmatprep.subr.bf16.mxu0 0
      %6839 = vmatpush1.bf16.msra.mxu0 0
      %6840 = vmatprep.subr.bf16.mxu0 0
      %6841 = vmatpush1.bf16.msra.mxu0 0
      %6842 = vmatprep.subr.bf16.mxu0 0
      %6843 = vmatpush1.bf16.msra.mxu0 0
      %6844 = vmatprep.subr.bf16.mxu0 0
      %6845 = vmatpush1.bf16.msra.mxu0 %v6706
      %6846 = vmatprep.subr.bf16.mxu0 0
      %6847 = vmatpush2.bf16.msra.mxu0 0
      %6848 = vmatprep.subr.bf16.mxu0 0
      %6849 = vmatpush2.bf16.msra.mxu0 0
      %6850 = vmatprep.subr.bf16.mxu0 0
      %6851 = vmatpush2.bf16.msra.mxu0 0
      %6852 = vmatprep.subr.bf16.mxu0 0
      %6853 = vmatpush2.bf16.msra.mxu0 0
      %6854 = vmatprep.subr.bf16.mxu0 0
      %6855 = vmatpush2.bf16.msra.mxu0 0
      %6856 = vmatprep.subr.bf16.mxu0 0
      %6857 = vmatpush2.bf16.msra.mxu0 0
      %6858 = vmatprep.subr.bf16.mxu0 0
      %6859 = vmatpush2.bf16.msra.mxu0 0
      %6860 = vmatprep.subr.bf16.mxu0 0
      %6861 = vmatpush2.bf16.msra.mxu0 0
      %6862 = vmatprep.mubr.bf16.mxu0 0
      %6863 = vmatmul.mubr.bf16.gmra.mxu0 %v1184
      %v6864 = vpop.f32.mrf.mxu0
      %v6865 = vadd.f32 0.0, %v6864
      %v6866 = vpop.f32.mrf.mxu0
      %v6867 = vpop.f32.mrf.mxu0
      %v6868 = vadd.f32 0.0, %v6867
      %v6869 = vpop.f32.mrf.mxu0
      %6870 = vdwg.mxu0
      %6871 = vmatprep.subr.bf16.mxu0 0
      %6872 = vmatpush1.bf16.msra.mxu0 0
      %6873 = vmatprep.subr.bf16.mxu0 0
      %6874 = vmatpush1.bf16.msra.mxu0 0
      %6875 = vmatprep.subr.bf16.mxu0 0
      %6876 = vmatpush1.bf16.msra.mxu0 0
      %6877 = vmatprep.subr.bf16.mxu0 0
      %6878 = vmatpush1.bf16.msra.mxu0 0
      %6879 = vmatprep.subr.bf16.mxu0 0
      %6880 = vmatpush1.bf16.msra.mxu0 0
      %6881 = vmatprep.subr.bf16.mxu0 0
      %6882 = vmatpush1.bf16.msra.mxu0 0
      %6883 = vmatprep.subr.bf16.mxu0 0
      %6884 = vmatpush1.bf16.msra.mxu0 0
      %6885 = vmatprep.subr.bf16.mxu0 0
      %6886 = vmatpush1.bf16.msra.mxu0 %v6706
      %6887 = vmatprep.subr.bf16.mxu0 0
      %6888 = vmatpush2.bf16.msra.mxu0 0
      %6889 = vmatprep.subr.bf16.mxu0 0
      %6890 = vmatpush2.bf16.msra.mxu0 0
      %6891 = vmatprep.subr.bf16.mxu0 0
      %6892 = vmatpush2.bf16.msra.mxu0 0
      %6893 = vmatprep.subr.bf16.mxu0 0
      %6894 = vmatpush2.bf16.msra.mxu0 0
      %6895 = vmatprep.subr.bf16.mxu0 0
      %6896 = vmatpush2.bf16.msra.mxu0 0
      %6897 = vmatprep.subr.bf16.mxu0 0
      %6898 = vmatpush2.bf16.msra.mxu0 0
      %6899 = vmatprep.subr.bf16.mxu0 0
      %6900 = vmatpush2.bf16.msra.mxu0 0
      %6901 = vmatprep.subr.bf16.mxu0 0
      %6902 = vmatpush2.bf16.msra.mxu0 0
      %6903 = vmatprep.mubr.bf16.mxu0 0
      %6904 = vmatmul.mubr.bf16.gmra.mxu0 %v1233
      %v6905 = vpop.f32.mrf.mxu0
      %v6906 = vadd.f32 0.0, %v6905
      %v6907 = vpop.f32.mrf.mxu0
      %v6908 = vpop.f32.mrf.mxu0
      %v6909 = vadd.f32 0.0, %v6908
      %v6910 = vpop.f32.mrf.mxu0
      %6911 = vdwg.mxu0
      %6912 = vmatprep.subr.bf16.mxu0 0
      %6913 = vmatpush1.bf16.msra.mxu0 0
      %6914 = vmatprep.subr.bf16.mxu0 0
      %6915 = vmatpush1.bf16.msra.mxu0 0
      %6916 = vmatprep.subr.bf16.mxu0 0
      %6917 = vmatpush1.bf16.msra.mxu0 0
      %6918 = vmatprep.subr.bf16.mxu0 0
      %6919 = vmatpush1.bf16.msra.mxu0 0
      %6920 = vmatprep.subr.bf16.mxu0 0
      %6921 = vmatpush1.bf16.msra.mxu0 0
      %6922 = vmatprep.subr.bf16.mxu0 0
      %6923 = vmatpush1.bf16.msra.mxu0 0
      %6924 = vmatprep.subr.bf16.mxu0 0
      %6925 = vmatpush1.bf16.msra.mxu0 0
      %6926 = vmatprep.subr.bf16.mxu0 0
      %6927 = vmatpush1.bf16.msra.mxu0 %v6706
      %6928 = vmatprep.subr.bf16.mxu0 0
      %6929 = vmatpush2.bf16.msra.mxu0 0
      %6930 = vmatprep.subr.bf16.mxu0 0
      %6931 = vmatpush2.bf16.msra.mxu0 0
      %6932 = vmatprep.subr.bf16.mxu0 0
      %6933 = vmatpush2.bf16.msra.mxu0 0
      %6934 = vmatprep.subr.bf16.mxu0 0
      %6935 = vmatpush2.bf16.msra.mxu0 0
      %6936 = vmatprep.subr.bf16.mxu0 0
      %6937 = vmatpush2.bf16.msra.mxu0 0
      %6938 = vmatprep.subr.bf16.mxu0 0
      %6939 = vmatpush2.bf16.msra.mxu0 0
      %6940 = vmatprep.subr.bf16.mxu0 0
      %6941 = vmatpush2.bf16.msra.mxu0 0
      %6942 = vmatprep.subr.bf16.mxu0 0
      %6943 = vmatpush2.bf16.msra.mxu0 0
      %6944 = vmatprep.mubr.bf16.mxu0 0
      %6945 = vmatmul.mubr.bf16.gmra.mxu0 %v1282
      %v6946 = vpop.f32.mrf.mxu0
      %v6947 = vadd.f32 0.0, %v6946
      %v6948 = vpop.f32.mrf.mxu0
      %v6949 = vpop.f32.mrf.mxu0
      %v6950 = vadd.f32 0.0, %v6949
      %v6951 = vpop.f32.mrf.mxu0
      %6952 = vdwg.mxu0
      %6953 = vmatprep.subr.bf16.mxu0 0
      %6954 = vmatpush1.bf16.msra.mxu0 0
      %6955 = vmatprep.subr.bf16.mxu0 0
      %6956 = vmatpush1.bf16.msra.mxu0 0
      %6957 = vmatprep.subr.bf16.mxu0 0
      %6958 = vmatpush1.bf16.msra.mxu0 0
      %6959 = vmatprep.subr.bf16.mxu0 0
      %6960 = vmatpush1.bf16.msra.mxu0 0
      %6961 = vmatprep.subr.bf16.mxu0 0
      %6962 = vmatpush1.bf16.msra.mxu0 0
      %6963 = vmatprep.subr.bf16.mxu0 0
      %6964 = vmatpush1.bf16.msra.mxu0 0
      %6965 = vmatprep.subr.bf16.mxu0 0
      %6966 = vmatpush1.bf16.msra.mxu0 0
      %6967 = vmatprep.subr.bf16.mxu0 0
      %6968 = vmatpush1.bf16.msra.mxu0 %v6706
      %6969 = vmatprep.subr.bf16.mxu0 0
      %6970 = vmatpush2.bf16.msra.mxu0 0
      %6971 = vmatprep.subr.bf16.mxu0 0
      %6972 = vmatpush2.bf16.msra.mxu0 0
      %6973 = vmatprep.subr.bf16.mxu0 0
      %6974 = vmatpush2.bf16.msra.mxu0 0
      %6975 = vmatprep.subr.bf16.mxu0 0
      %6976 = vmatpush2.bf16.msra.mxu0 0
      %6977 = vmatprep.subr.bf16.mxu0 0
      %6978 = vmatpush2.bf16.msra.mxu0 0
      %6979 = vmatprep.subr.bf16.mxu0 0
      %6980 = vmatpush2.bf16.msra.mxu0 0
      %6981 = vmatprep.subr.bf16.mxu0 0
      %6982 = vmatpush2.bf16.msra.mxu0 0
      %6983 = vmatprep.subr.bf16.mxu0 0
      %6984 = vmatpush2.bf16.msra.mxu0 0
      %6985 = vmatprep.mubr.bf16.mxu0 0
      %6986 = vmatmul.mubr.bf16.gmra.mxu0 %v1331
      %v6987 = vpop.f32.mrf.mxu0
      %v6988 = vadd.f32 0.0, %v6987
      %v6989 = vpop.f32.mrf.mxu0
      %v6990 = vpop.f32.mrf.mxu0
      %v6991 = vadd.f32 0.0, %v6990
      %v6992 = vpop.f32.mrf.mxu0
      %6993 = vdwg.mxu0
      %6994 = vmatprep.subr.bf16.mxu0 0
      %6995 = vmatpush1.bf16.msra.mxu0 0
      %6996 = vmatprep.subr.bf16.mxu0 0
      %6997 = vmatpush1.bf16.msra.mxu0 0
      %6998 = vmatprep.subr.bf16.mxu0 0
      %6999 = vmatpush1.bf16.msra.mxu0 0
      %7000 = vmatprep.subr.bf16.mxu0 0
      %7001 = vmatpush1.bf16.msra.mxu0 0
      %7002 = vmatprep.subr.bf16.mxu0 0
      %7003 = vmatpush1.bf16.msra.mxu0 0
      %7004 = vmatprep.subr.bf16.mxu0 0
      %7005 = vmatpush1.bf16.msra.mxu0 0
      %7006 = vmatprep.subr.bf16.mxu0 0
      %7007 = vmatpush1.bf16.msra.mxu0 0
      %7008 = vmatprep.subr.bf16.mxu0 0
      %7009 = vmatpush1.bf16.msra.mxu0 %v6706
      %7010 = vmatprep.subr.bf16.mxu0 0
      %7011 = vmatpush2.bf16.msra.mxu0 0
      %7012 = vmatprep.subr.bf16.mxu0 0
      %7013 = vmatpush2.bf16.msra.mxu0 0
      %7014 = vmatprep.subr.bf16.mxu0 0
      %7015 = vmatpush2.bf16.msra.mxu0 0
      %7016 = vmatprep.subr.bf16.mxu0 0
      %7017 = vmatpush2.bf16.msra.mxu0 0
      %7018 = vmatprep.subr.bf16.mxu0 0
      %7019 = vmatpush2.bf16.msra.mxu0 0
      %7020 = vmatprep.subr.bf16.mxu0 0
      %7021 = vmatpush2.bf16.msra.mxu0 0
      %7022 = vmatprep.subr.bf16.mxu0 0
      %7023 = vmatpush2.bf16.msra.mxu0 0
      %7024 = vmatprep.subr.bf16.mxu0 0
      %7025 = vmatpush2.bf16.msra.mxu0 0
      %7026 = vmatprep.mubr.bf16.mxu0 0
      %7027 = vmatmul.mubr.bf16.gmra.mxu0 %v1380
      %v7028 = vpop.f32.mrf.mxu0
      %v7029 = vadd.f32 0.0, %v7028
      %v7030 = vpop.f32.mrf.mxu0
      %v7031 = vpop.f32.mrf.mxu0
      %v7032 = vadd.f32 0.0, %v7031
      %v7033 = vpop.f32.mrf.mxu0
      %7034 = vdwg.mxu0
      %7037 = vrot.lane.b32.xlu0 %v6783, 64
      %v7038 = vpop.permute.xlu0 %7037
      %7039 = vrot.lane.b32.xlu0 %v6786, 64
      %v7040 = vpop.permute.xlu0 %7039
      %7045 = vrot.lane.b32.xlu0 %v6865, 64
      %v7046 = vpop.permute.xlu0 %7045
      %7047 = vrot.lane.b32.xlu0 %v6868, 64
      %v7048 = vpop.permute.xlu0 %7047
      %7053 = vrot.lane.b32.xlu0 %v6906, 64
      %v7054 = vpop.permute.xlu0 %7053
      %7055 = vrot.lane.b32.xlu0 %v6909, 64
      %v7056 = vpop.permute.xlu0 %7055
      %7061 = vrot.lane.b32.xlu0 %v6988, 64
      %v7062 = vpop.permute.xlu0 %7061
      %7063 = vrot.lane.b32.xlu0 %v6991, 64
      %v7064 = vpop.permute.xlu0 %7063
      %v7067 = vsel %vm1455, %v6742, %v7038
      %v7068 = vsel %vm1455, %v6745, %v7040
      %v7069 = vsel %vm1455, %v6824, %v7046
      %v7070 = vsel %vm1455, %v6827, %v7048
      %v7071 = vsel %vm1455, %v6631, %v7054
      %v7072 = vsel %vm1455, %v6632, %v7056
      %v7073 = vsel %vm1455, %v6947, %v7062
      %v7074 = vsel %vm1455, %v6950, %v7064
      %v7075 = vpack.c.bf16 %v7068, %v7067
      %v7076 = vpack.c.bf16 %v7070, %v7069
      %v7077 = vpack.c.bf16 %v7072, %v7071
      %v7078 = vpack.c.bf16 %v7074, %v7073
      %v7079 = vpack.c.bf16 %v7032, %v7029
      %v7081 = vlaneseq
      %v7082 = vshrl.u32 %v7081, 7
      %v7083 = vsub.s32 0, %v7082
      %v7084 = vrot.slane %v6705, %v7083
      %v7158 = vunpack.c.l.b16 %v6633
      %v7159 = vunpack.c.l.b16 %v6634
      %v7160 = vunpack.c.l.b16 %v6635
      %v7161 = vunpack.c.l.b16 %v6636
      %v7162 = vunpack.c.l.b16 %v6637
      %v7163 = vunpack.c.l.b16 %v6638
      %v7164 = vunpack.c.l.b16 %v6639
      %v7165 = vunpack.c.l.b16 %v6640
      %v7166 = vunpack.c.l.b16 %v6641
      %v7167 = vunpack.c.l.b16 %v6642
      %v7168 = vunpack.c.l.b16 %v6643
      %v7169 = vunpack.c.l.b16 %v6644
      %v7170 = vunpack.c.l.b16 %v6645
      %v7171 = vunpack.c.l.b16 %v6646
      %v7172 = vunpack.c.l.b16 %v6647
      %v7173 = vunpack.c.l.b16 %v6648
      %v7174 = vunpack.c.l.b16 %v6649
      %v7175 = vunpack.c.l.b16 %v6650
      %v7176 = vunpack.c.l.b16 %v6651
      %v7177 = vunpack.c.l.b16 %v6652
      %v7178 = vunpack.c.l.b16 %v6653
      %v7179 = vunpack.c.l.b16 %v6654
      %v7180 = vunpack.c.l.b16 %v6655
      %v7181 = vunpack.c.l.b16 %v6656
      %v7182 = vunpack.c.l.b16 %v6657
      %v7183 = vunpack.c.l.b16 %v6658
      %v7184 = vunpack.c.l.b16 %v6659
      %v7185 = vunpack.c.l.b16 %v6660
      %v7186 = vunpack.c.l.b16 %v6661
      %v7187 = vunpack.c.l.b16 %v6662
      %v7188 = vunpack.c.l.b16 %v6663
      %v7189 = vunpack.c.l.b16 %v6664
      %v7190 = vunpack.c.l.b16 %v6665
      %v7191 = vunpack.c.l.b16 %v6666
      %v7192 = vunpack.c.l.b16 %v6667
      %v7193 = vunpack.c.l.b16 %v6668
      %v7194 = vunpack.c.l.b16 %v6669
      %v7195 = vunpack.c.l.b16 %v6670
      %v7196 = vunpack.c.l.b16 %v6671
      %v7197 = vunpack.c.l.b16 %v6672
      %v7198 = vunpack.c.l.b16 %v6673
      %v7199 = vunpack.c.l.b16 %v6674
      %v7200 = vunpack.c.l.b16 %v6675
      %v7201 = vunpack.c.l.b16 %v6676
      %v7202 = vunpack.c.l.b16 %v6677
      %v7203 = vunpack.c.l.b16 %v6678
      %v7204 = vunpack.c.l.b16 %v6679
      %v7205 = vunpack.c.l.b16 %v6680
      %v7206 = vunpack.c.l.b16 %v6681
      %v7207 = vunpack.c.l.b16 %v6682
      %v7208 = vunpack.c.l.b16 %v6683
      %v7209 = vunpack.c.l.b16 %v6684
      %v7210 = vunpack.c.l.b16 %v6685
      %v7211 = vunpack.c.l.b16 %v6686
      %v7212 = vunpack.c.l.b16 %v6687
      %v7213 = vunpack.c.l.b16 %v6688
      %v7214 = vunpack.c.l.b16 %v6689
      %v7215 = vunpack.c.l.b16 %v6690
      %v7216 = vunpack.c.l.b16 %v6691
      %v7217 = vunpack.c.l.b16 %v6692
      %v7218 = vunpack.c.l.b16 %v6693
      %v7219 = vunpack.c.l.b16 %v6694
      %v7220 = vunpack.c.l.b16 %v6695
      %v7221 = vunpack.c.l.b16 %v6696
      %v7222 = vunpack.c.l.b16 %v6697
      %v7223 = vunpack.c.l.b16 %v6698
      %v7224 = vunpack.c.l.b16 %v6699
      %v7225 = vunpack.c.l.b16 %v6700
      %v7226 = vunpack.c.l.b16 %v6701
      %v7227 = vunpack.c.l.b16 %v6702
      %v7228 = vunpack.c.l.b16 %v6703
      %v7229 = vunpack.c.l.b16 %v6704
      %v7230 = vpack.c.b16 %v7159, %v7158
      %v7231 = vpack.c.b16 %v7161, %v7160
      %v7232 = vpack.c.b16 %v7163, %v7162
      %v7233 = vpack.c.b16 %v7165, %v7164
      %v7234 = vpack.c.b16 %v7167, %v7166
      %v7235 = vpack.c.b16 %v7169, %v7168
      %v7236 = vpack.c.b16 %v7171, %v7170
      %v7237 = vpack.c.b16 %v7173, %v7172
      %v7238 = vpack.c.b16 %v7175, %v7174
      %v7239 = vpack.c.b16 %v7177, %v7176
      %v7240 = vpack.c.b16 %v7179, %v7178
      %v7241 = vpack.c.b16 %v7181, %v7180
      %v7242 = vpack.c.b16 %v7183, %v7182
      %v7243 = vpack.c.b16 %v7185, %v7184
      %v7244 = vpack.c.b16 %v7187, %v7186
      %v7245 = vpack.c.b16 %v7189, %v7188
      %v7246 = vpack.c.b16 %v7191, %v7190
      %v7247 = vpack.c.b16 %v7193, %v7192
      %v7248 = vpack.c.b16 %v7195, %v7194
      %v7249 = vpack.c.b16 %v7197, %v7196
      %v7250 = vpack.c.b16 %v7199, %v7198
      %v7251 = vpack.c.b16 %v7201, %v7200
      %v7252 = vpack.c.b16 %v7203, %v7202
      %v7253 = vpack.c.b16 %v7205, %v7204
      %v7254 = vpack.c.b16 %v7207, %v7206
      %v7255 = vpack.c.b16 %v7209, %v7208
      %v7256 = vpack.c.b16 %v7211, %v7210
      %v7257 = vpack.c.b16 %v7213, %v7212
      %v7258 = vpack.c.b16 %v7215, %v7214
      %v7259 = vpack.c.b16 %v7217, %v7216
      %v7260 = vpack.c.b16 %v7219, %v7218
      %v7261 = vpack.c.b16 %v7221, %v7220
      %v7262 = vpack.c.b16 %v7223, %v7222
      %v7263 = vpack.c.b16 %v7225, %v7224
      %v7264 = vpack.c.b16 %v7227, %v7226
      %v7265 = vpack.c.b16 %v7229, %v7228
      %v7303 = vsel %vm1455, %v7079, 0
      %7305 = vmatprep.subr.bf16.mxu0 0
      %7306 = vmatpush1.bf16.msra.mxu0 %v7237
      %7307 = vmatprep.subr.bf16.mxu0 0
      %7308 = vmatpush1.bf16.msra.mxu0 %v7236
      %7309 = vmatprep.subr.bf16.mxu0 0
      %7310 = vmatpush1.bf16.msra.mxu0 %v7235
      %7311 = vmatprep.subr.bf16.mxu0 0
      %7312 = vmatpush1.bf16.msra.mxu0 %v7234
      %7313 = vmatprep.subr.bf16.mxu0 0
      %7314 = vmatpush1.bf16.msra.mxu0 %v7233
      %7315 = vmatprep.subr.bf16.mxu0 0
      %7316 = vmatpush1.bf16.msra.mxu0 %v7232
      %7317 = vmatprep.subr.bf16.mxu0 0
      %7318 = vmatpush1.bf16.msra.mxu0 %v7231
      %7319 = vmatprep.subr.bf16.mxu0 0
      %7320 = vmatpush1.bf16.msra.mxu0 %v7230
      %7321 = vmatprep.subr.bf16.mxu0 0
      %7322 = vmatpush2.bf16.msra.mxu0 %v7245
      %7323 = vmatprep.subr.bf16.mxu0 0
      %7324 = vmatpush2.bf16.msra.mxu0 %v7244
      %7325 = vmatprep.subr.bf16.mxu0 0
      %7326 = vmatpush2.bf16.msra.mxu0 %v7243
      %7327 = vmatprep.subr.bf16.mxu0 0
      %7328 = vmatpush2.bf16.msra.mxu0 %v7242
      %7329 = vmatprep.subr.bf16.mxu0 0
      %7330 = vmatpush2.bf16.msra.mxu0 %v7241
      %7331 = vmatprep.subr.bf16.mxu0 0
      %7332 = vmatpush2.bf16.msra.mxu0 %v7240
      %7333 = vmatprep.subr.bf16.mxu0 0
      %7334 = vmatpush2.bf16.msra.mxu0 %v7239
      %7335 = vmatprep.subr.bf16.mxu0 0
      %7336 = vmatpush2.bf16.msra.mxu0 %v7238
      %7337 = vmatprep.mubr.bf16.mxu0 %v7076
      %7338 = vmatmul.mubr.bf16.gmra.mxu0 %v7075
      %v7339 = vpop.f32.mrf.mxu0
      %v7340 = vadd.f32 %v7084, %v7339
      %v7341 = vpop.f32.mrf.mxu0
      %v7342 = vpop.f32.mrf.mxu0
      %v7343 = vadd.f32 %v7084, %v7342
      %v7344 = vpop.f32.mrf.mxu0
      %7345 = vdwg.mxu0
      %7346 = vmatprep.subr.bf16.mxu0 0
      %7347 = vmatpush1.bf16.msra.mxu0 %v7253
      %7348 = vmatprep.subr.bf16.mxu0 0
      %7349 = vmatpush1.bf16.msra.mxu0 %v7252
      %7350 = vmatprep.subr.bf16.mxu0 0
      %7351 = vmatpush1.bf16.msra.mxu0 %v7251
      %7352 = vmatprep.subr.bf16.mxu0 0
      %7353 = vmatpush1.bf16.msra.mxu0 %v7250
      %7354 = vmatprep.subr.bf16.mxu0 0
      %7355 = vmatpush1.bf16.msra.mxu0 %v7249
      %7356 = vmatprep.subr.bf16.mxu0 0
      %7357 = vmatpush1.bf16.msra.mxu0 %v7248
      %7358 = vmatprep.subr.bf16.mxu0 0
      %7359 = vmatpush1.bf16.msra.mxu0 %v7247
      %7360 = vmatprep.subr.bf16.mxu0 0
      %7361 = vmatpush1.bf16.msra.mxu0 %v7246
      %7362 = vmatprep.subr.bf16.mxu0 0
      %7363 = vmatpush2.bf16.msra.mxu0 %v7261
      %7364 = vmatprep.subr.bf16.mxu0 0
      %7365 = vmatpush2.bf16.msra.mxu0 %v7260
      %7366 = vmatprep.subr.bf16.mxu0 0
      %7367 = vmatpush2.bf16.msra.mxu0 %v7259
      %7368 = vmatprep.subr.bf16.mxu0 0
      %7369 = vmatpush2.bf16.msra.mxu0 %v7258
      %7370 = vmatprep.subr.bf16.mxu0 0
      %7371 = vmatpush2.bf16.msra.mxu0 %v7257
      %7372 = vmatprep.subr.bf16.mxu0 0
      %7373 = vmatpush2.bf16.msra.mxu0 %v7256
      %7374 = vmatprep.subr.bf16.mxu0 0
      %7375 = vmatpush2.bf16.msra.mxu0 %v7255
      %7376 = vmatprep.subr.bf16.mxu0 0
      %7377 = vmatpush2.bf16.msra.mxu0 %v7254
      %7378 = vmatprep.mubr.bf16.mxu0 %v7078
      %7379 = vmatmul.mubr.bf16.gmra.mxu0 %v7077
      %v7380 = vpop.f32.mrf.mxu0
      %v7381 = vadd.f32 %v7340, %v7380
      %v7382 = vpop.f32.mrf.mxu0
      %v7383 = vpop.f32.mrf.mxu0
      %v7384 = vadd.f32 %v7343, %v7383
      %v7385 = vpop.f32.mrf.mxu0
      %7386 = vdwg.mxu0
      %7387 = vmatprep.subr.bf16.mxu0 0
      %7388 = vmatpush1.bf16.msra.mxu0 0
      %7389 = vmatprep.subr.bf16.mxu0 0
      %7390 = vmatpush1.bf16.msra.mxu0 0
      %7391 = vmatprep.subr.bf16.mxu0 0
      %7392 = vmatpush1.bf16.msra.mxu0 0
      %7393 = vmatprep.subr.bf16.mxu0 0
      %7394 = vmatpush1.bf16.msra.mxu0 0
      %7395 = vmatprep.subr.bf16.mxu0 0
      %7396 = vmatpush1.bf16.msra.mxu0 %v7265
      %7397 = vmatprep.subr.bf16.mxu0 0
      %7398 = vmatpush1.bf16.msra.mxu0 %v7264
      %7399 = vmatprep.subr.bf16.mxu0 0
      %7400 = vmatpush1.bf16.msra.mxu0 %v7263
      %7401 = vmatprep.subr.bf16.mxu0 0
      %7402 = vmatpush1.bf16.msra.mxu0 %v7262
      %7403 = vmatprep.subr.bf16.mxu0 0
      %7404 = vmatpush2.bf16.msra.mxu0 0
      %7405 = vmatprep.subr.bf16.mxu0 0
      %7406 = vmatpush2.bf16.msra.mxu0 0
      %7407 = vmatprep.subr.bf16.mxu0 0
      %7408 = vmatpush2.bf16.msra.mxu0 0
      %7409 = vmatprep.subr.bf16.mxu0 0
      %7410 = vmatpush2.bf16.msra.mxu0 0
      %7411 = vmatprep.subr.bf16.mxu0 0
      %7412 = vmatpush2.bf16.msra.mxu0 0
      %7413 = vmatprep.subr.bf16.mxu0 0
      %7414 = vmatpush2.bf16.msra.mxu0 0
      %7415 = vmatprep.subr.bf16.mxu0 0
      %7416 = vmatpush2.bf16.msra.mxu0 0
      %7417 = vmatprep.subr.bf16.mxu0 0
      %7418 = vmatpush2.bf16.msra.mxu0 0
      %7419 = vmatprep.mubr.bf16.mxu0 0
      %7420 = vmatmul.mubr.bf16.gmra.mxu0 %v7303
      %v7421 = vpop.f32.mrf.mxu0
      %v7422 = vadd.f32 %v7381, %v7421
      %v7423 = vpop.f32.mrf.mxu0
      %v7424 = vpop.f32.mrf.mxu0
      %v7425 = vadd.f32 %v7384, %v7424
      %v7426 = vpop.f32.mrf.mxu0
      %7427 = vdwg.mxu0
      %7428 = vst [vmem:[%s744] sm:$0xff] %v7422
      %7429 = vst [vmem:[%s744 + $0x8] sm:$0xff] %v7425
      %p7430 = scmp.lt.s32.totalorder %s36, 1
      %s7431 = scalar_select %p7430, %s36, 1
      %s7432 = smul.addr %s7431, 2
      %s7433 = smul.addr %s7432, 8
      %s7434 = scalar_lea.vmem %s23, %s7433
      %p7435 = scmp.lt.s32.totalorder %s36, 1
      %s7436 = scalar_select %p7435, %s36, 1
      %s7437 = smul.addr %s7436, 2
      %s7438 = scalar_lea.vmem %s24, %s7437
      // Predicated region
      $region113: #{model_feature_forward.1} parent=111 // pred_check
        %p7439 = pneg %p542
      $region114: #{model_feature_forward.1} parent=111 // pred_check_branch
        %7441 = sbr.rel (%p7439) target = $region116
      $region115: #{model_feature_forward.1} parent=111 // pred_region
        _
      $region116: #{model_feature_forward.1} parent=111 // pred_fallthru
        _
      // Predicated region
      $region117: #{model_feature_forward.1} parent=111 // pred_check
        %p7442 = pneg %p568
      $region118: #{model_feature_forward.1} parent=111 // pred_check_branch
        %7444 = sbr.rel (%p7442) target = $region120
      $region119: #{model_feature_forward.1} parent=111 // pred_region
        _
      $region120: #{model_feature_forward.1} parent=111 // pred_fallthru
        _
    $region112: #{model_feature_forward.1} parent=5 // pred_fallthru
      _
    %p7445 = scmp.le.s32.totalorder 2, %s31
    // Predicated region
    $region121: #{model_feature_forward.1} parent=5 // pred_check
      %p7446 = pneg %p7445
    $region122: #{model_feature_forward.1} parent=5 // pred_check_branch
      %7448 = sbr.rel (%p7446) target = $region124
    $region123: #{model_feature_forward.1} parent=5 // pred_region
      %s7449 = ssub.s32 %s31, 2
      // Predicated region
      $region125: #{model_feature_forward.1} parent=123 // pred_check
        %p7450 = pneg %p548
      $region126: #{model_feature_forward.1} parent=123 // pred_check_branch
        %7452 = sbr.rel (%p7450) target = $region128
      $region127: #{model_feature_forward.1} parent=123 // pred_region
        %p7453 = scmp.lt.s32.totalorder %s37, 1
        %s7454 = scalar_select %p7453, %s37, 1
        %s7455 = smul.addr %s7454, 2
        %s7456 = smul.addr %s7455, 8
        %s7457 = scalar_lea.vmem %s23, %s7456
      $region128: #{model_feature_forward.1} parent=123 // pred_fallthru
        _
      // Predicated region
      $region129: #{model_feature_forward.1} parent=123 // pred_check
        %p7458 = pneg %p574
      $region130: #{model_feature_forward.1} parent=123 // pred_check_branch
        %7460 = sbr.rel (%p7458) target = $region132
      $region131: #{model_feature_forward.1} parent=123 // pred_region
        %p7461 = scmp.lt.s32.totalorder %s37, 1
        %s7462 = scalar_select %p7461, %s37, 1
        %s7463 = smul.addr %s7462, 2
        %s7464 = scalar_lea.vmem %s24, %s7463
      $region132: #{model_feature_forward.1} parent=123 // pred_fallthru
        _
    $region124: #{model_feature_forward.1} parent=5 // pred_fallthru
      _
  $region6: #{model_feature_forward.1} parent=0 // loop_footer
    %s35 = sadd.s32 1, %s31
  $region7: #{model_feature_forward.1} parent=0 // loop_footer_branch
    %30 = sbr.rel target = $region3
  $region8: #{model_feature_forward.1} parent=0 // loop_exit
    _

</llo_original>
